<compile_context>
chip_gen: v7x
topology: tpu7x:2x2x1
jax: 0.10.0
libtpu: 0.0.40
codegen_flags: <defaults>
</compile_context>

<pallas_src>
import functools

import jax
import jax.numpy as jnp
import numpy as np
from jax import lax
from jax.experimental import pallas as pl
from jax.experimental.pallas import tpu as pltpu

_DILATIONS = (6, 12, 18)
_PAD = max(_DILATIONS)          # one shared zero-pad covers every dilation
_VMEM_LIMIT = 32 * 1024 * 1024  # explicit scoped-VMEM budget (safe on v5e/v6e/v7x)


def _round_up(v, m):
    return ((v + m - 1) // m) * m


def _pick_tile_h(h, w, target_rows=128):
    """Largest divisor of H whose row tile (th*W) is a multiple of 8 and small."""
    best = None
    for cand in range(1, h + 1):
        rows = cand * w
        if h % cand == 0 and rows % 8 == 0 and rows <= target_rows:
            best = cand
    return best if best is not None else h


# -----------------------------------------------------------------------------
# Kernel A: fused ASPP branches + (folded) projection + GAP bias.
# Emits pre-BatchNorm z tiles and per-tile (sum, sum-of-squares) statistics.
# -----------------------------------------------------------------------------
def _aspp_branch_kernel(xpad_ref, wtaps_ref, mean_ref, w5f_ref,
                        z_ref, stats_ref, *, taps, th, w, cout_p):
    row0 = pl.program_id(1) * th                  # first output row of this tile

    # Single f32 accumulator; 28 matmuls (1x1 tap + 3 dilated branches x 9 taps),
    # projection already folded into each (Cin_p, Cout_p) tap weight.
    acc = jnp.zeros((th * w, cout_p), jnp.float32)
    for t, (r_off, c_off) in enumerate(taps):
        tap = xpad_ref[0, pl.ds(row0 + r_off, th), pl.ds(c_off, w), :]
        acc = acc + jnp.dot(tap.reshape(th * w, tap.shape[-1]), wtaps_ref[t],
                            preferred_element_type=jnp.float32)

    # Global-average-pool branch == per-image bias (upsample-from-1x1 == bcast).
    bias = jnp.dot(mean_ref[0], w5f_ref[...], preferred_element_type=jnp.float32)
    z = acc + bias                                # (th*w, cout_p) f32

    z_ref[...] = z
    s = jnp.sum(z, axis=0, keepdims=True)
    ss = jnp.sum(z * z, axis=0, keepdims=True)
    stats_ref[...] = jnp.concatenate([s, ss], axis=0).reshape(1, 2, cout_p)


# -----------------------------------------------------------------------------
# Kernel B: BatchNorm (precomputed global scale/shift) + ReLU, elementwise.
# -----------------------------------------------------------------------------
def _bn_relu_kernel(z_ref, scale_ref, shift_ref, o_ref):
    o_ref[...] = jnp.maximum(z_ref[...] * scale_ref[...] + shift_ref[...], 0.0)


def aspp_forward(x_nchw, params):
    n, c_in, h, w = x_nchw.shape
    c_out = params["w1"].shape[0]
    m = n * h * w

    cin_p = _round_up(c_in, 128)                  # lane-dense input channels
    cout_p = _round_up(c_out, 128)                # lane-dense output channels

    # ---- layout plumbing: NCHW -> NHWC, one shared zero-pad, channel pad ----
    x_nhwc = jnp.transpose(x_nchw, (0, 2, 3, 1)).astype(jnp.float32)
    x_pad = jnp.pad(x_nhwc,
                    ((0, 0), (_PAD, _PAD), (_PAD, _PAD), (0, cin_p - c_in)))
    x_pad = x_pad.astype(jnp.bfloat16)            # (N, Hp, Wp, cin_p)
    hp, wp = h + 2 * _PAD, w + 2 * _PAD

    # Per-image spatial mean for the global-average-pool branch.
    means = jnp.mean(x_nhwc, axis=(1, 2))                         # (N, Cin) f32
    means = jnp.pad(means, ((0, 0), (0, cin_p - c_in)))
    means = means.astype(jnp.bfloat16).reshape(n, 1, cin_p)

    # ---- fold the projection 1x1 conv into every branch weight ----
    wp_mat = params["wp"][:, :, 0, 0].T.astype(jnp.float32)       # (5*Cout, Cout)
    wp_k = [wp_mat[k * c_out:(k + 1) * c_out, :] for k in range(5)]

    tap_ws = [params["w1"][:, :, 0, 0].T @ wp_k[0]]               # 1x1 branch
    tap_offs = [(_PAD, _PAD)]
    for b_idx, d in enumerate(_DILATIONS):                        # dilated branches
        w3 = params["w%d" % (b_idx + 2)]                          # (Cout, Cin, 3, 3)
        for kh in range(3):
            for kw in range(3):
                tap_ws.append(w3[:, :, kh, kw].T @ wp_k[b_idx + 1])
                tap_offs.append((_PAD + (kh - 1) * d, _PAD + (kw - 1) * d))
    w_taps = jnp.stack(tap_ws, axis=0)                            # (28, Cin, Cout)
    w_taps = jnp.pad(w_taps,
                     ((0, 0), (0, cin_p - c_in), (0, cout_p - c_out)))
    w_taps = w_taps.astype(jnp.bfloat16)

    w5f = params["w5"][:, :, 0, 0].T @ wp_k[4]                    # GAP branch, folded
    w5f = jnp.pad(w5f, ((0, cin_p - c_in), (0, cout_p - c_out))).astype(jnp.bfloat16)

    # ---- tiling: grid over (image, row tile); z rows are (n, h, w)-major ----
    th = _pick_tile_h(h, w)
    n_h = h // th
    rows = th * w
    n_tiles = n * n_h

    kernel_a = functools.partial(_aspp_branch_kernel,
                                 taps=tuple(tap_offs), th=th, w=w, cout_p=cout_p)
    z, stats = pl.pallas_call(
        kernel_a,
        out_shape=(jax.ShapeDtypeStruct((m, cout_p), jnp.float32),
                   jax.ShapeDtypeStruct((n_tiles, 2, cout_p), jnp.float32)),
        grid=(n, n_h),
        in_specs=[
            pl.BlockSpec((1, hp, wp, cin_p), lambda b, i: (b, 0, 0, 0)),
            pl.BlockSpec((28, cin_p, cout_p), lambda b, i: (0, 0, 0)),
            pl.BlockSpec((1, 1, cin_p), lambda b, i: (b, 0, 0)),
            pl.BlockSpec((cin_p, cout_p), lambda b, i: (0, 0)),
        ],
        out_specs=(
            pl.BlockSpec((rows, cout_p), lambda b, i: (b * n_h + i, 0)),
            pl.BlockSpec((1, 2, cout_p), lambda b, i: (b * n_h + i, 0, 0)),
        ),
        compiler_params=pltpu.CompilerParams(
            dimension_semantics=("parallel", "parallel"),
            vmem_limit_bytes=_VMEM_LIMIT),
    )(x_pad, w_taps, means, w5f)

    # ---- finish BatchNorm: reduce per-tile partial stats to global stats ----
    tot = jnp.sum(stats, axis=0)                                  # (2, cout_p)
    mean = tot[0] / m
    var = jnp.maximum(tot[1] / m - mean * mean, 0.0)              # biased batch var
    inv = lax.rsqrt(var + 1e-5)
    gamma = jnp.pad(params["gamma"], (0, cout_p - c_out))
    beta = jnp.pad(params["beta"], (0, cout_p - c_out))
    scale = (gamma * inv).reshape(1, cout_p).astype(jnp.float32)
    shift = (beta - mean * gamma * inv).reshape(1, cout_p).astype(jnp.float32)

    out_p = pl.pallas_call(
        _bn_relu_kernel,
        out_shape=jax.ShapeDtypeStruct((m, cout_p), jnp.float32),
        grid=(n_tiles,),
        in_specs=[pl.BlockSpec((rows, cout_p), lambda i: (i, 0)),
                  pl.BlockSpec((1, cout_p), lambda i: (0, 0)),
                  pl.BlockSpec((1, cout_p), lambda i: (0, 0))],
        out_specs=pl.BlockSpec((rows, cout_p), lambda i: (i, 0)),
        compiler_params=pltpu.CompilerParams(
            dimension_semantics=("parallel",),
            vmem_limit_bytes=_VMEM_LIMIT),
    )(z, scale, shift)

    out = out_p[:, :c_out].reshape(n, h, w, c_out)
    return jnp.transpose(out, (0, 3, 1, 2))


def aspp_reference(x, params):
    """Pure-JAX reference with lax convolutions (NCHW / OIHW)."""
    dn = ("NCHW", "OIHW", "NCHW")

    def conv(inp, wt, pad, dil):
        return lax.conv_general_dilated(inp, wt, (1, 1), [(pad, pad), (pad, pad)],
                                        rhs_dilation=(dil, dil),
                                        dimension_numbers=dn)

    x1 = conv(x, params["w1"], 0, 1)
    x2 = conv(x, params["w2"], 6, 6)
    x3 = conv(x, params["w3"], 12, 12)
    x4 = conv(x, params["w4"], 18, 18)
    gap = jnp.mean(x, axis=(2, 3), keepdims=True)
    x5 = conv(gap, params["w5"], 0, 1)
    x5 = jnp.broadcast_to(x5, x1.shape)  # bilinear upsample of 1x1, align_corners=True
    cat = jnp.concatenate([x1, x2, x3, x4, x5], axis=1)
    z = conv(cat, params["wp"], 0, 1)
    mu = jnp.mean(z, axis=(0, 2, 3), keepdims=True)
    var = jnp.mean((z - mu) ** 2, axis=(0, 2, 3), keepdims=True)
    zn = (z - mu) / jnp.sqrt(var + 1e-5)
    out = zn * params["gamma"].reshape(1, -1, 1, 1) + params["beta"].reshape(1, -1, 1, 1)
    return jnp.maximum(out, 0.0)


if __name__ == "__main__":
    N, C_IN, H, W = 2, 4, 16, 16
    C_OUT = 8

    key = jax.random.PRNGKey(0)
    keys = jax.random.split(key, 8)
    params = {
        "w1": 0.1 * jax.random.normal(keys[0], (C_OUT, C_IN, 1, 1), jnp.float32),
        "w2": 0.1 * jax.random.normal(keys[1], (C_OUT, C_IN, 3, 3), jnp.float32),
        "w3": 0.1 * jax.random.normal(keys[2], (C_OUT, C_IN, 3, 3), jnp.float32),
        "w4": 0.1 * jax.random.normal(keys[3], (C_OUT, C_IN, 3, 3), jnp.float32),
        "w5": 0.1 * jax.random.normal(keys[4], (C_OUT, C_IN, 1, 1), jnp.float32),
        "wp": 0.1 * jax.random.normal(keys[5], (C_OUT, 5 * C_OUT, 1, 1), jnp.float32),
        "gamma": jnp.ones((C_OUT,), jnp.float32),   # BatchNorm default init
        "beta": jnp.zeros((C_OUT,), jnp.float32),
    }
    x = jax.random.normal(keys[6], (N, C_IN, H, W), jnp.float32)

    out = aspp_forward(x, params)
    out = jax.block_until_ready(out)

    ref = aspp_reference(x, params)
    # bf16 matmul operands (f32 accumulation / f32 BatchNorm stats) => relaxed tol.
    np.testing.assert_allclose(np.asarray(out), np.asarray(ref), atol=3e-2, rtol=3e-2)

    print("KERNEL_OK")
</pallas_src>

<mosaic_0001>
module attributes {stable_mosaic.version = 11 : i64} {
  func.func @_aspp_branch_kernel(%arg0: i32, %arg1: i32, %arg2: memref<1x52x52x128xbf16, #tpu.memory_space<vmem>>, %arg3: memref<28x128x128xbf16, #tpu.memory_space<vmem>>, %arg4: memref<1x1x128xbf16, #tpu.memory_space<vmem>>, %arg5: memref<128x128xbf16, #tpu.memory_space<vmem>>, %arg6: memref<128x128xf32, #tpu.memory_space<vmem>>, %arg7: memref<1x2x128xf32, #tpu.memory_space<vmem>>) attributes {dimension_semantics = [#tpu.dimension_semantics<parallel>, #tpu.dimension_semantics<parallel>], iteration_bounds = array<i64: 2, 2>, scalar_prefetch = 0 : i64, scratch_operands = 0 : i64, tpu.core_type = #tpu.core_type<tc>, window_params = [{transform_indices = @transform_0, window_bounds = array<i64: 1, 52, 52, 128>}, {pipeline_mode = #tpu.pipeline_mode<synchronous>, transform_indices = @transform_1, window_bounds = array<i64: 28, 128, 128>}, {transform_indices = @transform_2, window_bounds = array<i64: 1, 1, 128>}, {pipeline_mode = #tpu.pipeline_mode<synchronous>, transform_indices = @transform_3, window_bounds = array<i64: 128, 128>}, {transform_indices = @transform_4, window_bounds = array<i64: 128, 128>}, {transform_indices = @transform_5, window_bounds = array<i64: 1, 2, 128>}]} {
    %c8_i32 = arith.constant 8 : i32
    %0 = arith.muli %arg1, %c8_i32 : i32
    %cst = arith.constant 0.000000e+00 : f32
    %1 = vector.broadcast %cst : f32 to vector<128x128xf32>
    %c18_i32 = arith.constant 18 : i32
    %2 = arith.addi %0, %c18_i32 : i32
    %c0 = arith.constant 0 : index
    %3 = arith.index_cast %2 : i32 to index
    %c18 = arith.constant 18 : index
    %c0_0 = arith.constant 0 : index
    %4 = vector.load %arg2[%c0, %3, %c18, %c0_0] : memref<1x52x52x128xbf16, #tpu.memory_space<vmem>>, vector<1x8x16x128xbf16>
    %5 = vector.shape_cast %4 : vector<1x8x16x128xbf16> to vector<8x16x128xbf16>
    %6 = vector.shape_cast %5 : vector<8x16x128xbf16> to vector<128x128xbf16>
    %c0_1 = arith.constant 0 : index
    %c0_2 = arith.constant 0 : index
    %c0_3 = arith.constant 0 : index
    %7 = vector.load %arg3[%c0_1, %c0_2, %c0_3] : memref<28x128x128xbf16, #tpu.memory_space<vmem>>, vector<1x128x128xbf16>
    %8 = vector.shape_cast %7 : vector<1x128x128xbf16> to vector<128x128xbf16>
    %cst_4 = arith.constant dense<0.000000e+00> : vector<128x128xf32>
    %9 = tpu.matmul %6, %8, %cst_4 {dimension_numbers = #tpu.dot_dimension_numbers<[1], [0], [0], [1], [0, 0, 1, 1], [], []>} : vector<128x128xbf16>, vector<128x128xbf16>, vector<128x128xf32> -> vector<128x128xf32>
    %10 = arith.addf %1, %9 : vector<128x128xf32>
    %c12_i32 = arith.constant 12 : i32
    %11 = arith.addi %0, %c12_i32 : i32
    %c0_5 = arith.constant 0 : index
    %12 = arith.index_cast %11 : i32 to index
    %c12 = arith.constant 12 : index
    %c0_6 = arith.constant 0 : index
    %13 = vector.load %arg2[%c0_5, %12, %c12, %c0_6] : memref<1x52x52x128xbf16, #tpu.memory_space<vmem>>, vector<1x8x16x128xbf16>
    %14 = vector.shape_cast %13 : vector<1x8x16x128xbf16> to vector<8x16x128xbf16>
    %15 = vector.shape_cast %14 : vector<8x16x128xbf16> to vector<128x128xbf16>
    %c1 = arith.constant 1 : index
    %c0_7 = arith.constant 0 : index
    %c0_8 = arith.constant 0 : index
    %16 = vector.load %arg3[%c1, %c0_7, %c0_8] : memref<28x128x128xbf16, #tpu.memory_space<vmem>>, vector<1x128x128xbf16>
    %17 = vector.shape_cast %16 : vector<1x128x128xbf16> to vector<128x128xbf16>
    %cst_9 = arith.constant dense<0.000000e+00> : vector<128x128xf32>
    %18 = tpu.matmul %15, %17, %cst_9 {dimension_numbers = #tpu.dot_dimension_numbers<[1], [0], [0], [1], [0, 0, 1, 1], [], []>} : vector<128x128xbf16>, vector<128x128xbf16>, vector<128x128xf32> -> vector<128x128xf32>
    %19 = arith.addf %10, %18 : vector<128x128xf32>
    %c12_i32_10 = arith.constant 12 : i32
    %20 = arith.addi %0, %c12_i32_10 : i32
    %c0_11 = arith.constant 0 : index
    %21 = arith.index_cast %20 : i32 to index
    %c18_12 = arith.constant 18 : index
    %c0_13 = arith.constant 0 : index
    %22 = vector.load %arg2[%c0_11, %21, %c18_12, %c0_13] : memref<1x52x52x128xbf16, #tpu.memory_space<vmem>>, vector<1x8x16x128xbf16>
    %23 = vector.shape_cast %22 : vector<1x8x16x128xbf16> to vector<8x16x128xbf16>
    %24 = vector.shape_cast %23 : vector<8x16x128xbf16> to vector<128x128xbf16>
    %c2 = arith.constant 2 : index
    %c0_14 = arith.constant 0 : index
    %c0_15 = arith.constant 0 : index
    %25 = vector.load %arg3[%c2, %c0_14, %c0_15] : memref<28x128x128xbf16, #tpu.memory_space<vmem>>, vector<1x128x128xbf16>
    %26 = vector.shape_cast %25 : vector<1x128x128xbf16> to vector<128x128xbf16>
    %cst_16 = arith.constant dense<0.000000e+00> : vector<128x128xf32>
    %27 = tpu.matmul %24, %26, %cst_16 {dimension_numbers = #tpu.dot_dimension_numbers<[1], [0], [0], [1], [0, 0, 1, 1], [], []>} : vector<128x128xbf16>, vector<128x128xbf16>, vector<128x128xf32> -> vector<128x128xf32>
    %28 = arith.addf %19, %27 : vector<128x128xf32>
    %c12_i32_17 = arith.constant 12 : i32
    %29 = arith.addi %0, %c12_i32_17 : i32
    %c0_18 = arith.constant 0 : index
    %30 = arith.index_cast %29 : i32 to index
    %c24 = arith.constant 24 : index
    %c0_19 = arith.constant 0 : index
    %31 = vector.load %arg2[%c0_18, %30, %c24, %c0_19] : memref<1x52x52x128xbf16, #tpu.memory_space<vmem>>, vector<1x8x16x128xbf16>
    %32 = vector.shape_cast %31 : vector<1x8x16x128xbf16> to vector<8x16x128xbf16>
    %33 = vector.shape_cast %32 : vector<8x16x128xbf16> to vector<128x128xbf16>
    %c3 = arith.constant 3 : index
    %c0_20 = arith.constant 0 : index
    %c0_21 = arith.constant 0 : index
    %34 = vector.load %arg3[%c3, %c0_20, %c0_21] : memref<28x128x128xbf16, #tpu.memory_space<vmem>>, vector<1x128x128xbf16>
    %35 = vector.shape_cast %34 : vector<1x128x128xbf16> to vector<128x128xbf16>
    %cst_22 = arith.constant dense<0.000000e+00> : vector<128x128xf32>
    %36 = tpu.matmul %33, %35, %cst_22 {dimension_numbers = #tpu.dot_dimension_numbers<[1], [0], [0], [1], [0, 0, 1, 1], [], []>} : vector<128x128xbf16>, vector<128x128xbf16>, vector<128x128xf32> -> vector<128x128xf32>
    %37 = arith.addf %28, %36 : vector<128x128xf32>
    %c18_i32_23 = arith.constant 18 : i32
    %38 = arith.addi %0, %c18_i32_23 : i32
    %c0_24 = arith.constant 0 : index
    %39 = arith.index_cast %38 : i32 to index
    %c12_25 = arith.constant 12 : index
    %c0_26 = arith.constant 0 : index
    %40 = vector.load %arg2[%c0_24, %39, %c12_25, %c0_26] : memref<1x52x52x128xbf16, #tpu.memory_space<vmem>>, vector<1x8x16x128xbf16>
    %41 = vector.shape_cast %40 : vector<1x8x16x128xbf16> to vector<8x16x128xbf16>
    %42 = vector.shape_cast %41 : vector<8x16x128xbf16> to vector<128x128xbf16>
    %c4 = arith.constant 4 : index
    %c0_27 = arith.constant 0 : index
    %c0_28 = arith.constant 0 : index
    %43 = vector.load %arg3[%c4, %c0_27, %c0_28] : memref<28x128x128xbf16, #tpu.memory_space<vmem>>, vector<1x128x128xbf16>
    %44 = vector.shape_cast %43 : vector<1x128x128xbf16> to vector<128x128xbf16>
    %cst_29 = arith.constant dense<0.000000e+00> : vector<128x128xf32>
    %45 = tpu.matmul %42, %44, %cst_29 {dimension_numbers = #tpu.dot_dimension_numbers<[1], [0], [0], [1], [0, 0, 1, 1], [], []>} : vector<128x128xbf16>, vector<128x128xbf16>, vector<128x128xf32> -> vector<128x128xf32>
    %46 = arith.addf %37, %45 : vector<128x128xf32>
    %c18_i32_30 = arith.constant 18 : i32
    %47 = arith.addi %0, %c18_i32_30 : i32
    %c0_31 = arith.constant 0 : index
    %48 = arith.index_cast %47 : i32 to index
    %c18_32 = arith.constant 18 : index
    %c0_33 = arith.constant 0 : index
    %49 = vector.load %arg2[%c0_31, %48, %c18_32, %c0_33] : memref<1x52x52x128xbf16, #tpu.memory_space<vmem>>, vector<1x8x16x128xbf16>
    %50 = vector.shape_cast %49 : vector<1x8x16x128xbf16> to vector<8x16x128xbf16>
    %51 = vector.shape_cast %50 : vector<8x16x128xbf16> to vector<128x128xbf16>
    %c5 = arith.constant 5 : index
    %c0_34 = arith.constant 0 : index
    %c0_35 = arith.constant 0 : index
    %52 = vector.load %arg3[%c5, %c0_34, %c0_35] : memref<28x128x128xbf16, #tpu.memory_space<vmem>>, vector<1x128x128xbf16>
    %53 = vector.shape_cast %52 : vector<1x128x128xbf16> to vector<128x128xbf16>
    %cst_36 = arith.constant dense<0.000000e+00> : vector<128x128xf32>
    %54 = tpu.matmul %51, %53, %cst_36 {dimension_numbers = #tpu.dot_dimension_numbers<[1], [0], [0], [1], [0, 0, 1, 1], [], []>} : vector<128x128xbf16>, vector<128x128xbf16>, vector<128x128xf32> -> vector<128x128xf32>
    %55 = arith.addf %46, %54 : vector<128x128xf32>
    %c18_i32_37 = arith.constant 18 : i32
    %56 = arith.addi %0, %c18_i32_37 : i32
    %c0_38 = arith.constant 0 : index
    %57 = arith.index_cast %56 : i32 to index
    %c24_39 = arith.constant 24 : index
    %c0_40 = arith.constant 0 : index
    %58 = vector.load %arg2[%c0_38, %57, %c24_39, %c0_40] : memref<1x52x52x128xbf16, #tpu.memory_space<vmem>>, vector<1x8x16x128xbf16>
    %59 = vector.shape_cast %58 : vector<1x8x16x128xbf16> to vector<8x16x128xbf16>
    %60 = vector.shape_cast %59 : vector<8x16x128xbf16> to vector<128x128xbf16>
    %c6 = arith.constant 6 : index
    %c0_41 = arith.constant 0 : index
    %c0_42 = arith.constant 0 : index
    %61 = vector.load %arg3[%c6, %c0_41, %c0_42] : memref<28x128x128xbf16, #tpu.memory_space<vmem>>, vector<1x128x128xbf16>
    %62 = vector.shape_cast %61 : vector<1x128x128xbf16> to vector<128x128xbf16>
    %cst_43 = arith.constant dense<0.000000e+00> : vector<128x128xf32>
    %63 = tpu.matmul %60, %62, %cst_43 {dimension_numbers = #tpu.dot_dimension_numbers<[1], [0], [0], [1], [0, 0, 1, 1], [], []>} : vector<128x128xbf16>, vector<128x128xbf16>, vector<128x128xf32> -> vector<128x128xf32>
    %64 = arith.addf %55, %63 : vector<128x128xf32>
    %c24_i32 = arith.constant 24 : i32
    %65 = arith.addi %0, %c24_i32 : i32
    %c0_44 = arith.constant 0 : index
    %66 = arith.index_cast %65 : i32 to index
    %c12_45 = arith.constant 12 : index
    %c0_46 = arith.constant 0 : index
    %67 = vector.load %arg2[%c0_44, %66, %c12_45, %c0_46] : memref<1x52x52x128xbf16, #tpu.memory_space<vmem>>, vector<1x8x16x128xbf16>
    %68 = vector.shape_cast %67 : vector<1x8x16x128xbf16> to vector<8x16x128xbf16>
    %69 = vector.shape_cast %68 : vector<8x16x128xbf16> to vector<128x128xbf16>
    %c7 = arith.constant 7 : index
    %c0_47 = arith.constant 0 : index
    %c0_48 = arith.constant 0 : index
    %70 = vector.load %arg3[%c7, %c0_47, %c0_48] : memref<28x128x128xbf16, #tpu.memory_space<vmem>>, vector<1x128x128xbf16>
    %71 = vector.shape_cast %70 : vector<1x128x128xbf16> to vector<128x128xbf16>
    %cst_49 = arith.constant dense<0.000000e+00> : vector<128x128xf32>
    %72 = tpu.matmul %69, %71, %cst_49 {dimension_numbers = #tpu.dot_dimension_numbers<[1], [0], [0], [1], [0, 0, 1, 1], [], []>} : vector<128x128xbf16>, vector<128x128xbf16>, vector<128x128xf32> -> vector<128x128xf32>
    %73 = arith.addf %64, %72 : vector<128x128xf32>
    %c24_i32_50 = arith.constant 24 : i32
    %74 = arith.addi %0, %c24_i32_50 : i32
    %c0_51 = arith.constant 0 : index
    %75 = arith.index_cast %74 : i32 to index
    %c18_52 = arith.constant 18 : index
    %c0_53 = arith.constant 0 : index
    %76 = vector.load %arg2[%c0_51, %75, %c18_52, %c0_53] : memref<1x52x52x128xbf16, #tpu.memory_space<vmem>>, vector<1x8x16x128xbf16>
    %77 = vector.shape_cast %76 : vector<1x8x16x128xbf16> to vector<8x16x128xbf16>
    %78 = vector.shape_cast %77 : vector<8x16x128xbf16> to vector<128x128xbf16>
    %c8 = arith.constant 8 : index
    %c0_54 = arith.constant 0 : index
    %c0_55 = arith.constant 0 : index
    %79 = vector.load %arg3[%c8, %c0_54, %c0_55] : memref<28x128x128xbf16, #tpu.memory_space<vmem>>, vector<1x128x128xbf16>
    %80 = vector.shape_cast %79 : vector<1x128x128xbf16> to vector<128x128xbf16>
    %cst_56 = arith.constant dense<0.000000e+00> : vector<128x128xf32>
    %81 = tpu.matmul %78, %80, %cst_56 {dimension_numbers = #tpu.dot_dimension_numbers<[1], [0], [0], [1], [0, 0, 1, 1], [], []>} : vector<128x128xbf16>, vector<128x128xbf16>, vector<128x128xf32> -> vector<128x128xf32>
    %82 = arith.addf %73, %81 : vector<128x128xf32>
    %c24_i32_57 = arith.constant 24 : i32
    %83 = arith.addi %0, %c24_i32_57 : i32
    %c0_58 = arith.constant 0 : index
    %84 = arith.index_cast %83 : i32 to index
    %c24_59 = arith.constant 24 : index
    %c0_60 = arith.constant 0 : index
    %85 = vector.load %arg2[%c0_58, %84, %c24_59, %c0_60] : memref<1x52x52x128xbf16, #tpu.memory_space<vmem>>, vector<1x8x16x128xbf16>
    %86 = vector.shape_cast %85 : vector<1x8x16x128xbf16> to vector<8x16x128xbf16>
    %87 = vector.shape_cast %86 : vector<8x16x128xbf16> to vector<128x128xbf16>
    %c9 = arith.constant 9 : index
    %c0_61 = arith.constant 0 : index
    %c0_62 = arith.constant 0 : index
    %88 = vector.load %arg3[%c9, %c0_61, %c0_62] : memref<28x128x128xbf16, #tpu.memory_space<vmem>>, vector<1x128x128xbf16>
    %89 = vector.shape_cast %88 : vector<1x128x128xbf16> to vector<128x128xbf16>
    %cst_63 = arith.constant dense<0.000000e+00> : vector<128x128xf32>
    %90 = tpu.matmul %87, %89, %cst_63 {dimension_numbers = #tpu.dot_dimension_numbers<[1], [0], [0], [1], [0, 0, 1, 1], [], []>} : vector<128x128xbf16>, vector<128x128xbf16>, vector<128x128xf32> -> vector<128x128xf32>
    %91 = arith.addf %82, %90 : vector<128x128xf32>
    %c6_i32 = arith.constant 6 : i32
    %92 = arith.addi %0, %c6_i32 : i32
    %c0_64 = arith.constant 0 : index
    %93 = arith.index_cast %92 : i32 to index
    %c6_65 = arith.constant 6 : index
    %c0_66 = arith.constant 0 : index
    %94 = vector.load %arg2[%c0_64, %93, %c6_65, %c0_66] : memref<1x52x52x128xbf16, #tpu.memory_space<vmem>>, vector<1x8x16x128xbf16>
    %95 = vector.shape_cast %94 : vector<1x8x16x128xbf16> to vector<8x16x128xbf16>
    %96 = vector.shape_cast %95 : vector<8x16x128xbf16> to vector<128x128xbf16>
    %c10 = arith.constant 10 : index
    %c0_67 = arith.constant 0 : index
    %c0_68 = arith.constant 0 : index
    %97 = vector.load %arg3[%c10, %c0_67, %c0_68] : memref<28x128x128xbf16, #tpu.memory_space<vmem>>, vector<1x128x128xbf16>
    %98 = vector.shape_cast %97 : vector<1x128x128xbf16> to vector<128x128xbf16>
    %cst_69 = arith.constant dense<0.000000e+00> : vector<128x128xf32>
    %99 = tpu.matmul %96, %98, %cst_69 {dimension_numbers = #tpu.dot_dimension_numbers<[1], [0], [0], [1], [0, 0, 1, 1], [], []>} : vector<128x128xbf16>, vector<128x128xbf16>, vector<128x128xf32> -> vector<128x128xf32>
    %100 = arith.addf %91, %99 : vector<128x128xf32>
    %c6_i32_70 = arith.constant 6 : i32
    %101 = arith.addi %0, %c6_i32_70 : i32
    %c0_71 = arith.constant 0 : index
    %102 = arith.index_cast %101 : i32 to index
    %c18_72 = arith.constant 18 : index
    %c0_73 = arith.constant 0 : index
    %103 = vector.load %arg2[%c0_71, %102, %c18_72, %c0_73] : memref<1x52x52x128xbf16, #tpu.memory_space<vmem>>, vector<1x8x16x128xbf16>
    %104 = vector.shape_cast %103 : vector<1x8x16x128xbf16> to vector<8x16x128xbf16>
    %105 = vector.shape_cast %104 : vector<8x16x128xbf16> to vector<128x128xbf16>
    %c11 = arith.constant 11 : index
    %c0_74 = arith.constant 0 : index
    %c0_75 = arith.constant 0 : index
    %106 = vector.load %arg3[%c11, %c0_74, %c0_75] : memref<28x128x128xbf16, #tpu.memory_space<vmem>>, vector<1x128x128xbf16>
    %107 = vector.shape_cast %106 : vector<1x128x128xbf16> to vector<128x128xbf16>
    %cst_76 = arith.constant dense<0.000000e+00> : vector<128x128xf32>
    %108 = tpu.matmul %105, %107, %cst_76 {dimension_numbers = #tpu.dot_dimension_numbers<[1], [0], [0], [1], [0, 0, 1, 1], [], []>} : vector<128x128xbf16>, vector<128x128xbf16>, vector<128x128xf32> -> vector<128x128xf32>
    %109 = arith.addf %100, %108 : vector<128x128xf32>
    %c6_i32_77 = arith.constant 6 : i32
    %110 = arith.addi %0, %c6_i32_77 : i32
    %c0_78 = arith.constant 0 : index
    %111 = arith.index_cast %110 : i32 to index
    %c30 = arith.constant 30 : index
    %c0_79 = arith.constant 0 : index
    %112 = vector.load %arg2[%c0_78, %111, %c30, %c0_79] : memref<1x52x52x128xbf16, #tpu.memory_space<vmem>>, vector<1x8x16x128xbf16>
    %113 = vector.shape_cast %112 : vector<1x8x16x128xbf16> to vector<8x16x128xbf16>
    %114 = vector.shape_cast %113 : vector<8x16x128xbf16> to vector<128x128xbf16>
    %c12_80 = arith.constant 12 : index
    %c0_81 = arith.constant 0 : index
    %c0_82 = arith.constant 0 : index
    %115 = vector.load %arg3[%c12_80, %c0_81, %c0_82] : memref<28x128x128xbf16, #tpu.memory_space<vmem>>, vector<1x128x128xbf16>
    %116 = vector.shape_cast %115 : vector<1x128x128xbf16> to vector<128x128xbf16>
    %cst_83 = arith.constant dense<0.000000e+00> : vector<128x128xf32>
    %117 = tpu.matmul %114, %116, %cst_83 {dimension_numbers = #tpu.dot_dimension_numbers<[1], [0], [0], [1], [0, 0, 1, 1], [], []>} : vector<128x128xbf16>, vector<128x128xbf16>, vector<128x128xf32> -> vector<128x128xf32>
    %118 = arith.addf %109, %117 : vector<128x128xf32>
    %c18_i32_84 = arith.constant 18 : i32
    %119 = arith.addi %0, %c18_i32_84 : i32
    %c0_85 = arith.constant 0 : index
    %120 = arith.index_cast %119 : i32 to index
    %c6_86 = arith.constant 6 : index
    %c0_87 = arith.constant 0 : index
    %121 = vector.load %arg2[%c0_85, %120, %c6_86, %c0_87] : memref<1x52x52x128xbf16, #tpu.memory_space<vmem>>, vector<1x8x16x128xbf16>
    %122 = vector.shape_cast %121 : vector<1x8x16x128xbf16> to vector<8x16x128xbf16>
    %123 = vector.shape_cast %122 : vector<8x16x128xbf16> to vector<128x128xbf16>
    %c13 = arith.constant 13 : index
    %c0_88 = arith.constant 0 : index
    %c0_89 = arith.constant 0 : index
    %124 = vector.load %arg3[%c13, %c0_88, %c0_89] : memref<28x128x128xbf16, #tpu.memory_space<vmem>>, vector<1x128x128xbf16>
    %125 = vector.shape_cast %124 : vector<1x128x128xbf16> to vector<128x128xbf16>
    %cst_90 = arith.constant dense<0.000000e+00> : vector<128x128xf32>
    %126 = tpu.matmul %123, %125, %cst_90 {dimension_numbers = #tpu.dot_dimension_numbers<[1], [0], [0], [1], [0, 0, 1, 1], [], []>} : vector<128x128xbf16>, vector<128x128xbf16>, vector<128x128xf32> -> vector<128x128xf32>
    %127 = arith.addf %118, %126 : vector<128x128xf32>
    %c18_i32_91 = arith.constant 18 : i32
    %128 = arith.addi %0, %c18_i32_91 : i32
    %c0_92 = arith.constant 0 : index
    %129 = arith.index_cast %128 : i32 to index
    %c18_93 = arith.constant 18 : index
    %c0_94 = arith.constant 0 : index
    %130 = vector.load %arg2[%c0_92, %129, %c18_93, %c0_94] : memref<1x52x52x128xbf16, #tpu.memory_space<vmem>>, vector<1x8x16x128xbf16>
    %131 = vector.shape_cast %130 : vector<1x8x16x128xbf16> to vector<8x16x128xbf16>
    %132 = vector.shape_cast %131 : vector<8x16x128xbf16> to vector<128x128xbf16>
    %c14 = arith.constant 14 : index
    %c0_95 = arith.constant 0 : index
    %c0_96 = arith.constant 0 : index
    %133 = vector.load %arg3[%c14, %c0_95, %c0_96] : memref<28x128x128xbf16, #tpu.memory_space<vmem>>, vector<1x128x128xbf16>
    %134 = vector.shape_cast %133 : vector<1x128x128xbf16> to vector<128x128xbf16>
    %cst_97 = arith.constant dense<0.000000e+00> : vector<128x128xf32>
    %135 = tpu.matmul %132, %134, %cst_97 {dimension_numbers = #tpu.dot_dimension_numbers<[1], [0], [0], [1], [0, 0, 1, 1], [], []>} : vector<128x128xbf16>, vector<128x128xbf16>, vector<128x128xf32> -> vector<128x128xf32>
    %136 = arith.addf %127, %135 : vector<128x128xf32>
    %c18_i32_98 = arith.constant 18 : i32
    %137 = arith.addi %0, %c18_i32_98 : i32
    %c0_99 = arith.constant 0 : index
    %138 = arith.index_cast %137 : i32 to index
    %c30_100 = arith.constant 30 : index
    %c0_101 = arith.constant 0 : index
    %139 = vector.load %arg2[%c0_99, %138, %c30_100, %c0_101] : memref<1x52x52x128xbf16, #tpu.memory_space<vmem>>, vector<1x8x16x128xbf16>
    %140 = vector.shape_cast %139 : vector<1x8x16x128xbf16> to vector<8x16x128xbf16>
    %141 = vector.shape_cast %140 : vector<8x16x128xbf16> to vector<128x128xbf16>
    %c15 = arith.constant 15 : index
    %c0_102 = arith.constant 0 : index
    %c0_103 = arith.constant 0 : index
    %142 = vector.load %arg3[%c15, %c0_102, %c0_103] : memref<28x128x128xbf16, #tpu.memory_space<vmem>>, vector<1x128x128xbf16>
    %143 = vector.shape_cast %142 : vector<1x128x128xbf16> to vector<128x128xbf16>
    %cst_104 = arith.constant dense<0.000000e+00> : vector<128x128xf32>
    %144 = tpu.matmul %141, %143, %cst_104 {dimension_numbers = #tpu.dot_dimension_numbers<[1], [0], [0], [1], [0, 0, 1, 1], [], []>} : vector<128x128xbf16>, vector<128x128xbf16>, vector<128x128xf32> -> vector<128x128xf32>
    %145 = arith.addf %136, %144 : vector<128x128xf32>
    %c30_i32 = arith.constant 30 : i32
    %146 = arith.addi %0, %c30_i32 : i32
    %c0_105 = arith.constant 0 : index
    %147 = arith.index_cast %146 : i32 to index
    %c6_106 = arith.constant 6 : index
    %c0_107 = arith.constant 0 : index
    %148 = vector.load %arg2[%c0_105, %147, %c6_106, %c0_107] : memref<1x52x52x128xbf16, #tpu.memory_space<vmem>>, vector<1x8x16x128xbf16>
    %149 = vector.shape_cast %148 : vector<1x8x16x128xbf16> to vector<8x16x128xbf16>
    %150 = vector.shape_cast %149 : vector<8x16x128xbf16> to vector<128x128xbf16>
    %c16 = arith.constant 16 : index
    %c0_108 = arith.constant 0 : index
    %c0_109 = arith.constant 0 : index
    %151 = vector.load %arg3[%c16, %c0_108, %c0_109] : memref<28x128x128xbf16, #tpu.memory_space<vmem>>, vector<1x128x128xbf16>
    %152 = vector.shape_cast %151 : vector<1x128x128xbf16> to vector<128x128xbf16>
    %cst_110 = arith.constant dense<0.000000e+00> : vector<128x128xf32>
    %153 = tpu.matmul %150, %152, %cst_110 {dimension_numbers = #tpu.dot_dimension_numbers<[1], [0], [0], [1], [0, 0, 1, 1], [], []>} : vector<128x128xbf16>, vector<128x128xbf16>, vector<128x128xf32> -> vector<128x128xf32>
    %154 = arith.addf %145, %153 : vector<128x128xf32>
    %c30_i32_111 = arith.constant 30 : i32
    %155 = arith.addi %0, %c30_i32_111 : i32
    %c0_112 = arith.constant 0 : index
    %156 = arith.index_cast %155 : i32 to index
    %c18_113 = arith.constant 18 : index
    %c0_114 = arith.constant 0 : index
    %157 = vector.load %arg2[%c0_112, %156, %c18_113, %c0_114] : memref<1x52x52x128xbf16, #tpu.memory_space<vmem>>, vector<1x8x16x128xbf16>
    %158 = vector.shape_cast %157 : vector<1x8x16x128xbf16> to vector<8x16x128xbf16>
    %159 = vector.shape_cast %158 : vector<8x16x128xbf16> to vector<128x128xbf16>
    %c17 = arith.constant 17 : index
    %c0_115 = arith.constant 0 : index
    %c0_116 = arith.constant 0 : index
    %160 = vector.load %arg3[%c17, %c0_115, %c0_116] : memref<28x128x128xbf16, #tpu.memory_space<vmem>>, vector<1x128x128xbf16>
    %161 = vector.shape_cast %160 : vector<1x128x128xbf16> to vector<128x128xbf16>
    %cst_117 = arith.constant dense<0.000000e+00> : vector<128x128xf32>
    %162 = tpu.matmul %159, %161, %cst_117 {dimension_numbers = #tpu.dot_dimension_numbers<[1], [0], [0], [1], [0, 0, 1, 1], [], []>} : vector<128x128xbf16>, vector<128x128xbf16>, vector<128x128xf32> -> vector<128x128xf32>
    %163 = arith.addf %154, %162 : vector<128x128xf32>
    %c30_i32_118 = arith.constant 30 : i32
    %164 = arith.addi %0, %c30_i32_118 : i32
    %c0_119 = arith.constant 0 : index
    %165 = arith.index_cast %164 : i32 to index
    %c30_120 = arith.constant 30 : index
    %c0_121 = arith.constant 0 : index
    %166 = vector.load %arg2[%c0_119, %165, %c30_120, %c0_121] : memref<1x52x52x128xbf16, #tpu.memory_space<vmem>>, vector<1x8x16x128xbf16>
    %167 = vector.shape_cast %166 : vector<1x8x16x128xbf16> to vector<8x16x128xbf16>
    %168 = vector.shape_cast %167 : vector<8x16x128xbf16> to vector<128x128xbf16>
    %c18_122 = arith.constant 18 : index
    %c0_123 = arith.constant 0 : index
    %c0_124 = arith.constant 0 : index
    %169 = vector.load %arg3[%c18_122, %c0_123, %c0_124] : memref<28x128x128xbf16, #tpu.memory_space<vmem>>, vector<1x128x128xbf16>
    %170 = vector.shape_cast %169 : vector<1x128x128xbf16> to vector<128x128xbf16>
    %cst_125 = arith.constant dense<0.000000e+00> : vector<128x128xf32>
    %171 = tpu.matmul %168, %170, %cst_125 {dimension_numbers = #tpu.dot_dimension_numbers<[1], [0], [0], [1], [0, 0, 1, 1], [], []>} : vector<128x128xbf16>, vector<128x128xbf16>, vector<128x128xf32> -> vector<128x128xf32>
    %172 = arith.addf %163, %171 : vector<128x128xf32>
    %c0_i32 = arith.constant 0 : i32
    %173 = arith.addi %0, %c0_i32 : i32
    %c0_126 = arith.constant 0 : index
    %174 = arith.index_cast %173 : i32 to index
    %c0_127 = arith.constant 0 : index
    %c0_128 = arith.constant 0 : index
    %175 = vector.load %arg2[%c0_126, %174, %c0_127, %c0_128] : memref<1x52x52x128xbf16, #tpu.memory_space<vmem>>, vector<1x8x16x128xbf16>
    %176 = vector.shape_cast %175 : vector<1x8x16x128xbf16> to vector<8x16x128xbf16>
    %177 = vector.shape_cast %176 : vector<8x16x128xbf16> to vector<128x128xbf16>
    %c19 = arith.constant 19 : index
    %c0_129 = arith.constant 0 : index
    %c0_130 = arith.constant 0 : index
    %178 = vector.load %arg3[%c19, %c0_129, %c0_130] : memref<28x128x128xbf16, #tpu.memory_space<vmem>>, vector<1x128x128xbf16>
    %179 = vector.shape_cast %178 : vector<1x128x128xbf16> to vector<128x128xbf16>
    %cst_131 = arith.constant dense<0.000000e+00> : vector<128x128xf32>
    %180 = tpu.matmul %177, %179, %cst_131 {dimension_numbers = #tpu.dot_dimension_numbers<[1], [0], [0], [1], [0, 0, 1, 1], [], []>} : vector<128x128xbf16>, vector<128x128xbf16>, vector<128x128xf32> -> vector<128x128xf32>
    %181 = arith.addf %172, %180 : vector<128x128xf32>
    %c0_i32_132 = arith.constant 0 : i32
    %182 = arith.addi %0, %c0_i32_132 : i32
    %c0_133 = arith.constant 0 : index
    %183 = arith.index_cast %182 : i32 to index
    %c18_134 = arith.constant 18 : index
    %c0_135 = arith.constant 0 : index
    %184 = vector.load %arg2[%c0_133, %183, %c18_134, %c0_135] : memref<1x52x52x128xbf16, #tpu.memory_space<vmem>>, vector<1x8x16x128xbf16>
    %185 = vector.shape_cast %184 : vector<1x8x16x128xbf16> to vector<8x16x128xbf16>
    %186 = vector.shape_cast %185 : vector<8x16x128xbf16> to vector<128x128xbf16>
    %c20 = arith.constant 20 : index
    %c0_136 = arith.constant 0 : index
    %c0_137 = arith.constant 0 : index
    %187 = vector.load %arg3[%c20, %c0_136, %c0_137] : memref<28x128x128xbf16, #tpu.memory_space<vmem>>, vector<1x128x128xbf16>
    %188 = vector.shape_cast %187 : vector<1x128x128xbf16> to vector<128x128xbf16>
    %cst_138 = arith.constant dense<0.000000e+00> : vector<128x128xf32>
    %189 = tpu.matmul %186, %188, %cst_138 {dimension_numbers = #tpu.dot_dimension_numbers<[1], [0], [0], [1], [0, 0, 1, 1], [], []>} : vector<128x128xbf16>, vector<128x128xbf16>, vector<128x128xf32> -> vector<128x128xf32>
    %190 = arith.addf %181, %189 : vector<128x128xf32>
    %c0_i32_139 = arith.constant 0 : i32
    %191 = arith.addi %0, %c0_i32_139 : i32
    %c0_140 = arith.constant 0 : index
    %192 = arith.index_cast %191 : i32 to index
    %c36 = arith.constant 36 : index
    %c0_141 = arith.constant 0 : index
    %193 = vector.load %arg2[%c0_140, %192, %c36, %c0_141] : memref<1x52x52x128xbf16, #tpu.memory_space<vmem>>, vector<1x8x16x128xbf16>
    %194 = vector.shape_cast %193 : vector<1x8x16x128xbf16> to vector<8x16x128xbf16>
    %195 = vector.shape_cast %194 : vector<8x16x128xbf16> to vector<128x128xbf16>
    %c21 = arith.constant 21 : index
    %c0_142 = arith.constant 0 : index
    %c0_143 = arith.constant 0 : index
    %196 = vector.load %arg3[%c21, %c0_142, %c0_143] : memref<28x128x128xbf16, #tpu.memory_space<vmem>>, vector<1x128x128xbf16>
    %197 = vector.shape_cast %196 : vector<1x128x128xbf16> to vector<128x128xbf16>
    %cst_144 = arith.constant dense<0.000000e+00> : vector<128x128xf32>
    %198 = tpu.matmul %195, %197, %cst_144 {dimension_numbers = #tpu.dot_dimension_numbers<[1], [0], [0], [1], [0, 0, 1, 1], [], []>} : vector<128x128xbf16>, vector<128x128xbf16>, vector<128x128xf32> -> vector<128x128xf32>
    %199 = arith.addf %190, %198 : vector<128x128xf32>
    %c18_i32_145 = arith.constant 18 : i32
    %200 = arith.addi %0, %c18_i32_145 : i32
    %c0_146 = arith.constant 0 : index
    %201 = arith.index_cast %200 : i32 to index
    %c0_147 = arith.constant 0 : index
    %c0_148 = arith.constant 0 : index
    %202 = vector.load %arg2[%c0_146, %201, %c0_147, %c0_148] : memref<1x52x52x128xbf16, #tpu.memory_space<vmem>>, vector<1x8x16x128xbf16>
    %203 = vector.shape_cast %202 : vector<1x8x16x128xbf16> to vector<8x16x128xbf16>
    %204 = vector.shape_cast %203 : vector<8x16x128xbf16> to vector<128x128xbf16>
    %c22 = arith.constant 22 : index
    %c0_149 = arith.constant 0 : index
    %c0_150 = arith.constant 0 : index
    %205 = vector.load %arg3[%c22, %c0_149, %c0_150] : memref<28x128x128xbf16, #tpu.memory_space<vmem>>, vector<1x128x128xbf16>
    %206 = vector.shape_cast %205 : vector<1x128x128xbf16> to vector<128x128xbf16>
    %cst_151 = arith.constant dense<0.000000e+00> : vector<128x128xf32>
    %207 = tpu.matmul %204, %206, %cst_151 {dimension_numbers = #tpu.dot_dimension_numbers<[1], [0], [0], [1], [0, 0, 1, 1], [], []>} : vector<128x128xbf16>, vector<128x128xbf16>, vector<128x128xf32> -> vector<128x128xf32>
    %208 = arith.addf %199, %207 : vector<128x128xf32>
    %c18_i32_152 = arith.constant 18 : i32
    %209 = arith.addi %0, %c18_i32_152 : i32
    %c0_153 = arith.constant 0 : index
    %210 = arith.index_cast %209 : i32 to index
    %c18_154 = arith.constant 18 : index
    %c0_155 = arith.constant 0 : index
    %211 = vector.load %arg2[%c0_153, %210, %c18_154, %c0_155] : memref<1x52x52x128xbf16, #tpu.memory_space<vmem>>, vector<1x8x16x128xbf16>
    %212 = vector.shape_cast %211 : vector<1x8x16x128xbf16> to vector<8x16x128xbf16>
    %213 = vector.shape_cast %212 : vector<8x16x128xbf16> to vector<128x128xbf16>
    %c23 = arith.constant 23 : index
    %c0_156 = arith.constant 0 : index
    %c0_157 = arith.constant 0 : index
    %214 = vector.load %arg3[%c23, %c0_156, %c0_157] : memref<28x128x128xbf16, #tpu.memory_space<vmem>>, vector<1x128x128xbf16>
    %215 = vector.shape_cast %214 : vector<1x128x128xbf16> to vector<128x128xbf16>
    %cst_158 = arith.constant dense<0.000000e+00> : vector<128x128xf32>
    %216 = tpu.matmul %213, %215, %cst_158 {dimension_numbers = #tpu.dot_dimension_numbers<[1], [0], [0], [1], [0, 0, 1, 1], [], []>} : vector<128x128xbf16>, vector<128x128xbf16>, vector<128x128xf32> -> vector<128x128xf32>
    %217 = arith.addf %208, %216 : vector<128x128xf32>
    %c18_i32_159 = arith.constant 18 : i32
    %218 = arith.addi %0, %c18_i32_159 : i32
    %c0_160 = arith.constant 0 : index
    %219 = arith.index_cast %218 : i32 to index
    %c36_161 = arith.constant 36 : index
    %c0_162 = arith.constant 0 : index
    %220 = vector.load %arg2[%c0_160, %219, %c36_161, %c0_162] : memref<1x52x52x128xbf16, #tpu.memory_space<vmem>>, vector<1x8x16x128xbf16>
    %221 = vector.shape_cast %220 : vector<1x8x16x128xbf16> to vector<8x16x128xbf16>
    %222 = vector.shape_cast %221 : vector<8x16x128xbf16> to vector<128x128xbf16>
    %c24_163 = arith.constant 24 : index
    %c0_164 = arith.constant 0 : index
    %c0_165 = arith.constant 0 : index
    %223 = vector.load %arg3[%c24_163, %c0_164, %c0_165] : memref<28x128x128xbf16, #tpu.memory_space<vmem>>, vector<1x128x128xbf16>
    %224 = vector.shape_cast %223 : vector<1x128x128xbf16> to vector<128x128xbf16>
    %cst_166 = arith.constant dense<0.000000e+00> : vector<128x128xf32>
    %225 = tpu.matmul %222, %224, %cst_166 {dimension_numbers = #tpu.dot_dimension_numbers<[1], [0], [0], [1], [0, 0, 1, 1], [], []>} : vector<128x128xbf16>, vector<128x128xbf16>, vector<128x128xf32> -> vector<128x128xf32>
    %226 = arith.addf %217, %225 : vector<128x128xf32>
    %c36_i32 = arith.constant 36 : i32
    %227 = arith.addi %0, %c36_i32 : i32
    %c0_167 = arith.constant 0 : index
    %228 = arith.index_cast %227 : i32 to index
    %c0_168 = arith.constant 0 : index
    %c0_169 = arith.constant 0 : index
    %229 = vector.load %arg2[%c0_167, %228, %c0_168, %c0_169] : memref<1x52x52x128xbf16, #tpu.memory_space<vmem>>, vector<1x8x16x128xbf16>
    %230 = vector.shape_cast %229 : vector<1x8x16x128xbf16> to vector<8x16x128xbf16>
    %231 = vector.shape_cast %230 : vector<8x16x128xbf16> to vector<128x128xbf16>
    %c25 = arith.constant 25 : index
    %c0_170 = arith.constant 0 : index
    %c0_171 = arith.constant 0 : index
    %232 = vector.load %arg3[%c25, %c0_170, %c0_171] : memref<28x128x128xbf16, #tpu.memory_space<vmem>>, vector<1x128x128xbf16>
    %233 = vector.shape_cast %232 : vector<1x128x128xbf16> to vector<128x128xbf16>
    %cst_172 = arith.constant dense<0.000000e+00> : vector<128x128xf32>
    %234 = tpu.matmul %231, %233, %cst_172 {dimension_numbers = #tpu.dot_dimension_numbers<[1], [0], [0], [1], [0, 0, 1, 1], [], []>} : vector<128x128xbf16>, vector<128x128xbf16>, vector<128x128xf32> -> vector<128x128xf32>
    %235 = arith.addf %226, %234 : vector<128x128xf32>
    %c36_i32_173 = arith.constant 36 : i32
    %236 = arith.addi %0, %c36_i32_173 : i32
    %c0_174 = arith.constant 0 : index
    %237 = arith.index_cast %236 : i32 to index
    %c18_175 = arith.constant 18 : index
    %c0_176 = arith.constant 0 : index
    %238 = vector.load %arg2[%c0_174, %237, %c18_175, %c0_176] : memref<1x52x52x128xbf16, #tpu.memory_space<vmem>>, vector<1x8x16x128xbf16>
    %239 = vector.shape_cast %238 : vector<1x8x16x128xbf16> to vector<8x16x128xbf16>
    %240 = vector.shape_cast %239 : vector<8x16x128xbf16> to vector<128x128xbf16>
    %c26 = arith.constant 26 : index
    %c0_177 = arith.constant 0 : index
    %c0_178 = arith.constant 0 : index
    %241 = vector.load %arg3[%c26, %c0_177, %c0_178] : memref<28x128x128xbf16, #tpu.memory_space<vmem>>, vector<1x128x128xbf16>
    %242 = vector.shape_cast %241 : vector<1x128x128xbf16> to vector<128x128xbf16>
    %cst_179 = arith.constant dense<0.000000e+00> : vector<128x128xf32>
    %243 = tpu.matmul %240, %242, %cst_179 {dimension_numbers = #tpu.dot_dimension_numbers<[1], [0], [0], [1], [0, 0, 1, 1], [], []>} : vector<128x128xbf16>, vector<128x128xbf16>, vector<128x128xf32> -> vector<128x128xf32>
    %244 = arith.addf %235, %243 : vector<128x128xf32>
    %c36_i32_180 = arith.constant 36 : i32
    %245 = arith.addi %0, %c36_i32_180 : i32
    %c0_181 = arith.constant 0 : index
    %246 = arith.index_cast %245 : i32 to index
    %c36_182 = arith.constant 36 : index
    %c0_183 = arith.constant 0 : index
    %247 = vector.load %arg2[%c0_181, %246, %c36_182, %c0_183] : memref<1x52x52x128xbf16, #tpu.memory_space<vmem>>, vector<1x8x16x128xbf16>
    %248 = vector.shape_cast %247 : vector<1x8x16x128xbf16> to vector<8x16x128xbf16>
    %249 = vector.shape_cast %248 : vector<8x16x128xbf16> to vector<128x128xbf16>
    %c27 = arith.constant 27 : index
    %c0_184 = arith.constant 0 : index
    %c0_185 = arith.constant 0 : index
    %250 = vector.load %arg3[%c27, %c0_184, %c0_185] : memref<28x128x128xbf16, #tpu.memory_space<vmem>>, vector<1x128x128xbf16>
    %251 = vector.shape_cast %250 : vector<1x128x128xbf16> to vector<128x128xbf16>
    %cst_186 = arith.constant dense<0.000000e+00> : vector<128x128xf32>
    %252 = tpu.matmul %249, %251, %cst_186 {dimension_numbers = #tpu.dot_dimension_numbers<[1], [0], [0], [1], [0, 0, 1, 1], [], []>} : vector<128x128xbf16>, vector<128x128xbf16>, vector<128x128xf32> -> vector<128x128xf32>
    %253 = arith.addf %244, %252 : vector<128x128xf32>
    %c0_187 = arith.constant 0 : index
    %c0_188 = arith.constant 0 : index
    %c0_189 = arith.constant 0 : index
    %254 = vector.load %arg4[%c0_187, %c0_188, %c0_189] : memref<1x1x128xbf16, #tpu.memory_space<vmem>>, vector<1x1x128xbf16>
    %255 = vector.shape_cast %254 : vector<1x1x128xbf16> to vector<1x128xbf16>
    %c0_190 = arith.constant 0 : index
    %c0_191 = arith.constant 0 : index
    %256 = vector.load %arg5[%c0_190, %c0_191] : memref<128x128xbf16, #tpu.memory_space<vmem>>, vector<128x128xbf16>
    %cst_192 = arith.constant dense<0.000000e+00> : vector<1x128xf32>
    %257 = tpu.matmul %255, %256, %cst_192 {dimension_numbers = #tpu.dot_dimension_numbers<[1], [0], [0], [1], [0, 0, 1, 1], [], []>} : vector<1x128xbf16>, vector<128x128xbf16>, vector<1x128xf32> -> vector<1x128xf32>
    %258 = vector.broadcast %257 : vector<1x128xf32> to vector<128x128xf32>
    %259 = arith.addf %253, %258 : vector<128x128xf32>
    %c0_193 = arith.constant 0 : index
    %c0_194 = arith.constant 0 : index
    %260 = vector.load %arg6[%c0_193, %c0_194] : memref<128x128xf32, #tpu.memory_space<vmem>>, vector<128x128xf32>
    tpu.vector_store %arg6[%c0_193, %c0_194], %259 {strides = array<i32>} : memref<128x128xf32, #tpu.memory_space<vmem>>, vector<128x128xf32>,
    %cst_195 = arith.constant dense<0.000000e+00> : vector<128xf32>
    %261 = vector.multi_reduction <add>, %259, %cst_195 [0] : vector<128x128xf32> to vector<128xf32>
    %262 = vector.shape_cast %261 : vector<128xf32> to vector<1x128xf32>
    %263 = arith.mulf %259, %259 : vector<128x128xf32>
    %cst_196 = arith.constant dense<0.000000e+00> : vector<128xf32>
    %264 = vector.multi_reduction <add>, %263, %cst_196 [0] : vector<128x128xf32> to vector<128xf32>
    %265 = vector.shape_cast %264 : vector<128xf32> to vector<1x128xf32>
    %266 = tpu.concatenate %262, %265 in 0 : vector<1x128xf32>, vector<1x128xf32> -> vector<2x128xf32>
    %267 = vector.shape_cast %266 : vector<2x128xf32> to vector<1x2x128xf32>
    %c0_197 = arith.constant 0 : index
    %c0_198 = arith.constant 0 : index
    %c0_199 = arith.constant 0 : index
    %268 = vector.load %arg7[%c0_197, %c0_198, %c0_199] : memref<1x2x128xf32, #tpu.memory_space<vmem>>, vector<1x2x128xf32>
    tpu.vector_store %arg7[%c0_197, %c0_198, %c0_199], %267 {strides = array<i32>} : memref<1x2x128xf32, #tpu.memory_space<vmem>>, vector<1x2x128xf32>,
    return
  }
  func.func @transform_0(%arg0: i32, %arg1: i32) -> (i32, i32, i32, i32) {
    %c0_i32 = arith.constant 0 : i32
    %c0_i32_0 = arith.constant 0 : i32
    %c0_i32_1 = arith.constant 0 : i32
    %c0_i32_2 = arith.constant 0 : i32
    return %arg0, %c0_i32, %c0_i32_0, %c0_i32_1 : i32, i32, i32, i32
  }
  func.func @transform_1(%arg0: i32, %arg1: i32) -> (i32, i32, i32) {
    %c0_i32 = arith.constant 0 : i32
    %c0_i32_0 = arith.constant 0 : i32
    %c0_i32_1 = arith.constant 0 : i32
    %c0_i32_2 = arith.constant 0 : i32
    return %c0_i32, %c0_i32_0, %c0_i32_1 : i32, i32, i32
  }
  func.func @transform_2(%arg0: i32, %arg1: i32) -> (i32, i32, i32) {
    %c0_i32 = arith.constant 0 : i32
    %c0_i32_0 = arith.constant 0 : i32
    %c0_i32_1 = arith.constant 0 : i32
    return %arg0, %c0_i32, %c0_i32_0 : i32, i32, i32
  }
  func.func @transform_3(%arg0: i32, %arg1: i32) -> (i32, i32) {
    %c0_i32 = arith.constant 0 : i32
    %c0_i32_0 = arith.constant 0 : i32
    %c0_i32_1 = arith.constant 0 : i32
    return %c0_i32, %c0_i32_0 : i32, i32
  }
  func.func @transform_4(%arg0: i32, %arg1: i32) -> (i32, i32) {
    %c2_i32 = arith.constant 2 : i32
    %0 = arith.muli %arg0, %c2_i32 : i32
    %1 = arith.addi %0, %arg1 : i32
    %c0_i32 = arith.constant 0 : i32
    %c0_i32_0 = arith.constant 0 : i32
    return %1, %c0_i32 : i32, i32
  }
  func.func @transform_5(%arg0: i32, %arg1: i32) -> (i32, i32, i32) {
    %c2_i32 = arith.constant 2 : i32
    %0 = arith.muli %arg0, %c2_i32 : i32
    %1 = arith.addi %0, %arg1 : i32
    %c0_i32 = arith.constant 0 : i32
    %c0_i32_0 = arith.constant 0 : i32
    %c0_i32_1 = arith.constant 0 : i32
    return %1, %c0_i32, %c0_i32_0 : i32, i32, i32
  }
}

</mosaic_0001>

<llo_original>
// kernel: tpu_custom_call.1
$region0: #{tpu_custom_call.1}
  #allocation0 [shape = 'u32[]', space=smem, size = 0x4, offset = 0x4, fixed_abs, tag = 'smem constant byte address 0x4 - core index']
  #allocation1 [shape = 'u32[144,128]{1,0:T(1,128)}', space=vmem, size = 0x12000, scoped, tag = 'internal scratch']
  %s0 = inlined_call_operand.vmem [shape: bf16[2,52,52,128], index: 0, kind: input, shape index: {}]
  %s1 = inlined_call_operand.vmem [shape: bf16[28,128,128], index: 1, kind: input, shape index: {}]
  %s2 = inlined_call_operand.vmem [shape: bf16[2,1,128], index: 2, kind: input, shape index: {}]
  %s3 = inlined_call_operand.vmem [shape: bf16[128,128], index: 3, kind: input, shape index: {}]
  %s4 = inlined_call_operand.hbm [shape: f32[512,128], index: 4, kind: output, shape index: {0}]
  %s5 = inlined_call_operand.hbm [shape: f32[4,2,128], index: 5, kind: output, shape index: {1}]
  %6 = xla_tuple %s4, %s5
  %s7 = sld [smem:[#allocation0]]
  $region57: #{tpu_custom_call.1} parent=0
    _
  %s9 = ssub.s32 1, %s7
  %s10 = scalar_select 0, %s9, %s7
  $region1: #{tpu_custom_call.1} parent=0
    #allocation2 [shape = 'u8[131072]{0}', space=vmem, size = 0x20000, scoped, tag = 'output window, operand 0']
    #allocation3 [shape = 's32[2]{0}', space=sflag, size = 0x8, scoped, tag = 'scoped memory for tpu_custom_call.1']
    #allocation4 [shape = 'u8[2048]{0}', space=vmem, size = 0x800, scoped, tag = 'output window, operand 1']
    #allocation5 [shape = 's32[2]{0}', space=sflag, size = 0x8, scoped, tag = 'scoped memory for tpu_custom_call.1']
    %11 = vsyncpa [#allocation3], 0
    %s12 = scalar_lea.sflag [#allocation3], 1
    %13 = vsyncpa %s12, 0
    %14 = vsyncpa [#allocation5], 0
    %s15 = scalar_lea.sflag [#allocation5], 1
    %16 = vsyncpa %s15, 0
    loop: start=0, step=1, limit=6
    $region2: #{tpu_custom_call.1} parent=1 // loop_pre_header
      _
    $region3: #{tpu_custom_call.1} parent=1 // loop_header
      %s18 = sphi 0, %s22
      %p19 = scmp.ge.s32.totalorder %s18, 6
      %s25 = sphi 0, %s37
      %s26 = sphi 0, %s33
      %s27 = sphi 0, %s25
      %s28 = sphi 0, %s26
      %s29 = sphi 0, %s27
      %s30 = sphi 0, %s28
      %s40 = sphi 0, %s42
      %s43 = sphi 0, %s40
      %s44 = sphi 0, %s43
      %s60 = sphi 0, %s44
      %s64 = sphi 0, %s64
      %s66 = sphi 0, %s64
      %s67 = sphi 0, %s66
      %s81 = sphi 0, %s67
      %s87 = sphi 0, %s89
      %s90 = sphi 0, %s87
      %s91 = sphi 0, %s90
      %s107 = sphi 0, %s91
      %s111 = sphi 0, %s111
      %s113 = sphi 0, %s111
      %s114 = sphi 0, %s113
      %s128 = sphi 0, %s114
      %s138 = sphi 0, %s140
      %s141 = sphi 0, %s138
      %s142 = sphi 0, %s141
      %s158 = sphi 0, %s142
      %s168 = sphi 0, %s170
      %s171 = sphi 0, %s168
      %s172 = sphi 0, %s171
      %s188 = sphi 0, %s172
    $region4: #{tpu_custom_call.1} parent=1 // loop_header_branch
      %21 = sbr.rel (%p19) target = $region8
    $region5: #{tpu_custom_call.1} parent=1 // loop_body
      %s23 = ssub.s32 %s18, 1
      %s24 = ssub.s32 %s18, 2
      %s31 = sadd.s32 1, %s26
      %p32 = scmp.ge.s32.totalorder %s31, 2
      %s33 = scalar_select %p32, 0, %s31
      %s34 = sadd.s32 1, %s25
      %s35 = scalar_select %p32, %s34, %s25
      %p36 = scmp.ge.s32.totalorder %s35, 2
      %s37 = scalar_select %p36, 0, %s35
      %s38 = ssub.s32 %s25, %s37
      %p39 = scmp.eq.s32.totalorder %s38, 0
      %s41 = sadd.s32 %s40, 1
      %s42 = scalar_select %p39, %s40, %s41
      %p45 = pneg %p39
      %p46 = scmp.eq.s32.totalorder %s18, 3
      %p47 = por %p45, %p46
      %p48 = scmp.ne.s32.totalorder %s40, %s43
      %p49 = scmp.eq.s32.totalorder %s18, 0
      %p50 = por %p48, %p49
      %p51 = scmp.ne.s32.totalorder %s40, %s43
      %p52 = scmp.eq.s32.totalorder %s23, 3
      %p53 = por %p51, %p52
      %p54 = scmp.ne.s32.totalorder %s43, %s44
      %p55 = scmp.eq.s32.totalorder %s23, 0
      %p56 = por %p54, %p55
      %p57 = scmp.ne.s32.totalorder %s43, %s44
      %p58 = scmp.eq.s32.totalorder %s24, 3
      %p59 = por %p57, %p58
      %p61 = scmp.ne.s32.totalorder %s44, %s60
      %p62 = scmp.eq.s32.totalorder %s24, 0
      %p63 = por %p61, %p62
      %s65 = sadd.s32 %s64, 1
      %p68 = scmp.eq.s32.totalorder %s18, 3
      %p69 = scmp.ne.s32.totalorder %s64, %s66
      %p70 = scmp.eq.s32.totalorder %s18, 0
      %p71 = por %p69, %p70
      %p72 = scmp.ne.s32.totalorder %s64, %s66
      %p73 = scmp.eq.s32.totalorder %s23, 3
      %p74 = por %p72, %p73
      %p75 = scmp.ne.s32.totalorder %s66, %s67
      %p76 = scmp.eq.s32.totalorder %s23, 0
      %p77 = por %p75, %p76
      %p78 = scmp.ne.s32.totalorder %s66, %s67
      %p79 = scmp.eq.s32.totalorder %s24, 3
      %p80 = por %p78, %p79
      %p82 = scmp.ne.s32.totalorder %s67, %s81
      %p83 = scmp.eq.s32.totalorder %s24, 0
      %p84 = por %p82, %p83
      %s85 = ssub.s32 %s25, %s37
      %p86 = scmp.eq.s32.totalorder %s85, 0
      %s88 = sadd.s32 %s87, 1
      %s89 = scalar_select %p86, %s87, %s88
      %p92 = pneg %p86
      %p93 = scmp.eq.s32.totalorder %s18, 3
      %p94 = por %p92, %p93
      %p95 = scmp.ne.s32.totalorder %s87, %s90
      %p96 = scmp.eq.s32.totalorder %s18, 0
      %p97 = por %p95, %p96
      %p98 = scmp.ne.s32.totalorder %s87, %s90
      %p99 = scmp.eq.s32.totalorder %s23, 3
      %p100 = por %p98, %p99
      %p101 = scmp.ne.s32.totalorder %s90, %s91
      %p102 = scmp.eq.s32.totalorder %s23, 0
      %p103 = por %p101, %p102
      %p104 = scmp.ne.s32.totalorder %s90, %s91
      %p105 = scmp.eq.s32.totalorder %s24, 3
      %p106 = por %p104, %p105
      %p108 = scmp.ne.s32.totalorder %s91, %s107
      %p109 = scmp.eq.s32.totalorder %s24, 0
      %p110 = por %p108, %p109
      %s112 = sadd.s32 %s111, 1
      %p115 = scmp.eq.s32.totalorder %s18, 3
      %p116 = scmp.ne.s32.totalorder %s111, %s113
      %p117 = scmp.eq.s32.totalorder %s18, 0
      %p118 = por %p116, %p117
      %p119 = scmp.ne.s32.totalorder %s111, %s113
      %p120 = scmp.eq.s32.totalorder %s23, 3
      %p121 = por %p119, %p120
      %p122 = scmp.ne.s32.totalorder %s113, %s114
      %p123 = scmp.eq.s32.totalorder %s23, 0
      %p124 = por %p122, %p123
      %p125 = scmp.ne.s32.totalorder %s113, %s114
      %p126 = scmp.eq.s32.totalorder %s24, 3
      %p127 = por %p125, %p126
      %p129 = scmp.ne.s32.totalorder %s114, %s128
      %p130 = scmp.eq.s32.totalorder %s24, 0
      %p131 = por %p129, %p130
      %s132 = smul.u32 %s25, 2
      %s133 = sadd.s32 %s132, %s26
      %s134 = smul.u32 %s37, 2
      %s135 = sadd.s32 %s134, %s33
      %s136 = ssub.s32 %s133, %s135
      %p137 = scmp.eq.s32.totalorder %s136, 0
      %s139 = sadd.s32 %s138, 1
      %s140 = scalar_select %p137, %s138, %s139
      %p143 = pneg %p137
      %p144 = scmp.eq.s32.totalorder %s18, 3
      %p145 = por %p143, %p144
      %p146 = scmp.ne.s32.totalorder %s138, %s141
      %p147 = scmp.eq.s32.totalorder %s18, 0
      %p148 = por %p146, %p147
      %p149 = scmp.ne.s32.totalorder %s138, %s141
      %p150 = scmp.eq.s32.totalorder %s23, 3
      %p151 = por %p149, %p150
      %p152 = scmp.ne.s32.totalorder %s141, %s142
      %p153 = scmp.eq.s32.totalorder %s23, 0
      %p154 = por %p152, %p153
      %p155 = scmp.ne.s32.totalorder %s141, %s142
      %p156 = scmp.eq.s32.totalorder %s24, 3
      %p157 = por %p155, %p156
      %p159 = scmp.ne.s32.totalorder %s142, %s158
      %p160 = scmp.eq.s32.totalorder %s24, 0
      %p161 = por %p159, %p160
      %s162 = smul.u32 %s25, 2
      %s163 = sadd.s32 %s162, %s26
      %s164 = smul.u32 %s37, 2
      %s165 = sadd.s32 %s164, %s33
      %s166 = ssub.s32 %s163, %s165
      %p167 = scmp.eq.s32.totalorder %s166, 0
      %s169 = sadd.s32 %s168, 1
      %s170 = scalar_select %p167, %s168, %s169
      %p173 = pneg %p167
      %p174 = scmp.eq.s32.totalorder %s18, 3
      %p175 = por %p173, %p174
      %p176 = scmp.ne.s32.totalorder %s168, %s171
      %p177 = scmp.eq.s32.totalorder %s18, 0
      %p178 = por %p176, %p177
      %p179 = scmp.ne.s32.totalorder %s168, %s171
      %p180 = scmp.eq.s32.totalorder %s23, 3
      %p181 = por %p179, %p180
      %p182 = scmp.ne.s32.totalorder %s171, %s172
      %p183 = scmp.eq.s32.totalorder %s23, 0
      %p184 = por %p182, %p183
      %p185 = scmp.ne.s32.totalorder %s171, %s172
      %p186 = scmp.eq.s32.totalorder %s24, 3
      %p187 = por %p185, %p186
      %p189 = scmp.ne.s32.totalorder %s172, %s188
      %p190 = scmp.eq.s32.totalorder %s24, 0
      %p191 = por %p189, %p190
      %p192 = scmp.le.s32.totalorder 1, %s18
      %p193 = scmp.lt.s32.totalorder %s18, 5
      %p194 = pnand %p192, %p193
      %p195 = pneg %p194
      // Predicated region
      $region9: #{tpu_custom_call.1} parent=5 // pred_check
        _
      $region10: #{tpu_custom_call.1} parent=5 // pred_check_branch
        %197 = sbr.rel (%p194) target = $region12
      $region11: #{tpu_custom_call.1} parent=5 // pred_region
        %s198 = ssub.s32 %s18, 1
        // Predicated region
        $region13: #{tpu_custom_call.1} parent=11 // pred_check
          %p199 = pneg %p77
        $region14: #{tpu_custom_call.1} parent=11 // pred_check_branch
          %201 = sbr.rel (%p199) target = $region16
        $region15: #{tpu_custom_call.1} parent=11 // pred_region
          _
        $region16: #{tpu_custom_call.1} parent=11 // pred_fallthru
          _
        // Predicated region
        $region17: #{tpu_custom_call.1} parent=11 // pred_check
          %p202 = pneg %p124
        $region18: #{tpu_custom_call.1} parent=11 // pred_check_branch
          %204 = sbr.rel (%p202) target = $region20
        $region19: #{tpu_custom_call.1} parent=11 // pred_region
          _
        $region20: #{tpu_custom_call.1} parent=11 // pred_fallthru
          _
      $region12: #{tpu_custom_call.1} parent=5 // pred_fallthru
        _
      %p205 = scmp.lt.s32.totalorder %s18, 4
      // Predicated region
      $region21: #{tpu_custom_call.1} parent=5 // pred_check
        %p206 = pneg %p205
      $region22: #{tpu_custom_call.1} parent=5 // pred_check_branch
        %208 = sbr.rel (%p206) target = $region24
      $region23: #{tpu_custom_call.1} parent=5 // pred_region
        // Predicated region
        $region25: #{tpu_custom_call.1} parent=23 // pred_check
          %p209 = pneg %p50
        $region26: #{tpu_custom_call.1} parent=23 // pred_check_branch
          %211 = sbr.rel (%p209) target = $region28
        $region27: #{tpu_custom_call.1} parent=23 // pred_region
          %p212 = scmp.lt.s32.totalorder %s25, 1
          %s213 = scalar_select %p212, %s25, 1
          %s214 = smul.addr %s213, 364
          %s215 = smul.addr %s214, 4
          %s216 = scalar_lea.vmem %s0, %s215
        $region28: #{tpu_custom_call.1} parent=23 // pred_fallthru
          _
        // Predicated region
        $region29: #{tpu_custom_call.1} parent=23 // pred_check
          %p217 = pneg %p97
        $region30: #{tpu_custom_call.1} parent=23 // pred_check_branch
          %219 = sbr.rel (%p217) target = $region32
        $region31: #{tpu_custom_call.1} parent=23 // pred_region
          %p220 = scmp.lt.s32.totalorder %s25, 1
          %s221 = scalar_select %p220, %s25, 1
          %s222 = scalar_lea.vmem %s2, %s221
        $region32: #{tpu_custom_call.1} parent=23 // pred_fallthru
          _
      $region24: #{tpu_custom_call.1} parent=5 // pred_fallthru
        _
      %p223 = scmp.le.s32.totalorder 1, %s18
      %p224 = scmp.lt.s32.totalorder %s18, 5
      %p225 = pnand %p223, %p224
      %p226 = pneg %p225
      // Predicated region
      $region33: #{tpu_custom_call.1} parent=5 // pred_check
        _
      $region34: #{tpu_custom_call.1} parent=5 // pred_check_branch
        %228 = sbr.rel (%p225) target = $region36
      $region35: #{tpu_custom_call.1} parent=5 // pred_region
        %s229 = ssub.s32 %s18, 1
        %p230 = scmp.lt.s32.totalorder %s27, 1
        %s231 = scalar_select %p230, %s27, 1
        %s232 = smul.addr %s231, 364
        %s233 = smul.addr %s232, 4
        %s234 = scalar_lea.vmem %s0, %s233
        %p235 = pneg %p56
        %p236 = pneg %p53
        %p237 = pneg %p77
        %p238 = pneg %p74
        %p239 = scmp.lt.s32.totalorder %s27, 1
        %s240 = scalar_select %p239, %s27, 1
        %s241 = scalar_lea.vmem %s2, %s240
        %p242 = pneg %p103
        %p243 = pneg %p100
        %p244 = pneg %p124
        %p245 = pneg %p121
        %p246 = pneg %p154
        %p247 = pneg %p151
        %s248 = sand.u32 %s141, 1
        %s249 = scalar_lea.sflag [#allocation3], %s248
        %s250 = sand.u32 %s141, 1
        %s251 = smul.addr %s250, 128
        %s252 = scalar_lea.vmem [#allocation2], %s251
        %p253 = pneg %p184
        %p254 = pneg %p181
        %s255 = sand.u32 %s171, 1
        %s256 = scalar_lea.sflag [#allocation5], %s255
        %s257 = sand.u32 %s171, 1
        %s258 = smul.addr %s257, 2
        %s259 = scalar_lea.vmem [#allocation4], %s258
        %p260 = scmp.lt.s32.totalorder %s27, 1
        %s261 = scalar_select %p260, %s27, 1
        %s262 = smul.addr %s261, 364
        %s263 = smul.addr %s262, 4
        %s264 = scalar_lea.vmem %s0, %s263
        %p265 = scmp.lt.s32.totalorder %s27, 1
        %s266 = scalar_select %p265, %s27, 1
        %s267 = scalar_lea.vmem %s2, %s266
        %s268 = smul.u32 %s27, 2
        %s269 = sadd.s32 %s268, %s28
        %s270 = smul.u32 16, %s269
        %s271 = smul.u32 %s27, 2
        %s272 = sadd.s32 %s271, %s28
        %s274 = smul.u32 %s28, 8
        %s275 = sadd.s32 %s274, 18
        %s276 = smul.u32 %s275, 7
        %s277 = smul.addr %s276, 4
        %s278 = scalar_lea.vmem %s264, %s277
        %v279 = vld [vmem:[%s278 + $0x8] sm:$0xe]
        %v280 = vld [vmem:[%s278 + $0xc] sm:$0xf]
        %v281 = vld [vmem:[%s278 + $0x10] sm:$0x1]
        %v282 = vld [vmem:[%s278 + $0x24] sm:$0xe]
        %v283 = vld [vmem:[%s278 + $0x28] sm:$0xf]
        %v284 = vld [vmem:[%s278 + $0x2c] sm:$0x1]
        %v285 = vld [vmem:[%s278 + $0x40] sm:$0xe]
        %v286 = vld [vmem:[%s278 + $0x44] sm:$0xf]
        %v287 = vld [vmem:[%s278 + $0x48] sm:$0x1]
        %v288 = vld [vmem:[%s278 + $0x5c] sm:$0xe]
        %v289 = vld [vmem:[%s278 + $0x60] sm:$0xf]
        %v290 = vld [vmem:[%s278 + $0x64] sm:$0x1]
        %v291 = vld [vmem:[%s278 + $0x78] sm:$0xe]
        %v292 = vld [vmem:[%s278 + $0x7c] sm:$0xf]
        %v293 = vld [vmem:[%s278 + $0x80] sm:$0x1]
        %v294 = vld [vmem:[%s278 + $0x94] sm:$0xe]
        %v295 = vld [vmem:[%s278 + $0x98] sm:$0xf]
        %v296 = vld [vmem:[%s278 + $0x9c] sm:$0x1]
        %v297 = vld [vmem:[%s278 + $0xb0] sm:$0xe]
        %v298 = vld [vmem:[%s278 + $0xb4] sm:$0xf]
        %v299 = vld [vmem:[%s278 + $0xb8] sm:$0x1]
        %v300 = vld [vmem:[%s278 + $0xcc] sm:$0xe]
        %v301 = vld [vmem:[%s278 + $0xd0] sm:$0xf]
        %v302 = vld [vmem:[%s278 + $0xd4] sm:$0x1]
        %vm327 = vcmask 1042432
        %vm328 = vcmask 1046532
        %vm329 = vmor %vm327, %vm328
        %v330 = vrot.slane %v279, 5
        %v331 = vrot.slane %v330, 4
        %v332 = vrot.slane %v280, 5
        %v333 = vsel %vm329, %v331, %v332
        %v334 = vrot.slane %v332, 4
        %v335 = vrot.slane %v281, 5
        %v336 = vsel %vm329, %v334, %v335
        %v337 = vrot.slane %v282, 5
        %v338 = vrot.slane %v337, 4
        %v339 = vrot.slane %v283, 5
        %v340 = vsel %vm329, %v338, %v339
        %v341 = vrot.slane %v339, 4
        %v342 = vrot.slane %v284, 5
        %v343 = vsel %vm329, %v341, %v342
        %v344 = vrot.slane %v285, 5
        %v345 = vrot.slane %v344, 4
        %v346 = vrot.slane %v286, 5
        %v347 = vsel %vm329, %v345, %v346
        %v348 = vrot.slane %v346, 4
        %v349 = vrot.slane %v287, 5
        %v350 = vsel %vm329, %v348, %v349
        %v351 = vrot.slane %v288, 5
        %v352 = vrot.slane %v351, 4
        %v353 = vrot.slane %v289, 5
        %v354 = vsel %vm329, %v352, %v353
        %v355 = vrot.slane %v353, 4
        %v356 = vrot.slane %v290, 5
        %v357 = vsel %vm329, %v355, %v356
        %v358 = vrot.slane %v291, 5
        %v359 = vrot.slane %v358, 4
        %v360 = vrot.slane %v292, 5
        %v361 = vsel %vm329, %v359, %v360
        %v362 = vrot.slane %v360, 4
        %v363 = vrot.slane %v293, 5
        %v364 = vsel %vm329, %v362, %v363
        %v365 = vrot.slane %v294, 5
        %v366 = vrot.slane %v365, 4
        %v367 = vrot.slane %v295, 5
        %v368 = vsel %vm329, %v366, %v367
        %v369 = vrot.slane %v367, 4
        %v370 = vrot.slane %v296, 5
        %v371 = vsel %vm329, %v369, %v370
        %v372 = vrot.slane %v297, 5
        %v373 = vrot.slane %v372, 4
        %v374 = vrot.slane %v298, 5
        %v375 = vsel %vm329, %v373, %v374
        %v376 = vrot.slane %v374, 4
        %v377 = vrot.slane %v299, 5
        %v378 = vsel %vm329, %v376, %v377
        %v379 = vrot.slane %v300, 5
        %v380 = vrot.slane %v379, 4
        %v381 = vrot.slane %v301, 5
        %v382 = vsel %vm329, %v380, %v381
        %v383 = vrot.slane %v381, 4
        %v384 = vrot.slane %v302, 5
        %v385 = vsel %vm329, %v383, %v384
        %v386 = vld [vmem:[%s1] sm:$0xf]
        %v387 = vld [vmem:[%s1 + $0x4] sm:$0xf]
        %v388 = vld [vmem:[%s1 + $0x8] sm:$0xf]
        %v389 = vld [vmem:[%s1 + $0xc] sm:$0xf]
        %v390 = vld [vmem:[%s1 + $0x10] sm:$0xf]
        %v391 = vld [vmem:[%s1 + $0x14] sm:$0xf]
        %v392 = vld [vmem:[%s1 + $0x18] sm:$0xf]
        %v393 = vld [vmem:[%s1 + $0x1c] sm:$0xf]
        %v394 = vld [vmem:[%s1 + $0x20] sm:$0xf]
        %v395 = vld [vmem:[%s1 + $0x24] sm:$0xf]
        %v396 = vld [vmem:[%s1 + $0x28] sm:$0xf]
        %v397 = vld [vmem:[%s1 + $0x2c] sm:$0xf]
        %v398 = vld [vmem:[%s1 + $0x30] sm:$0xf]
        %v399 = vld [vmem:[%s1 + $0x34] sm:$0xf]
        %v400 = vld [vmem:[%s1 + $0x38] sm:$0xf]
        %v401 = vld [vmem:[%s1 + $0x3c] sm:$0xf]
        %s402 = sadd.s32 %s274, 12
        %s403 = smul.u32 %s402, 7
        %s404 = smul.addr %s403, 4
        %s405 = scalar_lea.vmem %s264, %s404
        %v406 = vld [vmem:[%s405 + $0x4] sm:$0xc]
        %v407 = vld [vmem:[%s405 + $0x8] sm:$0xf]
        %v408 = vld [vmem:[%s405 + $0xc] sm:$0x3]
        %v409 = vld [vmem:[%s405 + $0x20] sm:$0xc]
        %v410 = vld [vmem:[%s405 + $0x24] sm:$0xf]
        %v411 = vld [vmem:[%s405 + $0x28] sm:$0x3]
        %v412 = vld [vmem:[%s405 + $0x3c] sm:$0xc]
        %v413 = vld [vmem:[%s405 + $0x40] sm:$0xf]
        %v414 = vld [vmem:[%s405 + $0x44] sm:$0x3]
        %v415 = vld [vmem:[%s405 + $0x58] sm:$0xc]
        %v416 = vld [vmem:[%s405 + $0x5c] sm:$0xf]
        %v417 = vld [vmem:[%s405 + $0x60] sm:$0x3]
        %v418 = vld [vmem:[%s405 + $0x74] sm:$0xc]
        %v419 = vld [vmem:[%s405 + $0x78] sm:$0xf]
        %v420 = vld [vmem:[%s405 + $0x7c] sm:$0x3]
        %v421 = vld [vmem:[%s405 + $0x90] sm:$0xc]
        %v422 = vld [vmem:[%s405 + $0x94] sm:$0xf]
        %v423 = vld [vmem:[%s405 + $0x98] sm:$0x3]
        %v424 = vld [vmem:[%s405 + $0xac] sm:$0xc]
        %v425 = vld [vmem:[%s405 + $0xb0] sm:$0xf]
        %v426 = vld [vmem:[%s405 + $0xb4] sm:$0x3]
        %v427 = vld [vmem:[%s405 + $0xc8] sm:$0xc]
        %v428 = vld [vmem:[%s405 + $0xcc] sm:$0xf]
        %v429 = vld [vmem:[%s405 + $0xd0] sm:$0x3]
        %vm454 = vcmask 1041408
        %vm455 = vcmask 1045508
        %vm456 = vmor %vm454, %vm455
        %v457 = vrot.slane %v406, 6
        %v458 = vrot.slane %v457, 4
        %v459 = vrot.slane %v407, 6
        %v460 = vsel %vm456, %v458, %v459
        %v461 = vrot.slane %v459, 4
        %v462 = vrot.slane %v408, 6
        %v463 = vsel %vm456, %v461, %v462
        %v464 = vrot.slane %v409, 6
        %v465 = vrot.slane %v464, 4
        %v466 = vrot.slane %v410, 6
        %v467 = vsel %vm456, %v465, %v466
        %v468 = vrot.slane %v466, 4
        %v469 = vrot.slane %v411, 6
        %v470 = vsel %vm456, %v468, %v469
        %v471 = vrot.slane %v412, 6
        %v472 = vrot.slane %v471, 4
        %v473 = vrot.slane %v413, 6
        %v474 = vsel %vm456, %v472, %v473
        %v475 = vrot.slane %v473, 4
        %v476 = vrot.slane %v414, 6
        %v477 = vsel %vm456, %v475, %v476
        %v478 = vrot.slane %v415, 6
        %v479 = vrot.slane %v478, 4
        %v480 = vrot.slane %v416, 6
        %v481 = vsel %vm456, %v479, %v480
        %v482 = vrot.slane %v480, 4
        %v483 = vrot.slane %v417, 6
        %v484 = vsel %vm456, %v482, %v483
        %v485 = vrot.slane %v418, 6
        %v486 = vrot.slane %v485, 4
        %v487 = vrot.slane %v419, 6
        %v488 = vsel %vm456, %v486, %v487
        %v489 = vrot.slane %v487, 4
        %v490 = vrot.slane %v420, 6
        %v491 = vsel %vm456, %v489, %v490
        %v492 = vrot.slane %v421, 6
        %v493 = vrot.slane %v492, 4
        %v494 = vrot.slane %v422, 6
        %v495 = vsel %vm456, %v493, %v494
        %v496 = vrot.slane %v494, 4
        %v497 = vrot.slane %v423, 6
        %v498 = vsel %vm456, %v496, %v497
        %v499 = vrot.slane %v424, 6
        %v500 = vrot.slane %v499, 4
        %v501 = vrot.slane %v425, 6
        %v502 = vsel %vm456, %v500, %v501
        %v503 = vrot.slane %v501, 4
        %v504 = vrot.slane %v426, 6
        %v505 = vsel %vm456, %v503, %v504
        %v506 = vrot.slane %v427, 6
        %v507 = vrot.slane %v506, 4
        %v508 = vrot.slane %v428, 6
        %v509 = vsel %vm456, %v507, %v508
        %v510 = vrot.slane %v508, 4
        %v511 = vrot.slane %v429, 6
        %v512 = vsel %vm456, %v510, %v511
        %s513 = scalar_lea.vmem %s1, 64
        %v514 = vld [vmem:[%s513] sm:$0xf]
        %v515 = vld [vmem:[%s513 + $0x4] sm:$0xf]
        %v516 = vld [vmem:[%s513 + $0x8] sm:$0xf]
        %v517 = vld [vmem:[%s513 + $0xc] sm:$0xf]
        %v518 = vld [vmem:[%s513 + $0x10] sm:$0xf]
        %v519 = vld [vmem:[%s513 + $0x14] sm:$0xf]
        %v520 = vld [vmem:[%s513 + $0x18] sm:$0xf]
        %v521 = vld [vmem:[%s513 + $0x1c] sm:$0xf]
        %v522 = vld [vmem:[%s513 + $0x20] sm:$0xf]
        %v523 = vld [vmem:[%s513 + $0x24] sm:$0xf]
        %v524 = vld [vmem:[%s513 + $0x28] sm:$0xf]
        %v525 = vld [vmem:[%s513 + $0x2c] sm:$0xf]
        %v526 = vld [vmem:[%s513 + $0x30] sm:$0xf]
        %v527 = vld [vmem:[%s513 + $0x34] sm:$0xf]
        %v528 = vld [vmem:[%s513 + $0x38] sm:$0xf]
        %v529 = vld [vmem:[%s513 + $0x3c] sm:$0xf]
        %v530 = vunpack.c.l.b16 %v460
        %v531 = vunpack.c.l.b16 %v463
        %v532 = vunpack.c.l.b16 %v467
        %v533 = vunpack.c.l.b16 %v470
        %v534 = vunpack.c.l.b16 %v474
        %v535 = vunpack.c.l.b16 %v477
        %v536 = vunpack.c.l.b16 %v481
        %v537 = vunpack.c.l.b16 %v484
        %v538 = vunpack.c.l.b16 %v488
        %v539 = vunpack.c.l.b16 %v491
        %v540 = vunpack.c.l.b16 %v495
        %v541 = vunpack.c.l.b16 %v498
        %v542 = vunpack.c.l.b16 %v502
        %v543 = vunpack.c.l.b16 %v505
        %v544 = vunpack.c.l.b16 %v509
        %v545 = vunpack.c.l.b16 %v512
        %v546 = vpack.c.b16 %v531, %v530
        %v547 = vpack.c.b16 %v533, %v532
        %v548 = vpack.c.b16 %v535, %v534
        %v549 = vpack.c.b16 %v537, %v536
        %v550 = vpack.c.b16 %v539, %v538
        %v551 = vpack.c.b16 %v541, %v540
        %v552 = vpack.c.b16 %v543, %v542
        %v553 = vpack.c.b16 %v545, %v544
        %v578 = vunpack.c.l.b16 %v514
        %v579 = vunpack.c.l.b16 %v515
        %v580 = vunpack.c.l.b16 %v516
        %v581 = vunpack.c.l.b16 %v517
        %v582 = vunpack.c.l.b16 %v518
        %v583 = vunpack.c.l.b16 %v519
        %v584 = vunpack.c.l.b16 %v520
        %v585 = vunpack.c.l.b16 %v521
        %v586 = vunpack.c.l.b16 %v522
        %v587 = vunpack.c.l.b16 %v523
        %v588 = vunpack.c.l.b16 %v524
        %v589 = vunpack.c.l.b16 %v525
        %v590 = vunpack.c.l.b16 %v526
        %v591 = vunpack.c.l.b16 %v527
        %v592 = vunpack.c.l.b16 %v528
        %v593 = vunpack.c.l.b16 %v529
        %v594 = vpack.c.b16 %v579, %v578
        %v595 = vpack.c.b16 %v581, %v580
        %v596 = vpack.c.b16 %v583, %v582
        %v597 = vpack.c.b16 %v585, %v584
        %v598 = vpack.c.b16 %v587, %v586
        %v599 = vpack.c.b16 %v589, %v588
        %v600 = vpack.c.b16 %v591, %v590
        %v601 = vpack.c.b16 %v593, %v592
        %610 = vmatprep.subr.bf16.mxu0 0
        %611 = vmatpush1.bf16.msra.mxu0 %v594
        %612 = vmatprep.subr.bf16.mxu0 0
        %613 = vmatpush1.bf16.msra.mxu0 %v595
        %614 = vmatprep.subr.bf16.mxu0 0
        %615 = vmatpush1.bf16.msra.mxu0 %v596
        %616 = vmatprep.subr.bf16.mxu0 0
        %617 = vmatpush1.bf16.msra.mxu0 %v597
        %618 = vmatprep.subr.bf16.mxu0 0
        %619 = vmatpush1.bf16.msra.mxu0 %v598
        %620 = vmatprep.subr.bf16.mxu0 0
        %621 = vmatpush1.bf16.msra.mxu0 %v599
        %622 = vmatprep.subr.bf16.mxu0 0
        %623 = vmatpush1.bf16.msra.mxu0 %v600
        %624 = vmatprep.subr.bf16.mxu0 0
        %625 = vmatpush1.bf16.msra.mxu0 %v601
        %626 = vmatprep.subr.bf16.mxu0 0
        %627 = vmatpush1.bf16.msra.mxu0 0
        %628 = vmatprep.subr.bf16.mxu0 0
        %629 = vmatpush1.bf16.msra.mxu0 0
        %630 = vmatprep.subr.bf16.mxu0 0
        %631 = vmatpush1.bf16.msra.mxu0 0
        %632 = vmatprep.subr.bf16.mxu0 0
        %633 = vmatpush1.bf16.msra.mxu0 0
        %634 = vmatprep.subr.bf16.mxu0 0
        %635 = vmatpush1.bf16.msra.mxu0 0
        %636 = vmatprep.subr.bf16.mxu0 0
        %637 = vmatpush1.bf16.msra.mxu0 0
        %638 = vmatprep.subr.bf16.mxu0 0
        %639 = vmatpush1.bf16.msra.mxu0 0
        %640 = vmatprep.subr.bf16.mxu0 0
        %641 = vmatpush1.bf16.msra.mxu0 0
        %642 = vmatprep.mubr.bf16.mxu0 0
        %643 = vmatmul.mubr.bf16.gmra.mrb[0].mxu0 %v546
        %v644 = vpop.f32.mrb[0].mxu0
        %v645 = vadd.f32 0.0, %v644
        %v646 = vpop.f32.mrb[0].mxu0
        %v647 = vpop.f32.mrb[0].mxu0
        %v648 = vadd.f32 0.0, %v647
        %v649 = vpop.f32.mrb[0].mxu0
        %650 = vmatprep.mubr.bf16.mxu0 0
        %651 = vmatmul.mubr.bf16.gmra.mrb[0].mxu0 %v547
        %v652 = vpop.f32.mrb[0].mxu0
        %v653 = vadd.f32 0.0, %v652
        %v654 = vpop.f32.mrb[0].mxu0
        %v655 = vpop.f32.mrb[0].mxu0
        %v656 = vadd.f32 0.0, %v655
        %v657 = vpop.f32.mrb[0].mxu0
        %658 = vmatprep.mubr.bf16.mxu0 0
        %659 = vmatmul.mubr.bf16.gmra.mrb[0].mxu0 %v548
        %v660 = vpop.f32.mrb[0].mxu0
        %v661 = vadd.f32 0.0, %v660
        %v662 = vpop.f32.mrb[0].mxu0
        %v663 = vpop.f32.mrb[0].mxu0
        %v664 = vadd.f32 0.0, %v663
        %v665 = vpop.f32.mrb[0].mxu0
        %666 = vmatprep.mubr.bf16.mxu0 0
        %667 = vmatmul.mubr.bf16.gmra.mrb[0].mxu0 %v549
        %v668 = vpop.f32.mrb[0].mxu0
        %v669 = vadd.f32 0.0, %v668
        %v670 = vpop.f32.mrb[0].mxu0
        %v671 = vpop.f32.mrb[0].mxu0
        %v672 = vadd.f32 0.0, %v671
        %v673 = vpop.f32.mrb[0].mxu0
        %674 = vmatprep.mubr.bf16.mxu0 0
        %675 = vmatmul.mubr.bf16.gmra.mrb[0].mxu0 %v550
        %v676 = vpop.f32.mrb[0].mxu0
        %v677 = vadd.f32 0.0, %v676
        %v678 = vpop.f32.mrb[0].mxu0
        %v679 = vpop.f32.mrb[0].mxu0
        %v680 = vadd.f32 0.0, %v679
        %v681 = vpop.f32.mrb[0].mxu0
        %682 = vmatprep.mubr.bf16.mxu0 0
        %683 = vmatmul.mubr.bf16.gmra.mrb[0].mxu0 %v551
        %v684 = vpop.f32.mrb[0].mxu0
        %v685 = vadd.f32 0.0, %v684
        %v686 = vpop.f32.mrb[0].mxu0
        %v687 = vpop.f32.mrb[0].mxu0
        %v688 = vadd.f32 0.0, %v687
        %v689 = vpop.f32.mrb[0].mxu0
        %690 = vmatprep.mubr.bf16.mxu0 0
        %691 = vmatmul.mubr.bf16.gmra.mrb[0].mxu0 %v552
        %v692 = vpop.f32.mrb[0].mxu0
        %v693 = vadd.f32 0.0, %v692
        %v694 = vpop.f32.mrb[0].mxu0
        %v695 = vpop.f32.mrb[0].mxu0
        %v696 = vadd.f32 0.0, %v695
        %v697 = vpop.f32.mrb[0].mxu0
        %698 = vmatprep.mubr.bf16.mxu0 0
        %699 = vmatmul.mubr.bf16.gmra.mrb[0].mxu0 %v553
        %v700 = vpop.f32.mrb[0].mxu0
        %v701 = vadd.f32 0.0, %v700
        %v702 = vpop.f32.mrb[0].mxu0
        %v703 = vpop.f32.mrb[0].mxu0
        %v704 = vadd.f32 0.0, %v703
        %v705 = vpop.f32.mrb[0].mxu0
        %706 = vdwg.mxu0
        %v707 = vunpack.c.l.b16 %v333
        %v708 = vunpack.c.l.b16 %v336
        %v709 = vunpack.c.l.b16 %v340
        %v710 = vunpack.c.l.b16 %v343
        %v711 = vunpack.c.l.b16 %v347
        %v712 = vunpack.c.l.b16 %v350
        %v713 = vunpack.c.l.b16 %v354
        %v714 = vunpack.c.l.b16 %v357
        %v715 = vunpack.c.l.b16 %v361
        %v716 = vunpack.c.l.b16 %v364
        %v717 = vunpack.c.l.b16 %v368
        %v718 = vunpack.c.l.b16 %v371
        %v719 = vunpack.c.l.b16 %v375
        %v720 = vunpack.c.l.b16 %v378
        %v721 = vunpack.c.l.b16 %v382
        %v722 = vunpack.c.l.b16 %v385
        %v723 = vpack.c.b16 %v708, %v707
        %v724 = vpack.c.b16 %v710, %v709
        %v725 = vpack.c.b16 %v712, %v711
        %v726 = vpack.c.b16 %v714, %v713
        %v727 = vpack.c.b16 %v716, %v715
        %v728 = vpack.c.b16 %v718, %v717
        %v729 = vpack.c.b16 %v720, %v719
        %v730 = vpack.c.b16 %v722, %v721
        %v755 = vunpack.c.l.b16 %v386
        %v756 = vunpack.c.l.b16 %v387
        %v757 = vunpack.c.l.b16 %v388
        %v758 = vunpack.c.l.b16 %v389
        %v759 = vunpack.c.l.b16 %v390
        %v760 = vunpack.c.l.b16 %v391
        %v761 = vunpack.c.l.b16 %v392
        %v762 = vunpack.c.l.b16 %v393
        %v763 = vunpack.c.l.b16 %v394
        %v764 = vunpack.c.l.b16 %v395
        %v765 = vunpack.c.l.b16 %v396
        %v766 = vunpack.c.l.b16 %v397
        %v767 = vunpack.c.l.b16 %v398
        %v768 = vunpack.c.l.b16 %v399
        %v769 = vunpack.c.l.b16 %v400
        %v770 = vunpack.c.l.b16 %v401
        %v771 = vpack.c.b16 %v756, %v755
        %v772 = vpack.c.b16 %v758, %v757
        %v773 = vpack.c.b16 %v760, %v759
        %v774 = vpack.c.b16 %v762, %v761
        %v775 = vpack.c.b16 %v764, %v763
        %v776 = vpack.c.b16 %v766, %v765
        %v777 = vpack.c.b16 %v768, %v767
        %v778 = vpack.c.b16 %v770, %v769
        %787 = vmatprep.subr.bf16.mxu0 0
        %788 = vmatpush1.bf16.msra.mxu0 %v771
        %789 = vmatprep.subr.bf16.mxu0 0
        %790 = vmatpush1.bf16.msra.mxu0 %v772
        %791 = vmatprep.subr.bf16.mxu0 0
        %792 = vmatpush1.bf16.msra.mxu0 %v773
        %793 = vmatprep.subr.bf16.mxu0 0
        %794 = vmatpush1.bf16.msra.mxu0 %v774
        %795 = vmatprep.subr.bf16.mxu0 0
        %796 = vmatpush1.bf16.msra.mxu0 %v775
        %797 = vmatprep.subr.bf16.mxu0 0
        %798 = vmatpush1.bf16.msra.mxu0 %v776
        %799 = vmatprep.subr.bf16.mxu0 0
        %800 = vmatpush1.bf16.msra.mxu0 %v777
        %801 = vmatprep.subr.bf16.mxu0 0
        %802 = vmatpush1.bf16.msra.mxu0 %v778
        %803 = vmatprep.subr.bf16.mxu0 0
        %804 = vmatpush1.bf16.msra.mxu0 0
        %805 = vmatprep.subr.bf16.mxu0 0
        %806 = vmatpush1.bf16.msra.mxu0 0
        %807 = vmatprep.subr.bf16.mxu0 0
        %808 = vmatpush1.bf16.msra.mxu0 0
        %809 = vmatprep.subr.bf16.mxu0 0
        %810 = vmatpush1.bf16.msra.mxu0 0
        %811 = vmatprep.subr.bf16.mxu0 0
        %812 = vmatpush1.bf16.msra.mxu0 0
        %813 = vmatprep.subr.bf16.mxu0 0
        %814 = vmatpush1.bf16.msra.mxu0 0
        %815 = vmatprep.subr.bf16.mxu0 0
        %816 = vmatpush1.bf16.msra.mxu0 0
        %817 = vmatprep.subr.bf16.mxu0 0
        %818 = vmatpush1.bf16.msra.mxu0 0
        %819 = vmatprep.mubr.bf16.mxu0 0
        %820 = vmatmul.mubr.bf16.gmra.mrb[0].mxu0 %v723
        %v821 = vpop.f32.mrb[0].mxu0
        %v822 = vadd.f32 %v645, %v821
        %v823 = vpop.f32.mrb[0].mxu0
        %v824 = vpop.f32.mrb[0].mxu0
        %v825 = vadd.f32 %v648, %v824
        %v826 = vpop.f32.mrb[0].mxu0
        %827 = vmatprep.mubr.bf16.mxu0 0
        %828 = vmatmul.mubr.bf16.gmra.mrb[0].mxu0 %v724
        %v829 = vpop.f32.mrb[0].mxu0
        %v830 = vadd.f32 %v653, %v829
        %v831 = vpop.f32.mrb[0].mxu0
        %v832 = vpop.f32.mrb[0].mxu0
        %v833 = vadd.f32 %v656, %v832
        %v834 = vpop.f32.mrb[0].mxu0
        %835 = vmatprep.mubr.bf16.mxu0 0
        %836 = vmatmul.mubr.bf16.gmra.mrb[0].mxu0 %v725
        %v837 = vpop.f32.mrb[0].mxu0
        %v838 = vadd.f32 %v661, %v837
        %v839 = vpop.f32.mrb[0].mxu0
        %v840 = vpop.f32.mrb[0].mxu0
        %v841 = vadd.f32 %v664, %v840
        %v842 = vpop.f32.mrb[0].mxu0
        %843 = vmatprep.mubr.bf16.mxu0 0
        %844 = vmatmul.mubr.bf16.gmra.mrb[0].mxu0 %v726
        %v845 = vpop.f32.mrb[0].mxu0
        %v846 = vadd.f32 %v669, %v845
        %v847 = vpop.f32.mrb[0].mxu0
        %v848 = vpop.f32.mrb[0].mxu0
        %v849 = vadd.f32 %v672, %v848
        %v850 = vpop.f32.mrb[0].mxu0
        %851 = vmatprep.mubr.bf16.mxu0 0
        %852 = vmatmul.mubr.bf16.gmra.mrb[0].mxu0 %v727
        %v853 = vpop.f32.mrb[0].mxu0
        %v854 = vadd.f32 %v677, %v853
        %v855 = vpop.f32.mrb[0].mxu0
        %v856 = vpop.f32.mrb[0].mxu0
        %v857 = vadd.f32 %v680, %v856
        %v858 = vpop.f32.mrb[0].mxu0
        %859 = vmatprep.mubr.bf16.mxu0 0
        %860 = vmatmul.mubr.bf16.gmra.mrb[0].mxu0 %v728
        %v861 = vpop.f32.mrb[0].mxu0
        %v862 = vadd.f32 %v685, %v861
        %v863 = vpop.f32.mrb[0].mxu0
        %v864 = vpop.f32.mrb[0].mxu0
        %v865 = vadd.f32 %v688, %v864
        %v866 = vpop.f32.mrb[0].mxu0
        %867 = vmatprep.mubr.bf16.mxu0 0
        %868 = vmatmul.mubr.bf16.gmra.mrb[0].mxu0 %v729
        %v869 = vpop.f32.mrb[0].mxu0
        %v870 = vadd.f32 %v693, %v869
        %v871 = vpop.f32.mrb[0].mxu0
        %v872 = vpop.f32.mrb[0].mxu0
        %v873 = vadd.f32 %v696, %v872
        %v874 = vpop.f32.mrb[0].mxu0
        %875 = vmatprep.mubr.bf16.mxu0 0
        %876 = vmatmul.mubr.bf16.gmra.mrb[0].mxu0 %v730
        %v877 = vpop.f32.mrb[0].mxu0
        %v878 = vadd.f32 %v701, %v877
        %v879 = vpop.f32.mrb[0].mxu0
        %v880 = vpop.f32.mrb[0].mxu0
        %v881 = vadd.f32 %v704, %v880
        %v882 = vpop.f32.mrb[0].mxu0
        %883 = vdwg.mxu0
        %v884 = vld [vmem:[%s405 + $0x8] sm:$0xe]
        %v885 = vld [vmem:[%s405 + $0xc] sm:$0xf]
        %v886 = vld [vmem:[%s405 + $0x10] sm:$0x1]
        %v887 = vld [vmem:[%s405 + $0x24] sm:$0xe]
        %v888 = vld [vmem:[%s405 + $0x28] sm:$0xf]
        %v889 = vld [vmem:[%s405 + $0x2c] sm:$0x1]
        %v890 = vld [vmem:[%s405 + $0x40] sm:$0xe]
        %v891 = vld [vmem:[%s405 + $0x44] sm:$0xf]
        %v892 = vld [vmem:[%s405 + $0x48] sm:$0x1]
        %v893 = vld [vmem:[%s405 + $0x5c] sm:$0xe]
        %v894 = vld [vmem:[%s405 + $0x60] sm:$0xf]
        %v895 = vld [vmem:[%s405 + $0x64] sm:$0x1]
        %v896 = vld [vmem:[%s405 + $0x78] sm:$0xe]
        %v897 = vld [vmem:[%s405 + $0x7c] sm:$0xf]
        %v898 = vld [vmem:[%s405 + $0x80] sm:$0x1]
        %v899 = vld [vmem:[%s405 + $0x94] sm:$0xe]
        %v900 = vld [vmem:[%s405 + $0x98] sm:$0xf]
        %v901 = vld [vmem:[%s405 + $0x9c] sm:$0x1]
        %v902 = vld [vmem:[%s405 + $0xb0] sm:$0xe]
        %v903 = vld [vmem:[%s405 + $0xb4] sm:$0xf]
        %v904 = vld [vmem:[%s405 + $0xb8] sm:$0x1]
        %v905 = vld [vmem:[%s405 + $0xcc] sm:$0xe]
        %v906 = vld [vmem:[%s405 + $0xd0] sm:$0xf]
        %v907 = vld [vmem:[%s405 + $0xd4] sm:$0x1]
        %v932 = vrot.slane %v884, 5
        %v933 = vrot.slane %v932, 4
        %v934 = vrot.slane %v885, 5
        %v935 = vsel %vm329, %v933, %v934
        %v936 = vrot.slane %v934, 4
        %v937 = vrot.slane %v886, 5
        %v938 = vsel %vm329, %v936, %v937
        %v939 = vrot.slane %v887, 5
        %v940 = vrot.slane %v939, 4
        %v941 = vrot.slane %v888, 5
        %v942 = vsel %vm329, %v940, %v941
        %v943 = vrot.slane %v941, 4
        %v944 = vrot.slane %v889, 5
        %v945 = vsel %vm329, %v943, %v944
        %v946 = vrot.slane %v890, 5
        %v947 = vrot.slane %v946, 4
        %v948 = vrot.slane %v891, 5
        %v949 = vsel %vm329, %v947, %v948
        %v950 = vrot.slane %v948, 4
        %v951 = vrot.slane %v892, 5
        %v952 = vsel %vm329, %v950, %v951
        %v953 = vrot.slane %v893, 5
        %v954 = vrot.slane %v953, 4
        %v955 = vrot.slane %v894, 5
        %v956 = vsel %vm329, %v954, %v955
        %v957 = vrot.slane %v955, 4
        %v958 = vrot.slane %v895, 5
        %v959 = vsel %vm329, %v957, %v958
        %v960 = vrot.slane %v896, 5
        %v961 = vrot.slane %v960, 4
        %v962 = vrot.slane %v897, 5
        %v963 = vsel %vm329, %v961, %v962
        %v964 = vrot.slane %v962, 4
        %v965 = vrot.slane %v898, 5
        %v966 = vsel %vm329, %v964, %v965
        %v967 = vrot.slane %v899, 5
        %v968 = vrot.slane %v967, 4
        %v969 = vrot.slane %v900, 5
        %v970 = vsel %vm329, %v968, %v969
        %v971 = vrot.slane %v969, 4
        %v972 = vrot.slane %v901, 5
        %v973 = vsel %vm329, %v971, %v972
        %v974 = vrot.slane %v902, 5
        %v975 = vrot.slane %v974, 4
        %v976 = vrot.slane %v903, 5
        %v977 = vsel %vm329, %v975, %v976
        %v978 = vrot.slane %v976, 4
        %v979 = vrot.slane %v904, 5
        %v980 = vsel %vm329, %v978, %v979
        %v981 = vrot.slane %v905, 5
        %v982 = vrot.slane %v981, 4
        %v983 = vrot.slane %v906, 5
        %v984 = vsel %vm329, %v982, %v983
        %v985 = vrot.slane %v983, 4
        %v986 = vrot.slane %v907, 5
        %v987 = vsel %vm329, %v985, %v986
        %s988 = scalar_lea.vmem %s1, 128
        %v989 = vld [vmem:[%s988] sm:$0xf]
        %v990 = vld [vmem:[%s988 + $0x4] sm:$0xf]
        %v991 = vld [vmem:[%s988 + $0x8] sm:$0xf]
        %v992 = vld [vmem:[%s988 + $0xc] sm:$0xf]
        %v993 = vld [vmem:[%s988 + $0x10] sm:$0xf]
        %v994 = vld [vmem:[%s988 + $0x14] sm:$0xf]
        %v995 = vld [vmem:[%s988 + $0x18] sm:$0xf]
        %v996 = vld [vmem:[%s988 + $0x1c] sm:$0xf]
        %v997 = vld [vmem:[%s988 + $0x20] sm:$0xf]
        %v998 = vld [vmem:[%s988 + $0x24] sm:$0xf]
        %v999 = vld [vmem:[%s988 + $0x28] sm:$0xf]
        %v1000 = vld [vmem:[%s988 + $0x2c] sm:$0xf]
        %v1001 = vld [vmem:[%s988 + $0x30] sm:$0xf]
        %v1002 = vld [vmem:[%s988 + $0x34] sm:$0xf]
        %v1003 = vld [vmem:[%s988 + $0x38] sm:$0xf]
        %v1004 = vld [vmem:[%s988 + $0x3c] sm:$0xf]
        %v1005 = vunpack.c.l.b16 %v935
        %v1006 = vunpack.c.l.b16 %v938
        %v1007 = vunpack.c.l.b16 %v942
        %v1008 = vunpack.c.l.b16 %v945
        %v1009 = vunpack.c.l.b16 %v949
        %v1010 = vunpack.c.l.b16 %v952
        %v1011 = vunpack.c.l.b16 %v956
        %v1012 = vunpack.c.l.b16 %v959
        %v1013 = vunpack.c.l.b16 %v963
        %v1014 = vunpack.c.l.b16 %v966
        %v1015 = vunpack.c.l.b16 %v970
        %v1016 = vunpack.c.l.b16 %v973
        %v1017 = vunpack.c.l.b16 %v977
        %v1018 = vunpack.c.l.b16 %v980
        %v1019 = vunpack.c.l.b16 %v984
        %v1020 = vunpack.c.l.b16 %v987
        %v1021 = vpack.c.b16 %v1006, %v1005
        %v1022 = vpack.c.b16 %v1008, %v1007
        %v1023 = vpack.c.b16 %v1010, %v1009
        %v1024 = vpack.c.b16 %v1012, %v1011
        %v1025 = vpack.c.b16 %v1014, %v1013
        %v1026 = vpack.c.b16 %v1016, %v1015
        %v1027 = vpack.c.b16 %v1018, %v1017
        %v1028 = vpack.c.b16 %v1020, %v1019
        %v1053 = vunpack.c.l.b16 %v989
        %v1054 = vunpack.c.l.b16 %v990
        %v1055 = vunpack.c.l.b16 %v991
        %v1056 = vunpack.c.l.b16 %v992
        %v1057 = vunpack.c.l.b16 %v993
        %v1058 = vunpack.c.l.b16 %v994
        %v1059 = vunpack.c.l.b16 %v995
        %v1060 = vunpack.c.l.b16 %v996
        %v1061 = vunpack.c.l.b16 %v997
        %v1062 = vunpack.c.l.b16 %v998
        %v1063 = vunpack.c.l.b16 %v999
        %v1064 = vunpack.c.l.b16 %v1000
        %v1065 = vunpack.c.l.b16 %v1001
        %v1066 = vunpack.c.l.b16 %v1002
        %v1067 = vunpack.c.l.b16 %v1003
        %v1068 = vunpack.c.l.b16 %v1004
        %v1069 = vpack.c.b16 %v1054, %v1053
        %v1070 = vpack.c.b16 %v1056, %v1055
        %v1071 = vpack.c.b16 %v1058, %v1057
        %v1072 = vpack.c.b16 %v1060, %v1059
        %v1073 = vpack.c.b16 %v1062, %v1061
        %v1074 = vpack.c.b16 %v1064, %v1063
        %v1075 = vpack.c.b16 %v1066, %v1065
        %v1076 = vpack.c.b16 %v1068, %v1067
        %1085 = vmatprep.subr.bf16.mxu0 0
        %1086 = vmatpush1.bf16.msra.mxu0 %v1069
        %1087 = vmatprep.subr.bf16.mxu0 0
        %1088 = vmatpush1.bf16.msra.mxu0 %v1070
        %1089 = vmatprep.subr.bf16.mxu0 0
        %1090 = vmatpush1.bf16.msra.mxu0 %v1071
        %1091 = vmatprep.subr.bf16.mxu0 0
        %1092 = vmatpush1.bf16.msra.mxu0 %v1072
        %1093 = vmatprep.subr.bf16.mxu0 0
        %1094 = vmatpush1.bf16.msra.mxu0 %v1073
        %1095 = vmatprep.subr.bf16.mxu0 0
        %1096 = vmatpush1.bf16.msra.mxu0 %v1074
        %1097 = vmatprep.subr.bf16.mxu0 0
        %1098 = vmatpush1.bf16.msra.mxu0 %v1075
        %1099 = vmatprep.subr.bf16.mxu0 0
        %1100 = vmatpush1.bf16.msra.mxu0 %v1076
        %1101 = vmatprep.subr.bf16.mxu0 0
        %1102 = vmatpush1.bf16.msra.mxu0 0
        %1103 = vmatprep.subr.bf16.mxu0 0
        %1104 = vmatpush1.bf16.msra.mxu0 0
        %1105 = vmatprep.subr.bf16.mxu0 0
        %1106 = vmatpush1.bf16.msra.mxu0 0
        %1107 = vmatprep.subr.bf16.mxu0 0
        %1108 = vmatpush1.bf16.msra.mxu0 0
        %1109 = vmatprep.subr.bf16.mxu0 0
        %1110 = vmatpush1.bf16.msra.mxu0 0
        %1111 = vmatprep.subr.bf16.mxu0 0
        %1112 = vmatpush1.bf16.msra.mxu0 0
        %1113 = vmatprep.subr.bf16.mxu0 0
        %1114 = vmatpush1.bf16.msra.mxu0 0
        %1115 = vmatprep.subr.bf16.mxu0 0
        %1116 = vmatpush1.bf16.msra.mxu0 0
        %1117 = vmatprep.mubr.bf16.mxu0 0
        %1118 = vmatmul.mubr.bf16.gmra.mrb[0].mxu0 %v1021
        %v1119 = vpop.f32.mrb[0].mxu0
        %v1120 = vadd.f32 0.0, %v1119
        %v1121 = vpop.f32.mrb[0].mxu0
        %v1122 = vpop.f32.mrb[0].mxu0
        %v1123 = vadd.f32 0.0, %v1122
        %v1124 = vpop.f32.mrb[0].mxu0
        %1125 = vmatprep.mubr.bf16.mxu0 0
        %1126 = vmatmul.mubr.bf16.gmra.mrb[0].mxu0 %v1022
        %v1127 = vpop.f32.mrb[0].mxu0
        %v1128 = vadd.f32 0.0, %v1127
        %v1129 = vpop.f32.mrb[0].mxu0
        %v1130 = vpop.f32.mrb[0].mxu0
        %v1131 = vadd.f32 0.0, %v1130
        %v1132 = vpop.f32.mrb[0].mxu0
        %1133 = vmatprep.mubr.bf16.mxu0 0
        %1134 = vmatmul.mubr.bf16.gmra.mrb[0].mxu0 %v1023
        %v1135 = vpop.f32.mrb[0].mxu0
        %v1136 = vadd.f32 0.0, %v1135
        %v1137 = vpop.f32.mrb[0].mxu0
        %v1138 = vpop.f32.mrb[0].mxu0
        %v1139 = vadd.f32 0.0, %v1138
        %v1140 = vpop.f32.mrb[0].mxu0
        %1141 = vmatprep.mubr.bf16.mxu0 0
        %1142 = vmatmul.mubr.bf16.gmra.mrb[0].mxu0 %v1024
        %v1143 = vpop.f32.mrb[0].mxu0
        %v1144 = vadd.f32 0.0, %v1143
        %v1145 = vpop.f32.mrb[0].mxu0
        %v1146 = vpop.f32.mrb[0].mxu0
        %v1147 = vadd.f32 0.0, %v1146
        %v1148 = vpop.f32.mrb[0].mxu0
        %1149 = vmatprep.mubr.bf16.mxu0 0
        %1150 = vmatmul.mubr.bf16.gmra.mrb[0].mxu0 %v1025
        %v1151 = vpop.f32.mrb[0].mxu0
        %v1152 = vadd.f32 0.0, %v1151
        %v1153 = vpop.f32.mrb[0].mxu0
        %v1154 = vpop.f32.mrb[0].mxu0
        %v1155 = vadd.f32 0.0, %v1154
        %v1156 = vpop.f32.mrb[0].mxu0
        %1157 = vmatprep.mubr.bf16.mxu0 0
        %1158 = vmatmul.mubr.bf16.gmra.mrb[0].mxu0 %v1026
        %v1159 = vpop.f32.mrb[0].mxu0
        %v1160 = vadd.f32 0.0, %v1159
        %v1161 = vpop.f32.mrb[0].mxu0
        %v1162 = vpop.f32.mrb[0].mxu0
        %v1163 = vadd.f32 0.0, %v1162
        %v1164 = vpop.f32.mrb[0].mxu0
        %1165 = vmatprep.mubr.bf16.mxu0 0
        %1166 = vmatmul.mubr.bf16.gmra.mrb[0].mxu0 %v1027
        %v1167 = vpop.f32.mrb[0].mxu0
        %v1168 = vadd.f32 0.0, %v1167
        %v1169 = vpop.f32.mrb[0].mxu0
        %v1170 = vpop.f32.mrb[0].mxu0
        %v1171 = vadd.f32 0.0, %v1170
        %v1172 = vpop.f32.mrb[0].mxu0
        %1173 = vmatprep.mubr.bf16.mxu0 0
        %1174 = vmatmul.mubr.bf16.gmra.mrb[0].mxu0 %v1028
        %v1175 = vpop.f32.mrb[0].mxu0
        %v1176 = vadd.f32 0.0, %v1175
        %v1177 = vpop.f32.mrb[0].mxu0
        %v1178 = vpop.f32.mrb[0].mxu0
        %v1179 = vadd.f32 0.0, %v1178
        %v1180 = vpop.f32.mrb[0].mxu0
        %1181 = vdwg.mxu0
        %v1182 = vadd.f32 %v822, %v1120
        %v1183 = vadd.f32 %v825, %v1123
        %v1184 = vadd.f32 %v830, %v1128
        %v1185 = vadd.f32 %v833, %v1131
        %v1186 = vadd.f32 %v838, %v1136
        %v1187 = vadd.f32 %v841, %v1139
        %v1188 = vadd.f32 %v846, %v1144
        %v1189 = vadd.f32 %v849, %v1147
        %v1190 = vadd.f32 %v854, %v1152
        %v1191 = vadd.f32 %v857, %v1155
        %v1192 = vadd.f32 %v862, %v1160
        %v1193 = vadd.f32 %v865, %v1163
        %v1194 = vadd.f32 %v870, %v1168
        %v1195 = vadd.f32 %v873, %v1171
        %v1196 = vadd.f32 %v878, %v1176
        %v1197 = vadd.f32 %v881, %v1179
        %v1198 = vld [vmem:[%s405 + $0x10] sm:$0xf]
        %v1199 = vld [vmem:[%s405 + $0x2c] sm:$0xf]
        %v1200 = vld [vmem:[%s405 + $0x48] sm:$0xf]
        %v1201 = vld [vmem:[%s405 + $0x64] sm:$0xf]
        %v1202 = vld [vmem:[%s405 + $0x80] sm:$0xf]
        %v1203 = vld [vmem:[%s405 + $0x9c] sm:$0xf]
        %v1204 = vld [vmem:[%s405 + $0xb8] sm:$0xf]
        %v1205 = vld [vmem:[%s405 + $0xd4] sm:$0xf]
        %s1206 = scalar_lea.vmem %s1, 192
        %v1207 = vld [vmem:[%s1206] sm:$0xf]
        %v1208 = vld [vmem:[%s1206 + $0x4] sm:$0xf]
        %v1209 = vld [vmem:[%s1206 + $0x8] sm:$0xf]
        %v1210 = vld [vmem:[%s1206 + $0xc] sm:$0xf]
        %v1211 = vld [vmem:[%s1206 + $0x10] sm:$0xf]
        %v1212 = vld [vmem:[%s1206 + $0x14] sm:$0xf]
        %v1213 = vld [vmem:[%s1206 + $0x18] sm:$0xf]
        %v1214 = vld [vmem:[%s1206 + $0x1c] sm:$0xf]
        %v1215 = vld [vmem:[%s1206 + $0x20] sm:$0xf]
        %v1216 = vld [vmem:[%s1206 + $0x24] sm:$0xf]
        %v1217 = vld [vmem:[%s1206 + $0x28] sm:$0xf]
        %v1218 = vld [vmem:[%s1206 + $0x2c] sm:$0xf]
        %v1219 = vld [vmem:[%s1206 + $0x30] sm:$0xf]
        %v1220 = vld [vmem:[%s1206 + $0x34] sm:$0xf]
        %v1221 = vld [vmem:[%s1206 + $0x38] sm:$0xf]
        %v1222 = vld [vmem:[%s1206 + $0x3c] sm:$0xf]
        %v1231 = vunpack.c.l.b16 %v885
        %v1232 = vunpack.c.l.b16 %v1198
        %v1233 = vunpack.c.l.b16 %v888
        %v1234 = vunpack.c.l.b16 %v1199
        %v1235 = vunpack.c.l.b16 %v891
        %v1236 = vunpack.c.l.b16 %v1200
        %v1237 = vunpack.c.l.b16 %v894
        %v1238 = vunpack.c.l.b16 %v1201
        %v1239 = vunpack.c.l.b16 %v897
        %v1240 = vunpack.c.l.b16 %v1202
        %v1241 = vunpack.c.l.b16 %v900
        %v1242 = vunpack.c.l.b16 %v1203
        %v1243 = vunpack.c.l.b16 %v903
        %v1244 = vunpack.c.l.b16 %v1204
        %v1245 = vunpack.c.l.b16 %v906
        %v1246 = vunpack.c.l.b16 %v1205
        %v1247 = vpack.c.b16 %v1232, %v1231
        %v1248 = vpack.c.b16 %v1234, %v1233
        %v1249 = vpack.c.b16 %v1236, %v1235
        %v1250 = vpack.c.b16 %v1238, %v1237
        %v1251 = vpack.c.b16 %v1240, %v1239
        %v1252 = vpack.c.b16 %v1242, %v1241
        %v1253 = vpack.c.b16 %v1244, %v1243
        %v1254 = vpack.c.b16 %v1246, %v1245
        %v1279 = vunpack.c.l.b16 %v1207
        %v1280 = vunpack.c.l.b16 %v1208
        %v1281 = vunpack.c.l.b16 %v1209
        %v1282 = vunpack.c.l.b16 %v1210
        %v1283 = vunpack.c.l.b16 %v1211
        %v1284 = vunpack.c.l.b16 %v1212
        %v1285 = vunpack.c.l.b16 %v1213
        %v1286 = vunpack.c.l.b16 %v1214
        %v1287 = vunpack.c.l.b16 %v1215
        %v1288 = vunpack.c.l.b16 %v1216
        %v1289 = vunpack.c.l.b16 %v1217
        %v1290 = vunpack.c.l.b16 %v1218
        %v1291 = vunpack.c.l.b16 %v1219
        %v1292 = vunpack.c.l.b16 %v1220
        %v1293 = vunpack.c.l.b16 %v1221
        %v1294 = vunpack.c.l.b16 %v1222
        %v1295 = vpack.c.b16 %v1280, %v1279
        %v1296 = vpack.c.b16 %v1282, %v1281
        %v1297 = vpack.c.b16 %v1284, %v1283
        %v1298 = vpack.c.b16 %v1286, %v1285
        %v1299 = vpack.c.b16 %v1288, %v1287
        %v1300 = vpack.c.b16 %v1290, %v1289
        %v1301 = vpack.c.b16 %v1292, %v1291
        %v1302 = vpack.c.b16 %v1294, %v1293
        %1311 = vmatprep.subr.bf16.mxu0 0
        %1312 = vmatpush1.bf16.msra.mxu0 %v1295
        %1313 = vmatprep.subr.bf16.mxu0 0
        %1314 = vmatpush1.bf16.msra.mxu0 %v1296
        %1315 = vmatprep.subr.bf16.mxu0 0
        %1316 = vmatpush1.bf16.msra.mxu0 %v1297
        %1317 = vmatprep.subr.bf16.mxu0 0
        %1318 = vmatpush1.bf16.msra.mxu0 %v1298
        %1319 = vmatprep.subr.bf16.mxu0 0
        %1320 = vmatpush1.bf16.msra.mxu0 %v1299
        %1321 = vmatprep.subr.bf16.mxu0 0
        %1322 = vmatpush1.bf16.msra.mxu0 %v1300
        %1323 = vmatprep.subr.bf16.mxu0 0
        %1324 = vmatpush1.bf16.msra.mxu0 %v1301
        %1325 = vmatprep.subr.bf16.mxu0 0
        %1326 = vmatpush1.bf16.msra.mxu0 %v1302
        %1327 = vmatprep.subr.bf16.mxu0 0
        %1328 = vmatpush1.bf16.msra.mxu0 0
        %1329 = vmatprep.subr.bf16.mxu0 0
        %1330 = vmatpush1.bf16.msra.mxu0 0
        %1331 = vmatprep.subr.bf16.mxu0 0
        %1332 = vmatpush1.bf16.msra.mxu0 0
        %1333 = vmatprep.subr.bf16.mxu0 0
        %1334 = vmatpush1.bf16.msra.mxu0 0
        %1335 = vmatprep.subr.bf16.mxu0 0
        %1336 = vmatpush1.bf16.msra.mxu0 0
        %1337 = vmatprep.subr.bf16.mxu0 0
        %1338 = vmatpush1.bf16.msra.mxu0 0
        %1339 = vmatprep.subr.bf16.mxu0 0
        %1340 = vmatpush1.bf16.msra.mxu0 0
        %1341 = vmatprep.subr.bf16.mxu0 0
        %1342 = vmatpush1.bf16.msra.mxu0 0
        %1343 = vmatprep.mubr.bf16.mxu0 0
        %1344 = vmatmul.mubr.bf16.gmra.mrb[0].mxu0 %v1247
        %v1345 = vpop.f32.mrb[0].mxu0
        %v1346 = vadd.f32 0.0, %v1345
        %v1347 = vpop.f32.mrb[0].mxu0
        %v1348 = vpop.f32.mrb[0].mxu0
        %v1349 = vadd.f32 0.0, %v1348
        %v1350 = vpop.f32.mrb[0].mxu0
        %1351 = vmatprep.mubr.bf16.mxu0 0
        %1352 = vmatmul.mubr.bf16.gmra.mrb[0].mxu0 %v1248
        %v1353 = vpop.f32.mrb[0].mxu0
        %v1354 = vadd.f32 0.0, %v1353
        %v1355 = vpop.f32.mrb[0].mxu0
        %v1356 = vpop.f32.mrb[0].mxu0
        %v1357 = vadd.f32 0.0, %v1356
        %v1358 = vpop.f32.mrb[0].mxu0
        %1359 = vmatprep.mubr.bf16.mxu0 0
        %1360 = vmatmul.mubr.bf16.gmra.mrb[0].mxu0 %v1249
        %v1361 = vpop.f32.mrb[0].mxu0
        %v1362 = vadd.f32 0.0, %v1361
        %v1363 = vpop.f32.mrb[0].mxu0
        %v1364 = vpop.f32.mrb[0].mxu0
        %v1365 = vadd.f32 0.0, %v1364
        %v1366 = vpop.f32.mrb[0].mxu0
        %1367 = vmatprep.mubr.bf16.mxu0 0
        %1368 = vmatmul.mubr.bf16.gmra.mrb[0].mxu0 %v1250
        %v1369 = vpop.f32.mrb[0].mxu0
        %v1370 = vadd.f32 0.0, %v1369
        %v1371 = vpop.f32.mrb[0].mxu0
        %v1372 = vpop.f32.mrb[0].mxu0
        %v1373 = vadd.f32 0.0, %v1372
        %v1374 = vpop.f32.mrb[0].mxu0
        %1375 = vmatprep.mubr.bf16.mxu0 0
        %1376 = vmatmul.mubr.bf16.gmra.mrb[0].mxu0 %v1251
        %v1377 = vpop.f32.mrb[0].mxu0
        %v1378 = vadd.f32 0.0, %v1377
        %v1379 = vpop.f32.mrb[0].mxu0
        %v1380 = vpop.f32.mrb[0].mxu0
        %v1381 = vadd.f32 0.0, %v1380
        %v1382 = vpop.f32.mrb[0].mxu0
        %1383 = vmatprep.mubr.bf16.mxu0 0
        %1384 = vmatmul.mubr.bf16.gmra.mrb[0].mxu0 %v1252
        %v1385 = vpop.f32.mrb[0].mxu0
        %v1386 = vadd.f32 0.0, %v1385
        %v1387 = vpop.f32.mrb[0].mxu0
        %v1388 = vpop.f32.mrb[0].mxu0
        %v1389 = vadd.f32 0.0, %v1388
        %v1390 = vpop.f32.mrb[0].mxu0
        %1391 = vmatprep.mubr.bf16.mxu0 0
        %1392 = vmatmul.mubr.bf16.gmra.mrb[0].mxu0 %v1253
        %v1393 = vpop.f32.mrb[0].mxu0
        %v1394 = vadd.f32 0.0, %v1393
        %v1395 = vpop.f32.mrb[0].mxu0
        %v1396 = vpop.f32.mrb[0].mxu0
        %v1397 = vadd.f32 0.0, %v1396
        %v1398 = vpop.f32.mrb[0].mxu0
        %1399 = vmatprep.mubr.bf16.mxu0 0
        %1400 = vmatmul.mubr.bf16.gmra.mrb[0].mxu0 %v1254
        %v1401 = vpop.f32.mrb[0].mxu0
        %v1402 = vadd.f32 0.0, %v1401
        %v1403 = vpop.f32.mrb[0].mxu0
        %v1404 = vpop.f32.mrb[0].mxu0
        %v1405 = vadd.f32 0.0, %v1404
        %v1406 = vpop.f32.mrb[0].mxu0
        %1407 = vdwg.mxu0
        %v1408 = vadd.f32 %v1182, %v1346
        %v1409 = vadd.f32 %v1183, %v1349
        %v1410 = vadd.f32 %v1184, %v1354
        %v1411 = vadd.f32 %v1185, %v1357
        %v1412 = vadd.f32 %v1186, %v1362
        %v1413 = vadd.f32 %v1187, %v1365
        %v1414 = vadd.f32 %v1188, %v1370
        %v1415 = vadd.f32 %v1189, %v1373
        %v1416 = vadd.f32 %v1190, %v1378
        %v1417 = vadd.f32 %v1191, %v1381
        %v1418 = vadd.f32 %v1192, %v1386
        %v1419 = vadd.f32 %v1193, %v1389
        %v1420 = vadd.f32 %v1194, %v1394
        %v1421 = vadd.f32 %v1195, %v1397
        %v1422 = vadd.f32 %v1196, %v1402
        %v1423 = vadd.f32 %v1197, %v1405
        %v1424 = vld [vmem:[%s278 + $0x4] sm:$0xc]
        %v1425 = vld [vmem:[%s278 + $0x8] sm:$0xf]
        %v1426 = vld [vmem:[%s278 + $0xc] sm:$0x3]
        %v1427 = vld [vmem:[%s278 + $0x20] sm:$0xc]
        %v1428 = vld [vmem:[%s278 + $0x24] sm:$0xf]
        %v1429 = vld [vmem:[%s278 + $0x28] sm:$0x3]
        %v1430 = vld [vmem:[%s278 + $0x3c] sm:$0xc]
        %v1431 = vld [vmem:[%s278 + $0x40] sm:$0xf]
        %v1432 = vld [vmem:[%s278 + $0x44] sm:$0x3]
        %v1433 = vld [vmem:[%s278 + $0x58] sm:$0xc]
        %v1434 = vld [vmem:[%s278 + $0x5c] sm:$0xf]
        %v1435 = vld [vmem:[%s278 + $0x60] sm:$0x3]
        %v1436 = vld [vmem:[%s278 + $0x74] sm:$0xc]
        %v1437 = vld [vmem:[%s278 + $0x78] sm:$0xf]
        %v1438 = vld [vmem:[%s278 + $0x7c] sm:$0x3]
        %v1439 = vld [vmem:[%s278 + $0x90] sm:$0xc]
        %v1440 = vld [vmem:[%s278 + $0x94] sm:$0xf]
        %v1441 = vld [vmem:[%s278 + $0x98] sm:$0x3]
        %v1442 = vld [vmem:[%s278 + $0xac] sm:$0xc]
        %v1443 = vld [vmem:[%s278 + $0xb0] sm:$0xf]
        %v1444 = vld [vmem:[%s278 + $0xb4] sm:$0x3]
        %v1445 = vld [vmem:[%s278 + $0xc8] sm:$0xc]
        %v1446 = vld [vmem:[%s278 + $0xcc] sm:$0xf]
        %v1447 = vld [vmem:[%s278 + $0xd0] sm:$0x3]
        %v1472 = vrot.slane %v1424, 6
        %v1473 = vrot.slane %v1472, 4
        %v1474 = vrot.slane %v1425, 6
        %v1475 = vsel %vm456, %v1473, %v1474
        %v1476 = vrot.slane %v1474, 4
        %v1477 = vrot.slane %v1426, 6
        %v1478 = vsel %vm456, %v1476, %v1477
        %v1479 = vrot.slane %v1427, 6
        %v1480 = vrot.slane %v1479, 4
        %v1481 = vrot.slane %v1428, 6
        %v1482 = vsel %vm456, %v1480, %v1481
        %v1483 = vrot.slane %v1481, 4
        %v1484 = vrot.slane %v1429, 6
        %v1485 = vsel %vm456, %v1483, %v1484
        %v1486 = vrot.slane %v1430, 6
        %v1487 = vrot.slane %v1486, 4
        %v1488 = vrot.slane %v1431, 6
        %v1489 = vsel %vm456, %v1487, %v1488
        %v1490 = vrot.slane %v1488, 4
        %v1491 = vrot.slane %v1432, 6
        %v1492 = vsel %vm456, %v1490, %v1491
        %v1493 = vrot.slane %v1433, 6
        %v1494 = vrot.slane %v1493, 4
        %v1495 = vrot.slane %v1434, 6
        %v1496 = vsel %vm456, %v1494, %v1495
        %v1497 = vrot.slane %v1495, 4
        %v1498 = vrot.slane %v1435, 6
        %v1499 = vsel %vm456, %v1497, %v1498
        %v1500 = vrot.slane %v1436, 6
        %v1501 = vrot.slane %v1500, 4
        %v1502 = vrot.slane %v1437, 6
        %v1503 = vsel %vm456, %v1501, %v1502
        %v1504 = vrot.slane %v1502, 4
        %v1505 = vrot.slane %v1438, 6
        %v1506 = vsel %vm456, %v1504, %v1505
        %v1507 = vrot.slane %v1439, 6
        %v1508 = vrot.slane %v1507, 4
        %v1509 = vrot.slane %v1440, 6
        %v1510 = vsel %vm456, %v1508, %v1509
        %v1511 = vrot.slane %v1509, 4
        %v1512 = vrot.slane %v1441, 6
        %v1513 = vsel %vm456, %v1511, %v1512
        %v1514 = vrot.slane %v1442, 6
        %v1515 = vrot.slane %v1514, 4
        %v1516 = vrot.slane %v1443, 6
        %v1517 = vsel %vm456, %v1515, %v1516
        %v1518 = vrot.slane %v1516, 4
        %v1519 = vrot.slane %v1444, 6
        %v1520 = vsel %vm456, %v1518, %v1519
        %v1521 = vrot.slane %v1445, 6
        %v1522 = vrot.slane %v1521, 4
        %v1523 = vrot.slane %v1446, 6
        %v1524 = vsel %vm456, %v1522, %v1523
        %v1525 = vrot.slane %v1523, 4
        %v1526 = vrot.slane %v1447, 6
        %v1527 = vsel %vm456, %v1525, %v1526
        %s1528 = scalar_lea.vmem %s1, 256
        %v1529 = vld [vmem:[%s1528] sm:$0xf]
        %v1530 = vld [vmem:[%s1528 + $0x4] sm:$0xf]
        %v1531 = vld [vmem:[%s1528 + $0x8] sm:$0xf]
        %v1532 = vld [vmem:[%s1528 + $0xc] sm:$0xf]
        %v1533 = vld [vmem:[%s1528 + $0x10] sm:$0xf]
        %v1534 = vld [vmem:[%s1528 + $0x14] sm:$0xf]
        %v1535 = vld [vmem:[%s1528 + $0x18] sm:$0xf]
        %v1536 = vld [vmem:[%s1528 + $0x1c] sm:$0xf]
        %v1537 = vld [vmem:[%s1528 + $0x20] sm:$0xf]
        %v1538 = vld [vmem:[%s1528 + $0x24] sm:$0xf]
        %v1539 = vld [vmem:[%s1528 + $0x28] sm:$0xf]
        %v1540 = vld [vmem:[%s1528 + $0x2c] sm:$0xf]
        %v1541 = vld [vmem:[%s1528 + $0x30] sm:$0xf]
        %v1542 = vld [vmem:[%s1528 + $0x34] sm:$0xf]
        %v1543 = vld [vmem:[%s1528 + $0x38] sm:$0xf]
        %v1544 = vld [vmem:[%s1528 + $0x3c] sm:$0xf]
        %v1545 = vunpack.c.l.b16 %v1475
        %v1546 = vunpack.c.l.b16 %v1478
        %v1547 = vunpack.c.l.b16 %v1482
        %v1548 = vunpack.c.l.b16 %v1485
        %v1549 = vunpack.c.l.b16 %v1489
        %v1550 = vunpack.c.l.b16 %v1492
        %v1551 = vunpack.c.l.b16 %v1496
        %v1552 = vunpack.c.l.b16 %v1499
        %v1553 = vunpack.c.l.b16 %v1503
        %v1554 = vunpack.c.l.b16 %v1506
        %v1555 = vunpack.c.l.b16 %v1510
        %v1556 = vunpack.c.l.b16 %v1513
        %v1557 = vunpack.c.l.b16 %v1517
        %v1558 = vunpack.c.l.b16 %v1520
        %v1559 = vunpack.c.l.b16 %v1524
        %v1560 = vunpack.c.l.b16 %v1527
        %v1561 = vpack.c.b16 %v1546, %v1545
        %v1562 = vpack.c.b16 %v1548, %v1547
        %v1563 = vpack.c.b16 %v1550, %v1549
        %v1564 = vpack.c.b16 %v1552, %v1551
        %v1565 = vpack.c.b16 %v1554, %v1553
        %v1566 = vpack.c.b16 %v1556, %v1555
        %v1567 = vpack.c.b16 %v1558, %v1557
        %v1568 = vpack.c.b16 %v1560, %v1559
        %v1593 = vunpack.c.l.b16 %v1529
        %v1594 = vunpack.c.l.b16 %v1530
        %v1595 = vunpack.c.l.b16 %v1531
        %v1596 = vunpack.c.l.b16 %v1532
        %v1597 = vunpack.c.l.b16 %v1533
        %v1598 = vunpack.c.l.b16 %v1534
        %v1599 = vunpack.c.l.b16 %v1535
        %v1600 = vunpack.c.l.b16 %v1536
        %v1601 = vunpack.c.l.b16 %v1537
        %v1602 = vunpack.c.l.b16 %v1538
        %v1603 = vunpack.c.l.b16 %v1539
        %v1604 = vunpack.c.l.b16 %v1540
        %v1605 = vunpack.c.l.b16 %v1541
        %v1606 = vunpack.c.l.b16 %v1542
        %v1607 = vunpack.c.l.b16 %v1543
        %v1608 = vunpack.c.l.b16 %v1544
        %v1609 = vpack.c.b16 %v1594, %v1593
        %v1610 = vpack.c.b16 %v1596, %v1595
        %v1611 = vpack.c.b16 %v1598, %v1597
        %v1612 = vpack.c.b16 %v1600, %v1599
        %v1613 = vpack.c.b16 %v1602, %v1601
        %v1614 = vpack.c.b16 %v1604, %v1603
        %v1615 = vpack.c.b16 %v1606, %v1605
        %v1616 = vpack.c.b16 %v1608, %v1607
        %1625 = vmatprep.subr.bf16.mxu0 0
        %1626 = vmatpush1.bf16.msra.mxu0 %v1609
        %1627 = vmatprep.subr.bf16.mxu0 0
        %1628 = vmatpush1.bf16.msra.mxu0 %v1610
        %1629 = vmatprep.subr.bf16.mxu0 0
        %1630 = vmatpush1.bf16.msra.mxu0 %v1611
        %1631 = vmatprep.subr.bf16.mxu0 0
        %1632 = vmatpush1.bf16.msra.mxu0 %v1612
        %1633 = vmatprep.subr.bf16.mxu0 0
        %1634 = vmatpush1.bf16.msra.mxu0 %v1613
        %1635 = vmatprep.subr.bf16.mxu0 0
        %1636 = vmatpush1.bf16.msra.mxu0 %v1614
        %1637 = vmatprep.subr.bf16.mxu0 0
        %1638 = vmatpush1.bf16.msra.mxu0 %v1615
        %1639 = vmatprep.subr.bf16.mxu0 0
        %1640 = vmatpush1.bf16.msra.mxu0 %v1616
        %1641 = vmatprep.subr.bf16.mxu0 0
        %1642 = vmatpush1.bf16.msra.mxu0 0
        %1643 = vmatprep.subr.bf16.mxu0 0
        %1644 = vmatpush1.bf16.msra.mxu0 0
        %1645 = vmatprep.subr.bf16.mxu0 0
        %1646 = vmatpush1.bf16.msra.mxu0 0
        %1647 = vmatprep.subr.bf16.mxu0 0
        %1648 = vmatpush1.bf16.msra.mxu0 0
        %1649 = vmatprep.subr.bf16.mxu0 0
        %1650 = vmatpush1.bf16.msra.mxu0 0
        %1651 = vmatprep.subr.bf16.mxu0 0
        %1652 = vmatpush1.bf16.msra.mxu0 0
        %1653 = vmatprep.subr.bf16.mxu0 0
        %1654 = vmatpush1.bf16.msra.mxu0 0
        %1655 = vmatprep.subr.bf16.mxu0 0
        %1656 = vmatpush1.bf16.msra.mxu0 0
        %1657 = vmatprep.mubr.bf16.mxu0 0
        %1658 = vmatmul.mubr.bf16.gmra.mrb[0].mxu0 %v1561
        %v1659 = vpop.f32.mrb[0].mxu0
        %v1660 = vadd.f32 0.0, %v1659
        %v1661 = vpop.f32.mrb[0].mxu0
        %v1662 = vpop.f32.mrb[0].mxu0
        %v1663 = vadd.f32 0.0, %v1662
        %v1664 = vpop.f32.mrb[0].mxu0
        %1665 = vmatprep.mubr.bf16.mxu0 0
        %1666 = vmatmul.mubr.bf16.gmra.mrb[0].mxu0 %v1562
        %v1667 = vpop.f32.mrb[0].mxu0
        %v1668 = vadd.f32 0.0, %v1667
        %v1669 = vpop.f32.mrb[0].mxu0
        %v1670 = vpop.f32.mrb[0].mxu0
        %v1671 = vadd.f32 0.0, %v1670
        %v1672 = vpop.f32.mrb[0].mxu0
        %1673 = vmatprep.mubr.bf16.mxu0 0
        %1674 = vmatmul.mubr.bf16.gmra.mrb[0].mxu0 %v1563
        %v1675 = vpop.f32.mrb[0].mxu0
        %v1676 = vadd.f32 0.0, %v1675
        %v1677 = vpop.f32.mrb[0].mxu0
        %v1678 = vpop.f32.mrb[0].mxu0
        %v1679 = vadd.f32 0.0, %v1678
        %v1680 = vpop.f32.mrb[0].mxu0
        %1681 = vmatprep.mubr.bf16.mxu0 0
        %1682 = vmatmul.mubr.bf16.gmra.mrb[0].mxu0 %v1564
        %v1683 = vpop.f32.mrb[0].mxu0
        %v1684 = vadd.f32 0.0, %v1683
        %v1685 = vpop.f32.mrb[0].mxu0
        %v1686 = vpop.f32.mrb[0].mxu0
        %v1687 = vadd.f32 0.0, %v1686
        %v1688 = vpop.f32.mrb[0].mxu0
        %1689 = vmatprep.mubr.bf16.mxu0 0
        %1690 = vmatmul.mubr.bf16.gmra.mrb[0].mxu0 %v1565
        %v1691 = vpop.f32.mrb[0].mxu0
        %v1692 = vadd.f32 0.0, %v1691
        %v1693 = vpop.f32.mrb[0].mxu0
        %v1694 = vpop.f32.mrb[0].mxu0
        %v1695 = vadd.f32 0.0, %v1694
        %v1696 = vpop.f32.mrb[0].mxu0
        %1697 = vmatprep.mubr.bf16.mxu0 0
        %1698 = vmatmul.mubr.bf16.gmra.mrb[0].mxu0 %v1566
        %v1699 = vpop.f32.mrb[0].mxu0
        %v1700 = vadd.f32 0.0, %v1699
        %v1701 = vpop.f32.mrb[0].mxu0
        %v1702 = vpop.f32.mrb[0].mxu0
        %v1703 = vadd.f32 0.0, %v1702
        %v1704 = vpop.f32.mrb[0].mxu0
        %1705 = vmatprep.mubr.bf16.mxu0 0
        %1706 = vmatmul.mubr.bf16.gmra.mrb[0].mxu0 %v1567
        %v1707 = vpop.f32.mrb[0].mxu0
        %v1708 = vadd.f32 0.0, %v1707
        %v1709 = vpop.f32.mrb[0].mxu0
        %v1710 = vpop.f32.mrb[0].mxu0
        %v1711 = vadd.f32 0.0, %v1710
        %v1712 = vpop.f32.mrb[0].mxu0
        %1713 = vmatprep.mubr.bf16.mxu0 0
        %1714 = vmatmul.mubr.bf16.gmra.mrb[0].mxu0 %v1568
        %v1715 = vpop.f32.mrb[0].mxu0
        %v1716 = vadd.f32 0.0, %v1715
        %v1717 = vpop.f32.mrb[0].mxu0
        %v1718 = vpop.f32.mrb[0].mxu0
        %v1719 = vadd.f32 0.0, %v1718
        %v1720 = vpop.f32.mrb[0].mxu0
        %1721 = vdwg.mxu0
        %v1722 = vadd.f32 %v1408, %v1660
        %v1723 = vadd.f32 %v1409, %v1663
        %v1724 = vadd.f32 %v1410, %v1668
        %v1725 = vadd.f32 %v1411, %v1671
        %v1726 = vadd.f32 %v1412, %v1676
        %v1727 = vadd.f32 %v1413, %v1679
        %v1728 = vadd.f32 %v1414, %v1684
        %v1729 = vadd.f32 %v1415, %v1687
        %v1730 = vadd.f32 %v1416, %v1692
        %v1731 = vadd.f32 %v1417, %v1695
        %v1732 = vadd.f32 %v1418, %v1700
        %v1733 = vadd.f32 %v1419, %v1703
        %v1734 = vadd.f32 %v1420, %v1708
        %v1735 = vadd.f32 %v1421, %v1711
        %v1736 = vadd.f32 %v1422, %v1716
        %v1737 = vadd.f32 %v1423, %v1719
        %s1738 = scalar_lea.vmem %s1, 320
        %v1739 = vld [vmem:[%s1738] sm:$0xf]
        %v1740 = vld [vmem:[%s1738 + $0x4] sm:$0xf]
        %v1741 = vld [vmem:[%s1738 + $0x8] sm:$0xf]
        %v1742 = vld [vmem:[%s1738 + $0xc] sm:$0xf]
        %v1743 = vld [vmem:[%s1738 + $0x10] sm:$0xf]
        %v1744 = vld [vmem:[%s1738 + $0x14] sm:$0xf]
        %v1745 = vld [vmem:[%s1738 + $0x18] sm:$0xf]
        %v1746 = vld [vmem:[%s1738 + $0x1c] sm:$0xf]
        %v1747 = vld [vmem:[%s1738 + $0x20] sm:$0xf]
        %v1748 = vld [vmem:[%s1738 + $0x24] sm:$0xf]
        %v1749 = vld [vmem:[%s1738 + $0x28] sm:$0xf]
        %v1750 = vld [vmem:[%s1738 + $0x2c] sm:$0xf]
        %v1751 = vld [vmem:[%s1738 + $0x30] sm:$0xf]
        %v1752 = vld [vmem:[%s1738 + $0x34] sm:$0xf]
        %v1753 = vld [vmem:[%s1738 + $0x38] sm:$0xf]
        %v1754 = vld [vmem:[%s1738 + $0x3c] sm:$0xf]
        %v1771 = vunpack.c.l.b16 %v1739
        %v1772 = vunpack.c.l.b16 %v1740
        %v1773 = vunpack.c.l.b16 %v1741
        %v1774 = vunpack.c.l.b16 %v1742
        %v1775 = vunpack.c.l.b16 %v1743
        %v1776 = vunpack.c.l.b16 %v1744
        %v1777 = vunpack.c.l.b16 %v1745
        %v1778 = vunpack.c.l.b16 %v1746
        %v1779 = vunpack.c.l.b16 %v1747
        %v1780 = vunpack.c.l.b16 %v1748
        %v1781 = vunpack.c.l.b16 %v1749
        %v1782 = vunpack.c.l.b16 %v1750
        %v1783 = vunpack.c.l.b16 %v1751
        %v1784 = vunpack.c.l.b16 %v1752
        %v1785 = vunpack.c.l.b16 %v1753
        %v1786 = vunpack.c.l.b16 %v1754
        %v1787 = vpack.c.b16 %v1772, %v1771
        %v1788 = vpack.c.b16 %v1774, %v1773
        %v1789 = vpack.c.b16 %v1776, %v1775
        %v1790 = vpack.c.b16 %v1778, %v1777
        %v1791 = vpack.c.b16 %v1780, %v1779
        %v1792 = vpack.c.b16 %v1782, %v1781
        %v1793 = vpack.c.b16 %v1784, %v1783
        %v1794 = vpack.c.b16 %v1786, %v1785
        %1803 = vmatprep.subr.bf16.mxu0 0
        %1804 = vmatpush1.bf16.msra.mxu0 %v1787
        %1805 = vmatprep.subr.bf16.mxu0 0
        %1806 = vmatpush1.bf16.msra.mxu0 %v1788
        %1807 = vmatprep.subr.bf16.mxu0 0
        %1808 = vmatpush1.bf16.msra.mxu0 %v1789
        %1809 = vmatprep.subr.bf16.mxu0 0
        %1810 = vmatpush1.bf16.msra.mxu0 %v1790
        %1811 = vmatprep.subr.bf16.mxu0 0
        %1812 = vmatpush1.bf16.msra.mxu0 %v1791
        %1813 = vmatprep.subr.bf16.mxu0 0
        %1814 = vmatpush1.bf16.msra.mxu0 %v1792
        %1815 = vmatprep.subr.bf16.mxu0 0
        %1816 = vmatpush1.bf16.msra.mxu0 %v1793
        %1817 = vmatprep.subr.bf16.mxu0 0
        %1818 = vmatpush1.bf16.msra.mxu0 %v1794
        %1819 = vmatprep.subr.bf16.mxu0 0
        %1820 = vmatpush1.bf16.msra.mxu0 0
        %1821 = vmatprep.subr.bf16.mxu0 0
        %1822 = vmatpush1.bf16.msra.mxu0 0
        %1823 = vmatprep.subr.bf16.mxu0 0
        %1824 = vmatpush1.bf16.msra.mxu0 0
        %1825 = vmatprep.subr.bf16.mxu0 0
        %1826 = vmatpush1.bf16.msra.mxu0 0
        %1827 = vmatprep.subr.bf16.mxu0 0
        %1828 = vmatpush1.bf16.msra.mxu0 0
        %1829 = vmatprep.subr.bf16.mxu0 0
        %1830 = vmatpush1.bf16.msra.mxu0 0
        %1831 = vmatprep.subr.bf16.mxu0 0
        %1832 = vmatpush1.bf16.msra.mxu0 0
        %1833 = vmatprep.subr.bf16.mxu0 0
        %1834 = vmatpush1.bf16.msra.mxu0 0
        %1835 = vmatprep.mubr.bf16.mxu0 0
        %1836 = vmatmul.mubr.bf16.gmra.mrb[0].mxu0 %v723
        %v1837 = vpop.f32.mrb[0].mxu0
        %v1838 = vadd.f32 0.0, %v1837
        %v1839 = vpop.f32.mrb[0].mxu0
        %v1840 = vpop.f32.mrb[0].mxu0
        %v1841 = vadd.f32 0.0, %v1840
        %v1842 = vpop.f32.mrb[0].mxu0
        %1843 = vmatprep.mubr.bf16.mxu0 0
        %1844 = vmatmul.mubr.bf16.gmra.mrb[0].mxu0 %v724
        %v1845 = vpop.f32.mrb[0].mxu0
        %v1846 = vadd.f32 0.0, %v1845
        %v1847 = vpop.f32.mrb[0].mxu0
        %v1848 = vpop.f32.mrb[0].mxu0
        %v1849 = vadd.f32 0.0, %v1848
        %v1850 = vpop.f32.mrb[0].mxu0
        %1851 = vmatprep.mubr.bf16.mxu0 0
        %1852 = vmatmul.mubr.bf16.gmra.mrb[0].mxu0 %v725
        %v1853 = vpop.f32.mrb[0].mxu0
        %v1854 = vadd.f32 0.0, %v1853
        %v1855 = vpop.f32.mrb[0].mxu0
        %v1856 = vpop.f32.mrb[0].mxu0
        %v1857 = vadd.f32 0.0, %v1856
        %v1858 = vpop.f32.mrb[0].mxu0
        %1859 = vmatprep.mubr.bf16.mxu0 0
        %1860 = vmatmul.mubr.bf16.gmra.mrb[0].mxu0 %v726
        %v1861 = vpop.f32.mrb[0].mxu0
        %v1862 = vadd.f32 0.0, %v1861
        %v1863 = vpop.f32.mrb[0].mxu0
        %v1864 = vpop.f32.mrb[0].mxu0
        %v1865 = vadd.f32 0.0, %v1864
        %v1866 = vpop.f32.mrb[0].mxu0
        %1867 = vmatprep.mubr.bf16.mxu0 0
        %1868 = vmatmul.mubr.bf16.gmra.mrb[0].mxu0 %v727
        %v1869 = vpop.f32.mrb[0].mxu0
        %v1870 = vadd.f32 0.0, %v1869
        %v1871 = vpop.f32.mrb[0].mxu0
        %v1872 = vpop.f32.mrb[0].mxu0
        %v1873 = vadd.f32 0.0, %v1872
        %v1874 = vpop.f32.mrb[0].mxu0
        %1875 = vmatprep.mubr.bf16.mxu0 0
        %1876 = vmatmul.mubr.bf16.gmra.mrb[0].mxu0 %v728
        %v1877 = vpop.f32.mrb[0].mxu0
        %v1878 = vadd.f32 0.0, %v1877
        %v1879 = vpop.f32.mrb[0].mxu0
        %v1880 = vpop.f32.mrb[0].mxu0
        %v1881 = vadd.f32 0.0, %v1880
        %v1882 = vpop.f32.mrb[0].mxu0
        %1883 = vmatprep.mubr.bf16.mxu0 0
        %1884 = vmatmul.mubr.bf16.gmra.mrb[0].mxu0 %v729
        %v1885 = vpop.f32.mrb[0].mxu0
        %v1886 = vadd.f32 0.0, %v1885
        %v1887 = vpop.f32.mrb[0].mxu0
        %v1888 = vpop.f32.mrb[0].mxu0
        %v1889 = vadd.f32 0.0, %v1888
        %v1890 = vpop.f32.mrb[0].mxu0
        %1891 = vmatprep.mubr.bf16.mxu0 0
        %1892 = vmatmul.mubr.bf16.gmra.mrb[0].mxu0 %v730
        %v1893 = vpop.f32.mrb[0].mxu0
        %v1894 = vadd.f32 0.0, %v1893
        %v1895 = vpop.f32.mrb[0].mxu0
        %v1896 = vpop.f32.mrb[0].mxu0
        %v1897 = vadd.f32 0.0, %v1896
        %v1898 = vpop.f32.mrb[0].mxu0
        %1899 = vdwg.mxu0
        %v1900 = vadd.f32 %v1722, %v1838
        %v1901 = vadd.f32 %v1723, %v1841
        %v1902 = vadd.f32 %v1724, %v1846
        %v1903 = vadd.f32 %v1725, %v1849
        %v1904 = vadd.f32 %v1726, %v1854
        %v1905 = vadd.f32 %v1727, %v1857
        %v1906 = vadd.f32 %v1728, %v1862
        %v1907 = vadd.f32 %v1729, %v1865
        %v1908 = vadd.f32 %v1730, %v1870
        %v1909 = vadd.f32 %v1731, %v1873
        %v1910 = vadd.f32 %v1732, %v1878
        %v1911 = vadd.f32 %v1733, %v1881
        %v1912 = vadd.f32 %v1734, %v1886
        %v1913 = vadd.f32 %v1735, %v1889
        %v1914 = vadd.f32 %v1736, %v1894
        %v1915 = vadd.f32 %v1737, %v1897
        %v1916 = vld [vmem:[%s278 + $0x10] sm:$0xf]
        %v1917 = vld [vmem:[%s278 + $0x2c] sm:$0xf]
        %v1918 = vld [vmem:[%s278 + $0x48] sm:$0xf]
        %v1919 = vld [vmem:[%s278 + $0x64] sm:$0xf]
        %v1920 = vld [vmem:[%s278 + $0x80] sm:$0xf]
        %v1921 = vld [vmem:[%s278 + $0x9c] sm:$0xf]
        %v1922 = vld [vmem:[%s278 + $0xb8] sm:$0xf]
        %v1923 = vld [vmem:[%s278 + $0xd4] sm:$0xf]
        %s1924 = scalar_lea.vmem %s1, 384
        %v1925 = vld [vmem:[%s1924] sm:$0xf]
        %v1926 = vld [vmem:[%s1924 + $0x4] sm:$0xf]
        %v1927 = vld [vmem:[%s1924 + $0x8] sm:$0xf]
        %v1928 = vld [vmem:[%s1924 + $0xc] sm:$0xf]
        %v1929 = vld [vmem:[%s1924 + $0x10] sm:$0xf]
        %v1930 = vld [vmem:[%s1924 + $0x14] sm:$0xf]
        %v1931 = vld [vmem:[%s1924 + $0x18] sm:$0xf]
        %v1932 = vld [vmem:[%s1924 + $0x1c] sm:$0xf]
        %v1933 = vld [vmem:[%s1924 + $0x20] sm:$0xf]
        %v1934 = vld [vmem:[%s1924 + $0x24] sm:$0xf]
        %v1935 = vld [vmem:[%s1924 + $0x28] sm:$0xf]
        %v1936 = vld [vmem:[%s1924 + $0x2c] sm:$0xf]
        %v1937 = vld [vmem:[%s1924 + $0x30] sm:$0xf]
        %v1938 = vld [vmem:[%s1924 + $0x34] sm:$0xf]
        %v1939 = vld [vmem:[%s1924 + $0x38] sm:$0xf]
        %v1940 = vld [vmem:[%s1924 + $0x3c] sm:$0xf]
        %v1949 = vunpack.c.l.b16 %v280
        %v1950 = vunpack.c.l.b16 %v1916
        %v1951 = vunpack.c.l.b16 %v283
        %v1952 = vunpack.c.l.b16 %v1917
        %v1953 = vunpack.c.l.b16 %v286
        %v1954 = vunpack.c.l.b16 %v1918
        %v1955 = vunpack.c.l.b16 %v289
        %v1956 = vunpack.c.l.b16 %v1919
        %v1957 = vunpack.c.l.b16 %v292
        %v1958 = vunpack.c.l.b16 %v1920
        %v1959 = vunpack.c.l.b16 %v295
        %v1960 = vunpack.c.l.b16 %v1921
        %v1961 = vunpack.c.l.b16 %v298
        %v1962 = vunpack.c.l.b16 %v1922
        %v1963 = vunpack.c.l.b16 %v301
        %v1964 = vunpack.c.l.b16 %v1923
        %v1965 = vpack.c.b16 %v1950, %v1949
        %v1966 = vpack.c.b16 %v1952, %v1951
        %v1967 = vpack.c.b16 %v1954, %v1953
        %v1968 = vpack.c.b16 %v1956, %v1955
        %v1969 = vpack.c.b16 %v1958, %v1957
        %v1970 = vpack.c.b16 %v1960, %v1959
        %v1971 = vpack.c.b16 %v1962, %v1961
        %v1972 = vpack.c.b16 %v1964, %v1963
        %v1997 = vunpack.c.l.b16 %v1925
        %v1998 = vunpack.c.l.b16 %v1926
        %v1999 = vunpack.c.l.b16 %v1927
        %v2000 = vunpack.c.l.b16 %v1928
        %v2001 = vunpack.c.l.b16 %v1929
        %v2002 = vunpack.c.l.b16 %v1930
        %v2003 = vunpack.c.l.b16 %v1931
        %v2004 = vunpack.c.l.b16 %v1932
        %v2005 = vunpack.c.l.b16 %v1933
        %v2006 = vunpack.c.l.b16 %v1934
        %v2007 = vunpack.c.l.b16 %v1935
        %v2008 = vunpack.c.l.b16 %v1936
        %v2009 = vunpack.c.l.b16 %v1937
        %v2010 = vunpack.c.l.b16 %v1938
        %v2011 = vunpack.c.l.b16 %v1939
        %v2012 = vunpack.c.l.b16 %v1940
        %v2013 = vpack.c.b16 %v1998, %v1997
        %v2014 = vpack.c.b16 %v2000, %v1999
        %v2015 = vpack.c.b16 %v2002, %v2001
        %v2016 = vpack.c.b16 %v2004, %v2003
        %v2017 = vpack.c.b16 %v2006, %v2005
        %v2018 = vpack.c.b16 %v2008, %v2007
        %v2019 = vpack.c.b16 %v2010, %v2009
        %v2020 = vpack.c.b16 %v2012, %v2011
        %2029 = vmatprep.subr.bf16.mxu0 0
        %2030 = vmatpush1.bf16.msra.mxu0 %v2013
        %2031 = vmatprep.subr.bf16.mxu0 0
        %2032 = vmatpush1.bf16.msra.mxu0 %v2014
        %2033 = vmatprep.subr.bf16.mxu0 0
        %2034 = vmatpush1.bf16.msra.mxu0 %v2015
        %2035 = vmatprep.subr.bf16.mxu0 0
        %2036 = vmatpush1.bf16.msra.mxu0 %v2016
        %2037 = vmatprep.subr.bf16.mxu0 0
        %2038 = vmatpush1.bf16.msra.mxu0 %v2017
        %2039 = vmatprep.subr.bf16.mxu0 0
        %2040 = vmatpush1.bf16.msra.mxu0 %v2018
        %2041 = vmatprep.subr.bf16.mxu0 0
        %2042 = vmatpush1.bf16.msra.mxu0 %v2019
        %2043 = vmatprep.subr.bf16.mxu0 0
        %2044 = vmatpush1.bf16.msra.mxu0 %v2020
        %2045 = vmatprep.subr.bf16.mxu0 0
        %2046 = vmatpush1.bf16.msra.mxu0 0
        %2047 = vmatprep.subr.bf16.mxu0 0
        %2048 = vmatpush1.bf16.msra.mxu0 0
        %2049 = vmatprep.subr.bf16.mxu0 0
        %2050 = vmatpush1.bf16.msra.mxu0 0
        %2051 = vmatprep.subr.bf16.mxu0 0
        %2052 = vmatpush1.bf16.msra.mxu0 0
        %2053 = vmatprep.subr.bf16.mxu0 0
        %2054 = vmatpush1.bf16.msra.mxu0 0
        %2055 = vmatprep.subr.bf16.mxu0 0
        %2056 = vmatpush1.bf16.msra.mxu0 0
        %2057 = vmatprep.subr.bf16.mxu0 0
        %2058 = vmatpush1.bf16.msra.mxu0 0
        %2059 = vmatprep.subr.bf16.mxu0 0
        %2060 = vmatpush1.bf16.msra.mxu0 0
        %2061 = vmatprep.mubr.bf16.mxu0 0
        %2062 = vmatmul.mubr.bf16.gmra.mrb[0].mxu0 %v1965
        %v2063 = vpop.f32.mrb[0].mxu0
        %v2064 = vadd.f32 0.0, %v2063
        %v2065 = vpop.f32.mrb[0].mxu0
        %v2066 = vpop.f32.mrb[0].mxu0
        %v2067 = vadd.f32 0.0, %v2066
        %v2068 = vpop.f32.mrb[0].mxu0
        %2069 = vmatprep.mubr.bf16.mxu0 0
        %2070 = vmatmul.mubr.bf16.gmra.mrb[0].mxu0 %v1966
        %v2071 = vpop.f32.mrb[0].mxu0
        %v2072 = vadd.f32 0.0, %v2071
        %v2073 = vpop.f32.mrb[0].mxu0
        %v2074 = vpop.f32.mrb[0].mxu0
        %v2075 = vadd.f32 0.0, %v2074
        %v2076 = vpop.f32.mrb[0].mxu0
        %2077 = vmatprep.mubr.bf16.mxu0 0
        %2078 = vmatmul.mubr.bf16.gmra.mrb[0].mxu0 %v1967
        %v2079 = vpop.f32.mrb[0].mxu0
        %v2080 = vadd.f32 0.0, %v2079
        %v2081 = vpop.f32.mrb[0].mxu0
        %v2082 = vpop.f32.mrb[0].mxu0
        %v2083 = vadd.f32 0.0, %v2082
        %v2084 = vpop.f32.mrb[0].mxu0
        %2085 = vmatprep.mubr.bf16.mxu0 0
        %2086 = vmatmul.mubr.bf16.gmra.mrb[0].mxu0 %v1968
        %v2087 = vpop.f32.mrb[0].mxu0
        %v2088 = vadd.f32 0.0, %v2087
        %v2089 = vpop.f32.mrb[0].mxu0
        %v2090 = vpop.f32.mrb[0].mxu0
        %v2091 = vadd.f32 0.0, %v2090
        %v2092 = vpop.f32.mrb[0].mxu0
        %2093 = vmatprep.mubr.bf16.mxu0 0
        %2094 = vmatmul.mubr.bf16.gmra.mrb[0].mxu0 %v1969
        %v2095 = vpop.f32.mrb[0].mxu0
        %v2096 = vadd.f32 0.0, %v2095
        %v2097 = vpop.f32.mrb[0].mxu0
        %v2098 = vpop.f32.mrb[0].mxu0
        %v2099 = vadd.f32 0.0, %v2098
        %v2100 = vpop.f32.mrb[0].mxu0
        %2101 = vmatprep.mubr.bf16.mxu0 0
        %2102 = vmatmul.mubr.bf16.gmra.mrb[0].mxu0 %v1970
        %v2103 = vpop.f32.mrb[0].mxu0
        %v2104 = vadd.f32 0.0, %v2103
        %v2105 = vpop.f32.mrb[0].mxu0
        %v2106 = vpop.f32.mrb[0].mxu0
        %v2107 = vadd.f32 0.0, %v2106
        %v2108 = vpop.f32.mrb[0].mxu0
        %2109 = vmatprep.mubr.bf16.mxu0 0
        %2110 = vmatmul.mubr.bf16.gmra.mrb[0].mxu0 %v1971
        %v2111 = vpop.f32.mrb[0].mxu0
        %v2112 = vadd.f32 0.0, %v2111
        %v2113 = vpop.f32.mrb[0].mxu0
        %v2114 = vpop.f32.mrb[0].mxu0
        %v2115 = vadd.f32 0.0, %v2114
        %v2116 = vpop.f32.mrb[0].mxu0
        %2117 = vmatprep.mubr.bf16.mxu0 0
        %2118 = vmatmul.mubr.bf16.gmra.mrb[0].mxu0 %v1972
        %v2119 = vpop.f32.mrb[0].mxu0
        %v2120 = vadd.f32 0.0, %v2119
        %v2121 = vpop.f32.mrb[0].mxu0
        %v2122 = vpop.f32.mrb[0].mxu0
        %v2123 = vadd.f32 0.0, %v2122
        %v2124 = vpop.f32.mrb[0].mxu0
        %2125 = vdwg.mxu0
        %v2126 = vadd.f32 %v1900, %v2064
        %v2127 = vadd.f32 %v1901, %v2067
        %v2128 = vadd.f32 %v1902, %v2072
        %v2129 = vadd.f32 %v1903, %v2075
        %v2130 = vadd.f32 %v1904, %v2080
        %v2131 = vadd.f32 %v1905, %v2083
        %v2132 = vadd.f32 %v1906, %v2088
        %v2133 = vadd.f32 %v1907, %v2091
        %v2134 = vadd.f32 %v1908, %v2096
        %v2135 = vadd.f32 %v1909, %v2099
        %v2136 = vadd.f32 %v1910, %v2104
        %v2137 = vadd.f32 %v1911, %v2107
        %v2138 = vadd.f32 %v1912, %v2112
        %v2139 = vadd.f32 %v1913, %v2115
        %v2140 = vadd.f32 %v1914, %v2120
        %v2141 = vadd.f32 %v1915, %v2123
        %s2142 = sadd.s32 %s274, 24
        %s2143 = smul.u32 %s2142, 7
        %s2144 = smul.addr %s2143, 4
        %s2145 = scalar_lea.vmem %s264, %s2144
        %v2146 = vld [vmem:[%s2145 + $0x4] sm:$0xc]
        %v2147 = vld [vmem:[%s2145 + $0x8] sm:$0xf]
        %v2148 = vld [vmem:[%s2145 + $0xc] sm:$0x3]
        %v2149 = vld [vmem:[%s2145 + $0x20] sm:$0xc]
        %v2150 = vld [vmem:[%s2145 + $0x24] sm:$0xf]
        %v2151 = vld [vmem:[%s2145 + $0x28] sm:$0x3]
        %v2152 = vld [vmem:[%s2145 + $0x3c] sm:$0xc]
        %v2153 = vld [vmem:[%s2145 + $0x40] sm:$0xf]
        %v2154 = vld [vmem:[%s2145 + $0x44] sm:$0x3]
        %v2155 = vld [vmem:[%s2145 + $0x58] sm:$0xc]
        %v2156 = vld [vmem:[%s2145 + $0x5c] sm:$0xf]
        %v2157 = vld [vmem:[%s2145 + $0x60] sm:$0x3]
        %v2158 = vld [vmem:[%s2145 + $0x74] sm:$0xc]
        %v2159 = vld [vmem:[%s2145 + $0x78] sm:$0xf]
        %v2160 = vld [vmem:[%s2145 + $0x7c] sm:$0x3]
        %v2161 = vld [vmem:[%s2145 + $0x90] sm:$0xc]
        %v2162 = vld [vmem:[%s2145 + $0x94] sm:$0xf]
        %v2163 = vld [vmem:[%s2145 + $0x98] sm:$0x3]
        %v2164 = vld [vmem:[%s2145 + $0xac] sm:$0xc]
        %v2165 = vld [vmem:[%s2145 + $0xb0] sm:$0xf]
        %v2166 = vld [vmem:[%s2145 + $0xb4] sm:$0x3]
        %v2167 = vld [vmem:[%s2145 + $0xc8] sm:$0xc]
        %v2168 = vld [vmem:[%s2145 + $0xcc] sm:$0xf]
        %v2169 = vld [vmem:[%s2145 + $0xd0] sm:$0x3]
        %v2194 = vrot.slane %v2146, 6
        %v2195 = vrot.slane %v2194, 4
        %v2196 = vrot.slane %v2147, 6
        %v2197 = vsel %vm456, %v2195, %v2196
        %v2198 = vrot.slane %v2196, 4
        %v2199 = vrot.slane %v2148, 6
        %v2200 = vsel %vm456, %v2198, %v2199
        %v2201 = vrot.slane %v2149, 6
        %v2202 = vrot.slane %v2201, 4
        %v2203 = vrot.slane %v2150, 6
        %v2204 = vsel %vm456, %v2202, %v2203
        %v2205 = vrot.slane %v2203, 4
        %v2206 = vrot.slane %v2151, 6
        %v2207 = vsel %vm456, %v2205, %v2206
        %v2208 = vrot.slane %v2152, 6
        %v2209 = vrot.slane %v2208, 4
        %v2210 = vrot.slane %v2153, 6
        %v2211 = vsel %vm456, %v2209, %v2210
        %v2212 = vrot.slane %v2210, 4
        %v2213 = vrot.slane %v2154, 6
        %v2214 = vsel %vm456, %v2212, %v2213
        %v2215 = vrot.slane %v2155, 6
        %v2216 = vrot.slane %v2215, 4
        %v2217 = vrot.slane %v2156, 6
        %v2218 = vsel %vm456, %v2216, %v2217
        %v2219 = vrot.slane %v2217, 4
        %v2220 = vrot.slane %v2157, 6
        %v2221 = vsel %vm456, %v2219, %v2220
        %v2222 = vrot.slane %v2158, 6
        %v2223 = vrot.slane %v2222, 4
        %v2224 = vrot.slane %v2159, 6
        %v2225 = vsel %vm456, %v2223, %v2224
        %v2226 = vrot.slane %v2224, 4
        %v2227 = vrot.slane %v2160, 6
        %v2228 = vsel %vm456, %v2226, %v2227
        %v2229 = vrot.slane %v2161, 6
        %v2230 = vrot.slane %v2229, 4
        %v2231 = vrot.slane %v2162, 6
        %v2232 = vsel %vm456, %v2230, %v2231
        %v2233 = vrot.slane %v2231, 4
        %v2234 = vrot.slane %v2163, 6
        %v2235 = vsel %vm456, %v2233, %v2234
        %v2236 = vrot.slane %v2164, 6
        %v2237 = vrot.slane %v2236, 4
        %v2238 = vrot.slane %v2165, 6
        %v2239 = vsel %vm456, %v2237, %v2238
        %v2240 = vrot.slane %v2238, 4
        %v2241 = vrot.slane %v2166, 6
        %v2242 = vsel %vm456, %v2240, %v2241
        %v2243 = vrot.slane %v2167, 6
        %v2244 = vrot.slane %v2243, 4
        %v2245 = vrot.slane %v2168, 6
        %v2246 = vsel %vm456, %v2244, %v2245
        %v2247 = vrot.slane %v2245, 4
        %v2248 = vrot.slane %v2169, 6
        %v2249 = vsel %vm456, %v2247, %v2248
        %s2250 = scalar_lea.vmem %s1, 448
        %v2251 = vld [vmem:[%s2250] sm:$0xf]
        %v2252 = vld [vmem:[%s2250 + $0x4] sm:$0xf]
        %v2253 = vld [vmem:[%s2250 + $0x8] sm:$0xf]
        %v2254 = vld [vmem:[%s2250 + $0xc] sm:$0xf]
        %v2255 = vld [vmem:[%s2250 + $0x10] sm:$0xf]
        %v2256 = vld [vmem:[%s2250 + $0x14] sm:$0xf]
        %v2257 = vld [vmem:[%s2250 + $0x18] sm:$0xf]
        %v2258 = vld [vmem:[%s2250 + $0x1c] sm:$0xf]
        %v2259 = vld [vmem:[%s2250 + $0x20] sm:$0xf]
        %v2260 = vld [vmem:[%s2250 + $0x24] sm:$0xf]
        %v2261 = vld [vmem:[%s2250 + $0x28] sm:$0xf]
        %v2262 = vld [vmem:[%s2250 + $0x2c] sm:$0xf]
        %v2263 = vld [vmem:[%s2250 + $0x30] sm:$0xf]
        %v2264 = vld [vmem:[%s2250 + $0x34] sm:$0xf]
        %v2265 = vld [vmem:[%s2250 + $0x38] sm:$0xf]
        %v2266 = vld [vmem:[%s2250 + $0x3c] sm:$0xf]
        %v2267 = vunpack.c.l.b16 %v2197
        %v2268 = vunpack.c.l.b16 %v2200
        %v2269 = vunpack.c.l.b16 %v2204
        %v2270 = vunpack.c.l.b16 %v2207
        %v2271 = vunpack.c.l.b16 %v2211
        %v2272 = vunpack.c.l.b16 %v2214
        %v2273 = vunpack.c.l.b16 %v2218
        %v2274 = vunpack.c.l.b16 %v2221
        %v2275 = vunpack.c.l.b16 %v2225
        %v2276 = vunpack.c.l.b16 %v2228
        %v2277 = vunpack.c.l.b16 %v2232
        %v2278 = vunpack.c.l.b16 %v2235
        %v2279 = vunpack.c.l.b16 %v2239
        %v2280 = vunpack.c.l.b16 %v2242
        %v2281 = vunpack.c.l.b16 %v2246
        %v2282 = vunpack.c.l.b16 %v2249
        %v2283 = vpack.c.b16 %v2268, %v2267
        %v2284 = vpack.c.b16 %v2270, %v2269
        %v2285 = vpack.c.b16 %v2272, %v2271
        %v2286 = vpack.c.b16 %v2274, %v2273
        %v2287 = vpack.c.b16 %v2276, %v2275
        %v2288 = vpack.c.b16 %v2278, %v2277
        %v2289 = vpack.c.b16 %v2280, %v2279
        %v2290 = vpack.c.b16 %v2282, %v2281
        %v2315 = vunpack.c.l.b16 %v2251
        %v2316 = vunpack.c.l.b16 %v2252
        %v2317 = vunpack.c.l.b16 %v2253
        %v2318 = vunpack.c.l.b16 %v2254
        %v2319 = vunpack.c.l.b16 %v2255
        %v2320 = vunpack.c.l.b16 %v2256
        %v2321 = vunpack.c.l.b16 %v2257
        %v2322 = vunpack.c.l.b16 %v2258
        %v2323 = vunpack.c.l.b16 %v2259
        %v2324 = vunpack.c.l.b16 %v2260
        %v2325 = vunpack.c.l.b16 %v2261
        %v2326 = vunpack.c.l.b16 %v2262
        %v2327 = vunpack.c.l.b16 %v2263
        %v2328 = vunpack.c.l.b16 %v2264
        %v2329 = vunpack.c.l.b16 %v2265
        %v2330 = vunpack.c.l.b16 %v2266
        %v2331 = vpack.c.b16 %v2316, %v2315
        %v2332 = vpack.c.b16 %v2318, %v2317
        %v2333 = vpack.c.b16 %v2320, %v2319
        %v2334 = vpack.c.b16 %v2322, %v2321
        %v2335 = vpack.c.b16 %v2324, %v2323
        %v2336 = vpack.c.b16 %v2326, %v2325
        %v2337 = vpack.c.b16 %v2328, %v2327
        %v2338 = vpack.c.b16 %v2330, %v2329
        %2347 = vmatprep.subr.bf16.mxu0 0
        %2348 = vmatpush1.bf16.msra.mxu0 %v2331
        %2349 = vmatprep.subr.bf16.mxu0 0
        %2350 = vmatpush1.bf16.msra.mxu0 %v2332
        %2351 = vmatprep.subr.bf16.mxu0 0
        %2352 = vmatpush1.bf16.msra.mxu0 %v2333
        %2353 = vmatprep.subr.bf16.mxu0 0
        %2354 = vmatpush1.bf16.msra.mxu0 %v2334
        %2355 = vmatprep.subr.bf16.mxu0 0
        %2356 = vmatpush1.bf16.msra.mxu0 %v2335
        %2357 = vmatprep.subr.bf16.mxu0 0
        %2358 = vmatpush1.bf16.msra.mxu0 %v2336
        %2359 = vmatprep.subr.bf16.mxu0 0
        %2360 = vmatpush1.bf16.msra.mxu0 %v2337
        %2361 = vmatprep.subr.bf16.mxu0 0
        %2362 = vmatpush1.bf16.msra.mxu0 %v2338
        %2363 = vmatprep.subr.bf16.mxu0 0
        %2364 = vmatpush1.bf16.msra.mxu0 0
        %2365 = vmatprep.subr.bf16.mxu0 0
        %2366 = vmatpush1.bf16.msra.mxu0 0
        %2367 = vmatprep.subr.bf16.mxu0 0
        %2368 = vmatpush1.bf16.msra.mxu0 0
        %2369 = vmatprep.subr.bf16.mxu0 0
        %2370 = vmatpush1.bf16.msra.mxu0 0
        %2371 = vmatprep.subr.bf16.mxu0 0
        %2372 = vmatpush1.bf16.msra.mxu0 0
        %2373 = vmatprep.subr.bf16.mxu0 0
        %2374 = vmatpush1.bf16.msra.mxu0 0
        %2375 = vmatprep.subr.bf16.mxu0 0
        %2376 = vmatpush1.bf16.msra.mxu0 0
        %2377 = vmatprep.subr.bf16.mxu0 0
        %2378 = vmatpush1.bf16.msra.mxu0 0
        %2379 = vmatprep.mubr.bf16.mxu0 0
        %2380 = vmatmul.mubr.bf16.gmra.mrb[0].mxu0 %v2283
        %v2381 = vpop.f32.mrb[0].mxu0
        %v2382 = vadd.f32 0.0, %v2381
        %v2383 = vpop.f32.mrb[0].mxu0
        %v2384 = vpop.f32.mrb[0].mxu0
        %v2385 = vadd.f32 0.0, %v2384
        %v2386 = vpop.f32.mrb[0].mxu0
        %2387 = vmatprep.mubr.bf16.mxu0 0
        %2388 = vmatmul.mubr.bf16.gmra.mrb[0].mxu0 %v2284
        %v2389 = vpop.f32.mrb[0].mxu0
        %v2390 = vadd.f32 0.0, %v2389
        %v2391 = vpop.f32.mrb[0].mxu0
        %v2392 = vpop.f32.mrb[0].mxu0
        %v2393 = vadd.f32 0.0, %v2392
        %v2394 = vpop.f32.mrb[0].mxu0
        %2395 = vmatprep.mubr.bf16.mxu0 0
        %2396 = vmatmul.mubr.bf16.gmra.mrb[0].mxu0 %v2285
        %v2397 = vpop.f32.mrb[0].mxu0
        %v2398 = vadd.f32 0.0, %v2397
        %v2399 = vpop.f32.mrb[0].mxu0
        %v2400 = vpop.f32.mrb[0].mxu0
        %v2401 = vadd.f32 0.0, %v2400
        %v2402 = vpop.f32.mrb[0].mxu0
        %2403 = vmatprep.mubr.bf16.mxu0 0
        %2404 = vmatmul.mubr.bf16.gmra.mrb[0].mxu0 %v2286
        %v2405 = vpop.f32.mrb[0].mxu0
        %v2406 = vadd.f32 0.0, %v2405
        %v2407 = vpop.f32.mrb[0].mxu0
        %v2408 = vpop.f32.mrb[0].mxu0
        %v2409 = vadd.f32 0.0, %v2408
        %v2410 = vpop.f32.mrb[0].mxu0
        %2411 = vmatprep.mubr.bf16.mxu0 0
        %2412 = vmatmul.mubr.bf16.gmra.mrb[0].mxu0 %v2287
        %v2413 = vpop.f32.mrb[0].mxu0
        %v2414 = vadd.f32 0.0, %v2413
        %v2415 = vpop.f32.mrb[0].mxu0
        %v2416 = vpop.f32.mrb[0].mxu0
        %v2417 = vadd.f32 0.0, %v2416
        %v2418 = vpop.f32.mrb[0].mxu0
        %2419 = vmatprep.mubr.bf16.mxu0 0
        %2420 = vmatmul.mubr.bf16.gmra.mrb[0].mxu0 %v2288
        %v2421 = vpop.f32.mrb[0].mxu0
        %v2422 = vadd.f32 0.0, %v2421
        %v2423 = vpop.f32.mrb[0].mxu0
        %v2424 = vpop.f32.mrb[0].mxu0
        %v2425 = vadd.f32 0.0, %v2424
        %v2426 = vpop.f32.mrb[0].mxu0
        %2427 = vmatprep.mubr.bf16.mxu0 0
        %2428 = vmatmul.mubr.bf16.gmra.mrb[0].mxu0 %v2289
        %v2429 = vpop.f32.mrb[0].mxu0
        %v2430 = vadd.f32 0.0, %v2429
        %v2431 = vpop.f32.mrb[0].mxu0
        %v2432 = vpop.f32.mrb[0].mxu0
        %v2433 = vadd.f32 0.0, %v2432
        %v2434 = vpop.f32.mrb[0].mxu0
        %2435 = vmatprep.mubr.bf16.mxu0 0
        %2436 = vmatmul.mubr.bf16.gmra.mrb[0].mxu0 %v2290
        %v2437 = vpop.f32.mrb[0].mxu0
        %v2438 = vadd.f32 0.0, %v2437
        %v2439 = vpop.f32.mrb[0].mxu0
        %v2440 = vpop.f32.mrb[0].mxu0
        %v2441 = vadd.f32 0.0, %v2440
        %v2442 = vpop.f32.mrb[0].mxu0
        %2443 = vdwg.mxu0
        %v2444 = vadd.f32 %v2126, %v2382
        %v2445 = vadd.f32 %v2127, %v2385
        %v2446 = vadd.f32 %v2128, %v2390
        %v2447 = vadd.f32 %v2129, %v2393
        %v2448 = vadd.f32 %v2130, %v2398
        %v2449 = vadd.f32 %v2131, %v2401
        %v2450 = vadd.f32 %v2132, %v2406
        %v2451 = vadd.f32 %v2133, %v2409
        %v2452 = vadd.f32 %v2134, %v2414
        %v2453 = vadd.f32 %v2135, %v2417
        %v2454 = vadd.f32 %v2136, %v2422
        %v2455 = vadd.f32 %v2137, %v2425
        %v2456 = vadd.f32 %v2138, %v2430
        %v2457 = vadd.f32 %v2139, %v2433
        %v2458 = vadd.f32 %v2140, %v2438
        %v2459 = vadd.f32 %v2141, %v2441
        %v2460 = vld [vmem:[%s2145 + $0x8] sm:$0xe]
        %v2461 = vld [vmem:[%s2145 + $0xc] sm:$0xf]
        %v2462 = vld [vmem:[%s2145 + $0x10] sm:$0x1]
        %v2463 = vld [vmem:[%s2145 + $0x24] sm:$0xe]
        %v2464 = vld [vmem:[%s2145 + $0x28] sm:$0xf]
        %v2465 = vld [vmem:[%s2145 + $0x2c] sm:$0x1]
        %v2466 = vld [vmem:[%s2145 + $0x40] sm:$0xe]
        %v2467 = vld [vmem:[%s2145 + $0x44] sm:$0xf]
        %v2468 = vld [vmem:[%s2145 + $0x48] sm:$0x1]
        %v2469 = vld [vmem:[%s2145 + $0x5c] sm:$0xe]
        %v2470 = vld [vmem:[%s2145 + $0x60] sm:$0xf]
        %v2471 = vld [vmem:[%s2145 + $0x64] sm:$0x1]
        %v2472 = vld [vmem:[%s2145 + $0x78] sm:$0xe]
        %v2473 = vld [vmem:[%s2145 + $0x7c] sm:$0xf]
        %v2474 = vld [vmem:[%s2145 + $0x80] sm:$0x1]
        %v2475 = vld [vmem:[%s2145 + $0x94] sm:$0xe]
        %v2476 = vld [vmem:[%s2145 + $0x98] sm:$0xf]
        %v2477 = vld [vmem:[%s2145 + $0x9c] sm:$0x1]
        %v2478 = vld [vmem:[%s2145 + $0xb0] sm:$0xe]
        %v2479 = vld [vmem:[%s2145 + $0xb4] sm:$0xf]
        %v2480 = vld [vmem:[%s2145 + $0xb8] sm:$0x1]
        %v2481 = vld [vmem:[%s2145 + $0xcc] sm:$0xe]
        %v2482 = vld [vmem:[%s2145 + $0xd0] sm:$0xf]
        %v2483 = vld [vmem:[%s2145 + $0xd4] sm:$0x1]
        %v2508 = vrot.slane %v2460, 5
        %v2509 = vrot.slane %v2508, 4
        %v2510 = vrot.slane %v2461, 5
        %v2511 = vsel %vm329, %v2509, %v2510
        %v2512 = vrot.slane %v2510, 4
        %v2513 = vrot.slane %v2462, 5
        %v2514 = vsel %vm329, %v2512, %v2513
        %v2515 = vrot.slane %v2463, 5
        %v2516 = vrot.slane %v2515, 4
        %v2517 = vrot.slane %v2464, 5
        %v2518 = vsel %vm329, %v2516, %v2517
        %v2519 = vrot.slane %v2517, 4
        %v2520 = vrot.slane %v2465, 5
        %v2521 = vsel %vm329, %v2519, %v2520
        %v2522 = vrot.slane %v2466, 5
        %v2523 = vrot.slane %v2522, 4
        %v2524 = vrot.slane %v2467, 5
        %v2525 = vsel %vm329, %v2523, %v2524
        %v2526 = vrot.slane %v2524, 4
        %v2527 = vrot.slane %v2468, 5
        %v2528 = vsel %vm329, %v2526, %v2527
        %v2529 = vrot.slane %v2469, 5
        %v2530 = vrot.slane %v2529, 4
        %v2531 = vrot.slane %v2470, 5
        %v2532 = vsel %vm329, %v2530, %v2531
        %v2533 = vrot.slane %v2531, 4
        %v2534 = vrot.slane %v2471, 5
        %v2535 = vsel %vm329, %v2533, %v2534
        %v2536 = vrot.slane %v2472, 5
        %v2537 = vrot.slane %v2536, 4
        %v2538 = vrot.slane %v2473, 5
        %v2539 = vsel %vm329, %v2537, %v2538
        %v2540 = vrot.slane %v2538, 4
        %v2541 = vrot.slane %v2474, 5
        %v2542 = vsel %vm329, %v2540, %v2541
        %v2543 = vrot.slane %v2475, 5
        %v2544 = vrot.slane %v2543, 4
        %v2545 = vrot.slane %v2476, 5
        %v2546 = vsel %vm329, %v2544, %v2545
        %v2547 = vrot.slane %v2545, 4
        %v2548 = vrot.slane %v2477, 5
        %v2549 = vsel %vm329, %v2547, %v2548
        %v2550 = vrot.slane %v2478, 5
        %v2551 = vrot.slane %v2550, 4
        %v2552 = vrot.slane %v2479, 5
        %v2553 = vsel %vm329, %v2551, %v2552
        %v2554 = vrot.slane %v2552, 4
        %v2555 = vrot.slane %v2480, 5
        %v2556 = vsel %vm329, %v2554, %v2555
        %v2557 = vrot.slane %v2481, 5
        %v2558 = vrot.slane %v2557, 4
        %v2559 = vrot.slane %v2482, 5
        %v2560 = vsel %vm329, %v2558, %v2559
        %v2561 = vrot.slane %v2559, 4
        %v2562 = vrot.slane %v2483, 5
        %v2563 = vsel %vm329, %v2561, %v2562
        %s2564 = scalar_lea.vmem %s1, 512
        %v2565 = vld [vmem:[%s2564] sm:$0xf]
        %v2566 = vld [vmem:[%s2564 + $0x4] sm:$0xf]
        %v2567 = vld [vmem:[%s2564 + $0x8] sm:$0xf]
        %v2568 = vld [vmem:[%s2564 + $0xc] sm:$0xf]
        %v2569 = vld [vmem:[%s2564 + $0x10] sm:$0xf]
        %v2570 = vld [vmem:[%s2564 + $0x14] sm:$0xf]
        %v2571 = vld [vmem:[%s2564 + $0x18] sm:$0xf]
        %v2572 = vld [vmem:[%s2564 + $0x1c] sm:$0xf]
        %v2573 = vld [vmem:[%s2564 + $0x20] sm:$0xf]
        %v2574 = vld [vmem:[%s2564 + $0x24] sm:$0xf]
        %v2575 = vld [vmem:[%s2564 + $0x28] sm:$0xf]
        %v2576 = vld [vmem:[%s2564 + $0x2c] sm:$0xf]
        %v2577 = vld [vmem:[%s2564 + $0x30] sm:$0xf]
        %v2578 = vld [vmem:[%s2564 + $0x34] sm:$0xf]
        %v2579 = vld [vmem:[%s2564 + $0x38] sm:$0xf]
        %v2580 = vld [vmem:[%s2564 + $0x3c] sm:$0xf]
        %v2581 = vunpack.c.l.b16 %v2511
        %v2582 = vunpack.c.l.b16 %v2514
        %v2583 = vunpack.c.l.b16 %v2518
        %v2584 = vunpack.c.l.b16 %v2521
        %v2585 = vunpack.c.l.b16 %v2525
        %v2586 = vunpack.c.l.b16 %v2528
        %v2587 = vunpack.c.l.b16 %v2532
        %v2588 = vunpack.c.l.b16 %v2535
        %v2589 = vunpack.c.l.b16 %v2539
        %v2590 = vunpack.c.l.b16 %v2542
        %v2591 = vunpack.c.l.b16 %v2546
        %v2592 = vunpack.c.l.b16 %v2549
        %v2593 = vunpack.c.l.b16 %v2553
        %v2594 = vunpack.c.l.b16 %v2556
        %v2595 = vunpack.c.l.b16 %v2560
        %v2596 = vunpack.c.l.b16 %v2563
        %v2597 = vpack.c.b16 %v2582, %v2581
        %v2598 = vpack.c.b16 %v2584, %v2583
        %v2599 = vpack.c.b16 %v2586, %v2585
        %v2600 = vpack.c.b16 %v2588, %v2587
        %v2601 = vpack.c.b16 %v2590, %v2589
        %v2602 = vpack.c.b16 %v2592, %v2591
        %v2603 = vpack.c.b16 %v2594, %v2593
        %v2604 = vpack.c.b16 %v2596, %v2595
        %v2629 = vunpack.c.l.b16 %v2565
        %v2630 = vunpack.c.l.b16 %v2566
        %v2631 = vunpack.c.l.b16 %v2567
        %v2632 = vunpack.c.l.b16 %v2568
        %v2633 = vunpack.c.l.b16 %v2569
        %v2634 = vunpack.c.l.b16 %v2570
        %v2635 = vunpack.c.l.b16 %v2571
        %v2636 = vunpack.c.l.b16 %v2572
        %v2637 = vunpack.c.l.b16 %v2573
        %v2638 = vunpack.c.l.b16 %v2574
        %v2639 = vunpack.c.l.b16 %v2575
        %v2640 = vunpack.c.l.b16 %v2576
        %v2641 = vunpack.c.l.b16 %v2577
        %v2642 = vunpack.c.l.b16 %v2578
        %v2643 = vunpack.c.l.b16 %v2579
        %v2644 = vunpack.c.l.b16 %v2580
        %v2645 = vpack.c.b16 %v2630, %v2629
        %v2646 = vpack.c.b16 %v2632, %v2631
        %v2647 = vpack.c.b16 %v2634, %v2633
        %v2648 = vpack.c.b16 %v2636, %v2635
        %v2649 = vpack.c.b16 %v2638, %v2637
        %v2650 = vpack.c.b16 %v2640, %v2639
        %v2651 = vpack.c.b16 %v2642, %v2641
        %v2652 = vpack.c.b16 %v2644, %v2643
        %2661 = vmatprep.subr.bf16.mxu0 0
        %2662 = vmatpush1.bf16.msra.mxu0 %v2645
        %2663 = vmatprep.subr.bf16.mxu0 0
        %2664 = vmatpush1.bf16.msra.mxu0 %v2646
        %2665 = vmatprep.subr.bf16.mxu0 0
        %2666 = vmatpush1.bf16.msra.mxu0 %v2647
        %2667 = vmatprep.subr.bf16.mxu0 0
        %2668 = vmatpush1.bf16.msra.mxu0 %v2648
        %2669 = vmatprep.subr.bf16.mxu0 0
        %2670 = vmatpush1.bf16.msra.mxu0 %v2649
        %2671 = vmatprep.subr.bf16.mxu0 0
        %2672 = vmatpush1.bf16.msra.mxu0 %v2650
        %2673 = vmatprep.subr.bf16.mxu0 0
        %2674 = vmatpush1.bf16.msra.mxu0 %v2651
        %2675 = vmatprep.subr.bf16.mxu0 0
        %2676 = vmatpush1.bf16.msra.mxu0 %v2652
        %2677 = vmatprep.subr.bf16.mxu0 0
        %2678 = vmatpush1.bf16.msra.mxu0 0
        %2679 = vmatprep.subr.bf16.mxu0 0
        %2680 = vmatpush1.bf16.msra.mxu0 0
        %2681 = vmatprep.subr.bf16.mxu0 0
        %2682 = vmatpush1.bf16.msra.mxu0 0
        %2683 = vmatprep.subr.bf16.mxu0 0
        %2684 = vmatpush1.bf16.msra.mxu0 0
        %2685 = vmatprep.subr.bf16.mxu0 0
        %2686 = vmatpush1.bf16.msra.mxu0 0
        %2687 = vmatprep.subr.bf16.mxu0 0
        %2688 = vmatpush1.bf16.msra.mxu0 0
        %2689 = vmatprep.subr.bf16.mxu0 0
        %2690 = vmatpush1.bf16.msra.mxu0 0
        %2691 = vmatprep.subr.bf16.mxu0 0
        %2692 = vmatpush1.bf16.msra.mxu0 0
        %2693 = vmatprep.mubr.bf16.mxu0 0
        %2694 = vmatmul.mubr.bf16.gmra.mrb[0].mxu0 %v2597
        %v2695 = vpop.f32.mrb[0].mxu0
        %v2696 = vadd.f32 0.0, %v2695
        %v2697 = vpop.f32.mrb[0].mxu0
        %v2698 = vpop.f32.mrb[0].mxu0
        %v2699 = vadd.f32 0.0, %v2698
        %v2700 = vpop.f32.mrb[0].mxu0
        %2701 = vmatprep.mubr.bf16.mxu0 0
        %2702 = vmatmul.mubr.bf16.gmra.mrb[0].mxu0 %v2598
        %v2703 = vpop.f32.mrb[0].mxu0
        %v2704 = vadd.f32 0.0, %v2703
        %v2705 = vpop.f32.mrb[0].mxu0
        %v2706 = vpop.f32.mrb[0].mxu0
        %v2707 = vadd.f32 0.0, %v2706
        %v2708 = vpop.f32.mrb[0].mxu0
        %2709 = vmatprep.mubr.bf16.mxu0 0
        %2710 = vmatmul.mubr.bf16.gmra.mrb[0].mxu0 %v2599
        %v2711 = vpop.f32.mrb[0].mxu0
        %v2712 = vadd.f32 0.0, %v2711
        %v2713 = vpop.f32.mrb[0].mxu0
        %v2714 = vpop.f32.mrb[0].mxu0
        %v2715 = vadd.f32 0.0, %v2714
        %v2716 = vpop.f32.mrb[0].mxu0
        %2717 = vmatprep.mubr.bf16.mxu0 0
        %2718 = vmatmul.mubr.bf16.gmra.mrb[0].mxu0 %v2600
        %v2719 = vpop.f32.mrb[0].mxu0
        %v2720 = vadd.f32 0.0, %v2719
        %v2721 = vpop.f32.mrb[0].mxu0
        %v2722 = vpop.f32.mrb[0].mxu0
        %v2723 = vadd.f32 0.0, %v2722
        %v2724 = vpop.f32.mrb[0].mxu0
        %2725 = vmatprep.mubr.bf16.mxu0 0
        %2726 = vmatmul.mubr.bf16.gmra.mrb[0].mxu0 %v2601
        %v2727 = vpop.f32.mrb[0].mxu0
        %v2728 = vadd.f32 0.0, %v2727
        %v2729 = vpop.f32.mrb[0].mxu0
        %v2730 = vpop.f32.mrb[0].mxu0
        %v2731 = vadd.f32 0.0, %v2730
        %v2732 = vpop.f32.mrb[0].mxu0
        %2733 = vmatprep.mubr.bf16.mxu0 0
        %2734 = vmatmul.mubr.bf16.gmra.mrb[0].mxu0 %v2602
        %v2735 = vpop.f32.mrb[0].mxu0
        %v2736 = vadd.f32 0.0, %v2735
        %v2737 = vpop.f32.mrb[0].mxu0
        %v2738 = vpop.f32.mrb[0].mxu0
        %v2739 = vadd.f32 0.0, %v2738
        %v2740 = vpop.f32.mrb[0].mxu0
        %2741 = vmatprep.mubr.bf16.mxu0 0
        %2742 = vmatmul.mubr.bf16.gmra.mrb[0].mxu0 %v2603
        %v2743 = vpop.f32.mrb[0].mxu0
        %v2744 = vadd.f32 0.0, %v2743
        %v2745 = vpop.f32.mrb[0].mxu0
        %v2746 = vpop.f32.mrb[0].mxu0
        %v2747 = vadd.f32 0.0, %v2746
        %v2748 = vpop.f32.mrb[0].mxu0
        %2749 = vmatprep.mubr.bf16.mxu0 0
        %2750 = vmatmul.mubr.bf16.gmra.mrb[0].mxu0 %v2604
        %v2751 = vpop.f32.mrb[0].mxu0
        %v2752 = vadd.f32 0.0, %v2751
        %v2753 = vpop.f32.mrb[0].mxu0
        %v2754 = vpop.f32.mrb[0].mxu0
        %v2755 = vadd.f32 0.0, %v2754
        %v2756 = vpop.f32.mrb[0].mxu0
        %2757 = vdwg.mxu0
        %v2758 = vadd.f32 %v2444, %v2696
        %v2759 = vadd.f32 %v2445, %v2699
        %v2760 = vadd.f32 %v2446, %v2704
        %v2761 = vadd.f32 %v2447, %v2707
        %v2762 = vadd.f32 %v2448, %v2712
        %v2763 = vadd.f32 %v2449, %v2715
        %v2764 = vadd.f32 %v2450, %v2720
        %v2765 = vadd.f32 %v2451, %v2723
        %v2766 = vadd.f32 %v2452, %v2728
        %v2767 = vadd.f32 %v2453, %v2731
        %v2768 = vadd.f32 %v2454, %v2736
        %v2769 = vadd.f32 %v2455, %v2739
        %v2770 = vadd.f32 %v2456, %v2744
        %v2771 = vadd.f32 %v2457, %v2747
        %v2772 = vadd.f32 %v2458, %v2752
        %v2773 = vadd.f32 %v2459, %v2755
        %v2774 = vld [vmem:[%s2145 + $0x10] sm:$0xf]
        %v2775 = vld [vmem:[%s2145 + $0x2c] sm:$0xf]
        %v2776 = vld [vmem:[%s2145 + $0x48] sm:$0xf]
        %v2777 = vld [vmem:[%s2145 + $0x64] sm:$0xf]
        %v2778 = vld [vmem:[%s2145 + $0x80] sm:$0xf]
        %v2779 = vld [vmem:[%s2145 + $0x9c] sm:$0xf]
        %v2780 = vld [vmem:[%s2145 + $0xb8] sm:$0xf]
        %v2781 = vld [vmem:[%s2145 + $0xd4] sm:$0xf]
        %s2782 = scalar_lea.vmem %s1, 576
        %v2783 = vld [vmem:[%s2782] sm:$0xf]
        %v2784 = vld [vmem:[%s2782 + $0x4] sm:$0xf]
        %v2785 = vld [vmem:[%s2782 + $0x8] sm:$0xf]
        %v2786 = vld [vmem:[%s2782 + $0xc] sm:$0xf]
        %v2787 = vld [vmem:[%s2782 + $0x10] sm:$0xf]
        %v2788 = vld [vmem:[%s2782 + $0x14] sm:$0xf]
        %v2789 = vld [vmem:[%s2782 + $0x18] sm:$0xf]
        %v2790 = vld [vmem:[%s2782 + $0x1c] sm:$0xf]
        %v2791 = vld [vmem:[%s2782 + $0x20] sm:$0xf]
        %v2792 = vld [vmem:[%s2782 + $0x24] sm:$0xf]
        %v2793 = vld [vmem:[%s2782 + $0x28] sm:$0xf]
        %v2794 = vld [vmem:[%s2782 + $0x2c] sm:$0xf]
        %v2795 = vld [vmem:[%s2782 + $0x30] sm:$0xf]
        %v2796 = vld [vmem:[%s2782 + $0x34] sm:$0xf]
        %v2797 = vld [vmem:[%s2782 + $0x38] sm:$0xf]
        %v2798 = vld [vmem:[%s2782 + $0x3c] sm:$0xf]
        %v2807 = vunpack.c.l.b16 %v2461
        %v2808 = vunpack.c.l.b16 %v2774
        %v2809 = vunpack.c.l.b16 %v2464
        %v2810 = vunpack.c.l.b16 %v2775
        %v2811 = vunpack.c.l.b16 %v2467
        %v2812 = vunpack.c.l.b16 %v2776
        %v2813 = vunpack.c.l.b16 %v2470
        %v2814 = vunpack.c.l.b16 %v2777
        %v2815 = vunpack.c.l.b16 %v2473
        %v2816 = vunpack.c.l.b16 %v2778
        %v2817 = vunpack.c.l.b16 %v2476
        %v2818 = vunpack.c.l.b16 %v2779
        %v2819 = vunpack.c.l.b16 %v2479
        %v2820 = vunpack.c.l.b16 %v2780
        %v2821 = vunpack.c.l.b16 %v2482
        %v2822 = vunpack.c.l.b16 %v2781
        %v2823 = vpack.c.b16 %v2808, %v2807
        %v2824 = vpack.c.b16 %v2810, %v2809
        %v2825 = vpack.c.b16 %v2812, %v2811
        %v2826 = vpack.c.b16 %v2814, %v2813
        %v2827 = vpack.c.b16 %v2816, %v2815
        %v2828 = vpack.c.b16 %v2818, %v2817
        %v2829 = vpack.c.b16 %v2820, %v2819
        %v2830 = vpack.c.b16 %v2822, %v2821
        %v2855 = vunpack.c.l.b16 %v2783
        %v2856 = vunpack.c.l.b16 %v2784
        %v2857 = vunpack.c.l.b16 %v2785
        %v2858 = vunpack.c.l.b16 %v2786
        %v2859 = vunpack.c.l.b16 %v2787
        %v2860 = vunpack.c.l.b16 %v2788
        %v2861 = vunpack.c.l.b16 %v2789
        %v2862 = vunpack.c.l.b16 %v2790
        %v2863 = vunpack.c.l.b16 %v2791
        %v2864 = vunpack.c.l.b16 %v2792
        %v2865 = vunpack.c.l.b16 %v2793
        %v2866 = vunpack.c.l.b16 %v2794
        %v2867 = vunpack.c.l.b16 %v2795
        %v2868 = vunpack.c.l.b16 %v2796
        %v2869 = vunpack.c.l.b16 %v2797
        %v2870 = vunpack.c.l.b16 %v2798
        %v2871 = vpack.c.b16 %v2856, %v2855
        %v2872 = vpack.c.b16 %v2858, %v2857
        %v2873 = vpack.c.b16 %v2860, %v2859
        %v2874 = vpack.c.b16 %v2862, %v2861
        %v2875 = vpack.c.b16 %v2864, %v2863
        %v2876 = vpack.c.b16 %v2866, %v2865
        %v2877 = vpack.c.b16 %v2868, %v2867
        %v2878 = vpack.c.b16 %v2870, %v2869
        %2887 = vmatprep.subr.bf16.mxu0 0
        %2888 = vmatpush1.bf16.msra.mxu0 %v2871
        %2889 = vmatprep.subr.bf16.mxu0 0
        %2890 = vmatpush1.bf16.msra.mxu0 %v2872
        %2891 = vmatprep.subr.bf16.mxu0 0
        %2892 = vmatpush1.bf16.msra.mxu0 %v2873
        %2893 = vmatprep.subr.bf16.mxu0 0
        %2894 = vmatpush1.bf16.msra.mxu0 %v2874
        %2895 = vmatprep.subr.bf16.mxu0 0
        %2896 = vmatpush1.bf16.msra.mxu0 %v2875
        %2897 = vmatprep.subr.bf16.mxu0 0
        %2898 = vmatpush1.bf16.msra.mxu0 %v2876
        %2899 = vmatprep.subr.bf16.mxu0 0
        %2900 = vmatpush1.bf16.msra.mxu0 %v2877
        %2901 = vmatprep.subr.bf16.mxu0 0
        %2902 = vmatpush1.bf16.msra.mxu0 %v2878
        %2903 = vmatprep.subr.bf16.mxu0 0
        %2904 = vmatpush1.bf16.msra.mxu0 0
        %2905 = vmatprep.subr.bf16.mxu0 0
        %2906 = vmatpush1.bf16.msra.mxu0 0
        %2907 = vmatprep.subr.bf16.mxu0 0
        %2908 = vmatpush1.bf16.msra.mxu0 0
        %2909 = vmatprep.subr.bf16.mxu0 0
        %2910 = vmatpush1.bf16.msra.mxu0 0
        %2911 = vmatprep.subr.bf16.mxu0 0
        %2912 = vmatpush1.bf16.msra.mxu0 0
        %2913 = vmatprep.subr.bf16.mxu0 0
        %2914 = vmatpush1.bf16.msra.mxu0 0
        %2915 = vmatprep.subr.bf16.mxu0 0
        %2916 = vmatpush1.bf16.msra.mxu0 0
        %2917 = vmatprep.subr.bf16.mxu0 0
        %2918 = vmatpush1.bf16.msra.mxu0 0
        %2919 = vmatprep.mubr.bf16.mxu0 0
        %2920 = vmatmul.mubr.bf16.gmra.mrb[0].mxu0 %v2823
        %v2921 = vpop.f32.mrb[0].mxu0
        %v2922 = vadd.f32 0.0, %v2921
        %v2923 = vpop.f32.mrb[0].mxu0
        %v2924 = vpop.f32.mrb[0].mxu0
        %v2925 = vadd.f32 0.0, %v2924
        %v2926 = vpop.f32.mrb[0].mxu0
        %2927 = vmatprep.mubr.bf16.mxu0 0
        %2928 = vmatmul.mubr.bf16.gmra.mrb[0].mxu0 %v2824
        %v2929 = vpop.f32.mrb[0].mxu0
        %v2930 = vadd.f32 0.0, %v2929
        %v2931 = vpop.f32.mrb[0].mxu0
        %v2932 = vpop.f32.mrb[0].mxu0
        %v2933 = vadd.f32 0.0, %v2932
        %v2934 = vpop.f32.mrb[0].mxu0
        %2935 = vmatprep.mubr.bf16.mxu0 0
        %2936 = vmatmul.mubr.bf16.gmra.mrb[0].mxu0 %v2825
        %v2937 = vpop.f32.mrb[0].mxu0
        %v2938 = vadd.f32 0.0, %v2937
        %v2939 = vpop.f32.mrb[0].mxu0
        %v2940 = vpop.f32.mrb[0].mxu0
        %v2941 = vadd.f32 0.0, %v2940
        %v2942 = vpop.f32.mrb[0].mxu0
        %2943 = vmatprep.mubr.bf16.mxu0 0
        %2944 = vmatmul.mubr.bf16.gmra.mrb[0].mxu0 %v2826
        %v2945 = vpop.f32.mrb[0].mxu0
        %v2946 = vadd.f32 0.0, %v2945
        %v2947 = vpop.f32.mrb[0].mxu0
        %v2948 = vpop.f32.mrb[0].mxu0
        %v2949 = vadd.f32 0.0, %v2948
        %v2950 = vpop.f32.mrb[0].mxu0
        %2951 = vmatprep.mubr.bf16.mxu0 0
        %2952 = vmatmul.mubr.bf16.gmra.mrb[0].mxu0 %v2827
        %v2953 = vpop.f32.mrb[0].mxu0
        %v2954 = vadd.f32 0.0, %v2953
        %v2955 = vpop.f32.mrb[0].mxu0
        %v2956 = vpop.f32.mrb[0].mxu0
        %v2957 = vadd.f32 0.0, %v2956
        %v2958 = vpop.f32.mrb[0].mxu0
        %2959 = vmatprep.mubr.bf16.mxu0 0
        %2960 = vmatmul.mubr.bf16.gmra.mrb[0].mxu0 %v2828
        %v2961 = vpop.f32.mrb[0].mxu0
        %v2962 = vadd.f32 0.0, %v2961
        %v2963 = vpop.f32.mrb[0].mxu0
        %v2964 = vpop.f32.mrb[0].mxu0
        %v2965 = vadd.f32 0.0, %v2964
        %v2966 = vpop.f32.mrb[0].mxu0
        %2967 = vmatprep.mubr.bf16.mxu0 0
        %2968 = vmatmul.mubr.bf16.gmra.mrb[0].mxu0 %v2829
        %v2969 = vpop.f32.mrb[0].mxu0
        %v2970 = vadd.f32 0.0, %v2969
        %v2971 = vpop.f32.mrb[0].mxu0
        %v2972 = vpop.f32.mrb[0].mxu0
        %v2973 = vadd.f32 0.0, %v2972
        %v2974 = vpop.f32.mrb[0].mxu0
        %2975 = vmatprep.mubr.bf16.mxu0 0
        %2976 = vmatmul.mubr.bf16.gmra.mrb[0].mxu0 %v2830
        %v2977 = vpop.f32.mrb[0].mxu0
        %v2978 = vadd.f32 0.0, %v2977
        %v2979 = vpop.f32.mrb[0].mxu0
        %v2980 = vpop.f32.mrb[0].mxu0
        %v2981 = vadd.f32 0.0, %v2980
        %v2982 = vpop.f32.mrb[0].mxu0
        %2983 = vdwg.mxu0
        %v2984 = vadd.f32 %v2758, %v2922
        %v2985 = vadd.f32 %v2759, %v2925
        %v2986 = vadd.f32 %v2760, %v2930
        %v2987 = vadd.f32 %v2761, %v2933
        %v2988 = vadd.f32 %v2762, %v2938
        %v2989 = vadd.f32 %v2763, %v2941
        %v2990 = vadd.f32 %v2764, %v2946
        %v2991 = vadd.f32 %v2765, %v2949
        %v2992 = vadd.f32 %v2766, %v2954
        %v2993 = vadd.f32 %v2767, %v2957
        %v2994 = vadd.f32 %v2768, %v2962
        %v2995 = vadd.f32 %v2769, %v2965
        %v2996 = vadd.f32 %v2770, %v2970
        %v2997 = vadd.f32 %v2771, %v2973
        %v2998 = vadd.f32 %v2772, %v2978
        %v2999 = vadd.f32 %v2773, %v2981
        %s3000 = sadd.s32 %s274, 6
        %s3001 = smul.u32 %s3000, 7
        %s3002 = smul.addr %s3001, 4
        %s3003 = scalar_lea.vmem %s264, %s3002
        %v3004 = vld [vmem:[%s3003] sm:$0x8]
        %v3005 = vld [vmem:[%s3003 + $0x4] sm:$0xf]
        %v3006 = vld [vmem:[%s3003 + $0x8] sm:$0x7]
        %v3007 = vld [vmem:[%s3003 + $0x1c] sm:$0x8]
        %v3008 = vld [vmem:[%s3003 + $0x20] sm:$0xf]
        %v3009 = vld [vmem:[%s3003 + $0x24] sm:$0x7]
        %v3010 = vld [vmem:[%s3003 + $0x38] sm:$0x8]
        %v3011 = vld [vmem:[%s3003 + $0x3c] sm:$0xf]
        %v3012 = vld [vmem:[%s3003 + $0x40] sm:$0x7]
        %v3013 = vld [vmem:[%s3003 + $0x54] sm:$0x8]
        %v3014 = vld [vmem:[%s3003 + $0x58] sm:$0xf]
        %v3015 = vld [vmem:[%s3003 + $0x5c] sm:$0x7]
        %v3016 = vld [vmem:[%s3003 + $0x70] sm:$0x8]
        %v3017 = vld [vmem:[%s3003 + $0x74] sm:$0xf]
        %v3018 = vld [vmem:[%s3003 + $0x78] sm:$0x7]
        %v3019 = vld [vmem:[%s3003 + $0x8c] sm:$0x8]
        %v3020 = vld [vmem:[%s3003 + $0x90] sm:$0xf]
        %v3021 = vld [vmem:[%s3003 + $0x94] sm:$0x7]
        %v3022 = vld [vmem:[%s3003 + $0xa8] sm:$0x8]
        %v3023 = vld [vmem:[%s3003 + $0xac] sm:$0xf]
        %v3024 = vld [vmem:[%s3003 + $0xb0] sm:$0x7]
        %v3025 = vld [vmem:[%s3003 + $0xc4] sm:$0x8]
        %v3026 = vld [vmem:[%s3003 + $0xc8] sm:$0xf]
        %v3027 = vld [vmem:[%s3003 + $0xcc] sm:$0x7]
        %vm3052 = vcmask 1040384
        %vm3053 = vcmask 1044484
        %vm3054 = vmor %vm3052, %vm3053
        %v3055 = vrot.slane %v3004, 7
        %v3056 = vrot.slane %v3055, 4
        %v3057 = vrot.slane %v3005, 7
        %v3058 = vsel %vm3054, %v3056, %v3057
        %v3059 = vrot.slane %v3057, 4
        %v3060 = vrot.slane %v3006, 7
        %v3061 = vsel %vm3054, %v3059, %v3060
        %v3062 = vrot.slane %v3007, 7
        %v3063 = vrot.slane %v3062, 4
        %v3064 = vrot.slane %v3008, 7
        %v3065 = vsel %vm3054, %v3063, %v3064
        %v3066 = vrot.slane %v3064, 4
        %v3067 = vrot.slane %v3009, 7
        %v3068 = vsel %vm3054, %v3066, %v3067
        %v3069 = vrot.slane %v3010, 7
        %v3070 = vrot.slane %v3069, 4
        %v3071 = vrot.slane %v3011, 7
        %v3072 = vsel %vm3054, %v3070, %v3071
        %v3073 = vrot.slane %v3071, 4
        %v3074 = vrot.slane %v3012, 7
        %v3075 = vsel %vm3054, %v3073, %v3074
        %v3076 = vrot.slane %v3013, 7
        %v3077 = vrot.slane %v3076, 4
        %v3078 = vrot.slane %v3014, 7
        %v3079 = vsel %vm3054, %v3077, %v3078
        %v3080 = vrot.slane %v3078, 4
        %v3081 = vrot.slane %v3015, 7
        %v3082 = vsel %vm3054, %v3080, %v3081
        %v3083 = vrot.slane %v3016, 7
        %v3084 = vrot.slane %v3083, 4
        %v3085 = vrot.slane %v3017, 7
        %v3086 = vsel %vm3054, %v3084, %v3085
        %v3087 = vrot.slane %v3085, 4
        %v3088 = vrot.slane %v3018, 7
        %v3089 = vsel %vm3054, %v3087, %v3088
        %v3090 = vrot.slane %v3019, 7
        %v3091 = vrot.slane %v3090, 4
        %v3092 = vrot.slane %v3020, 7
        %v3093 = vsel %vm3054, %v3091, %v3092
        %v3094 = vrot.slane %v3092, 4
        %v3095 = vrot.slane %v3021, 7
        %v3096 = vsel %vm3054, %v3094, %v3095
        %v3097 = vrot.slane %v3022, 7
        %v3098 = vrot.slane %v3097, 4
        %v3099 = vrot.slane %v3023, 7
        %v3100 = vsel %vm3054, %v3098, %v3099
        %v3101 = vrot.slane %v3099, 4
        %v3102 = vrot.slane %v3024, 7
        %v3103 = vsel %vm3054, %v3101, %v3102
        %v3104 = vrot.slane %v3025, 7
        %v3105 = vrot.slane %v3104, 4
        %v3106 = vrot.slane %v3026, 7
        %v3107 = vsel %vm3054, %v3105, %v3106
        %v3108 = vrot.slane %v3106, 4
        %v3109 = vrot.slane %v3027, 7
        %v3110 = vsel %vm3054, %v3108, %v3109
        %s3111 = scalar_lea.vmem %s1, 640
        %v3112 = vld [vmem:[%s3111] sm:$0xf]
        %v3113 = vld [vmem:[%s3111 + $0x4] sm:$0xf]
        %v3114 = vld [vmem:[%s3111 + $0x8] sm:$0xf]
        %v3115 = vld [vmem:[%s3111 + $0xc] sm:$0xf]
        %v3116 = vld [vmem:[%s3111 + $0x10] sm:$0xf]
        %v3117 = vld [vmem:[%s3111 + $0x14] sm:$0xf]
        %v3118 = vld [vmem:[%s3111 + $0x18] sm:$0xf]
        %v3119 = vld [vmem:[%s3111 + $0x1c] sm:$0xf]
        %v3120 = vld [vmem:[%s3111 + $0x20] sm:$0xf]
        %v3121 = vld [vmem:[%s3111 + $0x24] sm:$0xf]
        %v3122 = vld [vmem:[%s3111 + $0x28] sm:$0xf]
        %v3123 = vld [vmem:[%s3111 + $0x2c] sm:$0xf]
        %v3124 = vld [vmem:[%s3111 + $0x30] sm:$0xf]
        %v3125 = vld [vmem:[%s3111 + $0x34] sm:$0xf]
        %v3126 = vld [vmem:[%s3111 + $0x38] sm:$0xf]
        %v3127 = vld [vmem:[%s3111 + $0x3c] sm:$0xf]
        %v3128 = vunpack.c.l.b16 %v3058
        %v3129 = vunpack.c.l.b16 %v3061
        %v3130 = vunpack.c.l.b16 %v3065
        %v3131 = vunpack.c.l.b16 %v3068
        %v3132 = vunpack.c.l.b16 %v3072
        %v3133 = vunpack.c.l.b16 %v3075
        %v3134 = vunpack.c.l.b16 %v3079
        %v3135 = vunpack.c.l.b16 %v3082
        %v3136 = vunpack.c.l.b16 %v3086
        %v3137 = vunpack.c.l.b16 %v3089
        %v3138 = vunpack.c.l.b16 %v3093
        %v3139 = vunpack.c.l.b16 %v3096
        %v3140 = vunpack.c.l.b16 %v3100
        %v3141 = vunpack.c.l.b16 %v3103
        %v3142 = vunpack.c.l.b16 %v3107
        %v3143 = vunpack.c.l.b16 %v3110
        %v3144 = vpack.c.b16 %v3129, %v3128
        %v3145 = vpack.c.b16 %v3131, %v3130
        %v3146 = vpack.c.b16 %v3133, %v3132
        %v3147 = vpack.c.b16 %v3135, %v3134
        %v3148 = vpack.c.b16 %v3137, %v3136
        %v3149 = vpack.c.b16 %v3139, %v3138
        %v3150 = vpack.c.b16 %v3141, %v3140
        %v3151 = vpack.c.b16 %v3143, %v3142
        %v3176 = vunpack.c.l.b16 %v3112
        %v3177 = vunpack.c.l.b16 %v3113
        %v3178 = vunpack.c.l.b16 %v3114
        %v3179 = vunpack.c.l.b16 %v3115
        %v3180 = vunpack.c.l.b16 %v3116
        %v3181 = vunpack.c.l.b16 %v3117
        %v3182 = vunpack.c.l.b16 %v3118
        %v3183 = vunpack.c.l.b16 %v3119
        %v3184 = vunpack.c.l.b16 %v3120
        %v3185 = vunpack.c.l.b16 %v3121
        %v3186 = vunpack.c.l.b16 %v3122
        %v3187 = vunpack.c.l.b16 %v3123
        %v3188 = vunpack.c.l.b16 %v3124
        %v3189 = vunpack.c.l.b16 %v3125
        %v3190 = vunpack.c.l.b16 %v3126
        %v3191 = vunpack.c.l.b16 %v3127
        %v3192 = vpack.c.b16 %v3177, %v3176
        %v3193 = vpack.c.b16 %v3179, %v3178
        %v3194 = vpack.c.b16 %v3181, %v3180
        %v3195 = vpack.c.b16 %v3183, %v3182
        %v3196 = vpack.c.b16 %v3185, %v3184
        %v3197 = vpack.c.b16 %v3187, %v3186
        %v3198 = vpack.c.b16 %v3189, %v3188
        %v3199 = vpack.c.b16 %v3191, %v3190
        %3208 = vmatprep.subr.bf16.mxu0 0
        %3209 = vmatpush1.bf16.msra.mxu0 %v3192
        %3210 = vmatprep.subr.bf16.mxu0 0
        %3211 = vmatpush1.bf16.msra.mxu0 %v3193
        %3212 = vmatprep.subr.bf16.mxu0 0
        %3213 = vmatpush1.bf16.msra.mxu0 %v3194
        %3214 = vmatprep.subr.bf16.mxu0 0
        %3215 = vmatpush1.bf16.msra.mxu0 %v3195
        %3216 = vmatprep.subr.bf16.mxu0 0
        %3217 = vmatpush1.bf16.msra.mxu0 %v3196
        %3218 = vmatprep.subr.bf16.mxu0 0
        %3219 = vmatpush1.bf16.msra.mxu0 %v3197
        %3220 = vmatprep.subr.bf16.mxu0 0
        %3221 = vmatpush1.bf16.msra.mxu0 %v3198
        %3222 = vmatprep.subr.bf16.mxu0 0
        %3223 = vmatpush1.bf16.msra.mxu0 %v3199
        %3224 = vmatprep.subr.bf16.mxu0 0
        %3225 = vmatpush1.bf16.msra.mxu0 0
        %3226 = vmatprep.subr.bf16.mxu0 0
        %3227 = vmatpush1.bf16.msra.mxu0 0
        %3228 = vmatprep.subr.bf16.mxu0 0
        %3229 = vmatpush1.bf16.msra.mxu0 0
        %3230 = vmatprep.subr.bf16.mxu0 0
        %3231 = vmatpush1.bf16.msra.mxu0 0
        %3232 = vmatprep.subr.bf16.mxu0 0
        %3233 = vmatpush1.bf16.msra.mxu0 0
        %3234 = vmatprep.subr.bf16.mxu0 0
        %3235 = vmatpush1.bf16.msra.mxu0 0
        %3236 = vmatprep.subr.bf16.mxu0 0
        %3237 = vmatpush1.bf16.msra.mxu0 0
        %3238 = vmatprep.subr.bf16.mxu0 0
        %3239 = vmatpush1.bf16.msra.mxu0 0
        %3240 = vmatprep.mubr.bf16.mxu0 0
        %3241 = vmatmul.mubr.bf16.gmra.mrb[0].mxu0 %v3144
        %v3242 = vpop.f32.mrb[0].mxu0
        %v3243 = vadd.f32 0.0, %v3242
        %v3244 = vpop.f32.mrb[0].mxu0
        %v3245 = vpop.f32.mrb[0].mxu0
        %v3246 = vadd.f32 0.0, %v3245
        %v3247 = vpop.f32.mrb[0].mxu0
        %3248 = vmatprep.mubr.bf16.mxu0 0
        %3249 = vmatmul.mubr.bf16.gmra.mrb[0].mxu0 %v3145
        %v3250 = vpop.f32.mrb[0].mxu0
        %v3251 = vadd.f32 0.0, %v3250
        %v3252 = vpop.f32.mrb[0].mxu0
        %v3253 = vpop.f32.mrb[0].mxu0
        %v3254 = vadd.f32 0.0, %v3253
        %v3255 = vpop.f32.mrb[0].mxu0
        %3256 = vmatprep.mubr.bf16.mxu0 0
        %3257 = vmatmul.mubr.bf16.gmra.mrb[0].mxu0 %v3146
        %v3258 = vpop.f32.mrb[0].mxu0
        %v3259 = vadd.f32 0.0, %v3258
        %v3260 = vpop.f32.mrb[0].mxu0
        %v3261 = vpop.f32.mrb[0].mxu0
        %v3262 = vadd.f32 0.0, %v3261
        %v3263 = vpop.f32.mrb[0].mxu0
        %3264 = vmatprep.mubr.bf16.mxu0 0
        %3265 = vmatmul.mubr.bf16.gmra.mrb[0].mxu0 %v3147
        %v3266 = vpop.f32.mrb[0].mxu0
        %v3267 = vadd.f32 0.0, %v3266
        %v3268 = vpop.f32.mrb[0].mxu0
        %v3269 = vpop.f32.mrb[0].mxu0
        %v3270 = vadd.f32 0.0, %v3269
        %v3271 = vpop.f32.mrb[0].mxu0
        %3272 = vmatprep.mubr.bf16.mxu0 0
        %3273 = vmatmul.mubr.bf16.gmra.mrb[0].mxu0 %v3148
        %v3274 = vpop.f32.mrb[0].mxu0
        %v3275 = vadd.f32 0.0, %v3274
        %v3276 = vpop.f32.mrb[0].mxu0
        %v3277 = vpop.f32.mrb[0].mxu0
        %v3278 = vadd.f32 0.0, %v3277
        %v3279 = vpop.f32.mrb[0].mxu0
        %3280 = vmatprep.mubr.bf16.mxu0 0
        %3281 = vmatmul.mubr.bf16.gmra.mrb[0].mxu0 %v3149
        %v3282 = vpop.f32.mrb[0].mxu0
        %v3283 = vadd.f32 0.0, %v3282
        %v3284 = vpop.f32.mrb[0].mxu0
        %v3285 = vpop.f32.mrb[0].mxu0
        %v3286 = vadd.f32 0.0, %v3285
        %v3287 = vpop.f32.mrb[0].mxu0
        %3288 = vmatprep.mubr.bf16.mxu0 0
        %3289 = vmatmul.mubr.bf16.gmra.mrb[0].mxu0 %v3150
        %v3290 = vpop.f32.mrb[0].mxu0
        %v3291 = vadd.f32 0.0, %v3290
        %v3292 = vpop.f32.mrb[0].mxu0
        %v3293 = vpop.f32.mrb[0].mxu0
        %v3294 = vadd.f32 0.0, %v3293
        %v3295 = vpop.f32.mrb[0].mxu0
        %3296 = vmatprep.mubr.bf16.mxu0 0
        %3297 = vmatmul.mubr.bf16.gmra.mrb[0].mxu0 %v3151
        %v3298 = vpop.f32.mrb[0].mxu0
        %v3299 = vadd.f32 0.0, %v3298
        %v3300 = vpop.f32.mrb[0].mxu0
        %v3301 = vpop.f32.mrb[0].mxu0
        %v3302 = vadd.f32 0.0, %v3301
        %v3303 = vpop.f32.mrb[0].mxu0
        %3304 = vdwg.mxu0
        %v3305 = vadd.f32 %v2984, %v3243
        %v3306 = vadd.f32 %v2985, %v3246
        %v3307 = vadd.f32 %v2986, %v3251
        %v3308 = vadd.f32 %v2987, %v3254
        %v3309 = vadd.f32 %v2988, %v3259
        %v3310 = vadd.f32 %v2989, %v3262
        %v3311 = vadd.f32 %v2990, %v3267
        %v3312 = vadd.f32 %v2991, %v3270
        %v3313 = vadd.f32 %v2992, %v3275
        %v3314 = vadd.f32 %v2993, %v3278
        %v3315 = vadd.f32 %v2994, %v3283
        %v3316 = vadd.f32 %v2995, %v3286
        %v3317 = vadd.f32 %v2996, %v3291
        %v3318 = vadd.f32 %v2997, %v3294
        %v3319 = vadd.f32 %v2998, %v3299
        %v3320 = vadd.f32 %v2999, %v3302
        %v3321 = vld [vmem:[%s3003 + $0x8] sm:$0xe]
        %v3322 = vld [vmem:[%s3003 + $0xc] sm:$0xf]
        %v3323 = vld [vmem:[%s3003 + $0x10] sm:$0x1]
        %v3324 = vld [vmem:[%s3003 + $0x24] sm:$0xe]
        %v3325 = vld [vmem:[%s3003 + $0x28] sm:$0xf]
        %v3326 = vld [vmem:[%s3003 + $0x2c] sm:$0x1]
        %v3327 = vld [vmem:[%s3003 + $0x40] sm:$0xe]
        %v3328 = vld [vmem:[%s3003 + $0x44] sm:$0xf]
        %v3329 = vld [vmem:[%s3003 + $0x48] sm:$0x1]
        %v3330 = vld [vmem:[%s3003 + $0x5c] sm:$0xe]
        %v3331 = vld [vmem:[%s3003 + $0x60] sm:$0xf]
        %v3332 = vld [vmem:[%s3003 + $0x64] sm:$0x1]
        %v3333 = vld [vmem:[%s3003 + $0x78] sm:$0xe]
        %v3334 = vld [vmem:[%s3003 + $0x7c] sm:$0xf]
        %v3335 = vld [vmem:[%s3003 + $0x80] sm:$0x1]
        %v3336 = vld [vmem:[%s3003 + $0x94] sm:$0xe]
        %v3337 = vld [vmem:[%s3003 + $0x98] sm:$0xf]
        %v3338 = vld [vmem:[%s3003 + $0x9c] sm:$0x1]
        %v3339 = vld [vmem:[%s3003 + $0xb0] sm:$0xe]
        %v3340 = vld [vmem:[%s3003 + $0xb4] sm:$0xf]
        %v3341 = vld [vmem:[%s3003 + $0xb8] sm:$0x1]
        %v3342 = vld [vmem:[%s3003 + $0xcc] sm:$0xe]
        %v3343 = vld [vmem:[%s3003 + $0xd0] sm:$0xf]
        %v3344 = vld [vmem:[%s3003 + $0xd4] sm:$0x1]
        %v3369 = vrot.slane %v3321, 5
        %v3370 = vrot.slane %v3369, 4
        %v3371 = vrot.slane %v3322, 5
        %v3372 = vsel %vm329, %v3370, %v3371
        %v3373 = vrot.slane %v3371, 4
        %v3374 = vrot.slane %v3323, 5
        %v3375 = vsel %vm329, %v3373, %v3374
        %v3376 = vrot.slane %v3324, 5
        %v3377 = vrot.slane %v3376, 4
        %v3378 = vrot.slane %v3325, 5
        %v3379 = vsel %vm329, %v3377, %v3378
        %v3380 = vrot.slane %v3378, 4
        %v3381 = vrot.slane %v3326, 5
        %v3382 = vsel %vm329, %v3380, %v3381
        %v3383 = vrot.slane %v3327, 5
        %v3384 = vrot.slane %v3383, 4
        %v3385 = vrot.slane %v3328, 5
        %v3386 = vsel %vm329, %v3384, %v3385
        %v3387 = vrot.slane %v3385, 4
        %v3388 = vrot.slane %v3329, 5
        %v3389 = vsel %vm329, %v3387, %v3388
        %v3390 = vrot.slane %v3330, 5
        %v3391 = vrot.slane %v3390, 4
        %v3392 = vrot.slane %v3331, 5
        %v3393 = vsel %vm329, %v3391, %v3392
        %v3394 = vrot.slane %v3392, 4
        %v3395 = vrot.slane %v3332, 5
        %v3396 = vsel %vm329, %v3394, %v3395
        %v3397 = vrot.slane %v3333, 5
        %v3398 = vrot.slane %v3397, 4
        %v3399 = vrot.slane %v3334, 5
        %v3400 = vsel %vm329, %v3398, %v3399
        %v3401 = vrot.slane %v3399, 4
        %v3402 = vrot.slane %v3335, 5
        %v3403 = vsel %vm329, %v3401, %v3402
        %v3404 = vrot.slane %v3336, 5
        %v3405 = vrot.slane %v3404, 4
        %v3406 = vrot.slane %v3337, 5
        %v3407 = vsel %vm329, %v3405, %v3406
        %v3408 = vrot.slane %v3406, 4
        %v3409 = vrot.slane %v3338, 5
        %v3410 = vsel %vm329, %v3408, %v3409
        %v3411 = vrot.slane %v3339, 5
        %v3412 = vrot.slane %v3411, 4
        %v3413 = vrot.slane %v3340, 5
        %v3414 = vsel %vm329, %v3412, %v3413
        %v3415 = vrot.slane %v3413, 4
        %v3416 = vrot.slane %v3341, 5
        %v3417 = vsel %vm329, %v3415, %v3416
        %v3418 = vrot.slane %v3342, 5
        %v3419 = vrot.slane %v3418, 4
        %v3420 = vrot.slane %v3343, 5
        %v3421 = vsel %vm329, %v3419, %v3420
        %v3422 = vrot.slane %v3420, 4
        %v3423 = vrot.slane %v3344, 5
        %v3424 = vsel %vm329, %v3422, %v3423
        %s3425 = scalar_lea.vmem %s1, 704
        %v3426 = vld [vmem:[%s3425] sm:$0xf]
        %v3427 = vld [vmem:[%s3425 + $0x4] sm:$0xf]
        %v3428 = vld [vmem:[%s3425 + $0x8] sm:$0xf]
        %v3429 = vld [vmem:[%s3425 + $0xc] sm:$0xf]
        %v3430 = vld [vmem:[%s3425 + $0x10] sm:$0xf]
        %v3431 = vld [vmem:[%s3425 + $0x14] sm:$0xf]
        %v3432 = vld [vmem:[%s3425 + $0x18] sm:$0xf]
        %v3433 = vld [vmem:[%s3425 + $0x1c] sm:$0xf]
        %v3434 = vld [vmem:[%s3425 + $0x20] sm:$0xf]
        %v3435 = vld [vmem:[%s3425 + $0x24] sm:$0xf]
        %v3436 = vld [vmem:[%s3425 + $0x28] sm:$0xf]
        %v3437 = vld [vmem:[%s3425 + $0x2c] sm:$0xf]
        %v3438 = vld [vmem:[%s3425 + $0x30] sm:$0xf]
        %v3439 = vld [vmem:[%s3425 + $0x34] sm:$0xf]
        %v3440 = vld [vmem:[%s3425 + $0x38] sm:$0xf]
        %v3441 = vld [vmem:[%s3425 + $0x3c] sm:$0xf]
        %v3442 = vunpack.c.l.b16 %v3372
        %v3443 = vunpack.c.l.b16 %v3375
        %v3444 = vunpack.c.l.b16 %v3379
        %v3445 = vunpack.c.l.b16 %v3382
        %v3446 = vunpack.c.l.b16 %v3386
        %v3447 = vunpack.c.l.b16 %v3389
        %v3448 = vunpack.c.l.b16 %v3393
        %v3449 = vunpack.c.l.b16 %v3396
        %v3450 = vunpack.c.l.b16 %v3400
        %v3451 = vunpack.c.l.b16 %v3403
        %v3452 = vunpack.c.l.b16 %v3407
        %v3453 = vunpack.c.l.b16 %v3410
        %v3454 = vunpack.c.l.b16 %v3414
        %v3455 = vunpack.c.l.b16 %v3417
        %v3456 = vunpack.c.l.b16 %v3421
        %v3457 = vunpack.c.l.b16 %v3424
        %v3458 = vpack.c.b16 %v3443, %v3442
        %v3459 = vpack.c.b16 %v3445, %v3444
        %v3460 = vpack.c.b16 %v3447, %v3446
        %v3461 = vpack.c.b16 %v3449, %v3448
        %v3462 = vpack.c.b16 %v3451, %v3450
        %v3463 = vpack.c.b16 %v3453, %v3452
        %v3464 = vpack.c.b16 %v3455, %v3454
        %v3465 = vpack.c.b16 %v3457, %v3456
        %v3490 = vunpack.c.l.b16 %v3426
        %v3491 = vunpack.c.l.b16 %v3427
        %v3492 = vunpack.c.l.b16 %v3428
        %v3493 = vunpack.c.l.b16 %v3429
        %v3494 = vunpack.c.l.b16 %v3430
        %v3495 = vunpack.c.l.b16 %v3431
        %v3496 = vunpack.c.l.b16 %v3432
        %v3497 = vunpack.c.l.b16 %v3433
        %v3498 = vunpack.c.l.b16 %v3434
        %v3499 = vunpack.c.l.b16 %v3435
        %v3500 = vunpack.c.l.b16 %v3436
        %v3501 = vunpack.c.l.b16 %v3437
        %v3502 = vunpack.c.l.b16 %v3438
        %v3503 = vunpack.c.l.b16 %v3439
        %v3504 = vunpack.c.l.b16 %v3440
        %v3505 = vunpack.c.l.b16 %v3441
        %v3506 = vpack.c.b16 %v3491, %v3490
        %v3507 = vpack.c.b16 %v3493, %v3492
        %v3508 = vpack.c.b16 %v3495, %v3494
        %v3509 = vpack.c.b16 %v3497, %v3496
        %v3510 = vpack.c.b16 %v3499, %v3498
        %v3511 = vpack.c.b16 %v3501, %v3500
        %v3512 = vpack.c.b16 %v3503, %v3502
        %v3513 = vpack.c.b16 %v3505, %v3504
        %3522 = vmatprep.subr.bf16.mxu0 0
        %3523 = vmatpush1.bf16.msra.mxu0 %v3506
        %3524 = vmatprep.subr.bf16.mxu0 0
        %3525 = vmatpush1.bf16.msra.mxu0 %v3507
        %3526 = vmatprep.subr.bf16.mxu0 0
        %3527 = vmatpush1.bf16.msra.mxu0 %v3508
        %3528 = vmatprep.subr.bf16.mxu0 0
        %3529 = vmatpush1.bf16.msra.mxu0 %v3509
        %3530 = vmatprep.subr.bf16.mxu0 0
        %3531 = vmatpush1.bf16.msra.mxu0 %v3510
        %3532 = vmatprep.subr.bf16.mxu0 0
        %3533 = vmatpush1.bf16.msra.mxu0 %v3511
        %3534 = vmatprep.subr.bf16.mxu0 0
        %3535 = vmatpush1.bf16.msra.mxu0 %v3512
        %3536 = vmatprep.subr.bf16.mxu0 0
        %3537 = vmatpush1.bf16.msra.mxu0 %v3513
        %3538 = vmatprep.subr.bf16.mxu0 0
        %3539 = vmatpush1.bf16.msra.mxu0 0
        %3540 = vmatprep.subr.bf16.mxu0 0
        %3541 = vmatpush1.bf16.msra.mxu0 0
        %3542 = vmatprep.subr.bf16.mxu0 0
        %3543 = vmatpush1.bf16.msra.mxu0 0
        %3544 = vmatprep.subr.bf16.mxu0 0
        %3545 = vmatpush1.bf16.msra.mxu0 0
        %3546 = vmatprep.subr.bf16.mxu0 0
        %3547 = vmatpush1.bf16.msra.mxu0 0
        %3548 = vmatprep.subr.bf16.mxu0 0
        %3549 = vmatpush1.bf16.msra.mxu0 0
        %3550 = vmatprep.subr.bf16.mxu0 0
        %3551 = vmatpush1.bf16.msra.mxu0 0
        %3552 = vmatprep.subr.bf16.mxu0 0
        %3553 = vmatpush1.bf16.msra.mxu0 0
        %3554 = vmatprep.mubr.bf16.mxu0 0
        %3555 = vmatmul.mubr.bf16.gmra.mrb[0].mxu0 %v3458
        %v3556 = vpop.f32.mrb[0].mxu0
        %v3557 = vadd.f32 0.0, %v3556
        %v3558 = vpop.f32.mrb[0].mxu0
        %v3559 = vpop.f32.mrb[0].mxu0
        %v3560 = vadd.f32 0.0, %v3559
        %v3561 = vpop.f32.mrb[0].mxu0
        %3562 = vmatprep.mubr.bf16.mxu0 0
        %3563 = vmatmul.mubr.bf16.gmra.mrb[0].mxu0 %v3459
        %v3564 = vpop.f32.mrb[0].mxu0
        %v3565 = vadd.f32 0.0, %v3564
        %v3566 = vpop.f32.mrb[0].mxu0
        %v3567 = vpop.f32.mrb[0].mxu0
        %v3568 = vadd.f32 0.0, %v3567
        %v3569 = vpop.f32.mrb[0].mxu0
        %3570 = vmatprep.mubr.bf16.mxu0 0
        %3571 = vmatmul.mubr.bf16.gmra.mrb[0].mxu0 %v3460
        %v3572 = vpop.f32.mrb[0].mxu0
        %v3573 = vadd.f32 0.0, %v3572
        %v3574 = vpop.f32.mrb[0].mxu0
        %v3575 = vpop.f32.mrb[0].mxu0
        %v3576 = vadd.f32 0.0, %v3575
        %v3577 = vpop.f32.mrb[0].mxu0
        %3578 = vmatprep.mubr.bf16.mxu0 0
        %3579 = vmatmul.mubr.bf16.gmra.mrb[0].mxu0 %v3461
        %v3580 = vpop.f32.mrb[0].mxu0
        %v3581 = vadd.f32 0.0, %v3580
        %v3582 = vpop.f32.mrb[0].mxu0
        %v3583 = vpop.f32.mrb[0].mxu0
        %v3584 = vadd.f32 0.0, %v3583
        %v3585 = vpop.f32.mrb[0].mxu0
        %3586 = vmatprep.mubr.bf16.mxu0 0
        %3587 = vmatmul.mubr.bf16.gmra.mrb[0].mxu0 %v3462
        %v3588 = vpop.f32.mrb[0].mxu0
        %v3589 = vadd.f32 0.0, %v3588
        %v3590 = vpop.f32.mrb[0].mxu0
        %v3591 = vpop.f32.mrb[0].mxu0
        %v3592 = vadd.f32 0.0, %v3591
        %v3593 = vpop.f32.mrb[0].mxu0
        %3594 = vmatprep.mubr.bf16.mxu0 0
        %3595 = vmatmul.mubr.bf16.gmra.mrb[0].mxu0 %v3463
        %v3596 = vpop.f32.mrb[0].mxu0
        %v3597 = vadd.f32 0.0, %v3596
        %v3598 = vpop.f32.mrb[0].mxu0
        %v3599 = vpop.f32.mrb[0].mxu0
        %v3600 = vadd.f32 0.0, %v3599
        %v3601 = vpop.f32.mrb[0].mxu0
        %3602 = vmatprep.mubr.bf16.mxu0 0
        %3603 = vmatmul.mubr.bf16.gmra.mrb[0].mxu0 %v3464
        %v3604 = vpop.f32.mrb[0].mxu0
        %v3605 = vadd.f32 0.0, %v3604
        %v3606 = vpop.f32.mrb[0].mxu0
        %v3607 = vpop.f32.mrb[0].mxu0
        %v3608 = vadd.f32 0.0, %v3607
        %v3609 = vpop.f32.mrb[0].mxu0
        %3610 = vmatprep.mubr.bf16.mxu0 0
        %3611 = vmatmul.mubr.bf16.gmra.mrb[0].mxu0 %v3465
        %v3612 = vpop.f32.mrb[0].mxu0
        %v3613 = vadd.f32 0.0, %v3612
        %v3614 = vpop.f32.mrb[0].mxu0
        %v3615 = vpop.f32.mrb[0].mxu0
        %v3616 = vadd.f32 0.0, %v3615
        %v3617 = vpop.f32.mrb[0].mxu0
        %3618 = vdwg.mxu0
        %v3619 = vadd.f32 %v3305, %v3557
        %v3620 = vadd.f32 %v3306, %v3560
        %v3621 = vadd.f32 %v3307, %v3565
        %v3622 = vadd.f32 %v3308, %v3568
        %v3623 = vadd.f32 %v3309, %v3573
        %v3624 = vadd.f32 %v3310, %v3576
        %v3625 = vadd.f32 %v3311, %v3581
        %v3626 = vadd.f32 %v3312, %v3584
        %v3627 = vadd.f32 %v3313, %v3589
        %v3628 = vadd.f32 %v3314, %v3592
        %v3629 = vadd.f32 %v3315, %v3597
        %v3630 = vadd.f32 %v3316, %v3600
        %v3631 = vadd.f32 %v3317, %v3605
        %v3632 = vadd.f32 %v3318, %v3608
        %v3633 = vadd.f32 %v3319, %v3613
        %v3634 = vadd.f32 %v3320, %v3616
        %v3635 = vld [vmem:[%s3003 + $0xc] sm:$0x8]
        %v3636 = vld [vmem:[%s3003 + $0x10] sm:$0xf]
        %v3637 = vld [vmem:[%s3003 + $0x14] sm:$0x7]
        %v3638 = vld [vmem:[%s3003 + $0x28] sm:$0x8]
        %v3639 = vld [vmem:[%s3003 + $0x2c] sm:$0xf]
        %v3640 = vld [vmem:[%s3003 + $0x30] sm:$0x7]
        %v3641 = vld [vmem:[%s3003 + $0x44] sm:$0x8]
        %v3642 = vld [vmem:[%s3003 + $0x48] sm:$0xf]
        %v3643 = vld [vmem:[%s3003 + $0x4c] sm:$0x7]
        %v3644 = vld [vmem:[%s3003 + $0x60] sm:$0x8]
        %v3645 = vld [vmem:[%s3003 + $0x64] sm:$0xf]
        %v3646 = vld [vmem:[%s3003 + $0x68] sm:$0x7]
        %v3647 = vld [vmem:[%s3003 + $0x7c] sm:$0x8]
        %v3648 = vld [vmem:[%s3003 + $0x80] sm:$0xf]
        %v3649 = vld [vmem:[%s3003 + $0x84] sm:$0x7]
        %v3650 = vld [vmem:[%s3003 + $0x98] sm:$0x8]
        %v3651 = vld [vmem:[%s3003 + $0x9c] sm:$0xf]
        %v3652 = vld [vmem:[%s3003 + $0xa0] sm:$0x7]
        %v3653 = vld [vmem:[%s3003 + $0xb4] sm:$0x8]
        %v3654 = vld [vmem:[%s3003 + $0xb8] sm:$0xf]
        %v3655 = vld [vmem:[%s3003 + $0xbc] sm:$0x7]
        %v3656 = vld [vmem:[%s3003 + $0xd0] sm:$0x8]
        %v3657 = vld [vmem:[%s3003 + $0xd4] sm:$0xf]
        %v3658 = vld [vmem:[%s3003 + $0xd8] sm:$0x7]
        %v3683 = vrot.slane %v3635, 7
        %v3684 = vrot.slane %v3683, 4
        %v3685 = vrot.slane %v3636, 7
        %v3686 = vsel %vm3054, %v3684, %v3685
        %v3687 = vrot.slane %v3685, 4
        %v3688 = vrot.slane %v3637, 7
        %v3689 = vsel %vm3054, %v3687, %v3688
        %v3690 = vrot.slane %v3638, 7
        %v3691 = vrot.slane %v3690, 4
        %v3692 = vrot.slane %v3639, 7
        %v3693 = vsel %vm3054, %v3691, %v3692
        %v3694 = vrot.slane %v3692, 4
        %v3695 = vrot.slane %v3640, 7
        %v3696 = vsel %vm3054, %v3694, %v3695
        %v3697 = vrot.slane %v3641, 7
        %v3698 = vrot.slane %v3697, 4
        %v3699 = vrot.slane %v3642, 7
        %v3700 = vsel %vm3054, %v3698, %v3699
        %v3701 = vrot.slane %v3699, 4
        %v3702 = vrot.slane %v3643, 7
        %v3703 = vsel %vm3054, %v3701, %v3702
        %v3704 = vrot.slane %v3644, 7
        %v3705 = vrot.slane %v3704, 4
        %v3706 = vrot.slane %v3645, 7
        %v3707 = vsel %vm3054, %v3705, %v3706
        %v3708 = vrot.slane %v3706, 4
        %v3709 = vrot.slane %v3646, 7
        %v3710 = vsel %vm3054, %v3708, %v3709
        %v3711 = vrot.slane %v3647, 7
        %v3712 = vrot.slane %v3711, 4
        %v3713 = vrot.slane %v3648, 7
        %v3714 = vsel %vm3054, %v3712, %v3713
        %v3715 = vrot.slane %v3713, 4
        %v3716 = vrot.slane %v3649, 7
        %v3717 = vsel %vm3054, %v3715, %v3716
        %v3718 = vrot.slane %v3650, 7
        %v3719 = vrot.slane %v3718, 4
        %v3720 = vrot.slane %v3651, 7
        %v3721 = vsel %vm3054, %v3719, %v3720
        %v3722 = vrot.slane %v3720, 4
        %v3723 = vrot.slane %v3652, 7
        %v3724 = vsel %vm3054, %v3722, %v3723
        %v3725 = vrot.slane %v3653, 7
        %v3726 = vrot.slane %v3725, 4
        %v3727 = vrot.slane %v3654, 7
        %v3728 = vsel %vm3054, %v3726, %v3727
        %v3729 = vrot.slane %v3727, 4
        %v3730 = vrot.slane %v3655, 7
        %v3731 = vsel %vm3054, %v3729, %v3730
        %v3732 = vrot.slane %v3656, 7
        %v3733 = vrot.slane %v3732, 4
        %v3734 = vrot.slane %v3657, 7
        %v3735 = vsel %vm3054, %v3733, %v3734
        %v3736 = vrot.slane %v3734, 4
        %v3737 = vrot.slane %v3658, 7
        %v3738 = vsel %vm3054, %v3736, %v3737
        %s3739 = scalar_lea.vmem %s1, 768
        %v3740 = vld [vmem:[%s3739] sm:$0xf]
        %v3741 = vld [vmem:[%s3739 + $0x4] sm:$0xf]
        %v3742 = vld [vmem:[%s3739 + $0x8] sm:$0xf]
        %v3743 = vld [vmem:[%s3739 + $0xc] sm:$0xf]
        %v3744 = vld [vmem:[%s3739 + $0x10] sm:$0xf]
        %v3745 = vld [vmem:[%s3739 + $0x14] sm:$0xf]
        %v3746 = vld [vmem:[%s3739 + $0x18] sm:$0xf]
        %v3747 = vld [vmem:[%s3739 + $0x1c] sm:$0xf]
        %v3748 = vld [vmem:[%s3739 + $0x20] sm:$0xf]
        %v3749 = vld [vmem:[%s3739 + $0x24] sm:$0xf]
        %v3750 = vld [vmem:[%s3739 + $0x28] sm:$0xf]
        %v3751 = vld [vmem:[%s3739 + $0x2c] sm:$0xf]
        %v3752 = vld [vmem:[%s3739 + $0x30] sm:$0xf]
        %v3753 = vld [vmem:[%s3739 + $0x34] sm:$0xf]
        %v3754 = vld [vmem:[%s3739 + $0x38] sm:$0xf]
        %v3755 = vld [vmem:[%s3739 + $0x3c] sm:$0xf]
        %v3756 = vunpack.c.l.b16 %v3686
        %v3757 = vunpack.c.l.b16 %v3689
        %v3758 = vunpack.c.l.b16 %v3693
        %v3759 = vunpack.c.l.b16 %v3696
        %v3760 = vunpack.c.l.b16 %v3700
        %v3761 = vunpack.c.l.b16 %v3703
        %v3762 = vunpack.c.l.b16 %v3707
        %v3763 = vunpack.c.l.b16 %v3710
        %v3764 = vunpack.c.l.b16 %v3714
        %v3765 = vunpack.c.l.b16 %v3717
        %v3766 = vunpack.c.l.b16 %v3721
        %v3767 = vunpack.c.l.b16 %v3724
        %v3768 = vunpack.c.l.b16 %v3728
        %v3769 = vunpack.c.l.b16 %v3731
        %v3770 = vunpack.c.l.b16 %v3735
        %v3771 = vunpack.c.l.b16 %v3738
        %v3772 = vpack.c.b16 %v3757, %v3756
        %v3773 = vpack.c.b16 %v3759, %v3758
        %v3774 = vpack.c.b16 %v3761, %v3760
        %v3775 = vpack.c.b16 %v3763, %v3762
        %v3776 = vpack.c.b16 %v3765, %v3764
        %v3777 = vpack.c.b16 %v3767, %v3766
        %v3778 = vpack.c.b16 %v3769, %v3768
        %v3779 = vpack.c.b16 %v3771, %v3770
        %v3804 = vunpack.c.l.b16 %v3740
        %v3805 = vunpack.c.l.b16 %v3741
        %v3806 = vunpack.c.l.b16 %v3742
        %v3807 = vunpack.c.l.b16 %v3743
        %v3808 = vunpack.c.l.b16 %v3744
        %v3809 = vunpack.c.l.b16 %v3745
        %v3810 = vunpack.c.l.b16 %v3746
        %v3811 = vunpack.c.l.b16 %v3747
        %v3812 = vunpack.c.l.b16 %v3748
        %v3813 = vunpack.c.l.b16 %v3749
        %v3814 = vunpack.c.l.b16 %v3750
        %v3815 = vunpack.c.l.b16 %v3751
        %v3816 = vunpack.c.l.b16 %v3752
        %v3817 = vunpack.c.l.b16 %v3753
        %v3818 = vunpack.c.l.b16 %v3754
        %v3819 = vunpack.c.l.b16 %v3755
        %v3820 = vpack.c.b16 %v3805, %v3804
        %v3821 = vpack.c.b16 %v3807, %v3806
        %v3822 = vpack.c.b16 %v3809, %v3808
        %v3823 = vpack.c.b16 %v3811, %v3810
        %v3824 = vpack.c.b16 %v3813, %v3812
        %v3825 = vpack.c.b16 %v3815, %v3814
        %v3826 = vpack.c.b16 %v3817, %v3816
        %v3827 = vpack.c.b16 %v3819, %v3818
        %3836 = vmatprep.subr.bf16.mxu0 0
        %3837 = vmatpush1.bf16.msra.mxu0 %v3820
        %3838 = vmatprep.subr.bf16.mxu0 0
        %3839 = vmatpush1.bf16.msra.mxu0 %v3821
        %3840 = vmatprep.subr.bf16.mxu0 0
        %3841 = vmatpush1.bf16.msra.mxu0 %v3822
        %3842 = vmatprep.subr.bf16.mxu0 0
        %3843 = vmatpush1.bf16.msra.mxu0 %v3823
        %3844 = vmatprep.subr.bf16.mxu0 0
        %3845 = vmatpush1.bf16.msra.mxu0 %v3824
        %3846 = vmatprep.subr.bf16.mxu0 0
        %3847 = vmatpush1.bf16.msra.mxu0 %v3825
        %3848 = vmatprep.subr.bf16.mxu0 0
        %3849 = vmatpush1.bf16.msra.mxu0 %v3826
        %3850 = vmatprep.subr.bf16.mxu0 0
        %3851 = vmatpush1.bf16.msra.mxu0 %v3827
        %3852 = vmatprep.subr.bf16.mxu0 0
        %3853 = vmatpush1.bf16.msra.mxu0 0
        %3854 = vmatprep.subr.bf16.mxu0 0
        %3855 = vmatpush1.bf16.msra.mxu0 0
        %3856 = vmatprep.subr.bf16.mxu0 0
        %3857 = vmatpush1.bf16.msra.mxu0 0
        %3858 = vmatprep.subr.bf16.mxu0 0
        %3859 = vmatpush1.bf16.msra.mxu0 0
        %3860 = vmatprep.subr.bf16.mxu0 0
        %3861 = vmatpush1.bf16.msra.mxu0 0
        %3862 = vmatprep.subr.bf16.mxu0 0
        %3863 = vmatpush1.bf16.msra.mxu0 0
        %3864 = vmatprep.subr.bf16.mxu0 0
        %3865 = vmatpush1.bf16.msra.mxu0 0
        %3866 = vmatprep.subr.bf16.mxu0 0
        %3867 = vmatpush1.bf16.msra.mxu0 0
        %3868 = vmatprep.mubr.bf16.mxu0 0
        %3869 = vmatmul.mubr.bf16.gmra.mrb[0].mxu0 %v3772
        %v3870 = vpop.f32.mrb[0].mxu0
        %v3871 = vadd.f32 0.0, %v3870
        %v3872 = vpop.f32.mrb[0].mxu0
        %v3873 = vpop.f32.mrb[0].mxu0
        %v3874 = vadd.f32 0.0, %v3873
        %v3875 = vpop.f32.mrb[0].mxu0
        %3876 = vmatprep.mubr.bf16.mxu0 0
        %3877 = vmatmul.mubr.bf16.gmra.mrb[0].mxu0 %v3773
        %v3878 = vpop.f32.mrb[0].mxu0
        %v3879 = vadd.f32 0.0, %v3878
        %v3880 = vpop.f32.mrb[0].mxu0
        %v3881 = vpop.f32.mrb[0].mxu0
        %v3882 = vadd.f32 0.0, %v3881
        %v3883 = vpop.f32.mrb[0].mxu0
        %3884 = vmatprep.mubr.bf16.mxu0 0
        %3885 = vmatmul.mubr.bf16.gmra.mrb[0].mxu0 %v3774
        %v3886 = vpop.f32.mrb[0].mxu0
        %v3887 = vadd.f32 0.0, %v3886
        %v3888 = vpop.f32.mrb[0].mxu0
        %v3889 = vpop.f32.mrb[0].mxu0
        %v3890 = vadd.f32 0.0, %v3889
        %v3891 = vpop.f32.mrb[0].mxu0
        %3892 = vmatprep.mubr.bf16.mxu0 0
        %3893 = vmatmul.mubr.bf16.gmra.mrb[0].mxu0 %v3775
        %v3894 = vpop.f32.mrb[0].mxu0
        %v3895 = vadd.f32 0.0, %v3894
        %v3896 = vpop.f32.mrb[0].mxu0
        %v3897 = vpop.f32.mrb[0].mxu0
        %v3898 = vadd.f32 0.0, %v3897
        %v3899 = vpop.f32.mrb[0].mxu0
        %3900 = vmatprep.mubr.bf16.mxu0 0
        %3901 = vmatmul.mubr.bf16.gmra.mrb[0].mxu0 %v3776
        %v3902 = vpop.f32.mrb[0].mxu0
        %v3903 = vadd.f32 0.0, %v3902
        %v3904 = vpop.f32.mrb[0].mxu0
        %v3905 = vpop.f32.mrb[0].mxu0
        %v3906 = vadd.f32 0.0, %v3905
        %v3907 = vpop.f32.mrb[0].mxu0
        %3908 = vmatprep.mubr.bf16.mxu0 0
        %3909 = vmatmul.mubr.bf16.gmra.mrb[0].mxu0 %v3777
        %v3910 = vpop.f32.mrb[0].mxu0
        %v3911 = vadd.f32 0.0, %v3910
        %v3912 = vpop.f32.mrb[0].mxu0
        %v3913 = vpop.f32.mrb[0].mxu0
        %v3914 = vadd.f32 0.0, %v3913
        %v3915 = vpop.f32.mrb[0].mxu0
        %3916 = vmatprep.mubr.bf16.mxu0 0
        %3917 = vmatmul.mubr.bf16.gmra.mrb[0].mxu0 %v3778
        %v3918 = vpop.f32.mrb[0].mxu0
        %v3919 = vadd.f32 0.0, %v3918
        %v3920 = vpop.f32.mrb[0].mxu0
        %v3921 = vpop.f32.mrb[0].mxu0
        %v3922 = vadd.f32 0.0, %v3921
        %v3923 = vpop.f32.mrb[0].mxu0
        %3924 = vmatprep.mubr.bf16.mxu0 0
        %3925 = vmatmul.mubr.bf16.gmra.mrb[0].mxu0 %v3779
        %v3926 = vpop.f32.mrb[0].mxu0
        %v3927 = vadd.f32 0.0, %v3926
        %v3928 = vpop.f32.mrb[0].mxu0
        %v3929 = vpop.f32.mrb[0].mxu0
        %v3930 = vadd.f32 0.0, %v3929
        %v3931 = vpop.f32.mrb[0].mxu0
        %3932 = vdwg.mxu0
        %v3933 = vadd.f32 %v3619, %v3871
        %v3934 = vadd.f32 %v3620, %v3874
        %v3935 = vadd.f32 %v3621, %v3879
        %v3936 = vadd.f32 %v3622, %v3882
        %v3937 = vadd.f32 %v3623, %v3887
        %v3938 = vadd.f32 %v3624, %v3890
        %v3939 = vadd.f32 %v3625, %v3895
        %v3940 = vadd.f32 %v3626, %v3898
        %v3941 = vadd.f32 %v3627, %v3903
        %v3942 = vadd.f32 %v3628, %v3906
        %v3943 = vadd.f32 %v3629, %v3911
        %v3944 = vadd.f32 %v3630, %v3914
        %v3945 = vadd.f32 %v3631, %v3919
        %v3946 = vadd.f32 %v3632, %v3922
        %v3947 = vadd.f32 %v3633, %v3927
        %v3948 = vadd.f32 %v3634, %v3930
        %v3949 = vld [vmem:[%s278] sm:$0x8]
        %v3950 = vld [vmem:[%s278 + $0x4] sm:$0xf]
        %v3951 = vld [vmem:[%s278 + $0x8] sm:$0x7]
        %v3952 = vld [vmem:[%s278 + $0x1c] sm:$0x8]
        %v3953 = vld [vmem:[%s278 + $0x20] sm:$0xf]
        %v3954 = vld [vmem:[%s278 + $0x24] sm:$0x7]
        %v3955 = vld [vmem:[%s278 + $0x38] sm:$0x8]
        %v3956 = vld [vmem:[%s278 + $0x3c] sm:$0xf]
        %v3957 = vld [vmem:[%s278 + $0x40] sm:$0x7]
        %v3958 = vld [vmem:[%s278 + $0x54] sm:$0x8]
        %v3959 = vld [vmem:[%s278 + $0x58] sm:$0xf]
        %v3960 = vld [vmem:[%s278 + $0x5c] sm:$0x7]
        %v3961 = vld [vmem:[%s278 + $0x70] sm:$0x8]
        %v3962 = vld [vmem:[%s278 + $0x74] sm:$0xf]
        %v3963 = vld [vmem:[%s278 + $0x78] sm:$0x7]
        %v3964 = vld [vmem:[%s278 + $0x8c] sm:$0x8]
        %v3965 = vld [vmem:[%s278 + $0x90] sm:$0xf]
        %v3966 = vld [vmem:[%s278 + $0x94] sm:$0x7]
        %v3967 = vld [vmem:[%s278 + $0xa8] sm:$0x8]
        %v3968 = vld [vmem:[%s278 + $0xac] sm:$0xf]
        %v3969 = vld [vmem:[%s278 + $0xb0] sm:$0x7]
        %v3970 = vld [vmem:[%s278 + $0xc4] sm:$0x8]
        %v3971 = vld [vmem:[%s278 + $0xc8] sm:$0xf]
        %v3972 = vld [vmem:[%s278 + $0xcc] sm:$0x7]
        %v3997 = vrot.slane %v3949, 7
        %v3998 = vrot.slane %v3997, 4
        %v3999 = vrot.slane %v3950, 7
        %v4000 = vsel %vm3054, %v3998, %v3999
        %v4001 = vrot.slane %v3999, 4
        %v4002 = vrot.slane %v3951, 7
        %v4003 = vsel %vm3054, %v4001, %v4002
        %v4004 = vrot.slane %v3952, 7
        %v4005 = vrot.slane %v4004, 4
        %v4006 = vrot.slane %v3953, 7
        %v4007 = vsel %vm3054, %v4005, %v4006
        %v4008 = vrot.slane %v4006, 4
        %v4009 = vrot.slane %v3954, 7
        %v4010 = vsel %vm3054, %v4008, %v4009
        %v4011 = vrot.slane %v3955, 7
        %v4012 = vrot.slane %v4011, 4
        %v4013 = vrot.slane %v3956, 7
        %v4014 = vsel %vm3054, %v4012, %v4013
        %v4015 = vrot.slane %v4013, 4
        %v4016 = vrot.slane %v3957, 7
        %v4017 = vsel %vm3054, %v4015, %v4016
        %v4018 = vrot.slane %v3958, 7
        %v4019 = vrot.slane %v4018, 4
        %v4020 = vrot.slane %v3959, 7
        %v4021 = vsel %vm3054, %v4019, %v4020
        %v4022 = vrot.slane %v4020, 4
        %v4023 = vrot.slane %v3960, 7
        %v4024 = vsel %vm3054, %v4022, %v4023
        %v4025 = vrot.slane %v3961, 7
        %v4026 = vrot.slane %v4025, 4
        %v4027 = vrot.slane %v3962, 7
        %v4028 = vsel %vm3054, %v4026, %v4027
        %v4029 = vrot.slane %v4027, 4
        %v4030 = vrot.slane %v3963, 7
        %v4031 = vsel %vm3054, %v4029, %v4030
        %v4032 = vrot.slane %v3964, 7
        %v4033 = vrot.slane %v4032, 4
        %v4034 = vrot.slane %v3965, 7
        %v4035 = vsel %vm3054, %v4033, %v4034
        %v4036 = vrot.slane %v4034, 4
        %v4037 = vrot.slane %v3966, 7
        %v4038 = vsel %vm3054, %v4036, %v4037
        %v4039 = vrot.slane %v3967, 7
        %v4040 = vrot.slane %v4039, 4
        %v4041 = vrot.slane %v3968, 7
        %v4042 = vsel %vm3054, %v4040, %v4041
        %v4043 = vrot.slane %v4041, 4
        %v4044 = vrot.slane %v3969, 7
        %v4045 = vsel %vm3054, %v4043, %v4044
        %v4046 = vrot.slane %v3970, 7
        %v4047 = vrot.slane %v4046, 4
        %v4048 = vrot.slane %v3971, 7
        %v4049 = vsel %vm3054, %v4047, %v4048
        %v4050 = vrot.slane %v4048, 4
        %v4051 = vrot.slane %v3972, 7
        %v4052 = vsel %vm3054, %v4050, %v4051
        %s4053 = scalar_lea.vmem %s1, 832
        %v4054 = vld [vmem:[%s4053] sm:$0xf]
        %v4055 = vld [vmem:[%s4053 + $0x4] sm:$0xf]
        %v4056 = vld [vmem:[%s4053 + $0x8] sm:$0xf]
        %v4057 = vld [vmem:[%s4053 + $0xc] sm:$0xf]
        %v4058 = vld [vmem:[%s4053 + $0x10] sm:$0xf]
        %v4059 = vld [vmem:[%s4053 + $0x14] sm:$0xf]
        %v4060 = vld [vmem:[%s4053 + $0x18] sm:$0xf]
        %v4061 = vld [vmem:[%s4053 + $0x1c] sm:$0xf]
        %v4062 = vld [vmem:[%s4053 + $0x20] sm:$0xf]
        %v4063 = vld [vmem:[%s4053 + $0x24] sm:$0xf]
        %v4064 = vld [vmem:[%s4053 + $0x28] sm:$0xf]
        %v4065 = vld [vmem:[%s4053 + $0x2c] sm:$0xf]
        %v4066 = vld [vmem:[%s4053 + $0x30] sm:$0xf]
        %v4067 = vld [vmem:[%s4053 + $0x34] sm:$0xf]
        %v4068 = vld [vmem:[%s4053 + $0x38] sm:$0xf]
        %v4069 = vld [vmem:[%s4053 + $0x3c] sm:$0xf]
        %v4070 = vunpack.c.l.b16 %v4000
        %v4071 = vunpack.c.l.b16 %v4003
        %v4072 = vunpack.c.l.b16 %v4007
        %v4073 = vunpack.c.l.b16 %v4010
        %v4074 = vunpack.c.l.b16 %v4014
        %v4075 = vunpack.c.l.b16 %v4017
        %v4076 = vunpack.c.l.b16 %v4021
        %v4077 = vunpack.c.l.b16 %v4024
        %v4078 = vunpack.c.l.b16 %v4028
        %v4079 = vunpack.c.l.b16 %v4031
        %v4080 = vunpack.c.l.b16 %v4035
        %v4081 = vunpack.c.l.b16 %v4038
        %v4082 = vunpack.c.l.b16 %v4042
        %v4083 = vunpack.c.l.b16 %v4045
        %v4084 = vunpack.c.l.b16 %v4049
        %v4085 = vunpack.c.l.b16 %v4052
        %v4086 = vpack.c.b16 %v4071, %v4070
        %v4087 = vpack.c.b16 %v4073, %v4072
        %v4088 = vpack.c.b16 %v4075, %v4074
        %v4089 = vpack.c.b16 %v4077, %v4076
        %v4090 = vpack.c.b16 %v4079, %v4078
        %v4091 = vpack.c.b16 %v4081, %v4080
        %v4092 = vpack.c.b16 %v4083, %v4082
        %v4093 = vpack.c.b16 %v4085, %v4084
        %v4118 = vunpack.c.l.b16 %v4054
        %v4119 = vunpack.c.l.b16 %v4055
        %v4120 = vunpack.c.l.b16 %v4056
        %v4121 = vunpack.c.l.b16 %v4057
        %v4122 = vunpack.c.l.b16 %v4058
        %v4123 = vunpack.c.l.b16 %v4059
        %v4124 = vunpack.c.l.b16 %v4060
        %v4125 = vunpack.c.l.b16 %v4061
        %v4126 = vunpack.c.l.b16 %v4062
        %v4127 = vunpack.c.l.b16 %v4063
        %v4128 = vunpack.c.l.b16 %v4064
        %v4129 = vunpack.c.l.b16 %v4065
        %v4130 = vunpack.c.l.b16 %v4066
        %v4131 = vunpack.c.l.b16 %v4067
        %v4132 = vunpack.c.l.b16 %v4068
        %v4133 = vunpack.c.l.b16 %v4069
        %v4134 = vpack.c.b16 %v4119, %v4118
        %v4135 = vpack.c.b16 %v4121, %v4120
        %v4136 = vpack.c.b16 %v4123, %v4122
        %v4137 = vpack.c.b16 %v4125, %v4124
        %v4138 = vpack.c.b16 %v4127, %v4126
        %v4139 = vpack.c.b16 %v4129, %v4128
        %v4140 = vpack.c.b16 %v4131, %v4130
        %v4141 = vpack.c.b16 %v4133, %v4132
        %4150 = vmatprep.subr.bf16.mxu0 0
        %4151 = vmatpush1.bf16.msra.mxu0 %v4134
        %4152 = vmatprep.subr.bf16.mxu0 0
        %4153 = vmatpush1.bf16.msra.mxu0 %v4135
        %4154 = vmatprep.subr.bf16.mxu0 0
        %4155 = vmatpush1.bf16.msra.mxu0 %v4136
        %4156 = vmatprep.subr.bf16.mxu0 0
        %4157 = vmatpush1.bf16.msra.mxu0 %v4137
        %4158 = vmatprep.subr.bf16.mxu0 0
        %4159 = vmatpush1.bf16.msra.mxu0 %v4138
        %4160 = vmatprep.subr.bf16.mxu0 0
        %4161 = vmatpush1.bf16.msra.mxu0 %v4139
        %4162 = vmatprep.subr.bf16.mxu0 0
        %4163 = vmatpush1.bf16.msra.mxu0 %v4140
        %4164 = vmatprep.subr.bf16.mxu0 0
        %4165 = vmatpush1.bf16.msra.mxu0 %v4141
        %4166 = vmatprep.subr.bf16.mxu0 0
        %4167 = vmatpush1.bf16.msra.mxu0 0
        %4168 = vmatprep.subr.bf16.mxu0 0
        %4169 = vmatpush1.bf16.msra.mxu0 0
        %4170 = vmatprep.subr.bf16.mxu0 0
        %4171 = vmatpush1.bf16.msra.mxu0 0
        %4172 = vmatprep.subr.bf16.mxu0 0
        %4173 = vmatpush1.bf16.msra.mxu0 0
        %4174 = vmatprep.subr.bf16.mxu0 0
        %4175 = vmatpush1.bf16.msra.mxu0 0
        %4176 = vmatprep.subr.bf16.mxu0 0
        %4177 = vmatpush1.bf16.msra.mxu0 0
        %4178 = vmatprep.subr.bf16.mxu0 0
        %4179 = vmatpush1.bf16.msra.mxu0 0
        %4180 = vmatprep.subr.bf16.mxu0 0
        %4181 = vmatpush1.bf16.msra.mxu0 0
        %4182 = vmatprep.mubr.bf16.mxu0 0
        %4183 = vmatmul.mubr.bf16.gmra.mrb[0].mxu0 %v4086
        %v4184 = vpop.f32.mrb[0].mxu0
        %v4185 = vadd.f32 0.0, %v4184
        %v4186 = vpop.f32.mrb[0].mxu0
        %v4187 = vpop.f32.mrb[0].mxu0
        %v4188 = vadd.f32 0.0, %v4187
        %v4189 = vpop.f32.mrb[0].mxu0
        %4190 = vmatprep.mubr.bf16.mxu0 0
        %4191 = vmatmul.mubr.bf16.gmra.mrb[0].mxu0 %v4087
        %v4192 = vpop.f32.mrb[0].mxu0
        %v4193 = vadd.f32 0.0, %v4192
        %v4194 = vpop.f32.mrb[0].mxu0
        %v4195 = vpop.f32.mrb[0].mxu0
        %v4196 = vadd.f32 0.0, %v4195
        %v4197 = vpop.f32.mrb[0].mxu0
        %4198 = vmatprep.mubr.bf16.mxu0 0
        %4199 = vmatmul.mubr.bf16.gmra.mrb[0].mxu0 %v4088
        %v4200 = vpop.f32.mrb[0].mxu0
        %v4201 = vadd.f32 0.0, %v4200
        %v4202 = vpop.f32.mrb[0].mxu0
        %v4203 = vpop.f32.mrb[0].mxu0
        %v4204 = vadd.f32 0.0, %v4203
        %v4205 = vpop.f32.mrb[0].mxu0
        %4206 = vmatprep.mubr.bf16.mxu0 0
        %4207 = vmatmul.mubr.bf16.gmra.mrb[0].mxu0 %v4089
        %v4208 = vpop.f32.mrb[0].mxu0
        %v4209 = vadd.f32 0.0, %v4208
        %v4210 = vpop.f32.mrb[0].mxu0
        %v4211 = vpop.f32.mrb[0].mxu0
        %v4212 = vadd.f32 0.0, %v4211
        %v4213 = vpop.f32.mrb[0].mxu0
        %4214 = vmatprep.mubr.bf16.mxu0 0
        %4215 = vmatmul.mubr.bf16.gmra.mrb[0].mxu0 %v4090
        %v4216 = vpop.f32.mrb[0].mxu0
        %v4217 = vadd.f32 0.0, %v4216
        %v4218 = vpop.f32.mrb[0].mxu0
        %v4219 = vpop.f32.mrb[0].mxu0
        %v4220 = vadd.f32 0.0, %v4219
        %v4221 = vpop.f32.mrb[0].mxu0
        %4222 = vmatprep.mubr.bf16.mxu0 0
        %4223 = vmatmul.mubr.bf16.gmra.mrb[0].mxu0 %v4091
        %v4224 = vpop.f32.mrb[0].mxu0
        %v4225 = vadd.f32 0.0, %v4224
        %v4226 = vpop.f32.mrb[0].mxu0
        %v4227 = vpop.f32.mrb[0].mxu0
        %v4228 = vadd.f32 0.0, %v4227
        %v4229 = vpop.f32.mrb[0].mxu0
        %4230 = vmatprep.mubr.bf16.mxu0 0
        %4231 = vmatmul.mubr.bf16.gmra.mrb[0].mxu0 %v4092
        %v4232 = vpop.f32.mrb[0].mxu0
        %v4233 = vadd.f32 0.0, %v4232
        %v4234 = vpop.f32.mrb[0].mxu0
        %v4235 = vpop.f32.mrb[0].mxu0
        %v4236 = vadd.f32 0.0, %v4235
        %v4237 = vpop.f32.mrb[0].mxu0
        %4238 = vmatprep.mubr.bf16.mxu0 0
        %4239 = vmatmul.mubr.bf16.gmra.mrb[0].mxu0 %v4093
        %v4240 = vpop.f32.mrb[0].mxu0
        %v4241 = vadd.f32 0.0, %v4240
        %v4242 = vpop.f32.mrb[0].mxu0
        %v4243 = vpop.f32.mrb[0].mxu0
        %v4244 = vadd.f32 0.0, %v4243
        %v4245 = vpop.f32.mrb[0].mxu0
        %4246 = vdwg.mxu0
        %v4247 = vadd.f32 %v3933, %v4185
        %v4248 = vadd.f32 %v3934, %v4188
        %v4249 = vadd.f32 %v3935, %v4193
        %v4250 = vadd.f32 %v3936, %v4196
        %v4251 = vadd.f32 %v3937, %v4201
        %v4252 = vadd.f32 %v3938, %v4204
        %v4253 = vadd.f32 %v3939, %v4209
        %v4254 = vadd.f32 %v3940, %v4212
        %v4255 = vadd.f32 %v3941, %v4217
        %v4256 = vadd.f32 %v3942, %v4220
        %v4257 = vadd.f32 %v3943, %v4225
        %v4258 = vadd.f32 %v3944, %v4228
        %v4259 = vadd.f32 %v3945, %v4233
        %v4260 = vadd.f32 %v3946, %v4236
        %v4261 = vadd.f32 %v3947, %v4241
        %v4262 = vadd.f32 %v3948, %v4244
        %s4263 = scalar_lea.vmem %s1, 896
        %v4264 = vld [vmem:[%s4263] sm:$0xf]
        %v4265 = vld [vmem:[%s4263 + $0x4] sm:$0xf]
        %v4266 = vld [vmem:[%s4263 + $0x8] sm:$0xf]
        %v4267 = vld [vmem:[%s4263 + $0xc] sm:$0xf]
        %v4268 = vld [vmem:[%s4263 + $0x10] sm:$0xf]
        %v4269 = vld [vmem:[%s4263 + $0x14] sm:$0xf]
        %v4270 = vld [vmem:[%s4263 + $0x18] sm:$0xf]
        %v4271 = vld [vmem:[%s4263 + $0x1c] sm:$0xf]
        %v4272 = vld [vmem:[%s4263 + $0x20] sm:$0xf]
        %v4273 = vld [vmem:[%s4263 + $0x24] sm:$0xf]
        %v4274 = vld [vmem:[%s4263 + $0x28] sm:$0xf]
        %v4275 = vld [vmem:[%s4263 + $0x2c] sm:$0xf]
        %v4276 = vld [vmem:[%s4263 + $0x30] sm:$0xf]
        %v4277 = vld [vmem:[%s4263 + $0x34] sm:$0xf]
        %v4278 = vld [vmem:[%s4263 + $0x38] sm:$0xf]
        %v4279 = vld [vmem:[%s4263 + $0x3c] sm:$0xf]
        %v4296 = vunpack.c.l.b16 %v4264
        %v4297 = vunpack.c.l.b16 %v4265
        %v4298 = vunpack.c.l.b16 %v4266
        %v4299 = vunpack.c.l.b16 %v4267
        %v4300 = vunpack.c.l.b16 %v4268
        %v4301 = vunpack.c.l.b16 %v4269
        %v4302 = vunpack.c.l.b16 %v4270
        %v4303 = vunpack.c.l.b16 %v4271
        %v4304 = vunpack.c.l.b16 %v4272
        %v4305 = vunpack.c.l.b16 %v4273
        %v4306 = vunpack.c.l.b16 %v4274
        %v4307 = vunpack.c.l.b16 %v4275
        %v4308 = vunpack.c.l.b16 %v4276
        %v4309 = vunpack.c.l.b16 %v4277
        %v4310 = vunpack.c.l.b16 %v4278
        %v4311 = vunpack.c.l.b16 %v4279
        %v4312 = vpack.c.b16 %v4297, %v4296
        %v4313 = vpack.c.b16 %v4299, %v4298
        %v4314 = vpack.c.b16 %v4301, %v4300
        %v4315 = vpack.c.b16 %v4303, %v4302
        %v4316 = vpack.c.b16 %v4305, %v4304
        %v4317 = vpack.c.b16 %v4307, %v4306
        %v4318 = vpack.c.b16 %v4309, %v4308
        %v4319 = vpack.c.b16 %v4311, %v4310
        %4328 = vmatprep.subr.bf16.mxu0 0
        %4329 = vmatpush1.bf16.msra.mxu0 %v4312
        %4330 = vmatprep.subr.bf16.mxu0 0
        %4331 = vmatpush1.bf16.msra.mxu0 %v4313
        %4332 = vmatprep.subr.bf16.mxu0 0
        %4333 = vmatpush1.bf16.msra.mxu0 %v4314
        %4334 = vmatprep.subr.bf16.mxu0 0
        %4335 = vmatpush1.bf16.msra.mxu0 %v4315
        %4336 = vmatprep.subr.bf16.mxu0 0
        %4337 = vmatpush1.bf16.msra.mxu0 %v4316
        %4338 = vmatprep.subr.bf16.mxu0 0
        %4339 = vmatpush1.bf16.msra.mxu0 %v4317
        %4340 = vmatprep.subr.bf16.mxu0 0
        %4341 = vmatpush1.bf16.msra.mxu0 %v4318
        %4342 = vmatprep.subr.bf16.mxu0 0
        %4343 = vmatpush1.bf16.msra.mxu0 %v4319
        %4344 = vmatprep.subr.bf16.mxu0 0
        %4345 = vmatpush1.bf16.msra.mxu0 0
        %4346 = vmatprep.subr.bf16.mxu0 0
        %4347 = vmatpush1.bf16.msra.mxu0 0
        %4348 = vmatprep.subr.bf16.mxu0 0
        %4349 = vmatpush1.bf16.msra.mxu0 0
        %4350 = vmatprep.subr.bf16.mxu0 0
        %4351 = vmatpush1.bf16.msra.mxu0 0
        %4352 = vmatprep.subr.bf16.mxu0 0
        %4353 = vmatpush1.bf16.msra.mxu0 0
        %4354 = vmatprep.subr.bf16.mxu0 0
        %4355 = vmatpush1.bf16.msra.mxu0 0
        %4356 = vmatprep.subr.bf16.mxu0 0
        %4357 = vmatpush1.bf16.msra.mxu0 0
        %4358 = vmatprep.subr.bf16.mxu0 0
        %4359 = vmatpush1.bf16.msra.mxu0 0
        %4360 = vmatprep.mubr.bf16.mxu0 0
        %4361 = vmatmul.mubr.bf16.gmra.mrb[0].mxu0 %v723
        %v4362 = vpop.f32.mrb[0].mxu0
        %v4363 = vadd.f32 0.0, %v4362
        %v4364 = vpop.f32.mrb[0].mxu0
        %v4365 = vpop.f32.mrb[0].mxu0
        %v4366 = vadd.f32 0.0, %v4365
        %v4367 = vpop.f32.mrb[0].mxu0
        %4368 = vmatprep.mubr.bf16.mxu0 0
        %4369 = vmatmul.mubr.bf16.gmra.mrb[0].mxu0 %v724
        %v4370 = vpop.f32.mrb[0].mxu0
        %v4371 = vadd.f32 0.0, %v4370
        %v4372 = vpop.f32.mrb[0].mxu0
        %v4373 = vpop.f32.mrb[0].mxu0
        %v4374 = vadd.f32 0.0, %v4373
        %v4375 = vpop.f32.mrb[0].mxu0
        %4376 = vmatprep.mubr.bf16.mxu0 0
        %4377 = vmatmul.mubr.bf16.gmra.mrb[0].mxu0 %v725
        %v4378 = vpop.f32.mrb[0].mxu0
        %v4379 = vadd.f32 0.0, %v4378
        %v4380 = vpop.f32.mrb[0].mxu0
        %v4381 = vpop.f32.mrb[0].mxu0
        %v4382 = vadd.f32 0.0, %v4381
        %v4383 = vpop.f32.mrb[0].mxu0
        %4384 = vmatprep.mubr.bf16.mxu0 0
        %4385 = vmatmul.mubr.bf16.gmra.mrb[0].mxu0 %v726
        %v4386 = vpop.f32.mrb[0].mxu0
        %v4387 = vadd.f32 0.0, %v4386
        %v4388 = vpop.f32.mrb[0].mxu0
        %v4389 = vpop.f32.mrb[0].mxu0
        %v4390 = vadd.f32 0.0, %v4389
        %v4391 = vpop.f32.mrb[0].mxu0
        %4392 = vmatprep.mubr.bf16.mxu0 0
        %4393 = vmatmul.mubr.bf16.gmra.mrb[0].mxu0 %v727
        %v4394 = vpop.f32.mrb[0].mxu0
        %v4395 = vadd.f32 0.0, %v4394
        %v4396 = vpop.f32.mrb[0].mxu0
        %v4397 = vpop.f32.mrb[0].mxu0
        %v4398 = vadd.f32 0.0, %v4397
        %v4399 = vpop.f32.mrb[0].mxu0
        %4400 = vmatprep.mubr.bf16.mxu0 0
        %4401 = vmatmul.mubr.bf16.gmra.mrb[0].mxu0 %v728
        %v4402 = vpop.f32.mrb[0].mxu0
        %v4403 = vadd.f32 0.0, %v4402
        %v4404 = vpop.f32.mrb[0].mxu0
        %v4405 = vpop.f32.mrb[0].mxu0
        %v4406 = vadd.f32 0.0, %v4405
        %v4407 = vpop.f32.mrb[0].mxu0
        %4408 = vmatprep.mubr.bf16.mxu0 0
        %4409 = vmatmul.mubr.bf16.gmra.mrb[0].mxu0 %v729
        %v4410 = vpop.f32.mrb[0].mxu0
        %v4411 = vadd.f32 0.0, %v4410
        %v4412 = vpop.f32.mrb[0].mxu0
        %v4413 = vpop.f32.mrb[0].mxu0
        %v4414 = vadd.f32 0.0, %v4413
        %v4415 = vpop.f32.mrb[0].mxu0
        %4416 = vmatprep.mubr.bf16.mxu0 0
        %4417 = vmatmul.mubr.bf16.gmra.mrb[0].mxu0 %v730
        %v4418 = vpop.f32.mrb[0].mxu0
        %v4419 = vadd.f32 0.0, %v4418
        %v4420 = vpop.f32.mrb[0].mxu0
        %v4421 = vpop.f32.mrb[0].mxu0
        %v4422 = vadd.f32 0.0, %v4421
        %v4423 = vpop.f32.mrb[0].mxu0
        %4424 = vdwg.mxu0
        %v4425 = vadd.f32 %v4247, %v4363
        %v4426 = vadd.f32 %v4248, %v4366
        %v4427 = vadd.f32 %v4249, %v4371
        %v4428 = vadd.f32 %v4250, %v4374
        %v4429 = vadd.f32 %v4251, %v4379
        %v4430 = vadd.f32 %v4252, %v4382
        %v4431 = vadd.f32 %v4253, %v4387
        %v4432 = vadd.f32 %v4254, %v4390
        %v4433 = vadd.f32 %v4255, %v4395
        %v4434 = vadd.f32 %v4256, %v4398
        %v4435 = vadd.f32 %v4257, %v4403
        %v4436 = vadd.f32 %v4258, %v4406
        %v4437 = vadd.f32 %v4259, %v4411
        %v4438 = vadd.f32 %v4260, %v4414
        %v4439 = vadd.f32 %v4261, %v4419
        %v4440 = vadd.f32 %v4262, %v4422
        %v4441 = vld [vmem:[%s278 + $0xc] sm:$0x8]
        %v4442 = vld [vmem:[%s278 + $0x10] sm:$0xf]
        %v4443 = vld [vmem:[%s278 + $0x14] sm:$0x7]
        %v4444 = vld [vmem:[%s278 + $0x28] sm:$0x8]
        %v4445 = vld [vmem:[%s278 + $0x2c] sm:$0xf]
        %v4446 = vld [vmem:[%s278 + $0x30] sm:$0x7]
        %v4447 = vld [vmem:[%s278 + $0x44] sm:$0x8]
        %v4448 = vld [vmem:[%s278 + $0x48] sm:$0xf]
        %v4449 = vld [vmem:[%s278 + $0x4c] sm:$0x7]
        %v4450 = vld [vmem:[%s278 + $0x60] sm:$0x8]
        %v4451 = vld [vmem:[%s278 + $0x64] sm:$0xf]
        %v4452 = vld [vmem:[%s278 + $0x68] sm:$0x7]
        %v4453 = vld [vmem:[%s278 + $0x7c] sm:$0x8]
        %v4454 = vld [vmem:[%s278 + $0x80] sm:$0xf]
        %v4455 = vld [vmem:[%s278 + $0x84] sm:$0x7]
        %v4456 = vld [vmem:[%s278 + $0x98] sm:$0x8]
        %v4457 = vld [vmem:[%s278 + $0x9c] sm:$0xf]
        %v4458 = vld [vmem:[%s278 + $0xa0] sm:$0x7]
        %v4459 = vld [vmem:[%s278 + $0xb4] sm:$0x8]
        %v4460 = vld [vmem:[%s278 + $0xb8] sm:$0xf]
        %v4461 = vld [vmem:[%s278 + $0xbc] sm:$0x7]
        %v4462 = vld [vmem:[%s278 + $0xd0] sm:$0x8]
        %v4463 = vld [vmem:[%s278 + $0xd4] sm:$0xf]
        %v4464 = vld [vmem:[%s278 + $0xd8] sm:$0x7]
        %v4489 = vrot.slane %v4441, 7
        %v4490 = vrot.slane %v4489, 4
        %v4491 = vrot.slane %v4442, 7
        %v4492 = vsel %vm3054, %v4490, %v4491
        %v4493 = vrot.slane %v4491, 4
        %v4494 = vrot.slane %v4443, 7
        %v4495 = vsel %vm3054, %v4493, %v4494
        %v4496 = vrot.slane %v4444, 7
        %v4497 = vrot.slane %v4496, 4
        %v4498 = vrot.slane %v4445, 7
        %v4499 = vsel %vm3054, %v4497, %v4498
        %v4500 = vrot.slane %v4498, 4
        %v4501 = vrot.slane %v4446, 7
        %v4502 = vsel %vm3054, %v4500, %v4501
        %v4503 = vrot.slane %v4447, 7
        %v4504 = vrot.slane %v4503, 4
        %v4505 = vrot.slane %v4448, 7
        %v4506 = vsel %vm3054, %v4504, %v4505
        %v4507 = vrot.slane %v4505, 4
        %v4508 = vrot.slane %v4449, 7
        %v4509 = vsel %vm3054, %v4507, %v4508
        %v4510 = vrot.slane %v4450, 7
        %v4511 = vrot.slane %v4510, 4
        %v4512 = vrot.slane %v4451, 7
        %v4513 = vsel %vm3054, %v4511, %v4512
        %v4514 = vrot.slane %v4512, 4
        %v4515 = vrot.slane %v4452, 7
        %v4516 = vsel %vm3054, %v4514, %v4515
        %v4517 = vrot.slane %v4453, 7
        %v4518 = vrot.slane %v4517, 4
        %v4519 = vrot.slane %v4454, 7
        %v4520 = vsel %vm3054, %v4518, %v4519
        %v4521 = vrot.slane %v4519, 4
        %v4522 = vrot.slane %v4455, 7
        %v4523 = vsel %vm3054, %v4521, %v4522
        %v4524 = vrot.slane %v4456, 7
        %v4525 = vrot.slane %v4524, 4
        %v4526 = vrot.slane %v4457, 7
        %v4527 = vsel %vm3054, %v4525, %v4526
        %v4528 = vrot.slane %v4526, 4
        %v4529 = vrot.slane %v4458, 7
        %v4530 = vsel %vm3054, %v4528, %v4529
        %v4531 = vrot.slane %v4459, 7
        %v4532 = vrot.slane %v4531, 4
        %v4533 = vrot.slane %v4460, 7
        %v4534 = vsel %vm3054, %v4532, %v4533
        %v4535 = vrot.slane %v4533, 4
        %v4536 = vrot.slane %v4461, 7
        %v4537 = vsel %vm3054, %v4535, %v4536
        %v4538 = vrot.slane %v4462, 7
        %v4539 = vrot.slane %v4538, 4
        %v4540 = vrot.slane %v4463, 7
        %v4541 = vsel %vm3054, %v4539, %v4540
        %v4542 = vrot.slane %v4540, 4
        %v4543 = vrot.slane %v4464, 7
        %v4544 = vsel %vm3054, %v4542, %v4543
        %s4545 = scalar_lea.vmem %s1, 960
        %v4546 = vld [vmem:[%s4545] sm:$0xf]
        %v4547 = vld [vmem:[%s4545 + $0x4] sm:$0xf]
        %v4548 = vld [vmem:[%s4545 + $0x8] sm:$0xf]
        %v4549 = vld [vmem:[%s4545 + $0xc] sm:$0xf]
        %v4550 = vld [vmem:[%s4545 + $0x10] sm:$0xf]
        %v4551 = vld [vmem:[%s4545 + $0x14] sm:$0xf]
        %v4552 = vld [vmem:[%s4545 + $0x18] sm:$0xf]
        %v4553 = vld [vmem:[%s4545 + $0x1c] sm:$0xf]
        %v4554 = vld [vmem:[%s4545 + $0x20] sm:$0xf]
        %v4555 = vld [vmem:[%s4545 + $0x24] sm:$0xf]
        %v4556 = vld [vmem:[%s4545 + $0x28] sm:$0xf]
        %v4557 = vld [vmem:[%s4545 + $0x2c] sm:$0xf]
        %v4558 = vld [vmem:[%s4545 + $0x30] sm:$0xf]
        %v4559 = vld [vmem:[%s4545 + $0x34] sm:$0xf]
        %v4560 = vld [vmem:[%s4545 + $0x38] sm:$0xf]
        %v4561 = vld [vmem:[%s4545 + $0x3c] sm:$0xf]
        %v4562 = vunpack.c.l.b16 %v4492
        %v4563 = vunpack.c.l.b16 %v4495
        %v4564 = vunpack.c.l.b16 %v4499
        %v4565 = vunpack.c.l.b16 %v4502
        %v4566 = vunpack.c.l.b16 %v4506
        %v4567 = vunpack.c.l.b16 %v4509
        %v4568 = vunpack.c.l.b16 %v4513
        %v4569 = vunpack.c.l.b16 %v4516
        %v4570 = vunpack.c.l.b16 %v4520
        %v4571 = vunpack.c.l.b16 %v4523
        %v4572 = vunpack.c.l.b16 %v4527
        %v4573 = vunpack.c.l.b16 %v4530
        %v4574 = vunpack.c.l.b16 %v4534
        %v4575 = vunpack.c.l.b16 %v4537
        %v4576 = vunpack.c.l.b16 %v4541
        %v4577 = vunpack.c.l.b16 %v4544
        %v4578 = vpack.c.b16 %v4563, %v4562
        %v4579 = vpack.c.b16 %v4565, %v4564
        %v4580 = vpack.c.b16 %v4567, %v4566
        %v4581 = vpack.c.b16 %v4569, %v4568
        %v4582 = vpack.c.b16 %v4571, %v4570
        %v4583 = vpack.c.b16 %v4573, %v4572
        %v4584 = vpack.c.b16 %v4575, %v4574
        %v4585 = vpack.c.b16 %v4577, %v4576
        %v4610 = vunpack.c.l.b16 %v4546
        %v4611 = vunpack.c.l.b16 %v4547
        %v4612 = vunpack.c.l.b16 %v4548
        %v4613 = vunpack.c.l.b16 %v4549
        %v4614 = vunpack.c.l.b16 %v4550
        %v4615 = vunpack.c.l.b16 %v4551
        %v4616 = vunpack.c.l.b16 %v4552
        %v4617 = vunpack.c.l.b16 %v4553
        %v4618 = vunpack.c.l.b16 %v4554
        %v4619 = vunpack.c.l.b16 %v4555
        %v4620 = vunpack.c.l.b16 %v4556
        %v4621 = vunpack.c.l.b16 %v4557
        %v4622 = vunpack.c.l.b16 %v4558
        %v4623 = vunpack.c.l.b16 %v4559
        %v4624 = vunpack.c.l.b16 %v4560
        %v4625 = vunpack.c.l.b16 %v4561
        %v4626 = vpack.c.b16 %v4611, %v4610
        %v4627 = vpack.c.b16 %v4613, %v4612
        %v4628 = vpack.c.b16 %v4615, %v4614
        %v4629 = vpack.c.b16 %v4617, %v4616
        %v4630 = vpack.c.b16 %v4619, %v4618
        %v4631 = vpack.c.b16 %v4621, %v4620
        %v4632 = vpack.c.b16 %v4623, %v4622
        %v4633 = vpack.c.b16 %v4625, %v4624
        %4642 = vmatprep.subr.bf16.mxu0 0
        %4643 = vmatpush1.bf16.msra.mxu0 %v4626
        %4644 = vmatprep.subr.bf16.mxu0 0
        %4645 = vmatpush1.bf16.msra.mxu0 %v4627
        %4646 = vmatprep.subr.bf16.mxu0 0
        %4647 = vmatpush1.bf16.msra.mxu0 %v4628
        %4648 = vmatprep.subr.bf16.mxu0 0
        %4649 = vmatpush1.bf16.msra.mxu0 %v4629
        %4650 = vmatprep.subr.bf16.mxu0 0
        %4651 = vmatpush1.bf16.msra.mxu0 %v4630
        %4652 = vmatprep.subr.bf16.mxu0 0
        %4653 = vmatpush1.bf16.msra.mxu0 %v4631
        %4654 = vmatprep.subr.bf16.mxu0 0
        %4655 = vmatpush1.bf16.msra.mxu0 %v4632
        %4656 = vmatprep.subr.bf16.mxu0 0
        %4657 = vmatpush1.bf16.msra.mxu0 %v4633
        %4658 = vmatprep.subr.bf16.mxu0 0
        %4659 = vmatpush1.bf16.msra.mxu0 0
        %4660 = vmatprep.subr.bf16.mxu0 0
        %4661 = vmatpush1.bf16.msra.mxu0 0
        %4662 = vmatprep.subr.bf16.mxu0 0
        %4663 = vmatpush1.bf16.msra.mxu0 0
        %4664 = vmatprep.subr.bf16.mxu0 0
        %4665 = vmatpush1.bf16.msra.mxu0 0
        %4666 = vmatprep.subr.bf16.mxu0 0
        %4667 = vmatpush1.bf16.msra.mxu0 0
        %4668 = vmatprep.subr.bf16.mxu0 0
        %4669 = vmatpush1.bf16.msra.mxu0 0
        %4670 = vmatprep.subr.bf16.mxu0 0
        %4671 = vmatpush1.bf16.msra.mxu0 0
        %4672 = vmatprep.subr.bf16.mxu0 0
        %4673 = vmatpush1.bf16.msra.mxu0 0
        %4674 = vmatprep.mubr.bf16.mxu0 0
        %4675 = vmatmul.mubr.bf16.gmra.mrb[0].mxu0 %v4578
        %v4676 = vpop.f32.mrb[0].mxu0
        %v4677 = vadd.f32 0.0, %v4676
        %v4678 = vpop.f32.mrb[0].mxu0
        %v4679 = vpop.f32.mrb[0].mxu0
        %v4680 = vadd.f32 0.0, %v4679
        %v4681 = vpop.f32.mrb[0].mxu0
        %4682 = vmatprep.mubr.bf16.mxu0 0
        %4683 = vmatmul.mubr.bf16.gmra.mrb[0].mxu0 %v4579
        %v4684 = vpop.f32.mrb[0].mxu0
        %v4685 = vadd.f32 0.0, %v4684
        %v4686 = vpop.f32.mrb[0].mxu0
        %v4687 = vpop.f32.mrb[0].mxu0
        %v4688 = vadd.f32 0.0, %v4687
        %v4689 = vpop.f32.mrb[0].mxu0
        %4690 = vmatprep.mubr.bf16.mxu0 0
        %4691 = vmatmul.mubr.bf16.gmra.mrb[0].mxu0 %v4580
        %v4692 = vpop.f32.mrb[0].mxu0
        %v4693 = vadd.f32 0.0, %v4692
        %v4694 = vpop.f32.mrb[0].mxu0
        %v4695 = vpop.f32.mrb[0].mxu0
        %v4696 = vadd.f32 0.0, %v4695
        %v4697 = vpop.f32.mrb[0].mxu0
        %4698 = vmatprep.mubr.bf16.mxu0 0
        %4699 = vmatmul.mubr.bf16.gmra.mrb[0].mxu0 %v4581
        %v4700 = vpop.f32.mrb[0].mxu0
        %v4701 = vadd.f32 0.0, %v4700
        %v4702 = vpop.f32.mrb[0].mxu0
        %v4703 = vpop.f32.mrb[0].mxu0
        %v4704 = vadd.f32 0.0, %v4703
        %v4705 = vpop.f32.mrb[0].mxu0
        %4706 = vmatprep.mubr.bf16.mxu0 0
        %4707 = vmatmul.mubr.bf16.gmra.mrb[0].mxu0 %v4582
        %v4708 = vpop.f32.mrb[0].mxu0
        %v4709 = vadd.f32 0.0, %v4708
        %v4710 = vpop.f32.mrb[0].mxu0
        %v4711 = vpop.f32.mrb[0].mxu0
        %v4712 = vadd.f32 0.0, %v4711
        %v4713 = vpop.f32.mrb[0].mxu0
        %4714 = vmatprep.mubr.bf16.mxu0 0
        %4715 = vmatmul.mubr.bf16.gmra.mrb[0].mxu0 %v4583
        %v4716 = vpop.f32.mrb[0].mxu0
        %v4717 = vadd.f32 0.0, %v4716
        %v4718 = vpop.f32.mrb[0].mxu0
        %v4719 = vpop.f32.mrb[0].mxu0
        %v4720 = vadd.f32 0.0, %v4719
        %v4721 = vpop.f32.mrb[0].mxu0
        %4722 = vmatprep.mubr.bf16.mxu0 0
        %4723 = vmatmul.mubr.bf16.gmra.mrb[0].mxu0 %v4584
        %v4724 = vpop.f32.mrb[0].mxu0
        %v4725 = vadd.f32 0.0, %v4724
        %v4726 = vpop.f32.mrb[0].mxu0
        %v4727 = vpop.f32.mrb[0].mxu0
        %v4728 = vadd.f32 0.0, %v4727
        %v4729 = vpop.f32.mrb[0].mxu0
        %4730 = vmatprep.mubr.bf16.mxu0 0
        %4731 = vmatmul.mubr.bf16.gmra.mrb[0].mxu0 %v4585
        %v4732 = vpop.f32.mrb[0].mxu0
        %v4733 = vadd.f32 0.0, %v4732
        %v4734 = vpop.f32.mrb[0].mxu0
        %v4735 = vpop.f32.mrb[0].mxu0
        %v4736 = vadd.f32 0.0, %v4735
        %v4737 = vpop.f32.mrb[0].mxu0
        %4738 = vdwg.mxu0
        %v4739 = vadd.f32 %v4425, %v4677
        %v4740 = vadd.f32 %v4426, %v4680
        %v4741 = vadd.f32 %v4427, %v4685
        %v4742 = vadd.f32 %v4428, %v4688
        %v4743 = vadd.f32 %v4429, %v4693
        %v4744 = vadd.f32 %v4430, %v4696
        %v4745 = vadd.f32 %v4431, %v4701
        %v4746 = vadd.f32 %v4432, %v4704
        %v4747 = vadd.f32 %v4433, %v4709
        %v4748 = vadd.f32 %v4434, %v4712
        %v4749 = vadd.f32 %v4435, %v4717
        %v4750 = vadd.f32 %v4436, %v4720
        %v4751 = vadd.f32 %v4437, %v4725
        %v4752 = vadd.f32 %v4438, %v4728
        %v4753 = vadd.f32 %v4439, %v4733
        %v4754 = vadd.f32 %v4440, %v4736
        %s4755 = sadd.s32 %s274, 30
        %s4756 = smul.u32 %s4755, 7
        %s4757 = smul.addr %s4756, 4
        %s4758 = scalar_lea.vmem %s264, %s4757
        %v4759 = vld [vmem:[%s4758] sm:$0x8]
        %v4760 = vld [vmem:[%s4758 + $0x4] sm:$0xf]
        %v4761 = vld [vmem:[%s4758 + $0x8] sm:$0x7]
        %v4762 = vld [vmem:[%s4758 + $0x1c] sm:$0x8]
        %v4763 = vld [vmem:[%s4758 + $0x20] sm:$0xf]
        %v4764 = vld [vmem:[%s4758 + $0x24] sm:$0x7]
        %v4765 = vld [vmem:[%s4758 + $0x38] sm:$0x8]
        %v4766 = vld [vmem:[%s4758 + $0x3c] sm:$0xf]
        %v4767 = vld [vmem:[%s4758 + $0x40] sm:$0x7]
        %v4768 = vld [vmem:[%s4758 + $0x54] sm:$0x8]
        %v4769 = vld [vmem:[%s4758 + $0x58] sm:$0xf]
        %v4770 = vld [vmem:[%s4758 + $0x5c] sm:$0x7]
        %v4771 = vld [vmem:[%s4758 + $0x70] sm:$0x8]
        %v4772 = vld [vmem:[%s4758 + $0x74] sm:$0xf]
        %v4773 = vld [vmem:[%s4758 + $0x78] sm:$0x7]
        %v4774 = vld [vmem:[%s4758 + $0x8c] sm:$0x8]
        %v4775 = vld [vmem:[%s4758 + $0x90] sm:$0xf]
        %v4776 = vld [vmem:[%s4758 + $0x94] sm:$0x7]
        %v4777 = vld [vmem:[%s4758 + $0xa8] sm:$0x8]
        %v4778 = vld [vmem:[%s4758 + $0xac] sm:$0xf]
        %v4779 = vld [vmem:[%s4758 + $0xb0] sm:$0x7]
        %v4780 = vld [vmem:[%s4758 + $0xc4] sm:$0x8]
        %v4781 = vld [vmem:[%s4758 + $0xc8] sm:$0xf]
        %v4782 = vld [vmem:[%s4758 + $0xcc] sm:$0x7]
        %v4807 = vrot.slane %v4759, 7
        %v4808 = vrot.slane %v4807, 4
        %v4809 = vrot.slane %v4760, 7
        %v4810 = vsel %vm3054, %v4808, %v4809
        %v4811 = vrot.slane %v4809, 4
        %v4812 = vrot.slane %v4761, 7
        %v4813 = vsel %vm3054, %v4811, %v4812
        %v4814 = vrot.slane %v4762, 7
        %v4815 = vrot.slane %v4814, 4
        %v4816 = vrot.slane %v4763, 7
        %v4817 = vsel %vm3054, %v4815, %v4816
        %v4818 = vrot.slane %v4816, 4
        %v4819 = vrot.slane %v4764, 7
        %v4820 = vsel %vm3054, %v4818, %v4819
        %v4821 = vrot.slane %v4765, 7
        %v4822 = vrot.slane %v4821, 4
        %v4823 = vrot.slane %v4766, 7
        %v4824 = vsel %vm3054, %v4822, %v4823
        %v4825 = vrot.slane %v4823, 4
        %v4826 = vrot.slane %v4767, 7
        %v4827 = vsel %vm3054, %v4825, %v4826
        %v4828 = vrot.slane %v4768, 7
        %v4829 = vrot.slane %v4828, 4
        %v4830 = vrot.slane %v4769, 7
        %v4831 = vsel %vm3054, %v4829, %v4830
        %v4832 = vrot.slane %v4830, 4
        %v4833 = vrot.slane %v4770, 7
        %v4834 = vsel %vm3054, %v4832, %v4833
        %v4835 = vrot.slane %v4771, 7
        %v4836 = vrot.slane %v4835, 4
        %v4837 = vrot.slane %v4772, 7
        %v4838 = vsel %vm3054, %v4836, %v4837
        %v4839 = vrot.slane %v4837, 4
        %v4840 = vrot.slane %v4773, 7
        %v4841 = vsel %vm3054, %v4839, %v4840
        %v4842 = vrot.slane %v4774, 7
        %v4843 = vrot.slane %v4842, 4
        %v4844 = vrot.slane %v4775, 7
        %v4845 = vsel %vm3054, %v4843, %v4844
        %v4846 = vrot.slane %v4844, 4
        %v4847 = vrot.slane %v4776, 7
        %v4848 = vsel %vm3054, %v4846, %v4847
        %v4849 = vrot.slane %v4777, 7
        %v4850 = vrot.slane %v4849, 4
        %v4851 = vrot.slane %v4778, 7
        %v4852 = vsel %vm3054, %v4850, %v4851
        %v4853 = vrot.slane %v4851, 4
        %v4854 = vrot.slane %v4779, 7
        %v4855 = vsel %vm3054, %v4853, %v4854
        %v4856 = vrot.slane %v4780, 7
        %v4857 = vrot.slane %v4856, 4
        %v4858 = vrot.slane %v4781, 7
        %v4859 = vsel %vm3054, %v4857, %v4858
        %v4860 = vrot.slane %v4858, 4
        %v4861 = vrot.slane %v4782, 7
        %v4862 = vsel %vm3054, %v4860, %v4861
        %s4863 = scalar_lea.vmem %s1, 1024
        %v4864 = vld [vmem:[%s4863] sm:$0xf]
        %v4865 = vld [vmem:[%s4863 + $0x4] sm:$0xf]
        %v4866 = vld [vmem:[%s4863 + $0x8] sm:$0xf]
        %v4867 = vld [vmem:[%s4863 + $0xc] sm:$0xf]
        %v4868 = vld [vmem:[%s4863 + $0x10] sm:$0xf]
        %v4869 = vld [vmem:[%s4863 + $0x14] sm:$0xf]
        %v4870 = vld [vmem:[%s4863 + $0x18] sm:$0xf]
        %v4871 = vld [vmem:[%s4863 + $0x1c] sm:$0xf]
        %v4872 = vld [vmem:[%s4863 + $0x20] sm:$0xf]
        %v4873 = vld [vmem:[%s4863 + $0x24] sm:$0xf]
        %v4874 = vld [vmem:[%s4863 + $0x28] sm:$0xf]
        %v4875 = vld [vmem:[%s4863 + $0x2c] sm:$0xf]
        %v4876 = vld [vmem:[%s4863 + $0x30] sm:$0xf]
        %v4877 = vld [vmem:[%s4863 + $0x34] sm:$0xf]
        %v4878 = vld [vmem:[%s4863 + $0x38] sm:$0xf]
        %v4879 = vld [vmem:[%s4863 + $0x3c] sm:$0xf]
        %v4880 = vunpack.c.l.b16 %v4810
        %v4881 = vunpack.c.l.b16 %v4813
        %v4882 = vunpack.c.l.b16 %v4817
        %v4883 = vunpack.c.l.b16 %v4820
        %v4884 = vunpack.c.l.b16 %v4824
        %v4885 = vunpack.c.l.b16 %v4827
        %v4886 = vunpack.c.l.b16 %v4831
        %v4887 = vunpack.c.l.b16 %v4834
        %v4888 = vunpack.c.l.b16 %v4838
        %v4889 = vunpack.c.l.b16 %v4841
        %v4890 = vunpack.c.l.b16 %v4845
        %v4891 = vunpack.c.l.b16 %v4848
        %v4892 = vunpack.c.l.b16 %v4852
        %v4893 = vunpack.c.l.b16 %v4855
        %v4894 = vunpack.c.l.b16 %v4859
        %v4895 = vunpack.c.l.b16 %v4862
        %v4896 = vpack.c.b16 %v4881, %v4880
        %v4897 = vpack.c.b16 %v4883, %v4882
        %v4898 = vpack.c.b16 %v4885, %v4884
        %v4899 = vpack.c.b16 %v4887, %v4886
        %v4900 = vpack.c.b16 %v4889, %v4888
        %v4901 = vpack.c.b16 %v4891, %v4890
        %v4902 = vpack.c.b16 %v4893, %v4892
        %v4903 = vpack.c.b16 %v4895, %v4894
        %v4928 = vunpack.c.l.b16 %v4864
        %v4929 = vunpack.c.l.b16 %v4865
        %v4930 = vunpack.c.l.b16 %v4866
        %v4931 = vunpack.c.l.b16 %v4867
        %v4932 = vunpack.c.l.b16 %v4868
        %v4933 = vunpack.c.l.b16 %v4869
        %v4934 = vunpack.c.l.b16 %v4870
        %v4935 = vunpack.c.l.b16 %v4871
        %v4936 = vunpack.c.l.b16 %v4872
        %v4937 = vunpack.c.l.b16 %v4873
        %v4938 = vunpack.c.l.b16 %v4874
        %v4939 = vunpack.c.l.b16 %v4875
        %v4940 = vunpack.c.l.b16 %v4876
        %v4941 = vunpack.c.l.b16 %v4877
        %v4942 = vunpack.c.l.b16 %v4878
        %v4943 = vunpack.c.l.b16 %v4879
        %v4944 = vpack.c.b16 %v4929, %v4928
        %v4945 = vpack.c.b16 %v4931, %v4930
        %v4946 = vpack.c.b16 %v4933, %v4932
        %v4947 = vpack.c.b16 %v4935, %v4934
        %v4948 = vpack.c.b16 %v4937, %v4936
        %v4949 = vpack.c.b16 %v4939, %v4938
        %v4950 = vpack.c.b16 %v4941, %v4940
        %v4951 = vpack.c.b16 %v4943, %v4942
        %4960 = vmatprep.subr.bf16.mxu0 0
        %4961 = vmatpush1.bf16.msra.mxu0 %v4944
        %4962 = vmatprep.subr.bf16.mxu0 0
        %4963 = vmatpush1.bf16.msra.mxu0 %v4945
        %4964 = vmatprep.subr.bf16.mxu0 0
        %4965 = vmatpush1.bf16.msra.mxu0 %v4946
        %4966 = vmatprep.subr.bf16.mxu0 0
        %4967 = vmatpush1.bf16.msra.mxu0 %v4947
        %4968 = vmatprep.subr.bf16.mxu0 0
        %4969 = vmatpush1.bf16.msra.mxu0 %v4948
        %4970 = vmatprep.subr.bf16.mxu0 0
        %4971 = vmatpush1.bf16.msra.mxu0 %v4949
        %4972 = vmatprep.subr.bf16.mxu0 0
        %4973 = vmatpush1.bf16.msra.mxu0 %v4950
        %4974 = vmatprep.subr.bf16.mxu0 0
        %4975 = vmatpush1.bf16.msra.mxu0 %v4951
        %4976 = vmatprep.subr.bf16.mxu0 0
        %4977 = vmatpush1.bf16.msra.mxu0 0
        %4978 = vmatprep.subr.bf16.mxu0 0
        %4979 = vmatpush1.bf16.msra.mxu0 0
        %4980 = vmatprep.subr.bf16.mxu0 0
        %4981 = vmatpush1.bf16.msra.mxu0 0
        %4982 = vmatprep.subr.bf16.mxu0 0
        %4983 = vmatpush1.bf16.msra.mxu0 0
        %4984 = vmatprep.subr.bf16.mxu0 0
        %4985 = vmatpush1.bf16.msra.mxu0 0
        %4986 = vmatprep.subr.bf16.mxu0 0
        %4987 = vmatpush1.bf16.msra.mxu0 0
        %4988 = vmatprep.subr.bf16.mxu0 0
        %4989 = vmatpush1.bf16.msra.mxu0 0
        %4990 = vmatprep.subr.bf16.mxu0 0
        %4991 = vmatpush1.bf16.msra.mxu0 0
        %4992 = vmatprep.mubr.bf16.mxu0 0
        %4993 = vmatmul.mubr.bf16.gmra.mrb[0].mxu0 %v4896
        %v4994 = vpop.f32.mrb[0].mxu0
        %v4995 = vadd.f32 0.0, %v4994
        %v4996 = vpop.f32.mrb[0].mxu0
        %v4997 = vpop.f32.mrb[0].mxu0
        %v4998 = vadd.f32 0.0, %v4997
        %v4999 = vpop.f32.mrb[0].mxu0
        %5000 = vmatprep.mubr.bf16.mxu0 0
        %5001 = vmatmul.mubr.bf16.gmra.mrb[0].mxu0 %v4897
        %v5002 = vpop.f32.mrb[0].mxu0
        %v5003 = vadd.f32 0.0, %v5002
        %v5004 = vpop.f32.mrb[0].mxu0
        %v5005 = vpop.f32.mrb[0].mxu0
        %v5006 = vadd.f32 0.0, %v5005
        %v5007 = vpop.f32.mrb[0].mxu0
        %5008 = vmatprep.mubr.bf16.mxu0 0
        %5009 = vmatmul.mubr.bf16.gmra.mrb[0].mxu0 %v4898
        %v5010 = vpop.f32.mrb[0].mxu0
        %v5011 = vadd.f32 0.0, %v5010
        %v5012 = vpop.f32.mrb[0].mxu0
        %v5013 = vpop.f32.mrb[0].mxu0
        %v5014 = vadd.f32 0.0, %v5013
        %v5015 = vpop.f32.mrb[0].mxu0
        %5016 = vmatprep.mubr.bf16.mxu0 0
        %5017 = vmatmul.mubr.bf16.gmra.mrb[0].mxu0 %v4899
        %v5018 = vpop.f32.mrb[0].mxu0
        %v5019 = vadd.f32 0.0, %v5018
        %v5020 = vpop.f32.mrb[0].mxu0
        %v5021 = vpop.f32.mrb[0].mxu0
        %v5022 = vadd.f32 0.0, %v5021
        %v5023 = vpop.f32.mrb[0].mxu0
        %5024 = vmatprep.mubr.bf16.mxu0 0
        %5025 = vmatmul.mubr.bf16.gmra.mrb[0].mxu0 %v4900
        %v5026 = vpop.f32.mrb[0].mxu0
        %v5027 = vadd.f32 0.0, %v5026
        %v5028 = vpop.f32.mrb[0].mxu0
        %v5029 = vpop.f32.mrb[0].mxu0
        %v5030 = vadd.f32 0.0, %v5029
        %v5031 = vpop.f32.mrb[0].mxu0
        %5032 = vmatprep.mubr.bf16.mxu0 0
        %5033 = vmatmul.mubr.bf16.gmra.mrb[0].mxu0 %v4901
        %v5034 = vpop.f32.mrb[0].mxu0
        %v5035 = vadd.f32 0.0, %v5034
        %v5036 = vpop.f32.mrb[0].mxu0
        %v5037 = vpop.f32.mrb[0].mxu0
        %v5038 = vadd.f32 0.0, %v5037
        %v5039 = vpop.f32.mrb[0].mxu0
        %5040 = vmatprep.mubr.bf16.mxu0 0
        %5041 = vmatmul.mubr.bf16.gmra.mrb[0].mxu0 %v4902
        %v5042 = vpop.f32.mrb[0].mxu0
        %v5043 = vadd.f32 0.0, %v5042
        %v5044 = vpop.f32.mrb[0].mxu0
        %v5045 = vpop.f32.mrb[0].mxu0
        %v5046 = vadd.f32 0.0, %v5045
        %v5047 = vpop.f32.mrb[0].mxu0
        %5048 = vmatprep.mubr.bf16.mxu0 0
        %5049 = vmatmul.mubr.bf16.gmra.mrb[0].mxu0 %v4903
        %v5050 = vpop.f32.mrb[0].mxu0
        %v5051 = vadd.f32 0.0, %v5050
        %v5052 = vpop.f32.mrb[0].mxu0
        %v5053 = vpop.f32.mrb[0].mxu0
        %v5054 = vadd.f32 0.0, %v5053
        %v5055 = vpop.f32.mrb[0].mxu0
        %5056 = vdwg.mxu0
        %v5057 = vadd.f32 %v4739, %v4995
        %v5058 = vadd.f32 %v4740, %v4998
        %v5059 = vadd.f32 %v4741, %v5003
        %v5060 = vadd.f32 %v4742, %v5006
        %v5061 = vadd.f32 %v4743, %v5011
        %v5062 = vadd.f32 %v4744, %v5014
        %v5063 = vadd.f32 %v4745, %v5019
        %v5064 = vadd.f32 %v4746, %v5022
        %v5065 = vadd.f32 %v4747, %v5027
        %v5066 = vadd.f32 %v4748, %v5030
        %v5067 = vadd.f32 %v4749, %v5035
        %v5068 = vadd.f32 %v4750, %v5038
        %v5069 = vadd.f32 %v4751, %v5043
        %v5070 = vadd.f32 %v4752, %v5046
        %v5071 = vadd.f32 %v4753, %v5051
        %v5072 = vadd.f32 %v4754, %v5054
        %v5073 = vld [vmem:[%s4758 + $0x8] sm:$0xe]
        %v5074 = vld [vmem:[%s4758 + $0xc] sm:$0xf]
        %v5075 = vld [vmem:[%s4758 + $0x10] sm:$0x1]
        %v5076 = vld [vmem:[%s4758 + $0x24] sm:$0xe]
        %v5077 = vld [vmem:[%s4758 + $0x28] sm:$0xf]
        %v5078 = vld [vmem:[%s4758 + $0x2c] sm:$0x1]
        %v5079 = vld [vmem:[%s4758 + $0x40] sm:$0xe]
        %v5080 = vld [vmem:[%s4758 + $0x44] sm:$0xf]
        %v5081 = vld [vmem:[%s4758 + $0x48] sm:$0x1]
        %v5082 = vld [vmem:[%s4758 + $0x5c] sm:$0xe]
        %v5083 = vld [vmem:[%s4758 + $0x60] sm:$0xf]
        %v5084 = vld [vmem:[%s4758 + $0x64] sm:$0x1]
        %v5085 = vld [vmem:[%s4758 + $0x78] sm:$0xe]
        %v5086 = vld [vmem:[%s4758 + $0x7c] sm:$0xf]
        %v5087 = vld [vmem:[%s4758 + $0x80] sm:$0x1]
        %v5088 = vld [vmem:[%s4758 + $0x94] sm:$0xe]
        %v5089 = vld [vmem:[%s4758 + $0x98] sm:$0xf]
        %v5090 = vld [vmem:[%s4758 + $0x9c] sm:$0x1]
        %v5091 = vld [vmem:[%s4758 + $0xb0] sm:$0xe]
        %v5092 = vld [vmem:[%s4758 + $0xb4] sm:$0xf]
        %v5093 = vld [vmem:[%s4758 + $0xb8] sm:$0x1]
        %v5094 = vld [vmem:[%s4758 + $0xcc] sm:$0xe]
        %v5095 = vld [vmem:[%s4758 + $0xd0] sm:$0xf]
        %v5096 = vld [vmem:[%s4758 + $0xd4] sm:$0x1]
        %v5121 = vrot.slane %v5073, 5
        %v5122 = vrot.slane %v5121, 4
        %v5123 = vrot.slane %v5074, 5
        %v5124 = vsel %vm329, %v5122, %v5123
        %v5125 = vrot.slane %v5123, 4
        %v5126 = vrot.slane %v5075, 5
        %v5127 = vsel %vm329, %v5125, %v5126
        %v5128 = vrot.slane %v5076, 5
        %v5129 = vrot.slane %v5128, 4
        %v5130 = vrot.slane %v5077, 5
        %v5131 = vsel %vm329, %v5129, %v5130
        %v5132 = vrot.slane %v5130, 4
        %v5133 = vrot.slane %v5078, 5
        %v5134 = vsel %vm329, %v5132, %v5133
        %v5135 = vrot.slane %v5079, 5
        %v5136 = vrot.slane %v5135, 4
        %v5137 = vrot.slane %v5080, 5
        %v5138 = vsel %vm329, %v5136, %v5137
        %v5139 = vrot.slane %v5137, 4
        %v5140 = vrot.slane %v5081, 5
        %v5141 = vsel %vm329, %v5139, %v5140
        %v5142 = vrot.slane %v5082, 5
        %v5143 = vrot.slane %v5142, 4
        %v5144 = vrot.slane %v5083, 5
        %v5145 = vsel %vm329, %v5143, %v5144
        %v5146 = vrot.slane %v5144, 4
        %v5147 = vrot.slane %v5084, 5
        %v5148 = vsel %vm329, %v5146, %v5147
        %v5149 = vrot.slane %v5085, 5
        %v5150 = vrot.slane %v5149, 4
        %v5151 = vrot.slane %v5086, 5
        %v5152 = vsel %vm329, %v5150, %v5151
        %v5153 = vrot.slane %v5151, 4
        %v5154 = vrot.slane %v5087, 5
        %v5155 = vsel %vm329, %v5153, %v5154
        %v5156 = vrot.slane %v5088, 5
        %v5157 = vrot.slane %v5156, 4
        %v5158 = vrot.slane %v5089, 5
        %v5159 = vsel %vm329, %v5157, %v5158
        %v5160 = vrot.slane %v5158, 4
        %v5161 = vrot.slane %v5090, 5
        %v5162 = vsel %vm329, %v5160, %v5161
        %v5163 = vrot.slane %v5091, 5
        %v5164 = vrot.slane %v5163, 4
        %v5165 = vrot.slane %v5092, 5
        %v5166 = vsel %vm329, %v5164, %v5165
        %v5167 = vrot.slane %v5165, 4
        %v5168 = vrot.slane %v5093, 5
        %v5169 = vsel %vm329, %v5167, %v5168
        %v5170 = vrot.slane %v5094, 5
        %v5171 = vrot.slane %v5170, 4
        %v5172 = vrot.slane %v5095, 5
        %v5173 = vsel %vm329, %v5171, %v5172
        %v5174 = vrot.slane %v5172, 4
        %v5175 = vrot.slane %v5096, 5
        %v5176 = vsel %vm329, %v5174, %v5175
        %s5177 = scalar_lea.vmem %s1, 1088
        %v5178 = vld [vmem:[%s5177] sm:$0xf]
        %v5179 = vld [vmem:[%s5177 + $0x4] sm:$0xf]
        %v5180 = vld [vmem:[%s5177 + $0x8] sm:$0xf]
        %v5181 = vld [vmem:[%s5177 + $0xc] sm:$0xf]
        %v5182 = vld [vmem:[%s5177 + $0x10] sm:$0xf]
        %v5183 = vld [vmem:[%s5177 + $0x14] sm:$0xf]
        %v5184 = vld [vmem:[%s5177 + $0x18] sm:$0xf]
        %v5185 = vld [vmem:[%s5177 + $0x1c] sm:$0xf]
        %v5186 = vld [vmem:[%s5177 + $0x20] sm:$0xf]
        %v5187 = vld [vmem:[%s5177 + $0x24] sm:$0xf]
        %v5188 = vld [vmem:[%s5177 + $0x28] sm:$0xf]
        %v5189 = vld [vmem:[%s5177 + $0x2c] sm:$0xf]
        %v5190 = vld [vmem:[%s5177 + $0x30] sm:$0xf]
        %v5191 = vld [vmem:[%s5177 + $0x34] sm:$0xf]
        %v5192 = vld [vmem:[%s5177 + $0x38] sm:$0xf]
        %v5193 = vld [vmem:[%s5177 + $0x3c] sm:$0xf]
        %v5194 = vunpack.c.l.b16 %v5124
        %v5195 = vunpack.c.l.b16 %v5127
        %v5196 = vunpack.c.l.b16 %v5131
        %v5197 = vunpack.c.l.b16 %v5134
        %v5198 = vunpack.c.l.b16 %v5138
        %v5199 = vunpack.c.l.b16 %v5141
        %v5200 = vunpack.c.l.b16 %v5145
        %v5201 = vunpack.c.l.b16 %v5148
        %v5202 = vunpack.c.l.b16 %v5152
        %v5203 = vunpack.c.l.b16 %v5155
        %v5204 = vunpack.c.l.b16 %v5159
        %v5205 = vunpack.c.l.b16 %v5162
        %v5206 = vunpack.c.l.b16 %v5166
        %v5207 = vunpack.c.l.b16 %v5169
        %v5208 = vunpack.c.l.b16 %v5173
        %v5209 = vunpack.c.l.b16 %v5176
        %v5210 = vpack.c.b16 %v5195, %v5194
        %v5211 = vpack.c.b16 %v5197, %v5196
        %v5212 = vpack.c.b16 %v5199, %v5198
        %v5213 = vpack.c.b16 %v5201, %v5200
        %v5214 = vpack.c.b16 %v5203, %v5202
        %v5215 = vpack.c.b16 %v5205, %v5204
        %v5216 = vpack.c.b16 %v5207, %v5206
        %v5217 = vpack.c.b16 %v5209, %v5208
        %v5242 = vunpack.c.l.b16 %v5178
        %v5243 = vunpack.c.l.b16 %v5179
        %v5244 = vunpack.c.l.b16 %v5180
        %v5245 = vunpack.c.l.b16 %v5181
        %v5246 = vunpack.c.l.b16 %v5182
        %v5247 = vunpack.c.l.b16 %v5183
        %v5248 = vunpack.c.l.b16 %v5184
        %v5249 = vunpack.c.l.b16 %v5185
        %v5250 = vunpack.c.l.b16 %v5186
        %v5251 = vunpack.c.l.b16 %v5187
        %v5252 = vunpack.c.l.b16 %v5188
        %v5253 = vunpack.c.l.b16 %v5189
        %v5254 = vunpack.c.l.b16 %v5190
        %v5255 = vunpack.c.l.b16 %v5191
        %v5256 = vunpack.c.l.b16 %v5192
        %v5257 = vunpack.c.l.b16 %v5193
        %v5258 = vpack.c.b16 %v5243, %v5242
        %v5259 = vpack.c.b16 %v5245, %v5244
        %v5260 = vpack.c.b16 %v5247, %v5246
        %v5261 = vpack.c.b16 %v5249, %v5248
        %v5262 = vpack.c.b16 %v5251, %v5250
        %v5263 = vpack.c.b16 %v5253, %v5252
        %v5264 = vpack.c.b16 %v5255, %v5254
        %v5265 = vpack.c.b16 %v5257, %v5256
        %5274 = vmatprep.subr.bf16.mxu0 0
        %5275 = vmatpush1.bf16.msra.mxu0 %v5258
        %5276 = vmatprep.subr.bf16.mxu0 0
        %5277 = vmatpush1.bf16.msra.mxu0 %v5259
        %5278 = vmatprep.subr.bf16.mxu0 0
        %5279 = vmatpush1.bf16.msra.mxu0 %v5260
        %5280 = vmatprep.subr.bf16.mxu0 0
        %5281 = vmatpush1.bf16.msra.mxu0 %v5261
        %5282 = vmatprep.subr.bf16.mxu0 0
        %5283 = vmatpush1.bf16.msra.mxu0 %v5262
        %5284 = vmatprep.subr.bf16.mxu0 0
        %5285 = vmatpush1.bf16.msra.mxu0 %v5263
        %5286 = vmatprep.subr.bf16.mxu0 0
        %5287 = vmatpush1.bf16.msra.mxu0 %v5264
        %5288 = vmatprep.subr.bf16.mxu0 0
        %5289 = vmatpush1.bf16.msra.mxu0 %v5265
        %5290 = vmatprep.subr.bf16.mxu0 0
        %5291 = vmatpush1.bf16.msra.mxu0 0
        %5292 = vmatprep.subr.bf16.mxu0 0
        %5293 = vmatpush1.bf16.msra.mxu0 0
        %5294 = vmatprep.subr.bf16.mxu0 0
        %5295 = vmatpush1.bf16.msra.mxu0 0
        %5296 = vmatprep.subr.bf16.mxu0 0
        %5297 = vmatpush1.bf16.msra.mxu0 0
        %5298 = vmatprep.subr.bf16.mxu0 0
        %5299 = vmatpush1.bf16.msra.mxu0 0
        %5300 = vmatprep.subr.bf16.mxu0 0
        %5301 = vmatpush1.bf16.msra.mxu0 0
        %5302 = vmatprep.subr.bf16.mxu0 0
        %5303 = vmatpush1.bf16.msra.mxu0 0
        %5304 = vmatprep.subr.bf16.mxu0 0
        %5305 = vmatpush1.bf16.msra.mxu0 0
        %5306 = vmatprep.mubr.bf16.mxu0 0
        %5307 = vmatmul.mubr.bf16.gmra.mrb[0].mxu0 %v5210
        %v5308 = vpop.f32.mrb[0].mxu0
        %v5309 = vadd.f32 0.0, %v5308
        %v5310 = vpop.f32.mrb[0].mxu0
        %v5311 = vpop.f32.mrb[0].mxu0
        %v5312 = vadd.f32 0.0, %v5311
        %v5313 = vpop.f32.mrb[0].mxu0
        %5314 = vmatprep.mubr.bf16.mxu0 0
        %5315 = vmatmul.mubr.bf16.gmra.mrb[0].mxu0 %v5211
        %v5316 = vpop.f32.mrb[0].mxu0
        %v5317 = vadd.f32 0.0, %v5316
        %v5318 = vpop.f32.mrb[0].mxu0
        %v5319 = vpop.f32.mrb[0].mxu0
        %v5320 = vadd.f32 0.0, %v5319
        %v5321 = vpop.f32.mrb[0].mxu0
        %5322 = vmatprep.mubr.bf16.mxu0 0
        %5323 = vmatmul.mubr.bf16.gmra.mrb[0].mxu0 %v5212
        %v5324 = vpop.f32.mrb[0].mxu0
        %v5325 = vadd.f32 0.0, %v5324
        %v5326 = vpop.f32.mrb[0].mxu0
        %v5327 = vpop.f32.mrb[0].mxu0
        %v5328 = vadd.f32 0.0, %v5327
        %v5329 = vpop.f32.mrb[0].mxu0
        %5330 = vmatprep.mubr.bf16.mxu0 0
        %5331 = vmatmul.mubr.bf16.gmra.mrb[0].mxu0 %v5213
        %v5332 = vpop.f32.mrb[0].mxu0
        %v5333 = vadd.f32 0.0, %v5332
        %v5334 = vpop.f32.mrb[0].mxu0
        %v5335 = vpop.f32.mrb[0].mxu0
        %v5336 = vadd.f32 0.0, %v5335
        %v5337 = vpop.f32.mrb[0].mxu0
        %5338 = vmatprep.mubr.bf16.mxu0 0
        %5339 = vmatmul.mubr.bf16.gmra.mrb[0].mxu0 %v5214
        %v5340 = vpop.f32.mrb[0].mxu0
        %v5341 = vadd.f32 0.0, %v5340
        %v5342 = vpop.f32.mrb[0].mxu0
        %v5343 = vpop.f32.mrb[0].mxu0
        %v5344 = vadd.f32 0.0, %v5343
        %v5345 = vpop.f32.mrb[0].mxu0
        %5346 = vmatprep.mubr.bf16.mxu0 0
        %5347 = vmatmul.mubr.bf16.gmra.mrb[0].mxu0 %v5215
        %v5348 = vpop.f32.mrb[0].mxu0
        %v5349 = vadd.f32 0.0, %v5348
        %v5350 = vpop.f32.mrb[0].mxu0
        %v5351 = vpop.f32.mrb[0].mxu0
        %v5352 = vadd.f32 0.0, %v5351
        %v5353 = vpop.f32.mrb[0].mxu0
        %5354 = vmatprep.mubr.bf16.mxu0 0
        %5355 = vmatmul.mubr.bf16.gmra.mrb[0].mxu0 %v5216
        %v5356 = vpop.f32.mrb[0].mxu0
        %v5357 = vadd.f32 0.0, %v5356
        %v5358 = vpop.f32.mrb[0].mxu0
        %v5359 = vpop.f32.mrb[0].mxu0
        %v5360 = vadd.f32 0.0, %v5359
        %v5361 = vpop.f32.mrb[0].mxu0
        %5362 = vmatprep.mubr.bf16.mxu0 0
        %5363 = vmatmul.mubr.bf16.gmra.mrb[0].mxu0 %v5217
        %v5364 = vpop.f32.mrb[0].mxu0
        %v5365 = vadd.f32 0.0, %v5364
        %v5366 = vpop.f32.mrb[0].mxu0
        %v5367 = vpop.f32.mrb[0].mxu0
        %v5368 = vadd.f32 0.0, %v5367
        %v5369 = vpop.f32.mrb[0].mxu0
        %5370 = vdwg.mxu0
        %v5371 = vadd.f32 %v5057, %v5309
        %v5372 = vadd.f32 %v5058, %v5312
        %v5373 = vadd.f32 %v5059, %v5317
        %v5374 = vadd.f32 %v5060, %v5320
        %v5375 = vadd.f32 %v5061, %v5325
        %v5376 = vadd.f32 %v5062, %v5328
        %v5377 = vadd.f32 %v5063, %v5333
        %v5378 = vadd.f32 %v5064, %v5336
        %v5379 = vadd.f32 %v5065, %v5341
        %v5380 = vadd.f32 %v5066, %v5344
        %v5381 = vadd.f32 %v5067, %v5349
        %v5382 = vadd.f32 %v5068, %v5352
        %v5383 = vadd.f32 %v5069, %v5357
        %v5384 = vadd.f32 %v5070, %v5360
        %v5385 = vadd.f32 %v5071, %v5365
        %v5386 = vadd.f32 %v5072, %v5368
        %v5387 = vld [vmem:[%s4758 + $0xc] sm:$0x8]
        %v5388 = vld [vmem:[%s4758 + $0x10] sm:$0xf]
        %v5389 = vld [vmem:[%s4758 + $0x14] sm:$0x7]
        %v5390 = vld [vmem:[%s4758 + $0x28] sm:$0x8]
        %v5391 = vld [vmem:[%s4758 + $0x2c] sm:$0xf]
        %v5392 = vld [vmem:[%s4758 + $0x30] sm:$0x7]
        %v5393 = vld [vmem:[%s4758 + $0x44] sm:$0x8]
        %v5394 = vld [vmem:[%s4758 + $0x48] sm:$0xf]
        %v5395 = vld [vmem:[%s4758 + $0x4c] sm:$0x7]
        %v5396 = vld [vmem:[%s4758 + $0x60] sm:$0x8]
        %v5397 = vld [vmem:[%s4758 + $0x64] sm:$0xf]
        %v5398 = vld [vmem:[%s4758 + $0x68] sm:$0x7]
        %v5399 = vld [vmem:[%s4758 + $0x7c] sm:$0x8]
        %v5400 = vld [vmem:[%s4758 + $0x80] sm:$0xf]
        %v5401 = vld [vmem:[%s4758 + $0x84] sm:$0x7]
        %v5402 = vld [vmem:[%s4758 + $0x98] sm:$0x8]
        %v5403 = vld [vmem:[%s4758 + $0x9c] sm:$0xf]
        %v5404 = vld [vmem:[%s4758 + $0xa0] sm:$0x7]
        %v5405 = vld [vmem:[%s4758 + $0xb4] sm:$0x8]
        %v5406 = vld [vmem:[%s4758 + $0xb8] sm:$0xf]
        %v5407 = vld [vmem:[%s4758 + $0xbc] sm:$0x7]
        %v5408 = vld [vmem:[%s4758 + $0xd0] sm:$0x8]
        %v5409 = vld [vmem:[%s4758 + $0xd4] sm:$0xf]
        %v5410 = vld [vmem:[%s4758 + $0xd8] sm:$0x7]
        %v5435 = vrot.slane %v5387, 7
        %v5436 = vrot.slane %v5435, 4
        %v5437 = vrot.slane %v5388, 7
        %v5438 = vsel %vm3054, %v5436, %v5437
        %v5439 = vrot.slane %v5437, 4
        %v5440 = vrot.slane %v5389, 7
        %v5441 = vsel %vm3054, %v5439, %v5440
        %v5442 = vrot.slane %v5390, 7
        %v5443 = vrot.slane %v5442, 4
        %v5444 = vrot.slane %v5391, 7
        %v5445 = vsel %vm3054, %v5443, %v5444
        %v5446 = vrot.slane %v5444, 4
        %v5447 = vrot.slane %v5392, 7
        %v5448 = vsel %vm3054, %v5446, %v5447
        %v5449 = vrot.slane %v5393, 7
        %v5450 = vrot.slane %v5449, 4
        %v5451 = vrot.slane %v5394, 7
        %v5452 = vsel %vm3054, %v5450, %v5451
        %v5453 = vrot.slane %v5451, 4
        %v5454 = vrot.slane %v5395, 7
        %v5455 = vsel %vm3054, %v5453, %v5454
        %v5456 = vrot.slane %v5396, 7
        %v5457 = vrot.slane %v5456, 4
        %v5458 = vrot.slane %v5397, 7
        %v5459 = vsel %vm3054, %v5457, %v5458
        %v5460 = vrot.slane %v5458, 4
        %v5461 = vrot.slane %v5398, 7
        %v5462 = vsel %vm3054, %v5460, %v5461
        %v5463 = vrot.slane %v5399, 7
        %v5464 = vrot.slane %v5463, 4
        %v5465 = vrot.slane %v5400, 7
        %v5466 = vsel %vm3054, %v5464, %v5465
        %v5467 = vrot.slane %v5465, 4
        %v5468 = vrot.slane %v5401, 7
        %v5469 = vsel %vm3054, %v5467, %v5468
        %v5470 = vrot.slane %v5402, 7
        %v5471 = vrot.slane %v5470, 4
        %v5472 = vrot.slane %v5403, 7
        %v5473 = vsel %vm3054, %v5471, %v5472
        %v5474 = vrot.slane %v5472, 4
        %v5475 = vrot.slane %v5404, 7
        %v5476 = vsel %vm3054, %v5474, %v5475
        %v5477 = vrot.slane %v5405, 7
        %v5478 = vrot.slane %v5477, 4
        %v5479 = vrot.slane %v5406, 7
        %v5480 = vsel %vm3054, %v5478, %v5479
        %v5481 = vrot.slane %v5479, 4
        %v5482 = vrot.slane %v5407, 7
        %v5483 = vsel %vm3054, %v5481, %v5482
        %v5484 = vrot.slane %v5408, 7
        %v5485 = vrot.slane %v5484, 4
        %v5486 = vrot.slane %v5409, 7
        %v5487 = vsel %vm3054, %v5485, %v5486
        %v5488 = vrot.slane %v5486, 4
        %v5489 = vrot.slane %v5410, 7
        %v5490 = vsel %vm3054, %v5488, %v5489
        %s5491 = scalar_lea.vmem %s1, 1152
        %v5492 = vld [vmem:[%s5491] sm:$0xf]
        %v5493 = vld [vmem:[%s5491 + $0x4] sm:$0xf]
        %v5494 = vld [vmem:[%s5491 + $0x8] sm:$0xf]
        %v5495 = vld [vmem:[%s5491 + $0xc] sm:$0xf]
        %v5496 = vld [vmem:[%s5491 + $0x10] sm:$0xf]
        %v5497 = vld [vmem:[%s5491 + $0x14] sm:$0xf]
        %v5498 = vld [vmem:[%s5491 + $0x18] sm:$0xf]
        %v5499 = vld [vmem:[%s5491 + $0x1c] sm:$0xf]
        %v5500 = vld [vmem:[%s5491 + $0x20] sm:$0xf]
        %v5501 = vld [vmem:[%s5491 + $0x24] sm:$0xf]
        %v5502 = vld [vmem:[%s5491 + $0x28] sm:$0xf]
        %v5503 = vld [vmem:[%s5491 + $0x2c] sm:$0xf]
        %v5504 = vld [vmem:[%s5491 + $0x30] sm:$0xf]
        %v5505 = vld [vmem:[%s5491 + $0x34] sm:$0xf]
        %v5506 = vld [vmem:[%s5491 + $0x38] sm:$0xf]
        %v5507 = vld [vmem:[%s5491 + $0x3c] sm:$0xf]
        %v5508 = vunpack.c.l.b16 %v5438
        %v5509 = vunpack.c.l.b16 %v5441
        %v5510 = vunpack.c.l.b16 %v5445
        %v5511 = vunpack.c.l.b16 %v5448
        %v5512 = vunpack.c.l.b16 %v5452
        %v5513 = vunpack.c.l.b16 %v5455
        %v5514 = vunpack.c.l.b16 %v5459
        %v5515 = vunpack.c.l.b16 %v5462
        %v5516 = vunpack.c.l.b16 %v5466
        %v5517 = vunpack.c.l.b16 %v5469
        %v5518 = vunpack.c.l.b16 %v5473
        %v5519 = vunpack.c.l.b16 %v5476
        %v5520 = vunpack.c.l.b16 %v5480
        %v5521 = vunpack.c.l.b16 %v5483
        %v5522 = vunpack.c.l.b16 %v5487
        %v5523 = vunpack.c.l.b16 %v5490
        %v5524 = vpack.c.b16 %v5509, %v5508
        %v5525 = vpack.c.b16 %v5511, %v5510
        %v5526 = vpack.c.b16 %v5513, %v5512
        %v5527 = vpack.c.b16 %v5515, %v5514
        %v5528 = vpack.c.b16 %v5517, %v5516
        %v5529 = vpack.c.b16 %v5519, %v5518
        %v5530 = vpack.c.b16 %v5521, %v5520
        %v5531 = vpack.c.b16 %v5523, %v5522
        %v5556 = vunpack.c.l.b16 %v5492
        %v5557 = vunpack.c.l.b16 %v5493
        %v5558 = vunpack.c.l.b16 %v5494
        %v5559 = vunpack.c.l.b16 %v5495
        %v5560 = vunpack.c.l.b16 %v5496
        %v5561 = vunpack.c.l.b16 %v5497
        %v5562 = vunpack.c.l.b16 %v5498
        %v5563 = vunpack.c.l.b16 %v5499
        %v5564 = vunpack.c.l.b16 %v5500
        %v5565 = vunpack.c.l.b16 %v5501
        %v5566 = vunpack.c.l.b16 %v5502
        %v5567 = vunpack.c.l.b16 %v5503
        %v5568 = vunpack.c.l.b16 %v5504
        %v5569 = vunpack.c.l.b16 %v5505
        %v5570 = vunpack.c.l.b16 %v5506
        %v5571 = vunpack.c.l.b16 %v5507
        %v5572 = vpack.c.b16 %v5557, %v5556
        %v5573 = vpack.c.b16 %v5559, %v5558
        %v5574 = vpack.c.b16 %v5561, %v5560
        %v5575 = vpack.c.b16 %v5563, %v5562
        %v5576 = vpack.c.b16 %v5565, %v5564
        %v5577 = vpack.c.b16 %v5567, %v5566
        %v5578 = vpack.c.b16 %v5569, %v5568
        %v5579 = vpack.c.b16 %v5571, %v5570
        %5588 = vmatprep.subr.bf16.mxu0 0
        %5589 = vmatpush1.bf16.msra.mxu0 %v5572
        %5590 = vmatprep.subr.bf16.mxu0 0
        %5591 = vmatpush1.bf16.msra.mxu0 %v5573
        %5592 = vmatprep.subr.bf16.mxu0 0
        %5593 = vmatpush1.bf16.msra.mxu0 %v5574
        %5594 = vmatprep.subr.bf16.mxu0 0
        %5595 = vmatpush1.bf16.msra.mxu0 %v5575
        %5596 = vmatprep.subr.bf16.mxu0 0
        %5597 = vmatpush1.bf16.msra.mxu0 %v5576
        %5598 = vmatprep.subr.bf16.mxu0 0
        %5599 = vmatpush1.bf16.msra.mxu0 %v5577
        %5600 = vmatprep.subr.bf16.mxu0 0
        %5601 = vmatpush1.bf16.msra.mxu0 %v5578
        %5602 = vmatprep.subr.bf16.mxu0 0
        %5603 = vmatpush1.bf16.msra.mxu0 %v5579
        %5604 = vmatprep.subr.bf16.mxu0 0
        %5605 = vmatpush1.bf16.msra.mxu0 0
        %5606 = vmatprep.subr.bf16.mxu0 0
        %5607 = vmatpush1.bf16.msra.mxu0 0
        %5608 = vmatprep.subr.bf16.mxu0 0
        %5609 = vmatpush1.bf16.msra.mxu0 0
        %5610 = vmatprep.subr.bf16.mxu0 0
        %5611 = vmatpush1.bf16.msra.mxu0 0
        %5612 = vmatprep.subr.bf16.mxu0 0
        %5613 = vmatpush1.bf16.msra.mxu0 0
        %5614 = vmatprep.subr.bf16.mxu0 0
        %5615 = vmatpush1.bf16.msra.mxu0 0
        %5616 = vmatprep.subr.bf16.mxu0 0
        %5617 = vmatpush1.bf16.msra.mxu0 0
        %5618 = vmatprep.subr.bf16.mxu0 0
        %5619 = vmatpush1.bf16.msra.mxu0 0
        %5620 = vmatprep.mubr.bf16.mxu0 0
        %5621 = vmatmul.mubr.bf16.gmra.mrb[0].mxu0 %v5524
        %v5622 = vpop.f32.mrb[0].mxu0
        %v5623 = vadd.f32 0.0, %v5622
        %v5624 = vpop.f32.mrb[0].mxu0
        %v5625 = vpop.f32.mrb[0].mxu0
        %v5626 = vadd.f32 0.0, %v5625
        %v5627 = vpop.f32.mrb[0].mxu0
        %5628 = vmatprep.mubr.bf16.mxu0 0
        %5629 = vmatmul.mubr.bf16.gmra.mrb[0].mxu0 %v5525
        %v5630 = vpop.f32.mrb[0].mxu0
        %v5631 = vadd.f32 0.0, %v5630
        %v5632 = vpop.f32.mrb[0].mxu0
        %v5633 = vpop.f32.mrb[0].mxu0
        %v5634 = vadd.f32 0.0, %v5633
        %v5635 = vpop.f32.mrb[0].mxu0
        %5636 = vmatprep.mubr.bf16.mxu0 0
        %5637 = vmatmul.mubr.bf16.gmra.mrb[0].mxu0 %v5526
        %v5638 = vpop.f32.mrb[0].mxu0
        %v5639 = vadd.f32 0.0, %v5638
        %v5640 = vpop.f32.mrb[0].mxu0
        %v5641 = vpop.f32.mrb[0].mxu0
        %v5642 = vadd.f32 0.0, %v5641
        %v5643 = vpop.f32.mrb[0].mxu0
        %5644 = vmatprep.mubr.bf16.mxu0 0
        %5645 = vmatmul.mubr.bf16.gmra.mrb[0].mxu0 %v5527
        %v5646 = vpop.f32.mrb[0].mxu0
        %v5647 = vadd.f32 0.0, %v5646
        %v5648 = vpop.f32.mrb[0].mxu0
        %v5649 = vpop.f32.mrb[0].mxu0
        %v5650 = vadd.f32 0.0, %v5649
        %v5651 = vpop.f32.mrb[0].mxu0
        %5652 = vmatprep.mubr.bf16.mxu0 0
        %5653 = vmatmul.mubr.bf16.gmra.mrb[0].mxu0 %v5528
        %v5654 = vpop.f32.mrb[0].mxu0
        %v5655 = vadd.f32 0.0, %v5654
        %v5656 = vpop.f32.mrb[0].mxu0
        %v5657 = vpop.f32.mrb[0].mxu0
        %v5658 = vadd.f32 0.0, %v5657
        %v5659 = vpop.f32.mrb[0].mxu0
        %5660 = vmatprep.mubr.bf16.mxu0 0
        %5661 = vmatmul.mubr.bf16.gmra.mrb[0].mxu0 %v5529
        %v5662 = vpop.f32.mrb[0].mxu0
        %v5663 = vadd.f32 0.0, %v5662
        %v5664 = vpop.f32.mrb[0].mxu0
        %v5665 = vpop.f32.mrb[0].mxu0
        %v5666 = vadd.f32 0.0, %v5665
        %v5667 = vpop.f32.mrb[0].mxu0
        %5668 = vmatprep.mubr.bf16.mxu0 0
        %5669 = vmatmul.mubr.bf16.gmra.mrb[0].mxu0 %v5530
        %v5670 = vpop.f32.mrb[0].mxu0
        %v5671 = vadd.f32 0.0, %v5670
        %v5672 = vpop.f32.mrb[0].mxu0
        %v5673 = vpop.f32.mrb[0].mxu0
        %v5674 = vadd.f32 0.0, %v5673
        %v5675 = vpop.f32.mrb[0].mxu0
        %5676 = vmatprep.mubr.bf16.mxu0 0
        %5677 = vmatmul.mubr.bf16.gmra.mrb[0].mxu0 %v5531
        %v5678 = vpop.f32.mrb[0].mxu0
        %v5679 = vadd.f32 0.0, %v5678
        %v5680 = vpop.f32.mrb[0].mxu0
        %v5681 = vpop.f32.mrb[0].mxu0
        %v5682 = vadd.f32 0.0, %v5681
        %v5683 = vpop.f32.mrb[0].mxu0
        %5684 = vdwg.mxu0
        %v5685 = vadd.f32 %v5371, %v5623
        %v5686 = vadd.f32 %v5372, %v5626
        %v5687 = vadd.f32 %v5373, %v5631
        %v5688 = vadd.f32 %v5374, %v5634
        %v5689 = vadd.f32 %v5375, %v5639
        %v5690 = vadd.f32 %v5376, %v5642
        %v5691 = vadd.f32 %v5377, %v5647
        %v5692 = vadd.f32 %v5378, %v5650
        %v5693 = vadd.f32 %v5379, %v5655
        %v5694 = vadd.f32 %v5380, %v5658
        %v5695 = vadd.f32 %v5381, %v5663
        %v5696 = vadd.f32 %v5382, %v5666
        %v5697 = vadd.f32 %v5383, %v5671
        %v5698 = vadd.f32 %v5384, %v5674
        %v5699 = vadd.f32 %v5385, %v5679
        %v5700 = vadd.f32 %v5386, %v5682
        %s5701 = smul.u32 %s274, 7
        %s5702 = smul.addr %s5701, 4
        %s5703 = scalar_lea.vmem %s264, %s5702
        %v5704 = vld [vmem:[%s5703] sm:$0xf]
        %v5705 = vld [vmem:[%s5703 + $0x4] sm:$0xf]
        %v5706 = vld [vmem:[%s5703 + $0x1c] sm:$0xf]
        %v5707 = vld [vmem:[%s5703 + $0x20] sm:$0xf]
        %v5708 = vld [vmem:[%s5703 + $0x38] sm:$0xf]
        %v5709 = vld [vmem:[%s5703 + $0x3c] sm:$0xf]
        %v5710 = vld [vmem:[%s5703 + $0x54] sm:$0xf]
        %v5711 = vld [vmem:[%s5703 + $0x58] sm:$0xf]
        %v5712 = vld [vmem:[%s5703 + $0x70] sm:$0xf]
        %v5713 = vld [vmem:[%s5703 + $0x74] sm:$0xf]
        %v5714 = vld [vmem:[%s5703 + $0x8c] sm:$0xf]
        %v5715 = vld [vmem:[%s5703 + $0x90] sm:$0xf]
        %v5716 = vld [vmem:[%s5703 + $0xa8] sm:$0xf]
        %v5717 = vld [vmem:[%s5703 + $0xac] sm:$0xf]
        %v5718 = vld [vmem:[%s5703 + $0xc4] sm:$0xf]
        %v5719 = vld [vmem:[%s5703 + $0xc8] sm:$0xf]
        %s5720 = scalar_lea.vmem %s1, 1216
        %v5721 = vld [vmem:[%s5720] sm:$0xf]
        %v5722 = vld [vmem:[%s5720 + $0x4] sm:$0xf]
        %v5723 = vld [vmem:[%s5720 + $0x8] sm:$0xf]
        %v5724 = vld [vmem:[%s5720 + $0xc] sm:$0xf]
        %v5725 = vld [vmem:[%s5720 + $0x10] sm:$0xf]
        %v5726 = vld [vmem:[%s5720 + $0x14] sm:$0xf]
        %v5727 = vld [vmem:[%s5720 + $0x18] sm:$0xf]
        %v5728 = vld [vmem:[%s5720 + $0x1c] sm:$0xf]
        %v5729 = vld [vmem:[%s5720 + $0x20] sm:$0xf]
        %v5730 = vld [vmem:[%s5720 + $0x24] sm:$0xf]
        %v5731 = vld [vmem:[%s5720 + $0x28] sm:$0xf]
        %v5732 = vld [vmem:[%s5720 + $0x2c] sm:$0xf]
        %v5733 = vld [vmem:[%s5720 + $0x30] sm:$0xf]
        %v5734 = vld [vmem:[%s5720 + $0x34] sm:$0xf]
        %v5735 = vld [vmem:[%s5720 + $0x38] sm:$0xf]
        %v5736 = vld [vmem:[%s5720 + $0x3c] sm:$0xf]
        %v5753 = vunpack.c.l.b16 %v5704
        %v5754 = vunpack.c.l.b16 %v5705
        %v5755 = vunpack.c.l.b16 %v5706
        %v5756 = vunpack.c.l.b16 %v5707
        %v5757 = vunpack.c.l.b16 %v5708
        %v5758 = vunpack.c.l.b16 %v5709
        %v5759 = vunpack.c.l.b16 %v5710
        %v5760 = vunpack.c.l.b16 %v5711
        %v5761 = vunpack.c.l.b16 %v5712
        %v5762 = vunpack.c.l.b16 %v5713
        %v5763 = vunpack.c.l.b16 %v5714
        %v5764 = vunpack.c.l.b16 %v5715
        %v5765 = vunpack.c.l.b16 %v5716
        %v5766 = vunpack.c.l.b16 %v5717
        %v5767 = vunpack.c.l.b16 %v5718
        %v5768 = vunpack.c.l.b16 %v5719
        %v5769 = vpack.c.b16 %v5754, %v5753
        %v5770 = vpack.c.b16 %v5756, %v5755
        %v5771 = vpack.c.b16 %v5758, %v5757
        %v5772 = vpack.c.b16 %v5760, %v5759
        %v5773 = vpack.c.b16 %v5762, %v5761
        %v5774 = vpack.c.b16 %v5764, %v5763
        %v5775 = vpack.c.b16 %v5766, %v5765
        %v5776 = vpack.c.b16 %v5768, %v5767
        %v5801 = vunpack.c.l.b16 %v5721
        %v5802 = vunpack.c.l.b16 %v5722
        %v5803 = vunpack.c.l.b16 %v5723
        %v5804 = vunpack.c.l.b16 %v5724
        %v5805 = vunpack.c.l.b16 %v5725
        %v5806 = vunpack.c.l.b16 %v5726
        %v5807 = vunpack.c.l.b16 %v5727
        %v5808 = vunpack.c.l.b16 %v5728
        %v5809 = vunpack.c.l.b16 %v5729
        %v5810 = vunpack.c.l.b16 %v5730
        %v5811 = vunpack.c.l.b16 %v5731
        %v5812 = vunpack.c.l.b16 %v5732
        %v5813 = vunpack.c.l.b16 %v5733
        %v5814 = vunpack.c.l.b16 %v5734
        %v5815 = vunpack.c.l.b16 %v5735
        %v5816 = vunpack.c.l.b16 %v5736
        %v5817 = vpack.c.b16 %v5802, %v5801
        %v5818 = vpack.c.b16 %v5804, %v5803
        %v5819 = vpack.c.b16 %v5806, %v5805
        %v5820 = vpack.c.b16 %v5808, %v5807
        %v5821 = vpack.c.b16 %v5810, %v5809
        %v5822 = vpack.c.b16 %v5812, %v5811
        %v5823 = vpack.c.b16 %v5814, %v5813
        %v5824 = vpack.c.b16 %v5816, %v5815
        %5833 = vmatprep.subr.bf16.mxu0 0
        %5834 = vmatpush1.bf16.msra.mxu0 %v5817
        %5835 = vmatprep.subr.bf16.mxu0 0
        %5836 = vmatpush1.bf16.msra.mxu0 %v5818
        %5837 = vmatprep.subr.bf16.mxu0 0
        %5838 = vmatpush1.bf16.msra.mxu0 %v5819
        %5839 = vmatprep.subr.bf16.mxu0 0
        %5840 = vmatpush1.bf16.msra.mxu0 %v5820
        %5841 = vmatprep.subr.bf16.mxu0 0
        %5842 = vmatpush1.bf16.msra.mxu0 %v5821
        %5843 = vmatprep.subr.bf16.mxu0 0
        %5844 = vmatpush1.bf16.msra.mxu0 %v5822
        %5845 = vmatprep.subr.bf16.mxu0 0
        %5846 = vmatpush1.bf16.msra.mxu0 %v5823
        %5847 = vmatprep.subr.bf16.mxu0 0
        %5848 = vmatpush1.bf16.msra.mxu0 %v5824
        %5849 = vmatprep.subr.bf16.mxu0 0
        %5850 = vmatpush1.bf16.msra.mxu0 0
        %5851 = vmatprep.subr.bf16.mxu0 0
        %5852 = vmatpush1.bf16.msra.mxu0 0
        %5853 = vmatprep.subr.bf16.mxu0 0
        %5854 = vmatpush1.bf16.msra.mxu0 0
        %5855 = vmatprep.subr.bf16.mxu0 0
        %5856 = vmatpush1.bf16.msra.mxu0 0
        %5857 = vmatprep.subr.bf16.mxu0 0
        %5858 = vmatpush1.bf16.msra.mxu0 0
        %5859 = vmatprep.subr.bf16.mxu0 0
        %5860 = vmatpush1.bf16.msra.mxu0 0
        %5861 = vmatprep.subr.bf16.mxu0 0
        %5862 = vmatpush1.bf16.msra.mxu0 0
        %5863 = vmatprep.subr.bf16.mxu0 0
        %5864 = vmatpush1.bf16.msra.mxu0 0
        %5865 = vmatprep.mubr.bf16.mxu0 0
        %5866 = vmatmul.mubr.bf16.gmra.mrb[0].mxu0 %v5769
        %v5867 = vpop.f32.mrb[0].mxu0
        %v5868 = vadd.f32 0.0, %v5867
        %v5869 = vpop.f32.mrb[0].mxu0
        %v5870 = vpop.f32.mrb[0].mxu0
        %v5871 = vadd.f32 0.0, %v5870
        %v5872 = vpop.f32.mrb[0].mxu0
        %5873 = vmatprep.mubr.bf16.mxu0 0
        %5874 = vmatmul.mubr.bf16.gmra.mrb[0].mxu0 %v5770
        %v5875 = vpop.f32.mrb[0].mxu0
        %v5876 = vadd.f32 0.0, %v5875
        %v5877 = vpop.f32.mrb[0].mxu0
        %v5878 = vpop.f32.mrb[0].mxu0
        %v5879 = vadd.f32 0.0, %v5878
        %v5880 = vpop.f32.mrb[0].mxu0
        %5881 = vmatprep.mubr.bf16.mxu0 0
        %5882 = vmatmul.mubr.bf16.gmra.mrb[0].mxu0 %v5771
        %v5883 = vpop.f32.mrb[0].mxu0
        %v5884 = vadd.f32 0.0, %v5883
        %v5885 = vpop.f32.mrb[0].mxu0
        %v5886 = vpop.f32.mrb[0].mxu0
        %v5887 = vadd.f32 0.0, %v5886
        %v5888 = vpop.f32.mrb[0].mxu0
        %5889 = vmatprep.mubr.bf16.mxu0 0
        %5890 = vmatmul.mubr.bf16.gmra.mrb[0].mxu0 %v5772
        %v5891 = vpop.f32.mrb[0].mxu0
        %v5892 = vadd.f32 0.0, %v5891
        %v5893 = vpop.f32.mrb[0].mxu0
        %v5894 = vpop.f32.mrb[0].mxu0
        %v5895 = vadd.f32 0.0, %v5894
        %v5896 = vpop.f32.mrb[0].mxu0
        %5897 = vmatprep.mubr.bf16.mxu0 0
        %5898 = vmatmul.mubr.bf16.gmra.mrb[0].mxu0 %v5773
        %v5899 = vpop.f32.mrb[0].mxu0
        %v5900 = vadd.f32 0.0, %v5899
        %v5901 = vpop.f32.mrb[0].mxu0
        %v5902 = vpop.f32.mrb[0].mxu0
        %v5903 = vadd.f32 0.0, %v5902
        %v5904 = vpop.f32.mrb[0].mxu0
        %5905 = vmatprep.mubr.bf16.mxu0 0
        %5906 = vmatmul.mubr.bf16.gmra.mrb[0].mxu0 %v5774
        %v5907 = vpop.f32.mrb[0].mxu0
        %v5908 = vadd.f32 0.0, %v5907
        %v5909 = vpop.f32.mrb[0].mxu0
        %v5910 = vpop.f32.mrb[0].mxu0
        %v5911 = vadd.f32 0.0, %v5910
        %v5912 = vpop.f32.mrb[0].mxu0
        %5913 = vmatprep.mubr.bf16.mxu0 0
        %5914 = vmatmul.mubr.bf16.gmra.mrb[0].mxu0 %v5775
        %v5915 = vpop.f32.mrb[0].mxu0
        %v5916 = vadd.f32 0.0, %v5915
        %v5917 = vpop.f32.mrb[0].mxu0
        %v5918 = vpop.f32.mrb[0].mxu0
        %v5919 = vadd.f32 0.0, %v5918
        %v5920 = vpop.f32.mrb[0].mxu0
        %5921 = vmatprep.mubr.bf16.mxu0 0
        %5922 = vmatmul.mubr.bf16.gmra.mrb[0].mxu0 %v5776
        %v5923 = vpop.f32.mrb[0].mxu0
        %v5924 = vadd.f32 0.0, %v5923
        %v5925 = vpop.f32.mrb[0].mxu0
        %v5926 = vpop.f32.mrb[0].mxu0
        %v5927 = vadd.f32 0.0, %v5926
        %v5928 = vpop.f32.mrb[0].mxu0
        %5929 = vdwg.mxu0
        %v5930 = vadd.f32 %v5685, %v5868
        %v5931 = vadd.f32 %v5686, %v5871
        %v5932 = vadd.f32 %v5687, %v5876
        %v5933 = vadd.f32 %v5688, %v5879
        %v5934 = vadd.f32 %v5689, %v5884
        %v5935 = vadd.f32 %v5690, %v5887
        %v5936 = vadd.f32 %v5691, %v5892
        %v5937 = vadd.f32 %v5692, %v5895
        %v5938 = vadd.f32 %v5693, %v5900
        %v5939 = vadd.f32 %v5694, %v5903
        %v5940 = vadd.f32 %v5695, %v5908
        %v5941 = vadd.f32 %v5696, %v5911
        %v5942 = vadd.f32 %v5697, %v5916
        %v5943 = vadd.f32 %v5698, %v5919
        %v5944 = vadd.f32 %v5699, %v5924
        %v5945 = vadd.f32 %v5700, %v5927
        %v5946 = vld [vmem:[%s5703 + $0x8] sm:$0xe]
        %v5947 = vld [vmem:[%s5703 + $0xc] sm:$0xf]
        %v5948 = vld [vmem:[%s5703 + $0x10] sm:$0x1]
        %v5949 = vld [vmem:[%s5703 + $0x24] sm:$0xe]
        %v5950 = vld [vmem:[%s5703 + $0x28] sm:$0xf]
        %v5951 = vld [vmem:[%s5703 + $0x2c] sm:$0x1]
        %v5952 = vld [vmem:[%s5703 + $0x40] sm:$0xe]
        %v5953 = vld [vmem:[%s5703 + $0x44] sm:$0xf]
        %v5954 = vld [vmem:[%s5703 + $0x48] sm:$0x1]
        %v5955 = vld [vmem:[%s5703 + $0x5c] sm:$0xe]
        %v5956 = vld [vmem:[%s5703 + $0x60] sm:$0xf]
        %v5957 = vld [vmem:[%s5703 + $0x64] sm:$0x1]
        %v5958 = vld [vmem:[%s5703 + $0x78] sm:$0xe]
        %v5959 = vld [vmem:[%s5703 + $0x7c] sm:$0xf]
        %v5960 = vld [vmem:[%s5703 + $0x80] sm:$0x1]
        %v5961 = vld [vmem:[%s5703 + $0x94] sm:$0xe]
        %v5962 = vld [vmem:[%s5703 + $0x98] sm:$0xf]
        %v5963 = vld [vmem:[%s5703 + $0x9c] sm:$0x1]
        %v5964 = vld [vmem:[%s5703 + $0xb0] sm:$0xe]
        %v5965 = vld [vmem:[%s5703 + $0xb4] sm:$0xf]
        %v5966 = vld [vmem:[%s5703 + $0xb8] sm:$0x1]
        %v5967 = vld [vmem:[%s5703 + $0xcc] sm:$0xe]
        %v5968 = vld [vmem:[%s5703 + $0xd0] sm:$0xf]
        %v5969 = vld [vmem:[%s5703 + $0xd4] sm:$0x1]
        %v5994 = vrot.slane %v5946, 5
        %v5995 = vrot.slane %v5994, 4
        %v5996 = vrot.slane %v5947, 5
        %v5997 = vsel %vm329, %v5995, %v5996
        %v5998 = vrot.slane %v5996, 4
        %v5999 = vrot.slane %v5948, 5
        %v6000 = vsel %vm329, %v5998, %v5999
        %v6001 = vrot.slane %v5949, 5
        %v6002 = vrot.slane %v6001, 4
        %v6003 = vrot.slane %v5950, 5
        %v6004 = vsel %vm329, %v6002, %v6003
        %v6005 = vrot.slane %v6003, 4
        %v6006 = vrot.slane %v5951, 5
        %v6007 = vsel %vm329, %v6005, %v6006
        %v6008 = vrot.slane %v5952, 5
        %v6009 = vrot.slane %v6008, 4
        %v6010 = vrot.slane %v5953, 5
        %v6011 = vsel %vm329, %v6009, %v6010
        %v6012 = vrot.slane %v6010, 4
        %v6013 = vrot.slane %v5954, 5
        %v6014 = vsel %vm329, %v6012, %v6013
        %v6015 = vrot.slane %v5955, 5
        %v6016 = vrot.slane %v6015, 4
        %v6017 = vrot.slane %v5956, 5
        %v6018 = vsel %vm329, %v6016, %v6017
        %v6019 = vrot.slane %v6017, 4
        %v6020 = vrot.slane %v5957, 5
        %v6021 = vsel %vm329, %v6019, %v6020
        %v6022 = vrot.slane %v5958, 5
        %v6023 = vrot.slane %v6022, 4
        %v6024 = vrot.slane %v5959, 5
        %v6025 = vsel %vm329, %v6023, %v6024
        %v6026 = vrot.slane %v6024, 4
        %v6027 = vrot.slane %v5960, 5
        %v6028 = vsel %vm329, %v6026, %v6027
        %v6029 = vrot.slane %v5961, 5
        %v6030 = vrot.slane %v6029, 4
        %v6031 = vrot.slane %v5962, 5
        %v6032 = vsel %vm329, %v6030, %v6031
        %v6033 = vrot.slane %v6031, 4
        %v6034 = vrot.slane %v5963, 5
        %v6035 = vsel %vm329, %v6033, %v6034
        %v6036 = vrot.slane %v5964, 5
        %v6037 = vrot.slane %v6036, 4
        %v6038 = vrot.slane %v5965, 5
        %v6039 = vsel %vm329, %v6037, %v6038
        %v6040 = vrot.slane %v6038, 4
        %v6041 = vrot.slane %v5966, 5
        %v6042 = vsel %vm329, %v6040, %v6041
        %v6043 = vrot.slane %v5967, 5
        %v6044 = vrot.slane %v6043, 4
        %v6045 = vrot.slane %v5968, 5
        %v6046 = vsel %vm329, %v6044, %v6045
        %v6047 = vrot.slane %v6045, 4
        %v6048 = vrot.slane %v5969, 5
        %v6049 = vsel %vm329, %v6047, %v6048
        %s6050 = scalar_lea.vmem %s1, 1280
        %v6051 = vld [vmem:[%s6050] sm:$0xf]
        %v6052 = vld [vmem:[%s6050 + $0x4] sm:$0xf]
        %v6053 = vld [vmem:[%s6050 + $0x8] sm:$0xf]
        %v6054 = vld [vmem:[%s6050 + $0xc] sm:$0xf]
        %v6055 = vld [vmem:[%s6050 + $0x10] sm:$0xf]
        %v6056 = vld [vmem:[%s6050 + $0x14] sm:$0xf]
        %v6057 = vld [vmem:[%s6050 + $0x18] sm:$0xf]
        %v6058 = vld [vmem:[%s6050 + $0x1c] sm:$0xf]
        %v6059 = vld [vmem:[%s6050 + $0x20] sm:$0xf]
        %v6060 = vld [vmem:[%s6050 + $0x24] sm:$0xf]
        %v6061 = vld [vmem:[%s6050 + $0x28] sm:$0xf]
        %v6062 = vld [vmem:[%s6050 + $0x2c] sm:$0xf]
        %v6063 = vld [vmem:[%s6050 + $0x30] sm:$0xf]
        %v6064 = vld [vmem:[%s6050 + $0x34] sm:$0xf]
        %v6065 = vld [vmem:[%s6050 + $0x38] sm:$0xf]
        %v6066 = vld [vmem:[%s6050 + $0x3c] sm:$0xf]
        %v6067 = vunpack.c.l.b16 %v5997
        %v6068 = vunpack.c.l.b16 %v6000
        %v6069 = vunpack.c.l.b16 %v6004
        %v6070 = vunpack.c.l.b16 %v6007
        %v6071 = vunpack.c.l.b16 %v6011
        %v6072 = vunpack.c.l.b16 %v6014
        %v6073 = vunpack.c.l.b16 %v6018
        %v6074 = vunpack.c.l.b16 %v6021
        %v6075 = vunpack.c.l.b16 %v6025
        %v6076 = vunpack.c.l.b16 %v6028
        %v6077 = vunpack.c.l.b16 %v6032
        %v6078 = vunpack.c.l.b16 %v6035
        %v6079 = vunpack.c.l.b16 %v6039
        %v6080 = vunpack.c.l.b16 %v6042
        %v6081 = vunpack.c.l.b16 %v6046
        %v6082 = vunpack.c.l.b16 %v6049
        %v6083 = vpack.c.b16 %v6068, %v6067
        %v6084 = vpack.c.b16 %v6070, %v6069
        %v6085 = vpack.c.b16 %v6072, %v6071
        %v6086 = vpack.c.b16 %v6074, %v6073
        %v6087 = vpack.c.b16 %v6076, %v6075
        %v6088 = vpack.c.b16 %v6078, %v6077
        %v6089 = vpack.c.b16 %v6080, %v6079
        %v6090 = vpack.c.b16 %v6082, %v6081
        %v6115 = vunpack.c.l.b16 %v6051
        %v6116 = vunpack.c.l.b16 %v6052
        %v6117 = vunpack.c.l.b16 %v6053
        %v6118 = vunpack.c.l.b16 %v6054
        %v6119 = vunpack.c.l.b16 %v6055
        %v6120 = vunpack.c.l.b16 %v6056
        %v6121 = vunpack.c.l.b16 %v6057
        %v6122 = vunpack.c.l.b16 %v6058
        %v6123 = vunpack.c.l.b16 %v6059
        %v6124 = vunpack.c.l.b16 %v6060
        %v6125 = vunpack.c.l.b16 %v6061
        %v6126 = vunpack.c.l.b16 %v6062
        %v6127 = vunpack.c.l.b16 %v6063
        %v6128 = vunpack.c.l.b16 %v6064
        %v6129 = vunpack.c.l.b16 %v6065
        %v6130 = vunpack.c.l.b16 %v6066
        %v6131 = vpack.c.b16 %v6116, %v6115
        %v6132 = vpack.c.b16 %v6118, %v6117
        %v6133 = vpack.c.b16 %v6120, %v6119
        %v6134 = vpack.c.b16 %v6122, %v6121
        %v6135 = vpack.c.b16 %v6124, %v6123
        %v6136 = vpack.c.b16 %v6126, %v6125
        %v6137 = vpack.c.b16 %v6128, %v6127
        %v6138 = vpack.c.b16 %v6130, %v6129
        %6147 = vmatprep.subr.bf16.mxu0 0
        %6148 = vmatpush1.bf16.msra.mxu0 %v6131
        %6149 = vmatprep.subr.bf16.mxu0 0
        %6150 = vmatpush1.bf16.msra.mxu0 %v6132
        %6151 = vmatprep.subr.bf16.mxu0 0
        %6152 = vmatpush1.bf16.msra.mxu0 %v6133
        %6153 = vmatprep.subr.bf16.mxu0 0
        %6154 = vmatpush1.bf16.msra.mxu0 %v6134
        %6155 = vmatprep.subr.bf16.mxu0 0
        %6156 = vmatpush1.bf16.msra.mxu0 %v6135
        %6157 = vmatprep.subr.bf16.mxu0 0
        %6158 = vmatpush1.bf16.msra.mxu0 %v6136
        %6159 = vmatprep.subr.bf16.mxu0 0
        %6160 = vmatpush1.bf16.msra.mxu0 %v6137
        %6161 = vmatprep.subr.bf16.mxu0 0
        %6162 = vmatpush1.bf16.msra.mxu0 %v6138
        %6163 = vmatprep.subr.bf16.mxu0 0
        %6164 = vmatpush1.bf16.msra.mxu0 0
        %6165 = vmatprep.subr.bf16.mxu0 0
        %6166 = vmatpush1.bf16.msra.mxu0 0
        %6167 = vmatprep.subr.bf16.mxu0 0
        %6168 = vmatpush1.bf16.msra.mxu0 0
        %6169 = vmatprep.subr.bf16.mxu0 0
        %6170 = vmatpush1.bf16.msra.mxu0 0
        %6171 = vmatprep.subr.bf16.mxu0 0
        %6172 = vmatpush1.bf16.msra.mxu0 0
        %6173 = vmatprep.subr.bf16.mxu0 0
        %6174 = vmatpush1.bf16.msra.mxu0 0
        %6175 = vmatprep.subr.bf16.mxu0 0
        %6176 = vmatpush1.bf16.msra.mxu0 0
        %6177 = vmatprep.subr.bf16.mxu0 0
        %6178 = vmatpush1.bf16.msra.mxu0 0
        %6179 = vmatprep.mubr.bf16.mxu0 0
        %6180 = vmatmul.mubr.bf16.gmra.mrb[0].mxu0 %v6083
        %v6181 = vpop.f32.mrb[0].mxu0
        %v6182 = vadd.f32 0.0, %v6181
        %v6183 = vpop.f32.mrb[0].mxu0
        %v6184 = vpop.f32.mrb[0].mxu0
        %v6185 = vadd.f32 0.0, %v6184
        %v6186 = vpop.f32.mrb[0].mxu0
        %6187 = vmatprep.mubr.bf16.mxu0 0
        %6188 = vmatmul.mubr.bf16.gmra.mrb[0].mxu0 %v6084
        %v6189 = vpop.f32.mrb[0].mxu0
        %v6190 = vadd.f32 0.0, %v6189
        %v6191 = vpop.f32.mrb[0].mxu0
        %v6192 = vpop.f32.mrb[0].mxu0
        %v6193 = vadd.f32 0.0, %v6192
        %v6194 = vpop.f32.mrb[0].mxu0
        %6195 = vmatprep.mubr.bf16.mxu0 0
        %6196 = vmatmul.mubr.bf16.gmra.mrb[0].mxu0 %v6085
        %v6197 = vpop.f32.mrb[0].mxu0
        %v6198 = vadd.f32 0.0, %v6197
        %v6199 = vpop.f32.mrb[0].mxu0
        %v6200 = vpop.f32.mrb[0].mxu0
        %v6201 = vadd.f32 0.0, %v6200
        %v6202 = vpop.f32.mrb[0].mxu0
        %6203 = vmatprep.mubr.bf16.mxu0 0
        %6204 = vmatmul.mubr.bf16.gmra.mrb[0].mxu0 %v6086
        %v6205 = vpop.f32.mrb[0].mxu0
        %v6206 = vadd.f32 0.0, %v6205
        %v6207 = vpop.f32.mrb[0].mxu0
        %v6208 = vpop.f32.mrb[0].mxu0
        %v6209 = vadd.f32 0.0, %v6208
        %v6210 = vpop.f32.mrb[0].mxu0
        %6211 = vmatprep.mubr.bf16.mxu0 0
        %6212 = vmatmul.mubr.bf16.gmra.mrb[0].mxu0 %v6087
        %v6213 = vpop.f32.mrb[0].mxu0
        %v6214 = vadd.f32 0.0, %v6213
        %v6215 = vpop.f32.mrb[0].mxu0
        %v6216 = vpop.f32.mrb[0].mxu0
        %v6217 = vadd.f32 0.0, %v6216
        %v6218 = vpop.f32.mrb[0].mxu0
        %6219 = vmatprep.mubr.bf16.mxu0 0
        %6220 = vmatmul.mubr.bf16.gmra.mrb[0].mxu0 %v6088
        %v6221 = vpop.f32.mrb[0].mxu0
        %v6222 = vadd.f32 0.0, %v6221
        %v6223 = vpop.f32.mrb[0].mxu0
        %v6224 = vpop.f32.mrb[0].mxu0
        %v6225 = vadd.f32 0.0, %v6224
        %v6226 = vpop.f32.mrb[0].mxu0
        %6227 = vmatprep.mubr.bf16.mxu0 0
        %6228 = vmatmul.mubr.bf16.gmra.mrb[0].mxu0 %v6089
        %v6229 = vpop.f32.mrb[0].mxu0
        %v6230 = vadd.f32 0.0, %v6229
        %v6231 = vpop.f32.mrb[0].mxu0
        %v6232 = vpop.f32.mrb[0].mxu0
        %v6233 = vadd.f32 0.0, %v6232
        %v6234 = vpop.f32.mrb[0].mxu0
        %6235 = vmatprep.mubr.bf16.mxu0 0
        %6236 = vmatmul.mubr.bf16.gmra.mrb[0].mxu0 %v6090
        %v6237 = vpop.f32.mrb[0].mxu0
        %v6238 = vadd.f32 0.0, %v6237
        %v6239 = vpop.f32.mrb[0].mxu0
        %v6240 = vpop.f32.mrb[0].mxu0
        %v6241 = vadd.f32 0.0, %v6240
        %v6242 = vpop.f32.mrb[0].mxu0
        %6243 = vdwg.mxu0
        %v6244 = vadd.f32 %v5930, %v6182
        %v6245 = vadd.f32 %v5931, %v6185
        %v6246 = vadd.f32 %v5932, %v6190
        %v6247 = vadd.f32 %v5933, %v6193
        %v6248 = vadd.f32 %v5934, %v6198
        %v6249 = vadd.f32 %v5935, %v6201
        %v6250 = vadd.f32 %v5936, %v6206
        %v6251 = vadd.f32 %v5937, %v6209
        %v6252 = vadd.f32 %v5938, %v6214
        %v6253 = vadd.f32 %v5939, %v6217
        %v6254 = vadd.f32 %v5940, %v6222
        %v6255 = vadd.f32 %v5941, %v6225
        %v6256 = vadd.f32 %v5942, %v6230
        %v6257 = vadd.f32 %v5943, %v6233
        %v6258 = vadd.f32 %v5944, %v6238
        %v6259 = vadd.f32 %v5945, %v6241
        %v6260 = vld [vmem:[%s5703 + $0x10] sm:$0xc]
        %v6261 = vld [vmem:[%s5703 + $0x14] sm:$0xf]
        %v6262 = vld [vmem:[%s5703 + $0x18] sm:$0x3]
        %v6263 = vld [vmem:[%s5703 + $0x2c] sm:$0xc]
        %v6264 = vld [vmem:[%s5703 + $0x30] sm:$0xf]
        %v6265 = vld [vmem:[%s5703 + $0x34] sm:$0x3]
        %v6266 = vld [vmem:[%s5703 + $0x48] sm:$0xc]
        %v6267 = vld [vmem:[%s5703 + $0x4c] sm:$0xf]
        %v6268 = vld [vmem:[%s5703 + $0x50] sm:$0x3]
        %v6269 = vld [vmem:[%s5703 + $0x64] sm:$0xc]
        %v6270 = vld [vmem:[%s5703 + $0x68] sm:$0xf]
        %v6271 = vld [vmem:[%s5703 + $0x6c] sm:$0x3]
        %v6272 = vld [vmem:[%s5703 + $0x80] sm:$0xc]
        %v6273 = vld [vmem:[%s5703 + $0x84] sm:$0xf]
        %v6274 = vld [vmem:[%s5703 + $0x88] sm:$0x3]
        %v6275 = vld [vmem:[%s5703 + $0x9c] sm:$0xc]
        %v6276 = vld [vmem:[%s5703 + $0xa0] sm:$0xf]
        %v6277 = vld [vmem:[%s5703 + $0xa4] sm:$0x3]
        %v6278 = vld [vmem:[%s5703 + $0xb8] sm:$0xc]
        %v6279 = vld [vmem:[%s5703 + $0xbc] sm:$0xf]
        %v6280 = vld [vmem:[%s5703 + $0xc0] sm:$0x3]
        %v6281 = vld [vmem:[%s5703 + $0xd4] sm:$0xc]
        %v6282 = vld [vmem:[%s5703 + $0xd8] sm:$0xf]
        %v6283 = vld [vmem:[%s5703 + $0xdc] sm:$0x3]
        %v6308 = vrot.slane %v6260, 6
        %v6309 = vrot.slane %v6308, 4
        %v6310 = vrot.slane %v6261, 6
        %v6311 = vsel %vm456, %v6309, %v6310
        %v6312 = vrot.slane %v6310, 4
        %v6313 = vrot.slane %v6262, 6
        %v6314 = vsel %vm456, %v6312, %v6313
        %v6315 = vrot.slane %v6263, 6
        %v6316 = vrot.slane %v6315, 4
        %v6317 = vrot.slane %v6264, 6
        %v6318 = vsel %vm456, %v6316, %v6317
        %v6319 = vrot.slane %v6317, 4
        %v6320 = vrot.slane %v6265, 6
        %v6321 = vsel %vm456, %v6319, %v6320
        %v6322 = vrot.slane %v6266, 6
        %v6323 = vrot.slane %v6322, 4
        %v6324 = vrot.slane %v6267, 6
        %v6325 = vsel %vm456, %v6323, %v6324
        %v6326 = vrot.slane %v6324, 4
        %v6327 = vrot.slane %v6268, 6
        %v6328 = vsel %vm456, %v6326, %v6327
        %v6329 = vrot.slane %v6269, 6
        %v6330 = vrot.slane %v6329, 4
        %v6331 = vrot.slane %v6270, 6
        %v6332 = vsel %vm456, %v6330, %v6331
        %v6333 = vrot.slane %v6331, 4
        %v6334 = vrot.slane %v6271, 6
        %v6335 = vsel %vm456, %v6333, %v6334
        %v6336 = vrot.slane %v6272, 6
        %v6337 = vrot.slane %v6336, 4
        %v6338 = vrot.slane %v6273, 6
        %v6339 = vsel %vm456, %v6337, %v6338
        %v6340 = vrot.slane %v6338, 4
        %v6341 = vrot.slane %v6274, 6
        %v6342 = vsel %vm456, %v6340, %v6341
        %v6343 = vrot.slane %v6275, 6
        %v6344 = vrot.slane %v6343, 4
        %v6345 = vrot.slane %v6276, 6
        %v6346 = vsel %vm456, %v6344, %v6345
        %v6347 = vrot.slane %v6345, 4
        %v6348 = vrot.slane %v6277, 6
        %v6349 = vsel %vm456, %v6347, %v6348
        %v6350 = vrot.slane %v6278, 6
        %v6351 = vrot.slane %v6350, 4
        %v6352 = vrot.slane %v6279, 6
        %v6353 = vsel %vm456, %v6351, %v6352
        %v6354 = vrot.slane %v6352, 4
        %v6355 = vrot.slane %v6280, 6
        %v6356 = vsel %vm456, %v6354, %v6355
        %v6357 = vrot.slane %v6281, 6
        %v6358 = vrot.slane %v6357, 4
        %v6359 = vrot.slane %v6282, 6
        %v6360 = vsel %vm456, %v6358, %v6359
        %v6361 = vrot.slane %v6359, 4
        %v6362 = vrot.slane %v6283, 6
        %v6363 = vsel %vm456, %v6361, %v6362
        %s6364 = scalar_lea.vmem %s1, 1344
        %v6365 = vld [vmem:[%s6364] sm:$0xf]
        %v6366 = vld [vmem:[%s6364 + $0x4] sm:$0xf]
        %v6367 = vld [vmem:[%s6364 + $0x8] sm:$0xf]
        %v6368 = vld [vmem:[%s6364 + $0xc] sm:$0xf]
        %v6369 = vld [vmem:[%s6364 + $0x10] sm:$0xf]
        %v6370 = vld [vmem:[%s6364 + $0x14] sm:$0xf]
        %v6371 = vld [vmem:[%s6364 + $0x18] sm:$0xf]
        %v6372 = vld [vmem:[%s6364 + $0x1c] sm:$0xf]
        %v6373 = vld [vmem:[%s6364 + $0x20] sm:$0xf]
        %v6374 = vld [vmem:[%s6364 + $0x24] sm:$0xf]
        %v6375 = vld [vmem:[%s6364 + $0x28] sm:$0xf]
        %v6376 = vld [vmem:[%s6364 + $0x2c] sm:$0xf]
        %v6377 = vld [vmem:[%s6364 + $0x30] sm:$0xf]
        %v6378 = vld [vmem:[%s6364 + $0x34] sm:$0xf]
        %v6379 = vld [vmem:[%s6364 + $0x38] sm:$0xf]
        %v6380 = vld [vmem:[%s6364 + $0x3c] sm:$0xf]
        %v6381 = vunpack.c.l.b16 %v6311
        %v6382 = vunpack.c.l.b16 %v6314
        %v6383 = vunpack.c.l.b16 %v6318
        %v6384 = vunpack.c.l.b16 %v6321
        %v6385 = vunpack.c.l.b16 %v6325
        %v6386 = vunpack.c.l.b16 %v6328
        %v6387 = vunpack.c.l.b16 %v6332
        %v6388 = vunpack.c.l.b16 %v6335
        %v6389 = vunpack.c.l.b16 %v6339
        %v6390 = vunpack.c.l.b16 %v6342
        %v6391 = vunpack.c.l.b16 %v6346
        %v6392 = vunpack.c.l.b16 %v6349
        %v6393 = vunpack.c.l.b16 %v6353
        %v6394 = vunpack.c.l.b16 %v6356
        %v6395 = vunpack.c.l.b16 %v6360
        %v6396 = vunpack.c.l.b16 %v6363
        %v6397 = vpack.c.b16 %v6382, %v6381
        %v6398 = vpack.c.b16 %v6384, %v6383
        %v6399 = vpack.c.b16 %v6386, %v6385
        %v6400 = vpack.c.b16 %v6388, %v6387
        %v6401 = vpack.c.b16 %v6390, %v6389
        %v6402 = vpack.c.b16 %v6392, %v6391
        %v6403 = vpack.c.b16 %v6394, %v6393
        %v6404 = vpack.c.b16 %v6396, %v6395
        %v6429 = vunpack.c.l.b16 %v6365
        %v6430 = vunpack.c.l.b16 %v6366
        %v6431 = vunpack.c.l.b16 %v6367
        %v6432 = vunpack.c.l.b16 %v6368
        %v6433 = vunpack.c.l.b16 %v6369
        %v6434 = vunpack.c.l.b16 %v6370
        %v6435 = vunpack.c.l.b16 %v6371
        %v6436 = vunpack.c.l.b16 %v6372
        %v6437 = vunpack.c.l.b16 %v6373
        %v6438 = vunpack.c.l.b16 %v6374
        %v6439 = vunpack.c.l.b16 %v6375
        %v6440 = vunpack.c.l.b16 %v6376
        %v6441 = vunpack.c.l.b16 %v6377
        %v6442 = vunpack.c.l.b16 %v6378
        %v6443 = vunpack.c.l.b16 %v6379
        %v6444 = vunpack.c.l.b16 %v6380
        %v6445 = vpack.c.b16 %v6430, %v6429
        %v6446 = vpack.c.b16 %v6432, %v6431
        %v6447 = vpack.c.b16 %v6434, %v6433
        %v6448 = vpack.c.b16 %v6436, %v6435
        %v6449 = vpack.c.b16 %v6438, %v6437
        %v6450 = vpack.c.b16 %v6440, %v6439
        %v6451 = vpack.c.b16 %v6442, %v6441
        %v6452 = vpack.c.b16 %v6444, %v6443
        %6461 = vmatprep.subr.bf16.mxu0 0
        %6462 = vmatpush1.bf16.msra.mxu0 %v6445
        %6463 = vmatprep.subr.bf16.mxu0 0
        %6464 = vmatpush1.bf16.msra.mxu0 %v6446
        %6465 = vmatprep.subr.bf16.mxu0 0
        %6466 = vmatpush1.bf16.msra.mxu0 %v6447
        %6467 = vmatprep.subr.bf16.mxu0 0
        %6468 = vmatpush1.bf16.msra.mxu0 %v6448
        %6469 = vmatprep.subr.bf16.mxu0 0
        %6470 = vmatpush1.bf16.msra.mxu0 %v6449
        %6471 = vmatprep.subr.bf16.mxu0 0
        %6472 = vmatpush1.bf16.msra.mxu0 %v6450
        %6473 = vmatprep.subr.bf16.mxu0 0
        %6474 = vmatpush1.bf16.msra.mxu0 %v6451
        %6475 = vmatprep.subr.bf16.mxu0 0
        %6476 = vmatpush1.bf16.msra.mxu0 %v6452
        %6477 = vmatprep.subr.bf16.mxu0 0
        %6478 = vmatpush1.bf16.msra.mxu0 0
        %6479 = vmatprep.subr.bf16.mxu0 0
        %6480 = vmatpush1.bf16.msra.mxu0 0
        %6481 = vmatprep.subr.bf16.mxu0 0
        %6482 = vmatpush1.bf16.msra.mxu0 0
        %6483 = vmatprep.subr.bf16.mxu0 0
        %6484 = vmatpush1.bf16.msra.mxu0 0
        %6485 = vmatprep.subr.bf16.mxu0 0
        %6486 = vmatpush1.bf16.msra.mxu0 0
        %6487 = vmatprep.subr.bf16.mxu0 0
        %6488 = vmatpush1.bf16.msra.mxu0 0
        %6489 = vmatprep.subr.bf16.mxu0 0
        %6490 = vmatpush1.bf16.msra.mxu0 0
        %6491 = vmatprep.subr.bf16.mxu0 0
        %6492 = vmatpush1.bf16.msra.mxu0 0
        %6493 = vmatprep.mubr.bf16.mxu0 0
        %6494 = vmatmul.mubr.bf16.gmra.mrb[0].mxu0 %v6397
        %v6495 = vpop.f32.mrb[0].mxu0
        %v6496 = vadd.f32 0.0, %v6495
        %v6497 = vpop.f32.mrb[0].mxu0
        %v6498 = vpop.f32.mrb[0].mxu0
        %v6499 = vadd.f32 0.0, %v6498
        %v6500 = vpop.f32.mrb[0].mxu0
        %6501 = vmatprep.mubr.bf16.mxu0 0
        %6502 = vmatmul.mubr.bf16.gmra.mrb[0].mxu0 %v6398
        %v6503 = vpop.f32.mrb[0].mxu0
        %v6504 = vadd.f32 0.0, %v6503
        %v6505 = vpop.f32.mrb[0].mxu0
        %v6506 = vpop.f32.mrb[0].mxu0
        %v6507 = vadd.f32 0.0, %v6506
        %v6508 = vpop.f32.mrb[0].mxu0
        %6509 = vmatprep.mubr.bf16.mxu0 0
        %6510 = vmatmul.mubr.bf16.gmra.mrb[0].mxu0 %v6399
        %v6511 = vpop.f32.mrb[0].mxu0
        %v6512 = vadd.f32 0.0, %v6511
        %v6513 = vpop.f32.mrb[0].mxu0
        %v6514 = vpop.f32.mrb[0].mxu0
        %v6515 = vadd.f32 0.0, %v6514
        %v6516 = vpop.f32.mrb[0].mxu0
        %6517 = vmatprep.mubr.bf16.mxu0 0
        %6518 = vmatmul.mubr.bf16.gmra.mrb[0].mxu0 %v6400
        %v6519 = vpop.f32.mrb[0].mxu0
        %v6520 = vadd.f32 0.0, %v6519
        %v6521 = vpop.f32.mrb[0].mxu0
        %v6522 = vpop.f32.mrb[0].mxu0
        %v6523 = vadd.f32 0.0, %v6522
        %v6524 = vpop.f32.mrb[0].mxu0
        %6525 = vmatprep.mubr.bf16.mxu0 0
        %6526 = vmatmul.mubr.bf16.gmra.mrb[0].mxu0 %v6401
        %v6527 = vpop.f32.mrb[0].mxu0
        %v6528 = vadd.f32 0.0, %v6527
        %v6529 = vpop.f32.mrb[0].mxu0
        %v6530 = vpop.f32.mrb[0].mxu0
        %v6531 = vadd.f32 0.0, %v6530
        %v6532 = vpop.f32.mrb[0].mxu0
        %6533 = vmatprep.mubr.bf16.mxu0 0
        %6534 = vmatmul.mubr.bf16.gmra.mrb[0].mxu0 %v6402
        %v6535 = vpop.f32.mrb[0].mxu0
        %v6536 = vadd.f32 0.0, %v6535
        %v6537 = vpop.f32.mrb[0].mxu0
        %v6538 = vpop.f32.mrb[0].mxu0
        %v6539 = vadd.f32 0.0, %v6538
        %v6540 = vpop.f32.mrb[0].mxu0
        %6541 = vmatprep.mubr.bf16.mxu0 0
        %6542 = vmatmul.mubr.bf16.gmra.mrb[0].mxu0 %v6403
        %v6543 = vpop.f32.mrb[0].mxu0
        %v6544 = vadd.f32 0.0, %v6543
        %v6545 = vpop.f32.mrb[0].mxu0
        %v6546 = vpop.f32.mrb[0].mxu0
        %v6547 = vadd.f32 0.0, %v6546
        %v6548 = vpop.f32.mrb[0].mxu0
        %6549 = vmatprep.mubr.bf16.mxu0 0
        %6550 = vmatmul.mubr.bf16.gmra.mrb[0].mxu0 %v6404
        %v6551 = vpop.f32.mrb[0].mxu0
        %v6552 = vadd.f32 0.0, %v6551
        %v6553 = vpop.f32.mrb[0].mxu0
        %v6554 = vpop.f32.mrb[0].mxu0
        %v6555 = vadd.f32 0.0, %v6554
        %v6556 = vpop.f32.mrb[0].mxu0
        %6557 = vdwg.mxu0
        %v6558 = vadd.f32 %v6244, %v6496
        %v6559 = vadd.f32 %v6245, %v6499
        %v6560 = vadd.f32 %v6246, %v6504
        %v6561 = vadd.f32 %v6247, %v6507
        %v6562 = vadd.f32 %v6248, %v6512
        %v6563 = vadd.f32 %v6249, %v6515
        %v6564 = vadd.f32 %v6250, %v6520
        %v6565 = vadd.f32 %v6251, %v6523
        %v6566 = vadd.f32 %v6252, %v6528
        %v6567 = vadd.f32 %v6253, %v6531
        %v6568 = vadd.f32 %v6254, %v6536
        %v6569 = vadd.f32 %v6255, %v6539
        %v6570 = vadd.f32 %v6256, %v6544
        %v6571 = vadd.f32 %v6257, %v6547
        %v6572 = vadd.f32 %v6258, %v6552
        %v6573 = vadd.f32 %v6259, %v6555
        %v6574 = vld [vmem:[%s278] sm:$0xf]
        %v6575 = vld [vmem:[%s278 + $0x4] sm:$0xf]
        %v6576 = vld [vmem:[%s278 + $0x1c] sm:$0xf]
        %v6577 = vld [vmem:[%s278 + $0x20] sm:$0xf]
        %v6578 = vld [vmem:[%s278 + $0x38] sm:$0xf]
        %v6579 = vld [vmem:[%s278 + $0x3c] sm:$0xf]
        %v6580 = vld [vmem:[%s278 + $0x54] sm:$0xf]
        %v6581 = vld [vmem:[%s278 + $0x58] sm:$0xf]
        %v6582 = vld [vmem:[%s278 + $0x70] sm:$0xf]
        %v6583 = vld [vmem:[%s278 + $0x74] sm:$0xf]
        %v6584 = vld [vmem:[%s278 + $0x8c] sm:$0xf]
        %v6585 = vld [vmem:[%s278 + $0x90] sm:$0xf]
        %v6586 = vld [vmem:[%s278 + $0xa8] sm:$0xf]
        %v6587 = vld [vmem:[%s278 + $0xac] sm:$0xf]
        %v6588 = vld [vmem:[%s278 + $0xc4] sm:$0xf]
        %v6589 = vld [vmem:[%s278 + $0xc8] sm:$0xf]
        %s6590 = scalar_lea.vmem %s1, 1408
        %v6591 = vld [vmem:[%s6590] sm:$0xf]
        %v6592 = vld [vmem:[%s6590 + $0x4] sm:$0xf]
        %v6593 = vld [vmem:[%s6590 + $0x8] sm:$0xf]
        %v6594 = vld [vmem:[%s6590 + $0xc] sm:$0xf]
        %v6595 = vld [vmem:[%s6590 + $0x10] sm:$0xf]
        %v6596 = vld [vmem:[%s6590 + $0x14] sm:$0xf]
        %v6597 = vld [vmem:[%s6590 + $0x18] sm:$0xf]
        %v6598 = vld [vmem:[%s6590 + $0x1c] sm:$0xf]
        %v6599 = vld [vmem:[%s6590 + $0x20] sm:$0xf]
        %v6600 = vld [vmem:[%s6590 + $0x24] sm:$0xf]
        %v6601 = vld [vmem:[%s6590 + $0x28] sm:$0xf]
        %v6602 = vld [vmem:[%s6590 + $0x2c] sm:$0xf]
        %v6603 = vld [vmem:[%s6590 + $0x30] sm:$0xf]
        %v6604 = vld [vmem:[%s6590 + $0x34] sm:$0xf]
        %v6605 = vld [vmem:[%s6590 + $0x38] sm:$0xf]
        %v6606 = vld [vmem:[%s6590 + $0x3c] sm:$0xf]
        %v6623 = vunpack.c.l.b16 %v6574
        %v6624 = vunpack.c.l.b16 %v6575
        %v6625 = vunpack.c.l.b16 %v6576
        %v6626 = vunpack.c.l.b16 %v6577
        %v6627 = vunpack.c.l.b16 %v6578
        %v6628 = vunpack.c.l.b16 %v6579
        %v6629 = vunpack.c.l.b16 %v6580
        %v6630 = vunpack.c.l.b16 %v6581
        %v6631 = vunpack.c.l.b16 %v6582
        %v6632 = vunpack.c.l.b16 %v6583
        %v6633 = vunpack.c.l.b16 %v6584
        %v6634 = vunpack.c.l.b16 %v6585
        %v6635 = vunpack.c.l.b16 %v6586
        %v6636 = vunpack.c.l.b16 %v6587
        %v6637 = vunpack.c.l.b16 %v6588
        %v6638 = vunpack.c.l.b16 %v6589
        %v6639 = vpack.c.b16 %v6624, %v6623
        %v6640 = vpack.c.b16 %v6626, %v6625
        %v6641 = vpack.c.b16 %v6628, %v6627
        %v6642 = vpack.c.b16 %v6630, %v6629
        %v6643 = vpack.c.b16 %v6632, %v6631
        %v6644 = vpack.c.b16 %v6634, %v6633
        %v6645 = vpack.c.b16 %v6636, %v6635
        %v6646 = vpack.c.b16 %v6638, %v6637
        %v6671 = vunpack.c.l.b16 %v6591
        %v6672 = vunpack.c.l.b16 %v6592
        %v6673 = vunpack.c.l.b16 %v6593
        %v6674 = vunpack.c.l.b16 %v6594
        %v6675 = vunpack.c.l.b16 %v6595
        %v6676 = vunpack.c.l.b16 %v6596
        %v6677 = vunpack.c.l.b16 %v6597
        %v6678 = vunpack.c.l.b16 %v6598
        %v6679 = vunpack.c.l.b16 %v6599
        %v6680 = vunpack.c.l.b16 %v6600
        %v6681 = vunpack.c.l.b16 %v6601
        %v6682 = vunpack.c.l.b16 %v6602
        %v6683 = vunpack.c.l.b16 %v6603
        %v6684 = vunpack.c.l.b16 %v6604
        %v6685 = vunpack.c.l.b16 %v6605
        %v6686 = vunpack.c.l.b16 %v6606
        %v6687 = vpack.c.b16 %v6672, %v6671
        %v6688 = vpack.c.b16 %v6674, %v6673
        %v6689 = vpack.c.b16 %v6676, %v6675
        %v6690 = vpack.c.b16 %v6678, %v6677
        %v6691 = vpack.c.b16 %v6680, %v6679
        %v6692 = vpack.c.b16 %v6682, %v6681
        %v6693 = vpack.c.b16 %v6684, %v6683
        %v6694 = vpack.c.b16 %v6686, %v6685
        %6703 = vmatprep.subr.bf16.mxu0 0
        %6704 = vmatpush1.bf16.msra.mxu0 %v6687
        %6705 = vmatprep.subr.bf16.mxu0 0
        %6706 = vmatpush1.bf16.msra.mxu0 %v6688
        %6707 = vmatprep.subr.bf16.mxu0 0
        %6708 = vmatpush1.bf16.msra.mxu0 %v6689
        %6709 = vmatprep.subr.bf16.mxu0 0
        %6710 = vmatpush1.bf16.msra.mxu0 %v6690
        %6711 = vmatprep.subr.bf16.mxu0 0
        %6712 = vmatpush1.bf16.msra.mxu0 %v6691
        %6713 = vmatprep.subr.bf16.mxu0 0
        %6714 = vmatpush1.bf16.msra.mxu0 %v6692
        %6715 = vmatprep.subr.bf16.mxu0 0
        %6716 = vmatpush1.bf16.msra.mxu0 %v6693
        %6717 = vmatprep.subr.bf16.mxu0 0
        %6718 = vmatpush1.bf16.msra.mxu0 %v6694
        %6719 = vmatprep.subr.bf16.mxu0 0
        %6720 = vmatpush1.bf16.msra.mxu0 0
        %6721 = vmatprep.subr.bf16.mxu0 0
        %6722 = vmatpush1.bf16.msra.mxu0 0
        %6723 = vmatprep.subr.bf16.mxu0 0
        %6724 = vmatpush1.bf16.msra.mxu0 0
        %6725 = vmatprep.subr.bf16.mxu0 0
        %6726 = vmatpush1.bf16.msra.mxu0 0
        %6727 = vmatprep.subr.bf16.mxu0 0
        %6728 = vmatpush1.bf16.msra.mxu0 0
        %6729 = vmatprep.subr.bf16.mxu0 0
        %6730 = vmatpush1.bf16.msra.mxu0 0
        %6731 = vmatprep.subr.bf16.mxu0 0
        %6732 = vmatpush1.bf16.msra.mxu0 0
        %6733 = vmatprep.subr.bf16.mxu0 0
        %6734 = vmatpush1.bf16.msra.mxu0 0
        %6735 = vmatprep.mubr.bf16.mxu0 0
        %6736 = vmatmul.mubr.bf16.gmra.mrb[0].mxu0 %v6639
        %v6737 = vpop.f32.mrb[0].mxu0
        %v6738 = vadd.f32 0.0, %v6737
        %v6739 = vpop.f32.mrb[0].mxu0
        %v6740 = vpop.f32.mrb[0].mxu0
        %v6741 = vadd.f32 0.0, %v6740
        %v6742 = vpop.f32.mrb[0].mxu0
        %6743 = vmatprep.mubr.bf16.mxu0 0
        %6744 = vmatmul.mubr.bf16.gmra.mrb[0].mxu0 %v6640
        %v6745 = vpop.f32.mrb[0].mxu0
        %v6746 = vadd.f32 0.0, %v6745
        %v6747 = vpop.f32.mrb[0].mxu0
        %v6748 = vpop.f32.mrb[0].mxu0
        %v6749 = vadd.f32 0.0, %v6748
        %v6750 = vpop.f32.mrb[0].mxu0
        %6751 = vmatprep.mubr.bf16.mxu0 0
        %6752 = vmatmul.mubr.bf16.gmra.mrb[0].mxu0 %v6641
        %v6753 = vpop.f32.mrb[0].mxu0
        %v6754 = vadd.f32 0.0, %v6753
        %v6755 = vpop.f32.mrb[0].mxu0
        %v6756 = vpop.f32.mrb[0].mxu0
        %v6757 = vadd.f32 0.0, %v6756
        %v6758 = vpop.f32.mrb[0].mxu0
        %6759 = vmatprep.mubr.bf16.mxu0 0
        %6760 = vmatmul.mubr.bf16.gmra.mrb[0].mxu0 %v6642
        %v6761 = vpop.f32.mrb[0].mxu0
        %v6762 = vadd.f32 0.0, %v6761
        %v6763 = vpop.f32.mrb[0].mxu0
        %v6764 = vpop.f32.mrb[0].mxu0
        %v6765 = vadd.f32 0.0, %v6764
        %v6766 = vpop.f32.mrb[0].mxu0
        %6767 = vmatprep.mubr.bf16.mxu0 0
        %6768 = vmatmul.mubr.bf16.gmra.mrb[0].mxu0 %v6643
        %v6769 = vpop.f32.mrb[0].mxu0
        %v6770 = vadd.f32 0.0, %v6769
        %v6771 = vpop.f32.mrb[0].mxu0
        %v6772 = vpop.f32.mrb[0].mxu0
        %v6773 = vadd.f32 0.0, %v6772
        %v6774 = vpop.f32.mrb[0].mxu0
        %6775 = vmatprep.mubr.bf16.mxu0 0
        %6776 = vmatmul.mubr.bf16.gmra.mrb[0].mxu0 %v6644
        %v6777 = vpop.f32.mrb[0].mxu0
        %v6778 = vadd.f32 0.0, %v6777
        %v6779 = vpop.f32.mrb[0].mxu0
        %v6780 = vpop.f32.mrb[0].mxu0
        %v6781 = vadd.f32 0.0, %v6780
        %v6782 = vpop.f32.mrb[0].mxu0
        %6783 = vmatprep.mubr.bf16.mxu0 0
        %6784 = vmatmul.mubr.bf16.gmra.mrb[0].mxu0 %v6645
        %v6785 = vpop.f32.mrb[0].mxu0
        %v6786 = vadd.f32 0.0, %v6785
        %v6787 = vpop.f32.mrb[0].mxu0
        %v6788 = vpop.f32.mrb[0].mxu0
        %v6789 = vadd.f32 0.0, %v6788
        %v6790 = vpop.f32.mrb[0].mxu0
        %6791 = vmatprep.mubr.bf16.mxu0 0
        %6792 = vmatmul.mubr.bf16.gmra.mrb[0].mxu0 %v6646
        %v6793 = vpop.f32.mrb[0].mxu0
        %v6794 = vadd.f32 0.0, %v6793
        %v6795 = vpop.f32.mrb[0].mxu0
        %v6796 = vpop.f32.mrb[0].mxu0
        %v6797 = vadd.f32 0.0, %v6796
        %v6798 = vpop.f32.mrb[0].mxu0
        %6799 = vdwg.mxu0
        %v6800 = vadd.f32 %v6558, %v6738
        %v6801 = vadd.f32 %v6559, %v6741
        %v6802 = vadd.f32 %v6560, %v6746
        %v6803 = vadd.f32 %v6561, %v6749
        %v6804 = vadd.f32 %v6562, %v6754
        %v6805 = vadd.f32 %v6563, %v6757
        %v6806 = vadd.f32 %v6564, %v6762
        %v6807 = vadd.f32 %v6565, %v6765
        %v6808 = vadd.f32 %v6566, %v6770
        %v6809 = vadd.f32 %v6567, %v6773
        %v6810 = vadd.f32 %v6568, %v6778
        %v6811 = vadd.f32 %v6569, %v6781
        %v6812 = vadd.f32 %v6570, %v6786
        %v6813 = vadd.f32 %v6571, %v6789
        %v6814 = vadd.f32 %v6572, %v6794
        %v6815 = vadd.f32 %v6573, %v6797
        %s6816 = scalar_lea.vmem %s1, 1472
        %v6817 = vld [vmem:[%s6816] sm:$0xf]
        %v6818 = vld [vmem:[%s6816 + $0x4] sm:$0xf]
        %v6819 = vld [vmem:[%s6816 + $0x8] sm:$0xf]
        %v6820 = vld [vmem:[%s6816 + $0xc] sm:$0xf]
        %v6821 = vld [vmem:[%s6816 + $0x10] sm:$0xf]
        %v6822 = vld [vmem:[%s6816 + $0x14] sm:$0xf]
        %v6823 = vld [vmem:[%s6816 + $0x18] sm:$0xf]
        %v6824 = vld [vmem:[%s6816 + $0x1c] sm:$0xf]
        %v6825 = vld [vmem:[%s6816 + $0x20] sm:$0xf]
        %v6826 = vld [vmem:[%s6816 + $0x24] sm:$0xf]
        %v6827 = vld [vmem:[%s6816 + $0x28] sm:$0xf]
        %v6828 = vld [vmem:[%s6816 + $0x2c] sm:$0xf]
        %v6829 = vld [vmem:[%s6816 + $0x30] sm:$0xf]
        %v6830 = vld [vmem:[%s6816 + $0x34] sm:$0xf]
        %v6831 = vld [vmem:[%s6816 + $0x38] sm:$0xf]
        %v6832 = vld [vmem:[%s6816 + $0x3c] sm:$0xf]
        %v6849 = vunpack.c.l.b16 %v6817
        %v6850 = vunpack.c.l.b16 %v6818
        %v6851 = vunpack.c.l.b16 %v6819
        %v6852 = vunpack.c.l.b16 %v6820
        %v6853 = vunpack.c.l.b16 %v6821
        %v6854 = vunpack.c.l.b16 %v6822
        %v6855 = vunpack.c.l.b16 %v6823
        %v6856 = vunpack.c.l.b16 %v6824
        %v6857 = vunpack.c.l.b16 %v6825
        %v6858 = vunpack.c.l.b16 %v6826
        %v6859 = vunpack.c.l.b16 %v6827
        %v6860 = vunpack.c.l.b16 %v6828
        %v6861 = vunpack.c.l.b16 %v6829
        %v6862 = vunpack.c.l.b16 %v6830
        %v6863 = vunpack.c.l.b16 %v6831
        %v6864 = vunpack.c.l.b16 %v6832
        %v6865 = vpack.c.b16 %v6850, %v6849
        %v6866 = vpack.c.b16 %v6852, %v6851
        %v6867 = vpack.c.b16 %v6854, %v6853
        %v6868 = vpack.c.b16 %v6856, %v6855
        %v6869 = vpack.c.b16 %v6858, %v6857
        %v6870 = vpack.c.b16 %v6860, %v6859
        %v6871 = vpack.c.b16 %v6862, %v6861
        %v6872 = vpack.c.b16 %v6864, %v6863
        %6881 = vmatprep.subr.bf16.mxu0 0
        %6882 = vmatpush1.bf16.msra.mxu0 %v6865
        %6883 = vmatprep.subr.bf16.mxu0 0
        %6884 = vmatpush1.bf16.msra.mxu0 %v6866
        %6885 = vmatprep.subr.bf16.mxu0 0
        %6886 = vmatpush1.bf16.msra.mxu0 %v6867
        %6887 = vmatprep.subr.bf16.mxu0 0
        %6888 = vmatpush1.bf16.msra.mxu0 %v6868
        %6889 = vmatprep.subr.bf16.mxu0 0
        %6890 = vmatpush1.bf16.msra.mxu0 %v6869
        %6891 = vmatprep.subr.bf16.mxu0 0
        %6892 = vmatpush1.bf16.msra.mxu0 %v6870
        %6893 = vmatprep.subr.bf16.mxu0 0
        %6894 = vmatpush1.bf16.msra.mxu0 %v6871
        %6895 = vmatprep.subr.bf16.mxu0 0
        %6896 = vmatpush1.bf16.msra.mxu0 %v6872
        %6897 = vmatprep.subr.bf16.mxu0 0
        %6898 = vmatpush1.bf16.msra.mxu0 0
        %6899 = vmatprep.subr.bf16.mxu0 0
        %6900 = vmatpush1.bf16.msra.mxu0 0
        %6901 = vmatprep.subr.bf16.mxu0 0
        %6902 = vmatpush1.bf16.msra.mxu0 0
        %6903 = vmatprep.subr.bf16.mxu0 0
        %6904 = vmatpush1.bf16.msra.mxu0 0
        %6905 = vmatprep.subr.bf16.mxu0 0
        %6906 = vmatpush1.bf16.msra.mxu0 0
        %6907 = vmatprep.subr.bf16.mxu0 0
        %6908 = vmatpush1.bf16.msra.mxu0 0
        %6909 = vmatprep.subr.bf16.mxu0 0
        %6910 = vmatpush1.bf16.msra.mxu0 0
        %6911 = vmatprep.subr.bf16.mxu0 0
        %6912 = vmatpush1.bf16.msra.mxu0 0
        %6913 = vmatprep.mubr.bf16.mxu0 0
        %6914 = vmatmul.mubr.bf16.gmra.mrb[0].mxu0 %v723
        %v6915 = vpop.f32.mrb[0].mxu0
        %v6916 = vadd.f32 0.0, %v6915
        %v6917 = vpop.f32.mrb[0].mxu0
        %v6918 = vpop.f32.mrb[0].mxu0
        %v6919 = vadd.f32 0.0, %v6918
        %v6920 = vpop.f32.mrb[0].mxu0
        %6921 = vmatprep.mubr.bf16.mxu0 0
        %6922 = vmatmul.mubr.bf16.gmra.mrb[0].mxu0 %v724
        %v6923 = vpop.f32.mrb[0].mxu0
        %v6924 = vadd.f32 0.0, %v6923
        %v6925 = vpop.f32.mrb[0].mxu0
        %v6926 = vpop.f32.mrb[0].mxu0
        %v6927 = vadd.f32 0.0, %v6926
        %v6928 = vpop.f32.mrb[0].mxu0
        %6929 = vmatprep.mubr.bf16.mxu0 0
        %6930 = vmatmul.mubr.bf16.gmra.mrb[0].mxu0 %v725
        %v6931 = vpop.f32.mrb[0].mxu0
        %v6932 = vadd.f32 0.0, %v6931
        %v6933 = vpop.f32.mrb[0].mxu0
        %v6934 = vpop.f32.mrb[0].mxu0
        %v6935 = vadd.f32 0.0, %v6934
        %v6936 = vpop.f32.mrb[0].mxu0
        %6937 = vmatprep.mubr.bf16.mxu0 0
        %6938 = vmatmul.mubr.bf16.gmra.mrb[0].mxu0 %v726
        %v6939 = vpop.f32.mrb[0].mxu0
        %v6940 = vadd.f32 0.0, %v6939
        %v6941 = vpop.f32.mrb[0].mxu0
        %v6942 = vpop.f32.mrb[0].mxu0
        %v6943 = vadd.f32 0.0, %v6942
        %v6944 = vpop.f32.mrb[0].mxu0
        %6945 = vmatprep.mubr.bf16.mxu0 0
        %6946 = vmatmul.mubr.bf16.gmra.mrb[0].mxu0 %v727
        %v6947 = vpop.f32.mrb[0].mxu0
        %v6948 = vadd.f32 0.0, %v6947
        %v6949 = vpop.f32.mrb[0].mxu0
        %v6950 = vpop.f32.mrb[0].mxu0
        %v6951 = vadd.f32 0.0, %v6950
        %v6952 = vpop.f32.mrb[0].mxu0
        %6953 = vmatprep.mubr.bf16.mxu0 0
        %6954 = vmatmul.mubr.bf16.gmra.mrb[0].mxu0 %v728
        %v6955 = vpop.f32.mrb[0].mxu0
        %v6956 = vadd.f32 0.0, %v6955
        %v6957 = vpop.f32.mrb[0].mxu0
        %v6958 = vpop.f32.mrb[0].mxu0
        %v6959 = vadd.f32 0.0, %v6958
        %v6960 = vpop.f32.mrb[0].mxu0
        %6961 = vmatprep.mubr.bf16.mxu0 0
        %6962 = vmatmul.mubr.bf16.gmra.mrb[0].mxu0 %v729
        %v6963 = vpop.f32.mrb[0].mxu0
        %v6964 = vadd.f32 0.0, %v6963
        %v6965 = vpop.f32.mrb[0].mxu0
        %v6966 = vpop.f32.mrb[0].mxu0
        %v6967 = vadd.f32 0.0, %v6966
        %v6968 = vpop.f32.mrb[0].mxu0
        %6969 = vmatprep.mubr.bf16.mxu0 0
        %6970 = vmatmul.mubr.bf16.gmra.mrb[0].mxu0 %v730
        %v6971 = vpop.f32.mrb[0].mxu0
        %v6972 = vadd.f32 0.0, %v6971
        %v6973 = vpop.f32.mrb[0].mxu0
        %v6974 = vpop.f32.mrb[0].mxu0
        %v6975 = vadd.f32 0.0, %v6974
        %v6976 = vpop.f32.mrb[0].mxu0
        %6977 = vdwg.mxu0
        %v6978 = vadd.f32 %v6800, %v6916
        %v6979 = vadd.f32 %v6801, %v6919
        %v6980 = vadd.f32 %v6802, %v6924
        %v6981 = vadd.f32 %v6803, %v6927
        %v6982 = vadd.f32 %v6804, %v6932
        %v6983 = vadd.f32 %v6805, %v6935
        %v6984 = vadd.f32 %v6806, %v6940
        %v6985 = vadd.f32 %v6807, %v6943
        %v6986 = vadd.f32 %v6808, %v6948
        %v6987 = vadd.f32 %v6809, %v6951
        %v6988 = vadd.f32 %v6810, %v6956
        %v6989 = vadd.f32 %v6811, %v6959
        %v6990 = vadd.f32 %v6812, %v6964
        %v6991 = vadd.f32 %v6813, %v6967
        %v6992 = vadd.f32 %v6814, %v6972
        %v6993 = vadd.f32 %v6815, %v6975
        %v6994 = vld [vmem:[%s278 + $0x10] sm:$0xc]
        %v6995 = vld [vmem:[%s278 + $0x14] sm:$0xf]
        %v6996 = vld [vmem:[%s278 + $0x18] sm:$0x3]
        %v6997 = vld [vmem:[%s278 + $0x2c] sm:$0xc]
        %v6998 = vld [vmem:[%s278 + $0x30] sm:$0xf]
        %v6999 = vld [vmem:[%s278 + $0x34] sm:$0x3]
        %v7000 = vld [vmem:[%s278 + $0x48] sm:$0xc]
        %v7001 = vld [vmem:[%s278 + $0x4c] sm:$0xf]
        %v7002 = vld [vmem:[%s278 + $0x50] sm:$0x3]
        %v7003 = vld [vmem:[%s278 + $0x64] sm:$0xc]
        %v7004 = vld [vmem:[%s278 + $0x68] sm:$0xf]
        %v7005 = vld [vmem:[%s278 + $0x6c] sm:$0x3]
        %v7006 = vld [vmem:[%s278 + $0x80] sm:$0xc]
        %v7007 = vld [vmem:[%s278 + $0x84] sm:$0xf]
        %v7008 = vld [vmem:[%s278 + $0x88] sm:$0x3]
        %v7009 = vld [vmem:[%s278 + $0x9c] sm:$0xc]
        %v7010 = vld [vmem:[%s278 + $0xa0] sm:$0xf]
        %v7011 = vld [vmem:[%s278 + $0xa4] sm:$0x3]
        %v7012 = vld [vmem:[%s278 + $0xb8] sm:$0xc]
        %v7013 = vld [vmem:[%s278 + $0xbc] sm:$0xf]
        %v7014 = vld [vmem:[%s278 + $0xc0] sm:$0x3]
        %v7015 = vld [vmem:[%s278 + $0xd4] sm:$0xc]
        %v7016 = vld [vmem:[%s278 + $0xd8] sm:$0xf]
        %v7017 = vld [vmem:[%s278 + $0xdc] sm:$0x3]
        %v7042 = vrot.slane %v6994, 6
        %v7043 = vrot.slane %v7042, 4
        %v7044 = vrot.slane %v6995, 6
        %v7045 = vsel %vm456, %v7043, %v7044
        %v7046 = vrot.slane %v7044, 4
        %v7047 = vrot.slane %v6996, 6
        %v7048 = vsel %vm456, %v7046, %v7047
        %v7049 = vrot.slane %v6997, 6
        %v7050 = vrot.slane %v7049, 4
        %v7051 = vrot.slane %v6998, 6
        %v7052 = vsel %vm456, %v7050, %v7051
        %v7053 = vrot.slane %v7051, 4
        %v7054 = vrot.slane %v6999, 6
        %v7055 = vsel %vm456, %v7053, %v7054
        %v7056 = vrot.slane %v7000, 6
        %v7057 = vrot.slane %v7056, 4
        %v7058 = vrot.slane %v7001, 6
        %v7059 = vsel %vm456, %v7057, %v7058
        %v7060 = vrot.slane %v7058, 4
        %v7061 = vrot.slane %v7002, 6
        %v7062 = vsel %vm456, %v7060, %v7061
        %v7063 = vrot.slane %v7003, 6
        %v7064 = vrot.slane %v7063, 4
        %v7065 = vrot.slane %v7004, 6
        %v7066 = vsel %vm456, %v7064, %v7065
        %v7067 = vrot.slane %v7065, 4
        %v7068 = vrot.slane %v7005, 6
        %v7069 = vsel %vm456, %v7067, %v7068
        %v7070 = vrot.slane %v7006, 6
        %v7071 = vrot.slane %v7070, 4
        %v7072 = vrot.slane %v7007, 6
        %v7073 = vsel %vm456, %v7071, %v7072
        %v7074 = vrot.slane %v7072, 4
        %v7075 = vrot.slane %v7008, 6
        %v7076 = vsel %vm456, %v7074, %v7075
        %v7077 = vrot.slane %v7009, 6
        %v7078 = vrot.slane %v7077, 4
        %v7079 = vrot.slane %v7010, 6
        %v7080 = vsel %vm456, %v7078, %v7079
        %v7081 = vrot.slane %v7079, 4
        %v7082 = vrot.slane %v7011, 6
        %v7083 = vsel %vm456, %v7081, %v7082
        %v7084 = vrot.slane %v7012, 6
        %v7085 = vrot.slane %v7084, 4
        %v7086 = vrot.slane %v7013, 6
        %v7087 = vsel %vm456, %v7085, %v7086
        %v7088 = vrot.slane %v7086, 4
        %v7089 = vrot.slane %v7014, 6
        %v7090 = vsel %vm456, %v7088, %v7089
        %v7091 = vrot.slane %v7015, 6
        %v7092 = vrot.slane %v7091, 4
        %v7093 = vrot.slane %v7016, 6
        %v7094 = vsel %vm456, %v7092, %v7093
        %v7095 = vrot.slane %v7093, 4
        %v7096 = vrot.slane %v7017, 6
        %v7097 = vsel %vm456, %v7095, %v7096
        %s7098 = scalar_lea.vmem %s1, 1536
        %v7099 = vld [vmem:[%s7098] sm:$0xf]
        %v7100 = vld [vmem:[%s7098 + $0x4] sm:$0xf]
        %v7101 = vld [vmem:[%s7098 + $0x8] sm:$0xf]
        %v7102 = vld [vmem:[%s7098 + $0xc] sm:$0xf]
        %v7103 = vld [vmem:[%s7098 + $0x10] sm:$0xf]
        %v7104 = vld [vmem:[%s7098 + $0x14] sm:$0xf]
        %v7105 = vld [vmem:[%s7098 + $0x18] sm:$0xf]
        %v7106 = vld [vmem:[%s7098 + $0x1c] sm:$0xf]
        %v7107 = vld [vmem:[%s7098 + $0x20] sm:$0xf]
        %v7108 = vld [vmem:[%s7098 + $0x24] sm:$0xf]
        %v7109 = vld [vmem:[%s7098 + $0x28] sm:$0xf]
        %v7110 = vld [vmem:[%s7098 + $0x2c] sm:$0xf]
        %v7111 = vld [vmem:[%s7098 + $0x30] sm:$0xf]
        %v7112 = vld [vmem:[%s7098 + $0x34] sm:$0xf]
        %v7113 = vld [vmem:[%s7098 + $0x38] sm:$0xf]
        %v7114 = vld [vmem:[%s7098 + $0x3c] sm:$0xf]
        %v7115 = vunpack.c.l.b16 %v7045
        %v7116 = vunpack.c.l.b16 %v7048
        %v7117 = vunpack.c.l.b16 %v7052
        %v7118 = vunpack.c.l.b16 %v7055
        %v7119 = vunpack.c.l.b16 %v7059
        %v7120 = vunpack.c.l.b16 %v7062
        %v7121 = vunpack.c.l.b16 %v7066
        %v7122 = vunpack.c.l.b16 %v7069
        %v7123 = vunpack.c.l.b16 %v7073
        %v7124 = vunpack.c.l.b16 %v7076
        %v7125 = vunpack.c.l.b16 %v7080
        %v7126 = vunpack.c.l.b16 %v7083
        %v7127 = vunpack.c.l.b16 %v7087
        %v7128 = vunpack.c.l.b16 %v7090
        %v7129 = vunpack.c.l.b16 %v7094
        %v7130 = vunpack.c.l.b16 %v7097
        %v7131 = vpack.c.b16 %v7116, %v7115
        %v7132 = vpack.c.b16 %v7118, %v7117
        %v7133 = vpack.c.b16 %v7120, %v7119
        %v7134 = vpack.c.b16 %v7122, %v7121
        %v7135 = vpack.c.b16 %v7124, %v7123
        %v7136 = vpack.c.b16 %v7126, %v7125
        %v7137 = vpack.c.b16 %v7128, %v7127
        %v7138 = vpack.c.b16 %v7130, %v7129
        %v7163 = vunpack.c.l.b16 %v7099
        %v7164 = vunpack.c.l.b16 %v7100
        %v7165 = vunpack.c.l.b16 %v7101
        %v7166 = vunpack.c.l.b16 %v7102
        %v7167 = vunpack.c.l.b16 %v7103
        %v7168 = vunpack.c.l.b16 %v7104
        %v7169 = vunpack.c.l.b16 %v7105
        %v7170 = vunpack.c.l.b16 %v7106
        %v7171 = vunpack.c.l.b16 %v7107
        %v7172 = vunpack.c.l.b16 %v7108
        %v7173 = vunpack.c.l.b16 %v7109
        %v7174 = vunpack.c.l.b16 %v7110
        %v7175 = vunpack.c.l.b16 %v7111
        %v7176 = vunpack.c.l.b16 %v7112
        %v7177 = vunpack.c.l.b16 %v7113
        %v7178 = vunpack.c.l.b16 %v7114
        %v7179 = vpack.c.b16 %v7164, %v7163
        %v7180 = vpack.c.b16 %v7166, %v7165
        %v7181 = vpack.c.b16 %v7168, %v7167
        %v7182 = vpack.c.b16 %v7170, %v7169
        %v7183 = vpack.c.b16 %v7172, %v7171
        %v7184 = vpack.c.b16 %v7174, %v7173
        %v7185 = vpack.c.b16 %v7176, %v7175
        %v7186 = vpack.c.b16 %v7178, %v7177
        %7195 = vmatprep.subr.bf16.mxu0 0
        %7196 = vmatpush1.bf16.msra.mxu0 %v7179
        %7197 = vmatprep.subr.bf16.mxu0 0
        %7198 = vmatpush1.bf16.msra.mxu0 %v7180
        %7199 = vmatprep.subr.bf16.mxu0 0
        %7200 = vmatpush1.bf16.msra.mxu0 %v7181
        %7201 = vmatprep.subr.bf16.mxu0 0
        %7202 = vmatpush1.bf16.msra.mxu0 %v7182
        %7203 = vmatprep.subr.bf16.mxu0 0
        %7204 = vmatpush1.bf16.msra.mxu0 %v7183
        %7205 = vmatprep.subr.bf16.mxu0 0
        %7206 = vmatpush1.bf16.msra.mxu0 %v7184
        %7207 = vmatprep.subr.bf16.mxu0 0
        %7208 = vmatpush1.bf16.msra.mxu0 %v7185
        %7209 = vmatprep.subr.bf16.mxu0 0
        %7210 = vmatpush1.bf16.msra.mxu0 %v7186
        %7211 = vmatprep.subr.bf16.mxu0 0
        %7212 = vmatpush1.bf16.msra.mxu0 0
        %7213 = vmatprep.subr.bf16.mxu0 0
        %7214 = vmatpush1.bf16.msra.mxu0 0
        %7215 = vmatprep.subr.bf16.mxu0 0
        %7216 = vmatpush1.bf16.msra.mxu0 0
        %7217 = vmatprep.subr.bf16.mxu0 0
        %7218 = vmatpush1.bf16.msra.mxu0 0
        %7219 = vmatprep.subr.bf16.mxu0 0
        %7220 = vmatpush1.bf16.msra.mxu0 0
        %7221 = vmatprep.subr.bf16.mxu0 0
        %7222 = vmatpush1.bf16.msra.mxu0 0
        %7223 = vmatprep.subr.bf16.mxu0 0
        %7224 = vmatpush1.bf16.msra.mxu0 0
        %7225 = vmatprep.subr.bf16.mxu0 0
        %7226 = vmatpush1.bf16.msra.mxu0 0
        %7227 = vmatprep.mubr.bf16.mxu0 0
        %7228 = vmatmul.mubr.bf16.gmra.mrb[0].mxu0 %v7131
        %v7229 = vpop.f32.mrb[0].mxu0
        %v7230 = vadd.f32 0.0, %v7229
        %v7231 = vpop.f32.mrb[0].mxu0
        %v7232 = vpop.f32.mrb[0].mxu0
        %v7233 = vadd.f32 0.0, %v7232
        %v7234 = vpop.f32.mrb[0].mxu0
        %7235 = vmatprep.mubr.bf16.mxu0 0
        %7236 = vmatmul.mubr.bf16.gmra.mrb[0].mxu0 %v7132
        %v7237 = vpop.f32.mrb[0].mxu0
        %v7238 = vadd.f32 0.0, %v7237
        %v7239 = vpop.f32.mrb[0].mxu0
        %v7240 = vpop.f32.mrb[0].mxu0
        %v7241 = vadd.f32 0.0, %v7240
        %v7242 = vpop.f32.mrb[0].mxu0
        %7243 = vmatprep.mubr.bf16.mxu0 0
        %7244 = vmatmul.mubr.bf16.gmra.mrb[0].mxu0 %v7133
        %v7245 = vpop.f32.mrb[0].mxu0
        %v7246 = vadd.f32 0.0, %v7245
        %v7247 = vpop.f32.mrb[0].mxu0
        %v7248 = vpop.f32.mrb[0].mxu0
        %v7249 = vadd.f32 0.0, %v7248
        %v7250 = vpop.f32.mrb[0].mxu0
        %7251 = vmatprep.mubr.bf16.mxu0 0
        %7252 = vmatmul.mubr.bf16.gmra.mrb[0].mxu0 %v7134
        %v7253 = vpop.f32.mrb[0].mxu0
        %v7254 = vadd.f32 0.0, %v7253
        %v7255 = vpop.f32.mrb[0].mxu0
        %v7256 = vpop.f32.mrb[0].mxu0
        %v7257 = vadd.f32 0.0, %v7256
        %v7258 = vpop.f32.mrb[0].mxu0
        %7259 = vmatprep.mubr.bf16.mxu0 0
        %7260 = vmatmul.mubr.bf16.gmra.mrb[0].mxu0 %v7135
        %v7261 = vpop.f32.mrb[0].mxu0
        %v7262 = vadd.f32 0.0, %v7261
        %v7263 = vpop.f32.mrb[0].mxu0
        %v7264 = vpop.f32.mrb[0].mxu0
        %v7265 = vadd.f32 0.0, %v7264
        %v7266 = vpop.f32.mrb[0].mxu0
        %7267 = vmatprep.mubr.bf16.mxu0 0
        %7268 = vmatmul.mubr.bf16.gmra.mrb[0].mxu0 %v7136
        %v7269 = vpop.f32.mrb[0].mxu0
        %v7270 = vadd.f32 0.0, %v7269
        %v7271 = vpop.f32.mrb[0].mxu0
        %v7272 = vpop.f32.mrb[0].mxu0
        %v7273 = vadd.f32 0.0, %v7272
        %v7274 = vpop.f32.mrb[0].mxu0
        %7275 = vmatprep.mubr.bf16.mxu0 0
        %7276 = vmatmul.mubr.bf16.gmra.mrb[0].mxu0 %v7137
        %v7277 = vpop.f32.mrb[0].mxu0
        %v7278 = vadd.f32 0.0, %v7277
        %v7279 = vpop.f32.mrb[0].mxu0
        %v7280 = vpop.f32.mrb[0].mxu0
        %v7281 = vadd.f32 0.0, %v7280
        %v7282 = vpop.f32.mrb[0].mxu0
        %7283 = vmatprep.mubr.bf16.mxu0 0
        %7284 = vmatmul.mubr.bf16.gmra.mrb[0].mxu0 %v7138
        %v7285 = vpop.f32.mrb[0].mxu0
        %v7286 = vadd.f32 0.0, %v7285
        %v7287 = vpop.f32.mrb[0].mxu0
        %v7288 = vpop.f32.mrb[0].mxu0
        %v7289 = vadd.f32 0.0, %v7288
        %v7290 = vpop.f32.mrb[0].mxu0
        %7291 = vdwg.mxu0
        %v7292 = vadd.f32 %v6978, %v7230
        %v7293 = vadd.f32 %v6979, %v7233
        %v7294 = vadd.f32 %v6980, %v7238
        %v7295 = vadd.f32 %v6981, %v7241
        %v7296 = vadd.f32 %v6982, %v7246
        %v7297 = vadd.f32 %v6983, %v7249
        %v7298 = vadd.f32 %v6984, %v7254
        %v7299 = vadd.f32 %v6985, %v7257
        %v7300 = vadd.f32 %v6986, %v7262
        %v7301 = vadd.f32 %v6987, %v7265
        %v7302 = vadd.f32 %v6988, %v7270
        %v7303 = vadd.f32 %v6989, %v7273
        %v7304 = vadd.f32 %v6990, %v7278
        %v7305 = vadd.f32 %v6991, %v7281
        %v7306 = vadd.f32 %v6992, %v7286
        %v7307 = vadd.f32 %v6993, %v7289
        %s7308 = sadd.s32 %s274, 36
        %s7309 = smul.u32 %s7308, 7
        %s7310 = smul.addr %s7309, 4
        %s7311 = scalar_lea.vmem %s264, %s7310
        %v7312 = vld [vmem:[%s7311] sm:$0xf]
        %v7313 = vld [vmem:[%s7311 + $0x4] sm:$0xf]
        %v7314 = vld [vmem:[%s7311 + $0x1c] sm:$0xf]
        %v7315 = vld [vmem:[%s7311 + $0x20] sm:$0xf]
        %v7316 = vld [vmem:[%s7311 + $0x38] sm:$0xf]
        %v7317 = vld [vmem:[%s7311 + $0x3c] sm:$0xf]
        %v7318 = vld [vmem:[%s7311 + $0x54] sm:$0xf]
        %v7319 = vld [vmem:[%s7311 + $0x58] sm:$0xf]
        %v7320 = vld [vmem:[%s7311 + $0x70] sm:$0xf]
        %v7321 = vld [vmem:[%s7311 + $0x74] sm:$0xf]
        %v7322 = vld [vmem:[%s7311 + $0x8c] sm:$0xf]
        %v7323 = vld [vmem:[%s7311 + $0x90] sm:$0xf]
        %v7324 = vld [vmem:[%s7311 + $0xa8] sm:$0xf]
        %v7325 = vld [vmem:[%s7311 + $0xac] sm:$0xf]
        %v7326 = vld [vmem:[%s7311 + $0xc4] sm:$0xf]
        %v7327 = vld [vmem:[%s7311 + $0xc8] sm:$0xf]
        %s7328 = scalar_lea.vmem %s1, 1600
        %v7329 = vld [vmem:[%s7328] sm:$0xf]
        %v7330 = vld [vmem:[%s7328 + $0x4] sm:$0xf]
        %v7331 = vld [vmem:[%s7328 + $0x8] sm:$0xf]
        %v7332 = vld [vmem:[%s7328 + $0xc] sm:$0xf]
        %v7333 = vld [vmem:[%s7328 + $0x10] sm:$0xf]
        %v7334 = vld [vmem:[%s7328 + $0x14] sm:$0xf]
        %v7335 = vld [vmem:[%s7328 + $0x18] sm:$0xf]
        %v7336 = vld [vmem:[%s7328 + $0x1c] sm:$0xf]
        %v7337 = vld [vmem:[%s7328 + $0x20] sm:$0xf]
        %v7338 = vld [vmem:[%s7328 + $0x24] sm:$0xf]
        %v7339 = vld [vmem:[%s7328 + $0x28] sm:$0xf]
        %v7340 = vld [vmem:[%s7328 + $0x2c] sm:$0xf]
        %v7341 = vld [vmem:[%s7328 + $0x30] sm:$0xf]
        %v7342 = vld [vmem:[%s7328 + $0x34] sm:$0xf]
        %v7343 = vld [vmem:[%s7328 + $0x38] sm:$0xf]
        %v7344 = vld [vmem:[%s7328 + $0x3c] sm:$0xf]
        %v7361 = vunpack.c.l.b16 %v7312
        %v7362 = vunpack.c.l.b16 %v7313
        %v7363 = vunpack.c.l.b16 %v7314
        %v7364 = vunpack.c.l.b16 %v7315
        %v7365 = vunpack.c.l.b16 %v7316
        %v7366 = vunpack.c.l.b16 %v7317
        %v7367 = vunpack.c.l.b16 %v7318
        %v7368 = vunpack.c.l.b16 %v7319
        %v7369 = vunpack.c.l.b16 %v7320
        %v7370 = vunpack.c.l.b16 %v7321
        %v7371 = vunpack.c.l.b16 %v7322
        %v7372 = vunpack.c.l.b16 %v7323
        %v7373 = vunpack.c.l.b16 %v7324
        %v7374 = vunpack.c.l.b16 %v7325
        %v7375 = vunpack.c.l.b16 %v7326
        %v7376 = vunpack.c.l.b16 %v7327
        %v7377 = vpack.c.b16 %v7362, %v7361
        %v7378 = vpack.c.b16 %v7364, %v7363
        %v7379 = vpack.c.b16 %v7366, %v7365
        %v7380 = vpack.c.b16 %v7368, %v7367
        %v7381 = vpack.c.b16 %v7370, %v7369
        %v7382 = vpack.c.b16 %v7372, %v7371
        %v7383 = vpack.c.b16 %v7374, %v7373
        %v7384 = vpack.c.b16 %v7376, %v7375
        %v7409 = vunpack.c.l.b16 %v7329
        %v7410 = vunpack.c.l.b16 %v7330
        %v7411 = vunpack.c.l.b16 %v7331
        %v7412 = vunpack.c.l.b16 %v7332
        %v7413 = vunpack.c.l.b16 %v7333
        %v7414 = vunpack.c.l.b16 %v7334
        %v7415 = vunpack.c.l.b16 %v7335
        %v7416 = vunpack.c.l.b16 %v7336
        %v7417 = vunpack.c.l.b16 %v7337
        %v7418 = vunpack.c.l.b16 %v7338
        %v7419 = vunpack.c.l.b16 %v7339
        %v7420 = vunpack.c.l.b16 %v7340
        %v7421 = vunpack.c.l.b16 %v7341
        %v7422 = vunpack.c.l.b16 %v7342
        %v7423 = vunpack.c.l.b16 %v7343
        %v7424 = vunpack.c.l.b16 %v7344
        %v7425 = vpack.c.b16 %v7410, %v7409
        %v7426 = vpack.c.b16 %v7412, %v7411
        %v7427 = vpack.c.b16 %v7414, %v7413
        %v7428 = vpack.c.b16 %v7416, %v7415
        %v7429 = vpack.c.b16 %v7418, %v7417
        %v7430 = vpack.c.b16 %v7420, %v7419
        %v7431 = vpack.c.b16 %v7422, %v7421
        %v7432 = vpack.c.b16 %v7424, %v7423
        %7441 = vmatprep.subr.bf16.mxu0 0
        %7442 = vmatpush1.bf16.msra.mxu0 %v7425
        %7443 = vmatprep.subr.bf16.mxu0 0
        %7444 = vmatpush1.bf16.msra.mxu0 %v7426
        %7445 = vmatprep.subr.bf16.mxu0 0
        %7446 = vmatpush1.bf16.msra.mxu0 %v7427
        %7447 = vmatprep.subr.bf16.mxu0 0
        %7448 = vmatpush1.bf16.msra.mxu0 %v7428
        %7449 = vmatprep.subr.bf16.mxu0 0
        %7450 = vmatpush1.bf16.msra.mxu0 %v7429
        %7451 = vmatprep.subr.bf16.mxu0 0
        %7452 = vmatpush1.bf16.msra.mxu0 %v7430
        %7453 = vmatprep.subr.bf16.mxu0 0
        %7454 = vmatpush1.bf16.msra.mxu0 %v7431
        %7455 = vmatprep.subr.bf16.mxu0 0
        %7456 = vmatpush1.bf16.msra.mxu0 %v7432
        %7457 = vmatprep.subr.bf16.mxu0 0
        %7458 = vmatpush1.bf16.msra.mxu0 0
        %7459 = vmatprep.subr.bf16.mxu0 0
        %7460 = vmatpush1.bf16.msra.mxu0 0
        %7461 = vmatprep.subr.bf16.mxu0 0
        %7462 = vmatpush1.bf16.msra.mxu0 0
        %7463 = vmatprep.subr.bf16.mxu0 0
        %7464 = vmatpush1.bf16.msra.mxu0 0
        %7465 = vmatprep.subr.bf16.mxu0 0
        %7466 = vmatpush1.bf16.msra.mxu0 0
        %7467 = vmatprep.subr.bf16.mxu0 0
        %7468 = vmatpush1.bf16.msra.mxu0 0
        %7469 = vmatprep.subr.bf16.mxu0 0
        %7470 = vmatpush1.bf16.msra.mxu0 0
        %7471 = vmatprep.subr.bf16.mxu0 0
        %7472 = vmatpush1.bf16.msra.mxu0 0
        %7473 = vmatprep.mubr.bf16.mxu0 0
        %7474 = vmatmul.mubr.bf16.gmra.mrb[0].mxu0 %v7377
        %v7475 = vpop.f32.mrb[0].mxu0
        %v7476 = vadd.f32 0.0, %v7475
        %v7477 = vpop.f32.mrb[0].mxu0
        %v7478 = vpop.f32.mrb[0].mxu0
        %v7479 = vadd.f32 0.0, %v7478
        %v7480 = vpop.f32.mrb[0].mxu0
        %7481 = vmatprep.mubr.bf16.mxu0 0
        %7482 = vmatmul.mubr.bf16.gmra.mrb[0].mxu0 %v7378
        %v7483 = vpop.f32.mrb[0].mxu0
        %v7484 = vadd.f32 0.0, %v7483
        %v7485 = vpop.f32.mrb[0].mxu0
        %v7486 = vpop.f32.mrb[0].mxu0
        %v7487 = vadd.f32 0.0, %v7486
        %v7488 = vpop.f32.mrb[0].mxu0
        %7489 = vmatprep.mubr.bf16.mxu0 0
        %7490 = vmatmul.mubr.bf16.gmra.mrb[0].mxu0 %v7379
        %v7491 = vpop.f32.mrb[0].mxu0
        %v7492 = vadd.f32 0.0, %v7491
        %v7493 = vpop.f32.mrb[0].mxu0
        %v7494 = vpop.f32.mrb[0].mxu0
        %v7495 = vadd.f32 0.0, %v7494
        %v7496 = vpop.f32.mrb[0].mxu0
        %7497 = vmatprep.mubr.bf16.mxu0 0
        %7498 = vmatmul.mubr.bf16.gmra.mrb[0].mxu0 %v7380
        %v7499 = vpop.f32.mrb[0].mxu0
        %v7500 = vadd.f32 0.0, %v7499
        %v7501 = vpop.f32.mrb[0].mxu0
        %v7502 = vpop.f32.mrb[0].mxu0
        %v7503 = vadd.f32 0.0, %v7502
        %v7504 = vpop.f32.mrb[0].mxu0
        %7505 = vmatprep.mubr.bf16.mxu0 0
        %7506 = vmatmul.mubr.bf16.gmra.mrb[0].mxu0 %v7381
        %v7507 = vpop.f32.mrb[0].mxu0
        %v7508 = vadd.f32 0.0, %v7507
        %v7509 = vpop.f32.mrb[0].mxu0
        %v7510 = vpop.f32.mrb[0].mxu0
        %v7511 = vadd.f32 0.0, %v7510
        %v7512 = vpop.f32.mrb[0].mxu0
        %7513 = vmatprep.mubr.bf16.mxu0 0
        %7514 = vmatmul.mubr.bf16.gmra.mrb[0].mxu0 %v7382
        %v7515 = vpop.f32.mrb[0].mxu0
        %v7516 = vadd.f32 0.0, %v7515
        %v7517 = vpop.f32.mrb[0].mxu0
        %v7518 = vpop.f32.mrb[0].mxu0
        %v7519 = vadd.f32 0.0, %v7518
        %v7520 = vpop.f32.mrb[0].mxu0
        %7521 = vmatprep.mubr.bf16.mxu0 0
        %7522 = vmatmul.mubr.bf16.gmra.mrb[0].mxu0 %v7383
        %v7523 = vpop.f32.mrb[0].mxu0
        %v7524 = vadd.f32 0.0, %v7523
        %v7525 = vpop.f32.mrb[0].mxu0
        %v7526 = vpop.f32.mrb[0].mxu0
        %v7527 = vadd.f32 0.0, %v7526
        %v7528 = vpop.f32.mrb[0].mxu0
        %7529 = vmatprep.mubr.bf16.mxu0 0
        %7530 = vmatmul.mubr.bf16.gmra.mrb[0].mxu0 %v7384
        %v7531 = vpop.f32.mrb[0].mxu0
        %v7532 = vadd.f32 0.0, %v7531
        %v7533 = vpop.f32.mrb[0].mxu0
        %v7534 = vpop.f32.mrb[0].mxu0
        %v7535 = vadd.f32 0.0, %v7534
        %v7536 = vpop.f32.mrb[0].mxu0
        %7537 = vdwg.mxu0
        %v7538 = vadd.f32 %v7292, %v7476
        %v7539 = vadd.f32 %v7293, %v7479
        %v7540 = vadd.f32 %v7294, %v7484
        %v7541 = vadd.f32 %v7295, %v7487
        %v7542 = vadd.f32 %v7296, %v7492
        %v7543 = vadd.f32 %v7297, %v7495
        %v7544 = vadd.f32 %v7298, %v7500
        %v7545 = vadd.f32 %v7299, %v7503
        %v7546 = vadd.f32 %v7300, %v7508
        %v7547 = vadd.f32 %v7301, %v7511
        %v7548 = vadd.f32 %v7302, %v7516
        %v7549 = vadd.f32 %v7303, %v7519
        %v7550 = vadd.f32 %v7304, %v7524
        %v7551 = vadd.f32 %v7305, %v7527
        %v7552 = vadd.f32 %v7306, %v7532
        %v7553 = vadd.f32 %v7307, %v7535
        %v7554 = vld [vmem:[%s7311 + $0x8] sm:$0xe]
        %v7555 = vld [vmem:[%s7311 + $0xc] sm:$0xf]
        %v7556 = vld [vmem:[%s7311 + $0x10] sm:$0x1]
        %v7557 = vld [vmem:[%s7311 + $0x24] sm:$0xe]
        %v7558 = vld [vmem:[%s7311 + $0x28] sm:$0xf]
        %v7559 = vld [vmem:[%s7311 + $0x2c] sm:$0x1]
        %v7560 = vld [vmem:[%s7311 + $0x40] sm:$0xe]
        %v7561 = vld [vmem:[%s7311 + $0x44] sm:$0xf]
        %v7562 = vld [vmem:[%s7311 + $0x48] sm:$0x1]
        %v7563 = vld [vmem:[%s7311 + $0x5c] sm:$0xe]
        %v7564 = vld [vmem:[%s7311 + $0x60] sm:$0xf]
        %v7565 = vld [vmem:[%s7311 + $0x64] sm:$0x1]
        %v7566 = vld [vmem:[%s7311 + $0x78] sm:$0xe]
        %v7567 = vld [vmem:[%s7311 + $0x7c] sm:$0xf]
        %v7568 = vld [vmem:[%s7311 + $0x80] sm:$0x1]
        %v7569 = vld [vmem:[%s7311 + $0x94] sm:$0xe]
        %v7570 = vld [vmem:[%s7311 + $0x98] sm:$0xf]
        %v7571 = vld [vmem:[%s7311 + $0x9c] sm:$0x1]
        %v7572 = vld [vmem:[%s7311 + $0xb0] sm:$0xe]
        %v7573 = vld [vmem:[%s7311 + $0xb4] sm:$0xf]
        %v7574 = vld [vmem:[%s7311 + $0xb8] sm:$0x1]
        %v7575 = vld [vmem:[%s7311 + $0xcc] sm:$0xe]
        %v7576 = vld [vmem:[%s7311 + $0xd0] sm:$0xf]
        %v7577 = vld [vmem:[%s7311 + $0xd4] sm:$0x1]
        %v7602 = vrot.slane %v7554, 5
        %v7603 = vrot.slane %v7602, 4
        %v7604 = vrot.slane %v7555, 5
        %v7605 = vsel %vm329, %v7603, %v7604
        %v7606 = vrot.slane %v7604, 4
        %v7607 = vrot.slane %v7556, 5
        %v7608 = vsel %vm329, %v7606, %v7607
        %v7609 = vrot.slane %v7557, 5
        %v7610 = vrot.slane %v7609, 4
        %v7611 = vrot.slane %v7558, 5
        %v7612 = vsel %vm329, %v7610, %v7611
        %v7613 = vrot.slane %v7611, 4
        %v7614 = vrot.slane %v7559, 5
        %v7615 = vsel %vm329, %v7613, %v7614
        %v7616 = vrot.slane %v7560, 5
        %v7617 = vrot.slane %v7616, 4
        %v7618 = vrot.slane %v7561, 5
        %v7619 = vsel %vm329, %v7617, %v7618
        %v7620 = vrot.slane %v7618, 4
        %v7621 = vrot.slane %v7562, 5
        %v7622 = vsel %vm329, %v7620, %v7621
        %v7623 = vrot.slane %v7563, 5
        %v7624 = vrot.slane %v7623, 4
        %v7625 = vrot.slane %v7564, 5
        %v7626 = vsel %vm329, %v7624, %v7625
        %v7627 = vrot.slane %v7625, 4
        %v7628 = vrot.slane %v7565, 5
        %v7629 = vsel %vm329, %v7627, %v7628
        %v7630 = vrot.slane %v7566, 5
        %v7631 = vrot.slane %v7630, 4
        %v7632 = vrot.slane %v7567, 5
        %v7633 = vsel %vm329, %v7631, %v7632
        %v7634 = vrot.slane %v7632, 4
        %v7635 = vrot.slane %v7568, 5
        %v7636 = vsel %vm329, %v7634, %v7635
        %v7637 = vrot.slane %v7569, 5
        %v7638 = vrot.slane %v7637, 4
        %v7639 = vrot.slane %v7570, 5
        %v7640 = vsel %vm329, %v7638, %v7639
        %v7641 = vrot.slane %v7639, 4
        %v7642 = vrot.slane %v7571, 5
        %v7643 = vsel %vm329, %v7641, %v7642
        %v7644 = vrot.slane %v7572, 5
        %v7645 = vrot.slane %v7644, 4
        %v7646 = vrot.slane %v7573, 5
        %v7647 = vsel %vm329, %v7645, %v7646
        %v7648 = vrot.slane %v7646, 4
        %v7649 = vrot.slane %v7574, 5
        %v7650 = vsel %vm329, %v7648, %v7649
        %v7651 = vrot.slane %v7575, 5
        %v7652 = vrot.slane %v7651, 4
        %v7653 = vrot.slane %v7576, 5
        %v7654 = vsel %vm329, %v7652, %v7653
        %v7655 = vrot.slane %v7653, 4
        %v7656 = vrot.slane %v7577, 5
        %v7657 = vsel %vm329, %v7655, %v7656
        %s7658 = scalar_lea.vmem %s1, 1664
        %v7659 = vld [vmem:[%s7658] sm:$0xf]
        %v7660 = vld [vmem:[%s7658 + $0x4] sm:$0xf]
        %v7661 = vld [vmem:[%s7658 + $0x8] sm:$0xf]
        %v7662 = vld [vmem:[%s7658 + $0xc] sm:$0xf]
        %v7663 = vld [vmem:[%s7658 + $0x10] sm:$0xf]
        %v7664 = vld [vmem:[%s7658 + $0x14] sm:$0xf]
        %v7665 = vld [vmem:[%s7658 + $0x18] sm:$0xf]
        %v7666 = vld [vmem:[%s7658 + $0x1c] sm:$0xf]
        %v7667 = vld [vmem:[%s7658 + $0x20] sm:$0xf]
        %v7668 = vld [vmem:[%s7658 + $0x24] sm:$0xf]
        %v7669 = vld [vmem:[%s7658 + $0x28] sm:$0xf]
        %v7670 = vld [vmem:[%s7658 + $0x2c] sm:$0xf]
        %v7671 = vld [vmem:[%s7658 + $0x30] sm:$0xf]
        %v7672 = vld [vmem:[%s7658 + $0x34] sm:$0xf]
        %v7673 = vld [vmem:[%s7658 + $0x38] sm:$0xf]
        %v7674 = vld [vmem:[%s7658 + $0x3c] sm:$0xf]
        %v7675 = vunpack.c.l.b16 %v7605
        %v7676 = vunpack.c.l.b16 %v7608
        %v7677 = vunpack.c.l.b16 %v7612
        %v7678 = vunpack.c.l.b16 %v7615
        %v7679 = vunpack.c.l.b16 %v7619
        %v7680 = vunpack.c.l.b16 %v7622
        %v7681 = vunpack.c.l.b16 %v7626
        %v7682 = vunpack.c.l.b16 %v7629
        %v7683 = vunpack.c.l.b16 %v7633
        %v7684 = vunpack.c.l.b16 %v7636
        %v7685 = vunpack.c.l.b16 %v7640
        %v7686 = vunpack.c.l.b16 %v7643
        %v7687 = vunpack.c.l.b16 %v7647
        %v7688 = vunpack.c.l.b16 %v7650
        %v7689 = vunpack.c.l.b16 %v7654
        %v7690 = vunpack.c.l.b16 %v7657
        %v7691 = vpack.c.b16 %v7676, %v7675
        %v7692 = vpack.c.b16 %v7678, %v7677
        %v7693 = vpack.c.b16 %v7680, %v7679
        %v7694 = vpack.c.b16 %v7682, %v7681
        %v7695 = vpack.c.b16 %v7684, %v7683
        %v7696 = vpack.c.b16 %v7686, %v7685
        %v7697 = vpack.c.b16 %v7688, %v7687
        %v7698 = vpack.c.b16 %v7690, %v7689
        %v7723 = vunpack.c.l.b16 %v7659
        %v7724 = vunpack.c.l.b16 %v7660
        %v7725 = vunpack.c.l.b16 %v7661
        %v7726 = vunpack.c.l.b16 %v7662
        %v7727 = vunpack.c.l.b16 %v7663
        %v7728 = vunpack.c.l.b16 %v7664
        %v7729 = vunpack.c.l.b16 %v7665
        %v7730 = vunpack.c.l.b16 %v7666
        %v7731 = vunpack.c.l.b16 %v7667
        %v7732 = vunpack.c.l.b16 %v7668
        %v7733 = vunpack.c.l.b16 %v7669
        %v7734 = vunpack.c.l.b16 %v7670
        %v7735 = vunpack.c.l.b16 %v7671
        %v7736 = vunpack.c.l.b16 %v7672
        %v7737 = vunpack.c.l.b16 %v7673
        %v7738 = vunpack.c.l.b16 %v7674
        %v7739 = vpack.c.b16 %v7724, %v7723
        %v7740 = vpack.c.b16 %v7726, %v7725
        %v7741 = vpack.c.b16 %v7728, %v7727
        %v7742 = vpack.c.b16 %v7730, %v7729
        %v7743 = vpack.c.b16 %v7732, %v7731
        %v7744 = vpack.c.b16 %v7734, %v7733
        %v7745 = vpack.c.b16 %v7736, %v7735
        %v7746 = vpack.c.b16 %v7738, %v7737
        %7755 = vmatprep.subr.bf16.mxu0 0
        %7756 = vmatpush1.bf16.msra.mxu0 %v7739
        %7757 = vmatprep.subr.bf16.mxu0 0
        %7758 = vmatpush1.bf16.msra.mxu0 %v7740
        %7759 = vmatprep.subr.bf16.mxu0 0
        %7760 = vmatpush1.bf16.msra.mxu0 %v7741
        %7761 = vmatprep.subr.bf16.mxu0 0
        %7762 = vmatpush1.bf16.msra.mxu0 %v7742
        %7763 = vmatprep.subr.bf16.mxu0 0
        %7764 = vmatpush1.bf16.msra.mxu0 %v7743
        %7765 = vmatprep.subr.bf16.mxu0 0
        %7766 = vmatpush1.bf16.msra.mxu0 %v7744
        %7767 = vmatprep.subr.bf16.mxu0 0
        %7768 = vmatpush1.bf16.msra.mxu0 %v7745
        %7769 = vmatprep.subr.bf16.mxu0 0
        %7770 = vmatpush1.bf16.msra.mxu0 %v7746
        %7771 = vmatprep.subr.bf16.mxu0 0
        %7772 = vmatpush1.bf16.msra.mxu0 0
        %7773 = vmatprep.subr.bf16.mxu0 0
        %7774 = vmatpush1.bf16.msra.mxu0 0
        %7775 = vmatprep.subr.bf16.mxu0 0
        %7776 = vmatpush1.bf16.msra.mxu0 0
        %7777 = vmatprep.subr.bf16.mxu0 0
        %7778 = vmatpush1.bf16.msra.mxu0 0
        %7779 = vmatprep.subr.bf16.mxu0 0
        %7780 = vmatpush1.bf16.msra.mxu0 0
        %7781 = vmatprep.subr.bf16.mxu0 0
        %7782 = vmatpush1.bf16.msra.mxu0 0
        %7783 = vmatprep.subr.bf16.mxu0 0
        %7784 = vmatpush1.bf16.msra.mxu0 0
        %7785 = vmatprep.subr.bf16.mxu0 0
        %7786 = vmatpush1.bf16.msra.mxu0 0
        %7787 = vmatprep.mubr.bf16.mxu0 0
        %7788 = vmatmul.mubr.bf16.gmra.mrb[0].mxu0 %v7691
        %v7789 = vpop.f32.mrb[0].mxu0
        %v7790 = vadd.f32 0.0, %v7789
        %v7791 = vpop.f32.mrb[0].mxu0
        %v7792 = vpop.f32.mrb[0].mxu0
        %v7793 = vadd.f32 0.0, %v7792
        %v7794 = vpop.f32.mrb[0].mxu0
        %7795 = vmatprep.mubr.bf16.mxu0 0
        %7796 = vmatmul.mubr.bf16.gmra.mrb[0].mxu0 %v7692
        %v7797 = vpop.f32.mrb[0].mxu0
        %v7798 = vadd.f32 0.0, %v7797
        %v7799 = vpop.f32.mrb[0].mxu0
        %v7800 = vpop.f32.mrb[0].mxu0
        %v7801 = vadd.f32 0.0, %v7800
        %v7802 = vpop.f32.mrb[0].mxu0
        %7803 = vmatprep.mubr.bf16.mxu0 0
        %7804 = vmatmul.mubr.bf16.gmra.mrb[0].mxu0 %v7693
        %v7805 = vpop.f32.mrb[0].mxu0
        %v7806 = vadd.f32 0.0, %v7805
        %v7807 = vpop.f32.mrb[0].mxu0
        %v7808 = vpop.f32.mrb[0].mxu0
        %v7809 = vadd.f32 0.0, %v7808
        %v7810 = vpop.f32.mrb[0].mxu0
        %7811 = vmatprep.mubr.bf16.mxu0 0
        %7812 = vmatmul.mubr.bf16.gmra.mrb[0].mxu0 %v7694
        %v7813 = vpop.f32.mrb[0].mxu0
        %v7814 = vadd.f32 0.0, %v7813
        %v7815 = vpop.f32.mrb[0].mxu0
        %v7816 = vpop.f32.mrb[0].mxu0
        %v7817 = vadd.f32 0.0, %v7816
        %v7818 = vpop.f32.mrb[0].mxu0
        %7819 = vmatprep.mubr.bf16.mxu0 0
        %7820 = vmatmul.mubr.bf16.gmra.mrb[0].mxu0 %v7695
        %v7821 = vpop.f32.mrb[0].mxu0
        %v7822 = vadd.f32 0.0, %v7821
        %v7823 = vpop.f32.mrb[0].mxu0
        %v7824 = vpop.f32.mrb[0].mxu0
        %v7825 = vadd.f32 0.0, %v7824
        %v7826 = vpop.f32.mrb[0].mxu0
        %7827 = vmatprep.mubr.bf16.mxu0 0
        %7828 = vmatmul.mubr.bf16.gmra.mrb[0].mxu0 %v7696
        %v7829 = vpop.f32.mrb[0].mxu0
        %v7830 = vadd.f32 0.0, %v7829
        %v7831 = vpop.f32.mrb[0].mxu0
        %v7832 = vpop.f32.mrb[0].mxu0
        %v7833 = vadd.f32 0.0, %v7832
        %v7834 = vpop.f32.mrb[0].mxu0
        %7835 = vmatprep.mubr.bf16.mxu0 0
        %7836 = vmatmul.mubr.bf16.gmra.mrb[0].mxu0 %v7697
        %v7837 = vpop.f32.mrb[0].mxu0
        %v7838 = vadd.f32 0.0, %v7837
        %v7839 = vpop.f32.mrb[0].mxu0
        %v7840 = vpop.f32.mrb[0].mxu0
        %v7841 = vadd.f32 0.0, %v7840
        %v7842 = vpop.f32.mrb[0].mxu0
        %7843 = vmatprep.mubr.bf16.mxu0 0
        %7844 = vmatmul.mubr.bf16.gmra.mrb[0].mxu0 %v7698
        %v7845 = vpop.f32.mrb[0].mxu0
        %v7846 = vadd.f32 0.0, %v7845
        %v7847 = vpop.f32.mrb[0].mxu0
        %v7848 = vpop.f32.mrb[0].mxu0
        %v7849 = vadd.f32 0.0, %v7848
        %v7850 = vpop.f32.mrb[0].mxu0
        %7851 = vdwg.mxu0
        %v7852 = vadd.f32 %v7538, %v7790
        %v7853 = vadd.f32 %v7539, %v7793
        %v7854 = vadd.f32 %v7540, %v7798
        %v7855 = vadd.f32 %v7541, %v7801
        %v7856 = vadd.f32 %v7542, %v7806
        %v7857 = vadd.f32 %v7543, %v7809
        %v7858 = vadd.f32 %v7544, %v7814
        %v7859 = vadd.f32 %v7545, %v7817
        %v7860 = vadd.f32 %v7546, %v7822
        %v7861 = vadd.f32 %v7547, %v7825
        %v7862 = vadd.f32 %v7548, %v7830
        %v7863 = vadd.f32 %v7549, %v7833
        %v7864 = vadd.f32 %v7550, %v7838
        %v7865 = vadd.f32 %v7551, %v7841
        %v7866 = vadd.f32 %v7552, %v7846
        %v7867 = vadd.f32 %v7553, %v7849
        %v7868 = vld [vmem:[%s7311 + $0x10] sm:$0xc]
        %v7869 = vld [vmem:[%s7311 + $0x14] sm:$0xf]
        %v7870 = vld [vmem:[%s7311 + $0x18] sm:$0x3]
        %v7871 = vld [vmem:[%s7311 + $0x2c] sm:$0xc]
        %v7872 = vld [vmem:[%s7311 + $0x30] sm:$0xf]
        %v7873 = vld [vmem:[%s7311 + $0x34] sm:$0x3]
        %v7874 = vld [vmem:[%s7311 + $0x48] sm:$0xc]
        %v7875 = vld [vmem:[%s7311 + $0x4c] sm:$0xf]
        %v7876 = vld [vmem:[%s7311 + $0x50] sm:$0x3]
        %v7877 = vld [vmem:[%s7311 + $0x64] sm:$0xc]
        %v7878 = vld [vmem:[%s7311 + $0x68] sm:$0xf]
        %v7879 = vld [vmem:[%s7311 + $0x6c] sm:$0x3]
        %v7880 = vld [vmem:[%s7311 + $0x80] sm:$0xc]
        %v7881 = vld [vmem:[%s7311 + $0x84] sm:$0xf]
        %v7882 = vld [vmem:[%s7311 + $0x88] sm:$0x3]
        %v7883 = vld [vmem:[%s7311 + $0x9c] sm:$0xc]
        %v7884 = vld [vmem:[%s7311 + $0xa0] sm:$0xf]
        %v7885 = vld [vmem:[%s7311 + $0xa4] sm:$0x3]
        %v7886 = vld [vmem:[%s7311 + $0xb8] sm:$0xc]
        %v7887 = vld [vmem:[%s7311 + $0xbc] sm:$0xf]
        %v7888 = vld [vmem:[%s7311 + $0xc0] sm:$0x3]
        %v7889 = vld [vmem:[%s7311 + $0xd4] sm:$0xc]
        %v7890 = vld [vmem:[%s7311 + $0xd8] sm:$0xf]
        %v7891 = vld [vmem:[%s7311 + $0xdc] sm:$0x3]
        %v7916 = vrot.slane %v7868, 6
        %v7917 = vrot.slane %v7916, 4
        %v7918 = vrot.slane %v7869, 6
        %v7919 = vsel %vm456, %v7917, %v7918
        %v7920 = vrot.slane %v7918, 4
        %v7921 = vrot.slane %v7870, 6
        %v7922 = vsel %vm456, %v7920, %v7921
        %v7923 = vrot.slane %v7871, 6
        %v7924 = vrot.slane %v7923, 4
        %v7925 = vrot.slane %v7872, 6
        %v7926 = vsel %vm456, %v7924, %v7925
        %v7927 = vrot.slane %v7925, 4
        %v7928 = vrot.slane %v7873, 6
        %v7929 = vsel %vm456, %v7927, %v7928
        %v7930 = vrot.slane %v7874, 6
        %v7931 = vrot.slane %v7930, 4
        %v7932 = vrot.slane %v7875, 6
        %v7933 = vsel %vm456, %v7931, %v7932
        %v7934 = vrot.slane %v7932, 4
        %v7935 = vrot.slane %v7876, 6
        %v7936 = vsel %vm456, %v7934, %v7935
        %v7937 = vrot.slane %v7877, 6
        %v7938 = vrot.slane %v7937, 4
        %v7939 = vrot.slane %v7878, 6
        %v7940 = vsel %vm456, %v7938, %v7939
        %v7941 = vrot.slane %v7939, 4
        %v7942 = vrot.slane %v7879, 6
        %v7943 = vsel %vm456, %v7941, %v7942
        %v7944 = vrot.slane %v7880, 6
        %v7945 = vrot.slane %v7944, 4
        %v7946 = vrot.slane %v7881, 6
        %v7947 = vsel %vm456, %v7945, %v7946
        %v7948 = vrot.slane %v7946, 4
        %v7949 = vrot.slane %v7882, 6
        %v7950 = vsel %vm456, %v7948, %v7949
        %v7951 = vrot.slane %v7883, 6
        %v7952 = vrot.slane %v7951, 4
        %v7953 = vrot.slane %v7884, 6
        %v7954 = vsel %vm456, %v7952, %v7953
        %v7955 = vrot.slane %v7953, 4
        %v7956 = vrot.slane %v7885, 6
        %v7957 = vsel %vm456, %v7955, %v7956
        %v7958 = vrot.slane %v7886, 6
        %v7959 = vrot.slane %v7958, 4
        %v7960 = vrot.slane %v7887, 6
        %v7961 = vsel %vm456, %v7959, %v7960
        %v7962 = vrot.slane %v7960, 4
        %v7963 = vrot.slane %v7888, 6
        %v7964 = vsel %vm456, %v7962, %v7963
        %v7965 = vrot.slane %v7889, 6
        %v7966 = vrot.slane %v7965, 4
        %v7967 = vrot.slane %v7890, 6
        %v7968 = vsel %vm456, %v7966, %v7967
        %v7969 = vrot.slane %v7967, 4
        %v7970 = vrot.slane %v7891, 6
        %v7971 = vsel %vm456, %v7969, %v7970
        %s7972 = scalar_lea.vmem %s1, 1728
        %v7973 = vld [vmem:[%s7972] sm:$0xf]
        %v7974 = vld [vmem:[%s7972 + $0x4] sm:$0xf]
        %v7975 = vld [vmem:[%s7972 + $0x8] sm:$0xf]
        %v7976 = vld [vmem:[%s7972 + $0xc] sm:$0xf]
        %v7977 = vld [vmem:[%s7972 + $0x10] sm:$0xf]
        %v7978 = vld [vmem:[%s7972 + $0x14] sm:$0xf]
        %v7979 = vld [vmem:[%s7972 + $0x18] sm:$0xf]
        %v7980 = vld [vmem:[%s7972 + $0x1c] sm:$0xf]
        %v7981 = vld [vmem:[%s7972 + $0x20] sm:$0xf]
        %v7982 = vld [vmem:[%s7972 + $0x24] sm:$0xf]
        %v7983 = vld [vmem:[%s7972 + $0x28] sm:$0xf]
        %v7984 = vld [vmem:[%s7972 + $0x2c] sm:$0xf]
        %v7985 = vld [vmem:[%s7972 + $0x30] sm:$0xf]
        %v7986 = vld [vmem:[%s7972 + $0x34] sm:$0xf]
        %v7987 = vld [vmem:[%s7972 + $0x38] sm:$0xf]
        %v7988 = vld [vmem:[%s7972 + $0x3c] sm:$0xf]
        %v7989 = vunpack.c.l.b16 %v7919
        %v7990 = vunpack.c.l.b16 %v7922
        %v7991 = vunpack.c.l.b16 %v7926
        %v7992 = vunpack.c.l.b16 %v7929
        %v7993 = vunpack.c.l.b16 %v7933
        %v7994 = vunpack.c.l.b16 %v7936
        %v7995 = vunpack.c.l.b16 %v7940
        %v7996 = vunpack.c.l.b16 %v7943
        %v7997 = vunpack.c.l.b16 %v7947
        %v7998 = vunpack.c.l.b16 %v7950
        %v7999 = vunpack.c.l.b16 %v7954
        %v8000 = vunpack.c.l.b16 %v7957
        %v8001 = vunpack.c.l.b16 %v7961
        %v8002 = vunpack.c.l.b16 %v7964
        %v8003 = vunpack.c.l.b16 %v7968
        %v8004 = vunpack.c.l.b16 %v7971
        %v8005 = vpack.c.b16 %v7990, %v7989
        %v8006 = vpack.c.b16 %v7992, %v7991
        %v8007 = vpack.c.b16 %v7994, %v7993
        %v8008 = vpack.c.b16 %v7996, %v7995
        %v8009 = vpack.c.b16 %v7998, %v7997
        %v8010 = vpack.c.b16 %v8000, %v7999
        %v8011 = vpack.c.b16 %v8002, %v8001
        %v8012 = vpack.c.b16 %v8004, %v8003
        %v8037 = vunpack.c.l.b16 %v7973
        %v8038 = vunpack.c.l.b16 %v7974
        %v8039 = vunpack.c.l.b16 %v7975
        %v8040 = vunpack.c.l.b16 %v7976
        %v8041 = vunpack.c.l.b16 %v7977
        %v8042 = vunpack.c.l.b16 %v7978
        %v8043 = vunpack.c.l.b16 %v7979
        %v8044 = vunpack.c.l.b16 %v7980
        %v8045 = vunpack.c.l.b16 %v7981
        %v8046 = vunpack.c.l.b16 %v7982
        %v8047 = vunpack.c.l.b16 %v7983
        %v8048 = vunpack.c.l.b16 %v7984
        %v8049 = vunpack.c.l.b16 %v7985
        %v8050 = vunpack.c.l.b16 %v7986
        %v8051 = vunpack.c.l.b16 %v7987
        %v8052 = vunpack.c.l.b16 %v7988
        %v8053 = vpack.c.b16 %v8038, %v8037
        %v8054 = vpack.c.b16 %v8040, %v8039
        %v8055 = vpack.c.b16 %v8042, %v8041
        %v8056 = vpack.c.b16 %v8044, %v8043
        %v8057 = vpack.c.b16 %v8046, %v8045
        %v8058 = vpack.c.b16 %v8048, %v8047
        %v8059 = vpack.c.b16 %v8050, %v8049
        %v8060 = vpack.c.b16 %v8052, %v8051
        %8069 = vmatprep.subr.bf16.mxu0 0
        %8070 = vmatpush1.bf16.msra.mxu0 %v8053
        %8071 = vmatprep.subr.bf16.mxu0 0
        %8072 = vmatpush1.bf16.msra.mxu0 %v8054
        %8073 = vmatprep.subr.bf16.mxu0 0
        %8074 = vmatpush1.bf16.msra.mxu0 %v8055
        %8075 = vmatprep.subr.bf16.mxu0 0
        %8076 = vmatpush1.bf16.msra.mxu0 %v8056
        %8077 = vmatprep.subr.bf16.mxu0 0
        %8078 = vmatpush1.bf16.msra.mxu0 %v8057
        %8079 = vmatprep.subr.bf16.mxu0 0
        %8080 = vmatpush1.bf16.msra.mxu0 %v8058
        %8081 = vmatprep.subr.bf16.mxu0 0
        %8082 = vmatpush1.bf16.msra.mxu0 %v8059
        %8083 = vmatprep.subr.bf16.mxu0 0
        %8084 = vmatpush1.bf16.msra.mxu0 %v8060
        %8085 = vmatprep.subr.bf16.mxu0 0
        %8086 = vmatpush1.bf16.msra.mxu0 0
        %8087 = vmatprep.subr.bf16.mxu0 0
        %8088 = vmatpush1.bf16.msra.mxu0 0
        %8089 = vmatprep.subr.bf16.mxu0 0
        %8090 = vmatpush1.bf16.msra.mxu0 0
        %8091 = vmatprep.subr.bf16.mxu0 0
        %8092 = vmatpush1.bf16.msra.mxu0 0
        %8093 = vmatprep.subr.bf16.mxu0 0
        %8094 = vmatpush1.bf16.msra.mxu0 0
        %8095 = vmatprep.subr.bf16.mxu0 0
        %8096 = vmatpush1.bf16.msra.mxu0 0
        %8097 = vmatprep.subr.bf16.mxu0 0
        %8098 = vmatpush1.bf16.msra.mxu0 0
        %8099 = vmatprep.subr.bf16.mxu0 0
        %8100 = vmatpush1.bf16.msra.mxu0 0
        %8101 = vmatprep.mubr.bf16.mxu0 0
        %8102 = vmatmul.mubr.bf16.gmra.mrb[0].mxu0 %v8005
        %v8103 = vpop.f32.mrb[0].mxu0
        %v8104 = vadd.f32 0.0, %v8103
        %v8105 = vpop.f32.mrb[0].mxu0
        %v8106 = vpop.f32.mrb[0].mxu0
        %v8107 = vadd.f32 0.0, %v8106
        %v8108 = vpop.f32.mrb[0].mxu0
        %8109 = vmatprep.mubr.bf16.mxu0 0
        %8110 = vmatmul.mubr.bf16.gmra.mrb[0].mxu0 %v8006
        %v8111 = vpop.f32.mrb[0].mxu0
        %v8112 = vadd.f32 0.0, %v8111
        %v8113 = vpop.f32.mrb[0].mxu0
        %v8114 = vpop.f32.mrb[0].mxu0
        %v8115 = vadd.f32 0.0, %v8114
        %v8116 = vpop.f32.mrb[0].mxu0
        %8117 = vmatprep.mubr.bf16.mxu0 0
        %8118 = vmatmul.mubr.bf16.gmra.mrb[0].mxu0 %v8007
        %v8119 = vpop.f32.mrb[0].mxu0
        %v8120 = vadd.f32 0.0, %v8119
        %v8121 = vpop.f32.mrb[0].mxu0
        %v8122 = vpop.f32.mrb[0].mxu0
        %v8123 = vadd.f32 0.0, %v8122
        %v8124 = vpop.f32.mrb[0].mxu0
        %8125 = vmatprep.mubr.bf16.mxu0 0
        %8126 = vmatmul.mubr.bf16.gmra.mrb[0].mxu0 %v8008
        %v8127 = vpop.f32.mrb[0].mxu0
        %v8128 = vadd.f32 0.0, %v8127
        %v8129 = vpop.f32.mrb[0].mxu0
        %v8130 = vpop.f32.mrb[0].mxu0
        %v8131 = vadd.f32 0.0, %v8130
        %v8132 = vpop.f32.mrb[0].mxu0
        %8133 = vmatprep.mubr.bf16.mxu0 0
        %8134 = vmatmul.mubr.bf16.gmra.mrb[0].mxu0 %v8009
        %v8135 = vpop.f32.mrb[0].mxu0
        %v8136 = vadd.f32 0.0, %v8135
        %v8137 = vpop.f32.mrb[0].mxu0
        %v8138 = vpop.f32.mrb[0].mxu0
        %v8139 = vadd.f32 0.0, %v8138
        %v8140 = vpop.f32.mrb[0].mxu0
        %8141 = vmatprep.mubr.bf16.mxu0 0
        %8142 = vmatmul.mubr.bf16.gmra.mrb[0].mxu0 %v8010
        %v8143 = vpop.f32.mrb[0].mxu0
        %v8144 = vadd.f32 0.0, %v8143
        %v8145 = vpop.f32.mrb[0].mxu0
        %v8146 = vpop.f32.mrb[0].mxu0
        %v8147 = vadd.f32 0.0, %v8146
        %v8148 = vpop.f32.mrb[0].mxu0
        %8149 = vmatprep.mubr.bf16.mxu0 0
        %8150 = vmatmul.mubr.bf16.gmra.mrb[0].mxu0 %v8011
        %v8151 = vpop.f32.mrb[0].mxu0
        %v8152 = vadd.f32 0.0, %v8151
        %v8153 = vpop.f32.mrb[0].mxu0
        %v8154 = vpop.f32.mrb[0].mxu0
        %v8155 = vadd.f32 0.0, %v8154
        %v8156 = vpop.f32.mrb[0].mxu0
        %8157 = vmatprep.mubr.bf16.mxu0 0
        %8158 = vmatmul.mubr.bf16.gmra.mrb[0].mxu0 %v8012
        %v8159 = vpop.f32.mrb[0].mxu0
        %v8160 = vadd.f32 0.0, %v8159
        %v8161 = vpop.f32.mrb[0].mxu0
        %v8162 = vpop.f32.mrb[0].mxu0
        %v8163 = vadd.f32 0.0, %v8162
        %v8164 = vpop.f32.mrb[0].mxu0
        %8165 = vdwg.mxu0
        %v8166 = vadd.f32 %v7852, %v8104
        %v8167 = vadd.f32 %v7853, %v8107
        %v8168 = vadd.f32 %v7854, %v8112
        %v8169 = vadd.f32 %v7855, %v8115
        %v8170 = vadd.f32 %v7856, %v8120
        %v8171 = vadd.f32 %v7857, %v8123
        %v8172 = vadd.f32 %v7858, %v8128
        %v8173 = vadd.f32 %v7859, %v8131
        %v8174 = vadd.f32 %v7860, %v8136
        %v8175 = vadd.f32 %v7861, %v8139
        %v8176 = vadd.f32 %v7862, %v8144
        %v8177 = vadd.f32 %v7863, %v8147
        %v8178 = vadd.f32 %v7864, %v8152
        %v8179 = vadd.f32 %v7865, %v8155
        %v8180 = vadd.f32 %v7866, %v8160
        %v8181 = vadd.f32 %v7867, %v8163
        %v8182 = vld [vmem:[%s267] sm:$0x1]
        %v8183 = vld [vmem:[%s3] sm:$0xf]
        %v8184 = vld [vmem:[%s3 + $0x4] sm:$0xf]
        %v8185 = vld [vmem:[%s3 + $0x8] sm:$0xf]
        %v8186 = vld [vmem:[%s3 + $0xc] sm:$0xf]
        %v8187 = vld [vmem:[%s3 + $0x10] sm:$0xf]
        %v8188 = vld [vmem:[%s3 + $0x14] sm:$0xf]
        %v8189 = vld [vmem:[%s3 + $0x18] sm:$0xf]
        %v8190 = vld [vmem:[%s3 + $0x1c] sm:$0xf]
        %v8191 = vld [vmem:[%s3 + $0x20] sm:$0xf]
        %v8192 = vld [vmem:[%s3 + $0x24] sm:$0xf]
        %v8193 = vld [vmem:[%s3 + $0x28] sm:$0xf]
        %v8194 = vld [vmem:[%s3 + $0x2c] sm:$0xf]
        %v8195 = vld [vmem:[%s3 + $0x30] sm:$0xf]
        %v8196 = vld [vmem:[%s3 + $0x34] sm:$0xf]
        %v8197 = vld [vmem:[%s3 + $0x38] sm:$0xf]
        %v8198 = vld [vmem:[%s3 + $0x3c] sm:$0xf]
        %v8215 = vunpack.c.l.b16 %v8183
        %v8216 = vunpack.c.l.b16 %v8184
        %v8217 = vunpack.c.l.b16 %v8185
        %v8218 = vunpack.c.l.b16 %v8186
        %v8219 = vunpack.c.l.b16 %v8187
        %v8220 = vunpack.c.l.b16 %v8188
        %v8221 = vunpack.c.l.b16 %v8189
        %v8222 = vunpack.c.l.b16 %v8190
        %v8223 = vunpack.c.l.b16 %v8191
        %v8224 = vunpack.c.l.b16 %v8192
        %v8225 = vunpack.c.l.b16 %v8193
        %v8226 = vunpack.c.l.b16 %v8194
        %v8227 = vunpack.c.l.b16 %v8195
        %v8228 = vunpack.c.l.b16 %v8196
        %v8229 = vunpack.c.l.b16 %v8197
        %v8230 = vunpack.c.l.b16 %v8198
        %v8231 = vpack.c.b16 %v8216, %v8215
        %v8232 = vpack.c.b16 %v8218, %v8217
        %v8233 = vpack.c.b16 %v8220, %v8219
        %v8234 = vpack.c.b16 %v8222, %v8221
        %v8235 = vpack.c.b16 %v8224, %v8223
        %v8236 = vpack.c.b16 %v8226, %v8225
        %v8237 = vpack.c.b16 %v8228, %v8227
        %v8238 = vpack.c.b16 %v8230, %v8229
        %8247 = vmatprep.subr.bf16.mxu0 0
        %8248 = vmatpush1.bf16.msra.mxu0 %v8231
        %8249 = vmatprep.subr.bf16.mxu0 0
        %8250 = vmatpush1.bf16.msra.mxu0 %v8232
        %8251 = vmatprep.subr.bf16.mxu0 0
        %8252 = vmatpush1.bf16.msra.mxu0 %v8233
        %8253 = vmatprep.subr.bf16.mxu0 0
        %8254 = vmatpush1.bf16.msra.mxu0 %v8234
        %8255 = vmatprep.subr.bf16.mxu0 0
        %8256 = vmatpush1.bf16.msra.mxu0 %v8235
        %8257 = vmatprep.subr.bf16.mxu0 0
        %8258 = vmatpush1.bf16.msra.mxu0 %v8236
        %8259 = vmatprep.subr.bf16.mxu0 0
        %8260 = vmatpush1.bf16.msra.mxu0 %v8237
        %8261 = vmatprep.subr.bf16.mxu0 0
        %8262 = vmatpush1.bf16.msra.mxu0 %v8238
        %8263 = vmatprep.subr.bf16.mxu0 0
        %8264 = vmatpush1.bf16.msra.mxu0 0
        %8265 = vmatprep.subr.bf16.mxu0 0
        %8266 = vmatpush1.bf16.msra.mxu0 0
        %8267 = vmatprep.subr.bf16.mxu0 0
        %8268 = vmatpush1.bf16.msra.mxu0 0
        %8269 = vmatprep.subr.bf16.mxu0 0
        %8270 = vmatpush1.bf16.msra.mxu0 0
        %8271 = vmatprep.subr.bf16.mxu0 0
        %8272 = vmatpush1.bf16.msra.mxu0 0
        %8273 = vmatprep.subr.bf16.mxu0 0
        %8274 = vmatpush1.bf16.msra.mxu0 0
        %8275 = vmatprep.subr.bf16.mxu0 0
        %8276 = vmatpush1.bf16.msra.mxu0 0
        %8277 = vmatprep.subr.bf16.mxu0 0
        %8278 = vmatpush1.bf16.msra.mxu0 0
        %8279 = vmatprep.mubr.bf16.mxu0 0
        %8280 = vmatmul.mubr.bf16.gmra.mrb[0].mxu0 %v8182
        %v8281 = vpop.f32.mrb[0].mxu0
        %v8282 = vadd.f32 0.0, %v8281
        %v8283 = vpop.f32.mrb[0].mxu0
        %v8284 = vpop.f32.mrb[0].mxu0
        %v8285 = vpop.f32.mrb[0].mxu0
        %8286 = vdwg.mxu0
        %v8287 = vlaneseq
        %v8288 = vshrl.u32 %v8287, 7
        %v8289 = vsub.s32 0, %v8288
        %v8290 = vrot.slane %v8282, %v8289
        %v8291 = vadd.f32 %v8166, %v8290
        %v8292 = vadd.f32 %v8167, %v8290
        %v8293 = vadd.f32 %v8168, %v8290
        %v8294 = vadd.f32 %v8169, %v8290
        %v8295 = vadd.f32 %v8170, %v8290
        %v8296 = vadd.f32 %v8171, %v8290
        %v8297 = vadd.f32 %v8172, %v8290
        %v8298 = vadd.f32 %v8173, %v8290
        %v8299 = vadd.f32 %v8174, %v8290
        %v8300 = vadd.f32 %v8175, %v8290
        %v8301 = vadd.f32 %v8176, %v8290
        %v8302 = vadd.f32 %v8177, %v8290
        %v8303 = vadd.f32 %v8178, %v8290
        %v8304 = vadd.f32 %v8179, %v8290
        %v8305 = vadd.f32 %v8180, %v8290
        %v8306 = vadd.f32 %v8181, %v8290
        %8307 = vst [vmem:[%s252] sm:$0xff] %v8291
        %8308 = vst [vmem:[%s252 + $0x8] sm:$0xff] %v8292
        %8309 = vst [vmem:[%s252 + $0x10] sm:$0xff] %v8293
        %8310 = vst [vmem:[%s252 + $0x18] sm:$0xff] %v8294
        %8311 = vst [vmem:[%s252 + $0x20] sm:$0xff] %v8295
        %8312 = vst [vmem:[%s252 + $0x28] sm:$0xff] %v8296
        %8313 = vst [vmem:[%s252 + $0x30] sm:$0xff] %v8297
        %8314 = vst [vmem:[%s252 + $0x38] sm:$0xff] %v8298
        %8315 = vst [vmem:[%s252 + $0x40] sm:$0xff] %v8299
        %8316 = vst [vmem:[%s252 + $0x48] sm:$0xff] %v8300
        %8317 = vst [vmem:[%s252 + $0x50] sm:$0xff] %v8301
        %8318 = vst [vmem:[%s252 + $0x58] sm:$0xff] %v8302
        %8319 = vst [vmem:[%s252 + $0x60] sm:$0xff] %v8303
        %8320 = vst [vmem:[%s252 + $0x68] sm:$0xff] %v8304
        %8321 = vst [vmem:[%s252 + $0x70] sm:$0xff] %v8305
        %8322 = vst [vmem:[%s252 + $0x78] sm:$0xff] %v8306
        %v8323 = vadd.f32 %v8291, %v8292
        %v8324 = vadd.f32 %v8323, %v8293
        %v8325 = vadd.f32 %v8324, %v8294
        %v8326 = vadd.f32 %v8325, %v8295
        %v8327 = vadd.f32 %v8326, %v8296
        %v8328 = vadd.f32 %v8327, %v8297
        %v8329 = vadd.f32 %v8328, %v8298
        %v8330 = vadd.f32 %v8329, %v8299
        %v8331 = vadd.f32 %v8330, %v8300
        %v8332 = vadd.f32 %v8331, %v8301
        %v8333 = vadd.f32 %v8332, %v8302
        %v8334 = vadd.f32 %v8333, %v8303
        %v8335 = vadd.f32 %v8334, %v8304
        %v8336 = vadd.f32 %v8335, %v8305
        %v8337 = vadd.f32 %v8336, %v8306
        %v8338 = vrot.slane %v8337, 4
        %v8339 = vadd.f32 %v8337, %v8338
        %v8340 = vrot.slane %v8339, 2
        %v8341 = vadd.f32 %v8339, %v8340
        %v8342 = vrot.slane %v8341, 1
        %v8343 = vadd.f32 %v8341, %v8342
        %v8344 = vmul.f32 %v8291, %v8291
        %v8345 = vmul.f32 %v8292, %v8292
        %v8346 = vmul.f32 %v8293, %v8293
        %v8347 = vmul.f32 %v8294, %v8294
        %v8348 = vmul.f32 %v8295, %v8295
        %v8349 = vmul.f32 %v8296, %v8296
        %v8350 = vmul.f32 %v8297, %v8297
        %v8351 = vmul.f32 %v8298, %v8298
        %v8352 = vmul.f32 %v8299, %v8299
        %v8353 = vmul.f32 %v8300, %v8300
        %v8354 = vmul.f32 %v8301, %v8301
        %v8355 = vmul.f32 %v8302, %v8302
        %v8356 = vmul.f32 %v8303, %v8303
        %v8357 = vmul.f32 %v8304, %v8304
        %v8358 = vmul.f32 %v8305, %v8305
        %v8359 = vmul.f32 %v8306, %v8306
        %v8360 = vadd.f32 %v8344, %v8345
        %v8361 = vadd.f32 %v8360, %v8346
        %v8362 = vadd.f32 %v8361, %v8347
        %v8363 = vadd.f32 %v8362, %v8348
        %v8364 = vadd.f32 %v8363, %v8349
        %v8365 = vadd.f32 %v8364, %v8350
        %v8366 = vadd.f32 %v8365, %v8351
        %v8367 = vadd.f32 %v8366, %v8352
        %v8368 = vadd.f32 %v8367, %v8353
        %v8369 = vadd.f32 %v8368, %v8354
        %v8370 = vadd.f32 %v8369, %v8355
        %v8371 = vadd.f32 %v8370, %v8356
        %v8372 = vadd.f32 %v8371, %v8357
        %v8373 = vadd.f32 %v8372, %v8358
        %v8374 = vadd.f32 %v8373, %v8359
        %v8375 = vrot.slane %v8374, 4
        %v8376 = vadd.f32 %v8374, %v8375
        %v8377 = vrot.slane %v8376, 2
        %v8378 = vadd.f32 %v8376, %v8377
        %v8379 = vrot.slane %v8378, 1
        %v8380 = vadd.f32 %v8378, %v8379
        %vm8381 = vcmask 1040384
        %v8382 = vsel %vm8381, %v8343, %v8380
        %8383 = vst [vmem:[%s259] sm:$0x3] %v8382
        %s8384 = sand.u32 %s141, 1
        %s8385 = scalar_lea.sflag [#allocation3], %s8384
        %s8386 = sand.u32 %s141, 1
        %s8387 = smul.addr %s8386, 128
        %s8388 = scalar_lea.vmem [#allocation2], %s8387
        %s8389 = sand.u32 %s171, 1
        %s8390 = scalar_lea.sflag [#allocation5], %s8389
        %s8391 = sand.u32 %s171, 1
        %s8392 = smul.addr %s8391, 2
        %s8393 = scalar_lea.vmem [#allocation4], %s8392
        // Predicated region
        $region37: #{tpu_custom_call.1} parent=35 // pred_check
          %p8394 = pneg %p151
        $region38: #{tpu_custom_call.1} parent=35 // pred_check_branch
          %8396 = sbr.rel (%p8394) target = $region40
        $region39: #{tpu_custom_call.1} parent=35 // pred_region
          %s8397 = smul.u32 %s27, 2
          %s8398 = sadd.s32 %s8397, %s28
          %s8399 = smul.u32 16, %s8398
          %s8401 = ssub.s32 2048, 2048
          %8402 = vsyncadd %s8385, %s8401
          %s8403 = smul.addr %s8399, 128
          %s8404 = scalar_lea.hbm %s4, %s8403
          %s8405 = sshll.u32 %s8388, 4
          %s8406 = int_to_ptr.vmem [resolvable:$true] %s8405
          %8411 = dma.vmem_to_hbm [thread:$0]  %s8406, 2048, %s8404, %s8385, 128, 128, 8
        $region40: #{tpu_custom_call.1} parent=35 // pred_fallthru
          _
        // Predicated region
        $region41: #{tpu_custom_call.1} parent=35 // pred_check
          %p8412 = pneg %p181
        $region42: #{tpu_custom_call.1} parent=35 // pred_check_branch
          %8414 = sbr.rel (%p8412) target = $region44
        $region43: #{tpu_custom_call.1} parent=35 // pred_region
          %s8415 = smul.u32 %s27, 2
          %s8416 = sadd.s32 %s8415, %s28
          %s8418 = ssub.s32 32, 32
          %8419 = vsyncadd %s8390, %s8418
          %s8420 = smul.addr %s8416, 32
          %s8421 = scalar_lea.hbm %s5, %s8420
          %s8423 = sshll.u32 %s8393, 4
          %s8424 = int_to_ptr.vmem [resolvable:$true] %s8423
          %8426 = dma.vmem_to_hbm [thread:$0]  %s8424, 32, %s8421, %s8390
        $region44: #{tpu_custom_call.1} parent=35 // pred_fallthru
          _
      $region36: #{tpu_custom_call.1} parent=5 // pred_fallthru
        _
      %p8427 = scmp.le.s32.totalorder 2, %s18
      // Predicated region
      $region45: #{tpu_custom_call.1} parent=5 // pred_check
        %p8428 = pneg %p8427
      $region46: #{tpu_custom_call.1} parent=5 // pred_check_branch
        %8430 = sbr.rel (%p8428) target = $region48
      $region47: #{tpu_custom_call.1} parent=5 // pred_region
        %s8431 = ssub.s32 %s18, 2
        // Predicated region
        $region49: #{tpu_custom_call.1} parent=47 // pred_check
          %p8432 = pneg %p157
        $region50: #{tpu_custom_call.1} parent=47 // pred_check_branch
          %8434 = sbr.rel (%p8432) target = $region52
        $region51: #{tpu_custom_call.1} parent=47 // pred_region
          %s8435 = sand.u32 %s142, 1
          %s8436 = scalar_lea.sflag [#allocation3], %s8435
          %s8437 = sand.u32 %s142, 1
          %s8438 = smul.addr %s8437, 128
          %s8439 = scalar_lea.vmem [#allocation2], %s8438
          %8440 = dma.done %s8436, 2048
        $region52: #{tpu_custom_call.1} parent=47 // pred_fallthru
          _
        // Predicated region
        $region53: #{tpu_custom_call.1} parent=47 // pred_check
          %p8441 = pneg %p187
        $region54: #{tpu_custom_call.1} parent=47 // pred_check_branch
          %8443 = sbr.rel (%p8441) target = $region56
        $region55: #{tpu_custom_call.1} parent=47 // pred_region
          %s8444 = sand.u32 %s172, 1
          %s8445 = scalar_lea.sflag [#allocation5], %s8444
          %s8446 = sand.u32 %s172, 1
          %s8447 = smul.addr %s8446, 2
          %s8448 = scalar_lea.vmem [#allocation4], %s8447
          %8449 = dma.done %s8445, 32
        $region56: #{tpu_custom_call.1} parent=47 // pred_fallthru
          _
      $region48: #{tpu_custom_call.1} parent=5 // pred_fallthru
        _
    $region6: #{tpu_custom_call.1} parent=1 // loop_footer
      %s22 = sadd.s32 1, %s18
    $region7: #{tpu_custom_call.1} parent=1 // loop_footer_branch
      %17 = sbr.rel target = $region3
    $region8: #{tpu_custom_call.1} parent=1 // loop_exit
      _
    %8450 = vsyncpa [#allocation3], 1
    %s8451 = scalar_lea.sflag [#allocation3], 1
    %8452 = vsyncpa %s8451, 1
    %8453 = vsyncpa [#allocation5], 1
    %s8454 = scalar_lea.sflag [#allocation5], 1
    %8455 = vsyncpa %s8454, 1

</llo_original>
